<compile_context>
chip_gen: v5e
topology: v5e:2x2
jax: 0.10.0
libtpu: 0.0.40
codegen_flags: <defaults>
</compile_context>

<pallas_src>
import numpy as np

import jax
import jax.numpy as jnp
from jax import lax
from jax.experimental import pallas as pl
from jax.experimental.pallas import tpu as pltpu

# Make the pure-JAX reference accumulate in f32 so the 2e-3 tolerance is meaningful.
jax.config.update("jax_default_matmul_precision", "highest")

# ------------------------- packed parameter layout -------------------------- #
_LANES   = 192                    # common lane width of the packed weight buffer
_W1_OFF  = 0                      # conv1 band matrix   (160, 168)
_W2_OFF  = _W1_OFF + 160          # conv2 band matrix   (252, 192), padded to 256 rows
_FC1_OFF = _W2_OFF + 256          # fc1 weight          (576, 120)
_FC2_OFF = _FC1_OFF + 576         # fc2 weight          (120,  84)
_FC3_OFF = _FC2_OFF + 120         # fc3 weight          ( 84,  10), padded to 88 rows
_WROWS   = _FC3_OFF + 88          # = 1200 rows total (multiple of 8)


# ------------------------------ fused kernel -------------------------------- #

def _lenet_kernel(x_ref, w_ref, b_ref, out_ref):
    f32 = jnp.float32
    N = x_ref.shape[0]

    def dot(a, b):
        return jnp.dot(a, b, preferred_element_type=f32)

    # Static, 8-row-aligned views into the two packed parameter buffers.
    wband1 = w_ref[_W1_OFF:_W1_OFF + 160, 0:168]
    wband2 = w_ref[_W2_OFF:_W2_OFF + 252, 0:192]
    fc1w   = w_ref[_FC1_OFF:_FC1_OFF + 576, 0:120]
    fc2w   = w_ref[_FC2_OFF:_FC2_OFF + 120, 0:84]
    fc3w   = w_ref[_FC3_OFF:_FC3_OFF + 84, 0:10]
    b1   = b_ref[0:1, 0:168]
    b2   = b_ref[1:2, 0:192]
    fc1b = b_ref[2:3, 0:120]
    fc2b = b_ref[3:4, 0:84]
    fc3b = b_ref[4:5, 0:10]

    x = x_ref[...]                                   # (N, 32, 32)

    # 0/1 "even picker" matrices built in-kernel (nothing DMA'd for pooling).
    def pick_even_rows(p, a):                        # (p, a): 1 where col == 2*row
        r = lax.broadcasted_iota(jnp.int32, (p, a), 0)
        c = lax.broadcasted_iota(jnp.int32, (p, a), 1)
        return (c == 2 * r).astype(f32)

    def pick_even_lanes(l, m):                       # (l, m): 1 where row == 2*col
        r = lax.broadcasted_iota(jnp.int32, (l, m), 0)
        c = lax.broadcasted_iota(jnp.int32, (l, m), 1)
        return (r == 2 * c).astype(f32)

    def pool2x2(y, out_rows, out_lanes):
        # y: (rows = N*H, lanes = C*H) channel-packed conv activation, H even.
        # 2x2/stride-2 max pool = adjacent-lane max + adjacent-row max on the VPU,
        # then "keep even rows" / "keep even lanes" via two batched 0/1 matmuls.
        R, L = y.shape
        wl = jnp.maximum(y[:, :L - 1], y[:, 1:])                 # max over lane pairs
        wr = jnp.maximum(wl[:R - 1, :], wl[1:, :])               # max over row pairs
        t = dot(pick_even_rows(out_rows, R - 1), wr)             # rows 0,2,4,...
        return dot(t, pick_even_lanes(L - 1, out_lanes))         # lanes 0,2,4,...

    # ---- conv1 (1->6, 5x5, valid) + ReLU + 2x2 pool -------------------------
    # Banded im2col: 5 row-shifted slabs concatenated along lanes, one GEMM.
    xcat1 = jnp.concatenate(
        [jnp.concatenate([x[n, di:di + 28, :] for n in range(N)], axis=0)
         for di in range(5)], axis=-1)                           # (N*28, 160)
    y1 = jnp.maximum(dot(xcat1, wband1) + b1, 0.0)               # (N*28, 168)
    p1 = pool2x2(y1, N * 14, 6 * 14)                             # (N*14, 84)

    # ---- conv2 (6->16, 3x3, valid) + ReLU + 2x2 pool -------------------------
    xcat2 = jnp.concatenate(
        [jnp.concatenate([p1[n * 14 + di:n * 14 + di + 12, :] for n in range(N)],
                         axis=0)
         for di in range(3)], axis=-1)                           # (N*12, 252)
    y2 = jnp.maximum(dot(xcat2, wband2) + b2, 0.0)               # (N*12, 192)
    p2 = pool2x2(y2, N * 6, 16 * 6)                              # (N*6, 96)

    # ---- flatten (row, channel, col) + fc1/fc2/fc3 ---------------------------
    # fc1w was permuted host-side so this lane-concat order equals PyTorch's
    # NCHW x.view(-1, 576); fc1 is a single (N,576)@(576,120) GEMM.
    feat = jnp.concatenate(
        [jnp.concatenate([p2[n * 6 + i:n * 6 + i + 1, :] for i in range(6)], axis=-1)
         for n in range(N)], axis=0)                             # (N, 576)
    h1 = jnp.maximum(dot(feat, fc1w) + fc1b, 0.0)                # (N, 120)
    h2 = jnp.maximum(dot(h1, fc2w) + fc2b, 0.0)                  # (N, 84)
    out_ref[...] = (dot(h2, fc3w) + fc3b).astype(out_ref.dtype)  # (N, 10)


# ------------------------------ host wrapper --------------------------------- #

def _prep_inputs(params):
    """Re-encode the PyTorch-shaped parameters into two packed buffers (exact, f32)."""
    f32 = jnp.float32
    w1 = params["conv1_w"].astype(f32)[:, 0]                     # (6, 5, 5)
    b1 = params["conv1_b"].astype(f32)
    w2 = params["conv2_w"].astype(f32)                           # (16, 6, 3, 3)
    b2 = params["conv2_b"].astype(f32)

    # conv1 band matrix: Wband1[di*32 + jp, co*28 + c] = w1[co, di, jp - c], 0<=jp-c<=4.
    co_i, di_i, dj_i, c_i = np.indices((6, 5, 5, 28))
    rows = (di_i * 32 + c_i + dj_i).reshape(-1)
    cols = (co_i * 28 + c_i).reshape(-1)
    vals = w1[co_i.reshape(-1), di_i.reshape(-1), dj_i.reshape(-1)]
    wband1 = jnp.zeros((160, 168), f32).at[rows, cols].set(vals)

    # conv2 band matrix on the channel-packed pooled map (lane = ci*14 + col):
    # Wband2[di*84 + ci*14 + jp, co*12 + c] = w2[co, ci, di, jp - c], 0<=jp-c<=2.
    co_i, ci_i, di_i, dj_i, c_i = np.indices((16, 6, 3, 3, 12))
    rows = (di_i * 84 + ci_i * 14 + c_i + dj_i).reshape(-1)
    cols = (co_i * 12 + c_i).reshape(-1)
    vals = w2[co_i.reshape(-1), ci_i.reshape(-1), di_i.reshape(-1), dj_i.reshape(-1)]
    wband2 = jnp.zeros((252, 192), f32).at[rows, cols].set(vals)

    # fc1 weight permuted to (row i, channel co, col j, out) so the kernel's flatten
    # order reproduces PyTorch's NCHW x.view(-1, 16*6*6) exactly.
    fc1w = params["fc1_w"].astype(f32).reshape(120, 16, 6, 6)    # (o, co, i, j)
    fc1w = jnp.transpose(fc1w, (2, 1, 3, 0)).reshape(576, 120)   # [(i,co,j), o]
    fc2w = params["fc2_w"].T.astype(f32)                         # (120, 84)
    fc3w = params["fc3_w"].T.astype(f32)                         # (84, 10)

    # Pack all matrices into ONE lane-dense (1200, 192) buffer -> 3 input DMAs total.
    def blockpad(a, padded_rows):
        return jnp.pad(a, ((0, padded_rows - a.shape[0]), (0, _LANES - a.shape[1])))
    wpack = jnp.concatenate([blockpad(wband1, 160), blockpad(wband2, 256),
                             blockpad(fc1w, 576), blockpad(fc2w, 120),
                             blockpad(fc3w, 88)], axis=0)        # (1200, 192)
    assert wpack.shape == (_WROWS, _LANES)

    def rowpad(v):
        return jnp.pad(v, (0, _LANES - v.shape[0]))[None, :]
    bpack = jnp.concatenate([rowpad(jnp.repeat(b1, 28)),         # conv1 bias (packed)
                             rowpad(jnp.repeat(b2, 12)),         # conv2 bias (packed)
                             rowpad(params["fc1_b"].astype(f32)),
                             rowpad(params["fc2_b"].astype(f32)),
                             rowpad(params["fc3_b"].astype(f32)),
                             jnp.zeros((3, _LANES), f32)], axis=0)   # (8, 192)
    return wpack, bpack


@jax.jit
def lenet_forward(x_nchw, params):
    N, C, H, W = x_nchw.shape
    assert (C, H, W) == (1, 32, 32), "LeNet geometry (fc1 = 16*6*6) implies 1x32x32 inputs"
    x = x_nchw.reshape(N, 32, 32).astype(jnp.float32)            # Cin == 1
    wpack, bpack = _prep_inputs(params)

    vmem = lambda: pl.BlockSpec(memory_space=pltpu.MemorySpace.VMEM)
    # Un-gridded single invocation: at batch 2 the kernel is launch/DMA bound and uses
    # ~1 MiB of VMEM.  TODO(synk): for large batch, add a batch grid axis with
    # dimension_semantics=("parallel",) so v7x's two TensorCores split the work.
    return pl.pallas_call(
        _lenet_kernel,
        out_shape=jax.ShapeDtypeStruct((N, 10), jnp.float32),
        in_specs=[vmem(), vmem(), vmem()],
        out_specs=vmem(),
    )(x, wpack, bpack)


# --------------------------- reference & params ------------------------------ #

def lenet_reference(x_nchw, params):
    """Pure-JAX reference matching the PyTorch module."""
    f32 = jnp.float32
    y = x_nchw.astype(f32)
    y = lax.conv_general_dilated(y, params["conv1_w"], (1, 1), "VALID",
                                 dimension_numbers=("NCHW", "OIHW", "NCHW"))
    y = jax.nn.relu(y + params["conv1_b"][None, :, None, None])
    y = lax.reduce_window(y, -jnp.inf, lax.max, (1, 1, 2, 2), (1, 1, 2, 2), "VALID")
    y = lax.conv_general_dilated(y, params["conv2_w"], (1, 1), "VALID",
                                 dimension_numbers=("NCHW", "OIHW", "NCHW"))
    y = jax.nn.relu(y + params["conv2_b"][None, :, None, None])
    y = lax.reduce_window(y, -jnp.inf, lax.max, (1, 1, 2, 2), (1, 1, 2, 2), "VALID")
    y = y.reshape(y.shape[0], -1)                        # PyTorch x.view(-1, 16*6*6)
    y = jax.nn.relu(y @ params["fc1_w"].T + params["fc1_b"])
    y = jax.nn.relu(y @ params["fc2_w"].T + params["fc2_b"])
    return y @ params["fc3_w"].T + params["fc3_b"]


def init_params(key):
    """Deterministic synthetic parameters with the shapes from LeNet.__init__."""
    ks = jax.random.split(key, 10)

    def w(k, shape, fan_in):
        return (jax.random.normal(k, shape, jnp.float32) / jnp.sqrt(fan_in)).astype(jnp.float32)

    return {
        "conv1_w": w(ks[0], (6, 1, 5, 5), 1 * 5 * 5),
        "conv1_b": w(ks[1], (6,), 1 * 5 * 5),
        "conv2_w": w(ks[2], (16, 6, 3, 3), 6 * 3 * 3),
        "conv2_b": w(ks[3], (16,), 6 * 3 * 3),
        "fc1_w":   w(ks[4], (120, 16 * 6 * 6), 16 * 6 * 6),
        "fc1_b":   w(ks[5], (120,), 16 * 6 * 6),
        "fc2_w":   w(ks[6], (84, 120), 120),
        "fc2_b":   w(ks[7], (84,), 120),
        "fc3_w":   w(ks[8], (10, 84), 84),
        "fc3_b":   w(ks[9], (10,), 84),
    }


if __name__ == "__main__":
    key = jax.random.PRNGKey(0)
    k_x, k_p = jax.random.split(key)
    # LeNet's geometry (fc1 = 16*6*6) implies 1x32x32 inputs; small batch of 2.
    x = jax.random.uniform(k_x, (2, 1, 32, 32), jnp.float32)
    params = init_params(k_p)

    out = jax.block_until_ready(lenet_forward(x, params))
    assert out.shape == (2, 10)

    ref = jax.block_until_ready(jax.jit(lenet_reference)(x, params))
    max_err = float(jnp.max(jnp.abs(out - ref)))
    assert max_err < 2e-3, f"kernel vs reference mismatch: max abs err = {max_err}"

    print("KERNEL_OK")
</pallas_src>

<mosaic_0001>
module attributes {stable_mosaic.version = 11 : i64} {
  func.func @_lenet_kernel(%arg0: memref<2x32x32xf32, #tpu.memory_space<vmem>>, %arg1: memref<1200x192xf32, #tpu.memory_space<vmem>>, %arg2: memref<8x192xf32, #tpu.memory_space<vmem>>, %arg3: memref<2x10xf32, #tpu.memory_space<vmem>>) attributes {dimension_semantics = [], scalar_prefetch = 0 : i64, scratch_operands = 0 : i64, tpu.core_type = #tpu.core_type<tc>} {
    %c0 = arith.constant 0 : index
    %c0_0 = arith.constant 0 : index
    %0 = vector.load %arg1[%c0, %c0_0] : memref<1200x192xf32, #tpu.memory_space<vmem>>, vector<160x168xf32>
    %c160 = arith.constant 160 : index
    %c0_1 = arith.constant 0 : index
    %1 = vector.load %arg1[%c160, %c0_1] : memref<1200x192xf32, #tpu.memory_space<vmem>>, vector<252x192xf32>
    %c416 = arith.constant 416 : index
    %c0_2 = arith.constant 0 : index
    %2 = vector.load %arg1[%c416, %c0_2] : memref<1200x192xf32, #tpu.memory_space<vmem>>, vector<576x120xf32>
    %c992 = arith.constant 992 : index
    %c0_3 = arith.constant 0 : index
    %3 = vector.load %arg1[%c992, %c0_3] : memref<1200x192xf32, #tpu.memory_space<vmem>>, vector<120x84xf32>
    %c1112 = arith.constant 1112 : index
    %c0_4 = arith.constant 0 : index
    %4 = vector.load %arg1[%c1112, %c0_4] : memref<1200x192xf32, #tpu.memory_space<vmem>>, vector<84x10xf32>
    %c0_5 = arith.constant 0 : index
    %c0_6 = arith.constant 0 : index
    %5 = vector.load %arg2[%c0_5, %c0_6] : memref<8x192xf32, #tpu.memory_space<vmem>>, vector<1x168xf32>
    %c1 = arith.constant 1 : index
    %c0_7 = arith.constant 0 : index
    %6 = vector.load %arg2[%c1, %c0_7] : memref<8x192xf32, #tpu.memory_space<vmem>>, vector<1x192xf32>
    %c2 = arith.constant 2 : index
    %c0_8 = arith.constant 0 : index
    %7 = vector.load %arg2[%c2, %c0_8] : memref<8x192xf32, #tpu.memory_space<vmem>>, vector<1x120xf32>
    %c3 = arith.constant 3 : index
    %c0_9 = arith.constant 0 : index
    %8 = vector.load %arg2[%c3, %c0_9] : memref<8x192xf32, #tpu.memory_space<vmem>>, vector<1x84xf32>
    %c4 = arith.constant 4 : index
    %c0_10 = arith.constant 0 : index
    %9 = vector.load %arg2[%c4, %c0_10] : memref<8x192xf32, #tpu.memory_space<vmem>>, vector<1x10xf32>
    %c0_11 = arith.constant 0 : index
    %c0_12 = arith.constant 0 : index
    %c0_13 = arith.constant 0 : index
    %10 = vector.load %arg0[%c0_11, %c0_12, %c0_13] : memref<2x32x32xf32, #tpu.memory_space<vmem>>, vector<2x32x32xf32>
    %11 = vector.extract_strided_slice %10 {offsets = [0, 0, 0], sizes = [1, 28, 32], strides = [1, 1, 1]} : vector<2x32x32xf32> to vector<1x28x32xf32>
    %12 = vector.shape_cast %11 : vector<1x28x32xf32> to vector<28x32xf32>
    %13 = vector.extract_strided_slice %10 {offsets = [1, 0, 0], sizes = [1, 28, 32], strides = [1, 1, 1]} : vector<2x32x32xf32> to vector<1x28x32xf32>
    %14 = vector.shape_cast %13 : vector<1x28x32xf32> to vector<28x32xf32>
    %15 = tpu.concatenate %12, %14 in 0 : vector<28x32xf32>, vector<28x32xf32> -> vector<56x32xf32>
    %16 = vector.extract_strided_slice %10 {offsets = [0, 1, 0], sizes = [1, 28, 32], strides = [1, 1, 1]} : vector<2x32x32xf32> to vector<1x28x32xf32>
    %17 = vector.shape_cast %16 : vector<1x28x32xf32> to vector<28x32xf32>
    %18 = vector.extract_strided_slice %10 {offsets = [1, 1, 0], sizes = [1, 28, 32], strides = [1, 1, 1]} : vector<2x32x32xf32> to vector<1x28x32xf32>
    %19 = vector.shape_cast %18 : vector<1x28x32xf32> to vector<28x32xf32>
    %20 = tpu.concatenate %17, %19 in 0 : vector<28x32xf32>, vector<28x32xf32> -> vector<56x32xf32>
    %21 = vector.extract_strided_slice %10 {offsets = [0, 2, 0], sizes = [1, 28, 32], strides = [1, 1, 1]} : vector<2x32x32xf32> to vector<1x28x32xf32>
    %22 = vector.shape_cast %21 : vector<1x28x32xf32> to vector<28x32xf32>
    %23 = vector.extract_strided_slice %10 {offsets = [1, 2, 0], sizes = [1, 28, 32], strides = [1, 1, 1]} : vector<2x32x32xf32> to vector<1x28x32xf32>
    %24 = vector.shape_cast %23 : vector<1x28x32xf32> to vector<28x32xf32>
    %25 = tpu.concatenate %22, %24 in 0 : vector<28x32xf32>, vector<28x32xf32> -> vector<56x32xf32>
    %26 = vector.extract_strided_slice %10 {offsets = [0, 3, 0], sizes = [1, 28, 32], strides = [1, 1, 1]} : vector<2x32x32xf32> to vector<1x28x32xf32>
    %27 = vector.shape_cast %26 : vector<1x28x32xf32> to vector<28x32xf32>
    %28 = vector.extract_strided_slice %10 {offsets = [1, 3, 0], sizes = [1, 28, 32], strides = [1, 1, 1]} : vector<2x32x32xf32> to vector<1x28x32xf32>
    %29 = vector.shape_cast %28 : vector<1x28x32xf32> to vector<28x32xf32>
    %30 = tpu.concatenate %27, %29 in 0 : vector<28x32xf32>, vector<28x32xf32> -> vector<56x32xf32>
    %31 = vector.extract_strided_slice %10 {offsets = [0, 4, 0], sizes = [1, 28, 32], strides = [1, 1, 1]} : vector<2x32x32xf32> to vector<1x28x32xf32>
    %32 = vector.shape_cast %31 : vector<1x28x32xf32> to vector<28x32xf32>
    %33 = vector.extract_strided_slice %10 {offsets = [1, 4, 0], sizes = [1, 28, 32], strides = [1, 1, 1]} : vector<2x32x32xf32> to vector<1x28x32xf32>
    %34 = vector.shape_cast %33 : vector<1x28x32xf32> to vector<28x32xf32>
    %35 = tpu.concatenate %32, %34 in 0 : vector<28x32xf32>, vector<28x32xf32> -> vector<56x32xf32>
    %36 = tpu.concatenate %15, %20, %25, %30, %35 in 1 : vector<56x32xf32>, vector<56x32xf32>, vector<56x32xf32>, vector<56x32xf32>, vector<56x32xf32> -> vector<56x160xf32>
    %cst = arith.constant dense<0.000000e+00> : vector<56x168xf32>
    %37 = tpu.matmul %36, %0, %cst {dimension_numbers = #tpu.dot_dimension_numbers<[1], [0], [0], [1], [0, 0, 1, 1], [], []>, precision = #tpu.contract_precision<fp32>} : vector<56x160xf32>, vector<160x168xf32>, vector<56x168xf32> -> vector<56x168xf32>
    %38 = vector.broadcast %5 : vector<1x168xf32> to vector<56x168xf32>
    %39 = arith.addf %37, %38 : vector<56x168xf32>
    %cst_14 = arith.constant 0.000000e+00 : f32
    %40 = vector.broadcast %cst_14 : f32 to vector<56x168xf32>
    %41 = arith.maximumf %39, %40 : vector<56x168xf32>
    %42 = vector.extract_strided_slice %41 {offsets = [0, 0], sizes = [56, 167], strides = [1, 1]} : vector<56x168xf32> to vector<56x167xf32>
    %43 = vector.extract_strided_slice %41 {offsets = [0, 1], sizes = [56, 167], strides = [1, 1]} : vector<56x168xf32> to vector<56x167xf32>
    %44 = arith.maximumf %42, %43 : vector<56x167xf32>
    %45 = vector.extract_strided_slice %44 {offsets = [0, 0], sizes = [55, 167], strides = [1, 1]} : vector<56x167xf32> to vector<55x167xf32>
    %46 = vector.extract_strided_slice %44 {offsets = [1, 0], sizes = [55, 167], strides = [1, 1]} : vector<56x167xf32> to vector<55x167xf32>
    %47 = arith.maximumf %45, %46 : vector<55x167xf32>
    %48 = tpu.iota {dimensions = array<i32: 0>} : vector<28x55xi32>
    %49 = tpu.iota {dimensions = array<i32: 1>} : vector<28x55xi32>
    %c2_i32 = arith.constant 2 : i32
    %50 = vector.broadcast %c2_i32 : i32 to vector<28x55xi32>
    %51 = arith.muli %50, %48 : vector<28x55xi32>
    %52 = arith.cmpi eq, %49, %51 : vector<28x55xi32>
    %53 = arith.extui %52 : vector<28x55xi1> to vector<28x55xi32>
    %54 = arith.sitofp %53 : vector<28x55xi32> to vector<28x55xf32>
    %cst_15 = arith.constant dense<0.000000e+00> : vector<28x167xf32>
    %55 = tpu.matmul %54, %47, %cst_15 {dimension_numbers = #tpu.dot_dimension_numbers<[1], [0], [0], [1], [0, 0, 1, 1], [], []>, precision = #tpu.contract_precision<fp32>} : vector<28x55xf32>, vector<55x167xf32>, vector<28x167xf32> -> vector<28x167xf32>
    %56 = tpu.iota {dimensions = array<i32: 0>} : vector<167x84xi32>
    %57 = tpu.iota {dimensions = array<i32: 1>} : vector<167x84xi32>
    %c2_i32_16 = arith.constant 2 : i32
    %58 = vector.broadcast %c2_i32_16 : i32 to vector<167x84xi32>
    %59 = arith.muli %58, %57 : vector<167x84xi32>
    %60 = arith.cmpi eq, %56, %59 : vector<167x84xi32>
    %61 = arith.extui %60 : vector<167x84xi1> to vector<167x84xi32>
    %62 = arith.sitofp %61 : vector<167x84xi32> to vector<167x84xf32>
    %cst_17 = arith.constant dense<0.000000e+00> : vector<28x84xf32>
    %63 = tpu.matmul %55, %62, %cst_17 {dimension_numbers = #tpu.dot_dimension_numbers<[1], [0], [0], [1], [0, 0, 1, 1], [], []>, precision = #tpu.contract_precision<fp32>} : vector<28x167xf32>, vector<167x84xf32>, vector<28x84xf32> -> vector<28x84xf32>
    %64 = vector.extract_strided_slice %63 {offsets = [0, 0], sizes = [12, 84], strides = [1, 1]} : vector<28x84xf32> to vector<12x84xf32>
    %65 = vector.extract_strided_slice %63 {offsets = [14, 0], sizes = [12, 84], strides = [1, 1]} : vector<28x84xf32> to vector<12x84xf32>
    %66 = tpu.concatenate %64, %65 in 0 : vector<12x84xf32>, vector<12x84xf32> -> vector<24x84xf32>
    %67 = vector.extract_strided_slice %63 {offsets = [1, 0], sizes = [12, 84], strides = [1, 1]} : vector<28x84xf32> to vector<12x84xf32>
    %68 = vector.extract_strided_slice %63 {offsets = [15, 0], sizes = [12, 84], strides = [1, 1]} : vector<28x84xf32> to vector<12x84xf32>
    %69 = tpu.concatenate %67, %68 in 0 : vector<12x84xf32>, vector<12x84xf32> -> vector<24x84xf32>
    %70 = vector.extract_strided_slice %63 {offsets = [2, 0], sizes = [12, 84], strides = [1, 1]} : vector<28x84xf32> to vector<12x84xf32>
    %71 = vector.extract_strided_slice %63 {offsets = [16, 0], sizes = [12, 84], strides = [1, 1]} : vector<28x84xf32> to vector<12x84xf32>
    %72 = tpu.concatenate %70, %71 in 0 : vector<12x84xf32>, vector<12x84xf32> -> vector<24x84xf32>
    %73 = tpu.concatenate %66, %69, %72 in 1 : vector<24x84xf32>, vector<24x84xf32>, vector<24x84xf32> -> vector<24x252xf32>
    %cst_18 = arith.constant dense<0.000000e+00> : vector<24x192xf32>
    %74 = tpu.matmul %73, %1, %cst_18 {dimension_numbers = #tpu.dot_dimension_numbers<[1], [0], [0], [1], [0, 0, 1, 1], [], []>, precision = #tpu.contract_precision<fp32>} : vector<24x252xf32>, vector<252x192xf32>, vector<24x192xf32> -> vector<24x192xf32>
    %75 = vector.broadcast %6 : vector<1x192xf32> to vector<24x192xf32>
    %76 = arith.addf %74, %75 : vector<24x192xf32>
    %cst_19 = arith.constant 0.000000e+00 : f32
    %77 = vector.broadcast %cst_19 : f32 to vector<24x192xf32>
    %78 = arith.maximumf %76, %77 : vector<24x192xf32>
    %79 = vector.extract_strided_slice %78 {offsets = [0, 0], sizes = [24, 191], strides = [1, 1]} : vector<24x192xf32> to vector<24x191xf32>
    %80 = vector.extract_strided_slice %78 {offsets = [0, 1], sizes = [24, 191], strides = [1, 1]} : vector<24x192xf32> to vector<24x191xf32>
    %81 = arith.maximumf %79, %80 : vector<24x191xf32>
    %82 = vector.extract_strided_slice %81 {offsets = [0, 0], sizes = [23, 191], strides = [1, 1]} : vector<24x191xf32> to vector<23x191xf32>
    %83 = vector.extract_strided_slice %81 {offsets = [1, 0], sizes = [23, 191], strides = [1, 1]} : vector<24x191xf32> to vector<23x191xf32>
    %84 = arith.maximumf %82, %83 : vector<23x191xf32>
    %85 = tpu.iota {dimensions = array<i32: 0>} : vector<12x23xi32>
    %86 = tpu.iota {dimensions = array<i32: 1>} : vector<12x23xi32>
    %c2_i32_20 = arith.constant 2 : i32
    %87 = vector.broadcast %c2_i32_20 : i32 to vector<12x23xi32>
    %88 = arith.muli %87, %85 : vector<12x23xi32>
    %89 = arith.cmpi eq, %86, %88 : vector<12x23xi32>
    %90 = arith.extui %89 : vector<12x23xi1> to vector<12x23xi32>
    %91 = arith.sitofp %90 : vector<12x23xi32> to vector<12x23xf32>
    %cst_21 = arith.constant dense<0.000000e+00> : vector<12x191xf32>
    %92 = tpu.matmul %91, %84, %cst_21 {dimension_numbers = #tpu.dot_dimension_numbers<[1], [0], [0], [1], [0, 0, 1, 1], [], []>, precision = #tpu.contract_precision<fp32>} : vector<12x23xf32>, vector<23x191xf32>, vector<12x191xf32> -> vector<12x191xf32>
    %93 = tpu.iota {dimensions = array<i32: 0>} : vector<191x96xi32>
    %94 = tpu.iota {dimensions = array<i32: 1>} : vector<191x96xi32>
    %c2_i32_22 = arith.constant 2 : i32
    %95 = vector.broadcast %c2_i32_22 : i32 to vector<191x96xi32>
    %96 = arith.muli %95, %94 : vector<191x96xi32>
    %97 = arith.cmpi eq, %93, %96 : vector<191x96xi32>
    %98 = arith.extui %97 : vector<191x96xi1> to vector<191x96xi32>
    %99 = arith.sitofp %98 : vector<191x96xi32> to vector<191x96xf32>
    %cst_23 = arith.constant dense<0.000000e+00> : vector<12x96xf32>
    %100 = tpu.matmul %92, %99, %cst_23 {dimension_numbers = #tpu.dot_dimension_numbers<[1], [0], [0], [1], [0, 0, 1, 1], [], []>, precision = #tpu.contract_precision<fp32>} : vector<12x191xf32>, vector<191x96xf32>, vector<12x96xf32> -> vector<12x96xf32>
    %101 = vector.extract_strided_slice %100 {offsets = [0, 0], sizes = [1, 96], strides = [1, 1]} : vector<12x96xf32> to vector<1x96xf32>
    %102 = vector.extract_strided_slice %100 {offsets = [1, 0], sizes = [1, 96], strides = [1, 1]} : vector<12x96xf32> to vector<1x96xf32>
    %103 = vector.extract_strided_slice %100 {offsets = [2, 0], sizes = [1, 96], strides = [1, 1]} : vector<12x96xf32> to vector<1x96xf32>
    %104 = vector.extract_strided_slice %100 {offsets = [3, 0], sizes = [1, 96], strides = [1, 1]} : vector<12x96xf32> to vector<1x96xf32>
    %105 = vector.extract_strided_slice %100 {offsets = [4, 0], sizes = [1, 96], strides = [1, 1]} : vector<12x96xf32> to vector<1x96xf32>
    %106 = vector.extract_strided_slice %100 {offsets = [5, 0], sizes = [1, 96], strides = [1, 1]} : vector<12x96xf32> to vector<1x96xf32>
    %107 = tpu.concatenate %101, %102, %103, %104, %105, %106 in 1 : vector<1x96xf32>, vector<1x96xf32>, vector<1x96xf32>, vector<1x96xf32>, vector<1x96xf32>, vector<1x96xf32> -> vector<1x576xf32>
    %108 = vector.extract_strided_slice %100 {offsets = [6, 0], sizes = [1, 96], strides = [1, 1]} : vector<12x96xf32> to vector<1x96xf32>
    %109 = vector.extract_strided_slice %100 {offsets = [7, 0], sizes = [1, 96], strides = [1, 1]} : vector<12x96xf32> to vector<1x96xf32>
    %110 = vector.extract_strided_slice %100 {offsets = [8, 0], sizes = [1, 96], strides = [1, 1]} : vector<12x96xf32> to vector<1x96xf32>
    %111 = vector.extract_strided_slice %100 {offsets = [9, 0], sizes = [1, 96], strides = [1, 1]} : vector<12x96xf32> to vector<1x96xf32>
    %112 = vector.extract_strided_slice %100 {offsets = [10, 0], sizes = [1, 96], strides = [1, 1]} : vector<12x96xf32> to vector<1x96xf32>
    %113 = vector.extract_strided_slice %100 {offsets = [11, 0], sizes = [1, 96], strides = [1, 1]} : vector<12x96xf32> to vector<1x96xf32>
    %114 = tpu.concatenate %108, %109, %110, %111, %112, %113 in 1 : vector<1x96xf32>, vector<1x96xf32>, vector<1x96xf32>, vector<1x96xf32>, vector<1x96xf32>, vector<1x96xf32> -> vector<1x576xf32>
    %115 = tpu.concatenate %107, %114 in 0 : vector<1x576xf32>, vector<1x576xf32> -> vector<2x576xf32>
    %cst_24 = arith.constant dense<0.000000e+00> : vector<2x120xf32>
    %116 = tpu.matmul %115, %2, %cst_24 {dimension_numbers = #tpu.dot_dimension_numbers<[1], [0], [0], [1], [0, 0, 1, 1], [], []>, precision = #tpu.contract_precision<fp32>} : vector<2x576xf32>, vector<576x120xf32>, vector<2x120xf32> -> vector<2x120xf32>
    %117 = vector.broadcast %7 : vector<1x120xf32> to vector<2x120xf32>
    %118 = arith.addf %116, %117 : vector<2x120xf32>
    %cst_25 = arith.constant 0.000000e+00 : f32
    %119 = vector.broadcast %cst_25 : f32 to vector<2x120xf32>
    %120 = arith.maximumf %118, %119 : vector<2x120xf32>
    %cst_26 = arith.constant dense<0.000000e+00> : vector<2x84xf32>
    %121 = tpu.matmul %120, %3, %cst_26 {dimension_numbers = #tpu.dot_dimension_numbers<[1], [0], [0], [1], [0, 0, 1, 1], [], []>, precision = #tpu.contract_precision<fp32>} : vector<2x120xf32>, vector<120x84xf32>, vector<2x84xf32> -> vector<2x84xf32>
    %122 = vector.broadcast %8 : vector<1x84xf32> to vector<2x84xf32>
    %123 = arith.addf %121, %122 : vector<2x84xf32>
    %cst_27 = arith.constant 0.000000e+00 : f32
    %124 = vector.broadcast %cst_27 : f32 to vector<2x84xf32>
    %125 = arith.maximumf %123, %124 : vector<2x84xf32>
    %cst_28 = arith.constant dense<0.000000e+00> : vector<2x10xf32>
    %126 = tpu.matmul %125, %4, %cst_28 {dimension_numbers = #tpu.dot_dimension_numbers<[1], [0], [0], [1], [0, 0, 1, 1], [], []>, precision = #tpu.contract_precision<fp32>} : vector<2x84xf32>, vector<84x10xf32>, vector<2x10xf32> -> vector<2x10xf32>
    %127 = vector.broadcast %9 : vector<1x10xf32> to vector<2x10xf32>
    %128 = arith.addf %126, %127 : vector<2x10xf32>
    %c0_29 = arith.constant 0 : index
    %c0_30 = arith.constant 0 : index
    %129 = vector.load %arg3[%c0_29, %c0_30] : memref<2x10xf32, #tpu.memory_space<vmem>>, vector<2x10xf32>
    tpu.vector_store %arg3[%c0_29, %c0_30], %128 {strides = array<i32>} : memref<2x10xf32, #tpu.memory_space<vmem>>, vector<2x10xf32>,
    return
  }
}

</mosaic_0001>

<llo_original>
// kernel: lenet_forward.1
$region0: #{lenet_forward.1}
  #allocation0 [shape = 'u32[]', space=smem, size = 0x4, offset = 0x4, fixed_abs, tag = 'smem constant byte address 0x4 - core index']
  #allocation1 [shape = 'u32[72,128]{1,0:T(1,128)}', space=vmem, size = 0x9000, scoped, tag = 'internal scratch']
  %s0 = inlined_call_operand.vmem [shape: f32[2,32,32], index: 0, kind: input, shape index: {}]
  %s1 = inlined_call_operand.vmem [shape: f32[1200,192], index: 1, kind: input, shape index: {}]
  %s2 = inlined_call_operand.vmem [shape: f32[8,192], index: 2, kind: input, shape index: {}]
  %s3 = inlined_call_operand.hbm [shape: f32[2,10], index: 3, kind: output, shape index: {}]
  %s4 = sld [smem:[#allocation0]]
  $region22: #{lenet_forward.1} parent=0
    _
  %s6 = ssub.s32 1, %s4
  %s7 = scalar_select 0, %s6, %s4
  $region1: #{lenet_forward.1} parent=0
    #allocation2 [shape = 'u8[1024]{0}', space=vmem, size = 0x400, scoped, tag = 'output window, operand 0, single buffered']
    #allocation3 [shape = 's32[1]{0}', space=sflag, size = 0x4, scoped, tag = 'scoped memory for lenet_forward.1']
    %8 = vsyncpa [#allocation3], 0
    // Predicated region
    $region2: #{lenet_forward.1} parent=1 // pred_check
      _
    $region3: #{lenet_forward.1} parent=1 // pred_check_branch
      %10 = sbr.rel (0) target = $region5
    $region4: #{lenet_forward.1} parent=1 // pred_region
      _
    $region5: #{lenet_forward.1} parent=1 // pred_fallthru
      _
    // Predicated region
    $region6: #{lenet_forward.1} parent=1 // pred_check
      _
    $region7: #{lenet_forward.1} parent=1 // pred_check_branch
      %12 = sbr.rel (0) target = $region9
    $region8: #{lenet_forward.1} parent=1 // pred_region
      _
    $region9: #{lenet_forward.1} parent=1 // pred_fallthru
      _
    // Predicated region
    $region10: #{lenet_forward.1} parent=1 // pred_check
      _
    $region11: #{lenet_forward.1} parent=1 // pred_check_branch
      %14 = sbr.rel (0) target = $region13
    $region12: #{lenet_forward.1} parent=1 // pred_region
      _
    $region13: #{lenet_forward.1} parent=1 // pred_fallthru
      _
    %v15 = vld [vmem:[%s1] sm:$0xff]
    %v16 = vld [vmem:[%s1 + $0x8] sm:$0xff]
    %v17 = vld [vmem:[%s1 + $0x10] sm:$0xff]
    %v18 = vld [vmem:[%s1 + $0x18] sm:$0xff]
    %v19 = vld [vmem:[%s1 + $0x20] sm:$0xff]
    %v20 = vld [vmem:[%s1 + $0x28] sm:$0xff]
    %v21 = vld [vmem:[%s1 + $0x30] sm:$0xff]
    %v22 = vld [vmem:[%s1 + $0x38] sm:$0xff]
    %v23 = vld [vmem:[%s1 + $0x40] sm:$0xff]
    %v24 = vld [vmem:[%s1 + $0x48] sm:$0xff]
    %v25 = vld [vmem:[%s1 + $0x50] sm:$0xff]
    %v26 = vld [vmem:[%s1 + $0x58] sm:$0xff]
    %v27 = vld [vmem:[%s1 + $0x60] sm:$0xff]
    %v28 = vld [vmem:[%s1 + $0x68] sm:$0xff]
    %v29 = vld [vmem:[%s1 + $0x70] sm:$0xff]
    %v30 = vld [vmem:[%s1 + $0x78] sm:$0xff]
    %v31 = vld [vmem:[%s1 + $0x80] sm:$0xff]
    %v32 = vld [vmem:[%s1 + $0x88] sm:$0xff]
    %v33 = vld [vmem:[%s1 + $0x90] sm:$0xff]
    %v34 = vld [vmem:[%s1 + $0x98] sm:$0xff]
    %v35 = vld [vmem:[%s1 + $0xa0] sm:$0xff]
    %v36 = vld [vmem:[%s1 + $0xa8] sm:$0xff]
    %v37 = vld [vmem:[%s1 + $0xb0] sm:$0xff]
    %v38 = vld [vmem:[%s1 + $0xb8] sm:$0xff]
    %v39 = vld [vmem:[%s1 + $0xc0] sm:$0xff]
    %v40 = vld [vmem:[%s1 + $0xc8] sm:$0xff]
    %v41 = vld [vmem:[%s1 + $0xd0] sm:$0xff]
    %v42 = vld [vmem:[%s1 + $0xd8] sm:$0xff]
    %v43 = vld [vmem:[%s1 + $0xe0] sm:$0xff]
    %v44 = vld [vmem:[%s1 + $0xe8] sm:$0xff]
    %v45 = vld [vmem:[%s1 + $0xf0] sm:$0xff]
    %v46 = vld [vmem:[%s1 + $0xf8] sm:$0xff]
    %v47 = vld [vmem:[%s1 + $0x100] sm:$0xff]
    %v48 = vld [vmem:[%s1 + $0x108] sm:$0xff]
    %v49 = vld [vmem:[%s1 + $0x110] sm:$0xff]
    %v50 = vld [vmem:[%s1 + $0x118] sm:$0xff]
    %v51 = vld [vmem:[%s1 + $0x120] sm:$0xff]
    %v52 = vld [vmem:[%s1 + $0x128] sm:$0xff]
    %v53 = vld [vmem:[%s1 + $0x130] sm:$0xff]
    %v54 = vld [vmem:[%s1 + $0x138] sm:$0xff]
    %v55 = vld [vmem:[%s1 + $0x140] sm:$0xff]
    %v56 = vld [vmem:[%s1 + $0x148] sm:$0xff]
    %v57 = vld [vmem:[%s1 + $0x150] sm:$0xff]
    %v58 = vld [vmem:[%s1 + $0x158] sm:$0xff]
    %v59 = vld [vmem:[%s1 + $0x160] sm:$0xff]
    %v60 = vld [vmem:[%s1 + $0x168] sm:$0xff]
    %v61 = vld [vmem:[%s1 + $0x170] sm:$0xff]
    %v62 = vld [vmem:[%s1 + $0x178] sm:$0xff]
    %v63 = vld [vmem:[%s1 + $0x180] sm:$0xff]
    %v64 = vld [vmem:[%s1 + $0x188] sm:$0xff]
    %v65 = vld [vmem:[%s1 + $0x190] sm:$0xff]
    %v66 = vld [vmem:[%s1 + $0x198] sm:$0xff]
    %v67 = vld [vmem:[%s1 + $0x1a0] sm:$0xff]
    %v68 = vld [vmem:[%s1 + $0x1a8] sm:$0xff]
    %v69 = vld [vmem:[%s1 + $0x1b0] sm:$0xff]
    %v70 = vld [vmem:[%s1 + $0x1b8] sm:$0xff]
    %v71 = vld [vmem:[%s1 + $0x1c0] sm:$0xff]
    %v72 = vld [vmem:[%s1 + $0x1c8] sm:$0xff]
    %v73 = vld [vmem:[%s1 + $0x1d0] sm:$0xff]
    %v74 = vld [vmem:[%s1 + $0x1d8] sm:$0xff]
    %v75 = vld [vmem:[%s1 + $0x1e0] sm:$0xff]
    %v76 = vld [vmem:[%s1 + $0x1e8] sm:$0xff]
    %v77 = vld [vmem:[%s1 + $0x1f0] sm:$0xff]
    %v78 = vld [vmem:[%s1 + $0x1f8] sm:$0xff]
    %v79 = vld [vmem:[%s1 + $0x200] sm:$0xff]
    %v80 = vld [vmem:[%s1 + $0x208] sm:$0xff]
    %v81 = vld [vmem:[%s1 + $0x210] sm:$0xff]
    %v82 = vld [vmem:[%s1 + $0x218] sm:$0xff]
    %v83 = vld [vmem:[%s1 + $0x220] sm:$0xff]
    %v84 = vld [vmem:[%s1 + $0x228] sm:$0xff]
    %v85 = vld [vmem:[%s1 + $0x230] sm:$0xff]
    %v86 = vld [vmem:[%s1 + $0x238] sm:$0xff]
    %v87 = vld [vmem:[%s1 + $0x240] sm:$0xff]
    %v88 = vld [vmem:[%s1 + $0x248] sm:$0xff]
    %v89 = vld [vmem:[%s1 + $0x250] sm:$0xff]
    %v90 = vld [vmem:[%s1 + $0x258] sm:$0xff]
    %v91 = vld [vmem:[%s1 + $0x260] sm:$0xff]
    %v92 = vld [vmem:[%s1 + $0x268] sm:$0xff]
    %v93 = vld [vmem:[%s1 + $0x270] sm:$0xff]
    %v94 = vld [vmem:[%s1 + $0x278] sm:$0xff]
    %v95 = vld [vmem:[%s1 + $0x280] sm:$0xff]
    %v96 = vld [vmem:[%s1 + $0x288] sm:$0xff]
    %v97 = vld [vmem:[%s1 + $0x290] sm:$0xff]
    %v98 = vld [vmem:[%s1 + $0x298] sm:$0xff]
    %v99 = vld [vmem:[%s1 + $0x2a0] sm:$0xff]
    %v100 = vld [vmem:[%s1 + $0x2a8] sm:$0xff]
    %v101 = vld [vmem:[%s1 + $0x2b0] sm:$0xff]
    %v102 = vld [vmem:[%s1 + $0x2b8] sm:$0xff]
    %v103 = vld [vmem:[%s1 + $0x2c0] sm:$0xff]
    %v104 = vld [vmem:[%s1 + $0x2c8] sm:$0xff]
    %v105 = vld [vmem:[%s1 + $0x2d0] sm:$0xff]
    %v106 = vld [vmem:[%s1 + $0x2d8] sm:$0xff]
    %v107 = vld [vmem:[%s1 + $0x2e0] sm:$0xff]
    %v108 = vld [vmem:[%s1 + $0x2e8] sm:$0xff]
    %v109 = vld [vmem:[%s1 + $0x2f0] sm:$0xff]
    %v110 = vld [vmem:[%s1 + $0x2f8] sm:$0xff]
    %v111 = vld [vmem:[%s1 + $0x300] sm:$0xff]
    %v112 = vld [vmem:[%s1 + $0x308] sm:$0xff]
    %v113 = vld [vmem:[%s1 + $0x310] sm:$0xff]
    %v114 = vld [vmem:[%s1 + $0x318] sm:$0xff]
    %v115 = vld [vmem:[%s1 + $0x320] sm:$0xff]
    %v116 = vld [vmem:[%s1 + $0x328] sm:$0xff]
    %v117 = vld [vmem:[%s1 + $0x330] sm:$0xf]
    %v118 = vld [vmem:[%s1 + $0x338] sm:$0xf]
    %v119 = vld [vmem:[%s1 + $0x340] sm:$0xff]
    %v120 = vld [vmem:[%s1 + $0x350] sm:$0xff]
    %v121 = vld [vmem:[%s1 + $0x360] sm:$0xff]
    %v122 = vld [vmem:[%s1 + $0x370] sm:$0xff]
    %v123 = vld [vmem:[%s1 + $0x380] sm:$0xff]
    %v124 = vld [vmem:[%s1 + $0x390] sm:$0xff]
    %v125 = vld [vmem:[%s1 + $0x3a0] sm:$0xff]
    %v126 = vld [vmem:[%s1 + $0x3b0] sm:$0xff]
    %v127 = vld [vmem:[%s1 + $0x3c0] sm:$0xff]
    %v128 = vld [vmem:[%s1 + $0x3d0] sm:$0xff]
    %v129 = vld [vmem:[%s1 + $0x3e0] sm:$0xff]
    %v130 = vld [vmem:[%s1 + $0x3f0] sm:$0xff]
    %v131 = vld [vmem:[%s1 + $0x400] sm:$0xff]
    %v132 = vld [vmem:[%s1 + $0x410] sm:$0xff]
    %v133 = vld [vmem:[%s1 + $0x420] sm:$0xff]
    %v134 = vld [vmem:[%s1 + $0x430] sm:$0xff]
    %v135 = vld [vmem:[%s1 + $0x440] sm:$0xff]
    %v136 = vld [vmem:[%s1 + $0x450] sm:$0xff]
    %v137 = vld [vmem:[%s1 + $0x460] sm:$0xff]
    %v138 = vld [vmem:[%s1 + $0x470] sm:$0xff]
    %v139 = vld [vmem:[%s1 + $0x480] sm:$0xff]
    %v140 = vld [vmem:[%s1 + $0x490] sm:$0xff]
    %v141 = vld [vmem:[%s1 + $0x4a0] sm:$0xff]
    %v142 = vld [vmem:[%s1 + $0x4b0] sm:$0xff]
    %v143 = vld [vmem:[%s1 + $0x4c0] sm:$0xff]
    %v144 = vld [vmem:[%s1 + $0x4d0] sm:$0xff]
    %v145 = vld [vmem:[%s1 + $0x4e0] sm:$0xff]
    %v146 = vld [vmem:[%s1 + $0x4f0] sm:$0xff]
    %v147 = vld [vmem:[%s1 + $0x500] sm:$0xff]
    %v148 = vld [vmem:[%s1 + $0x510] sm:$0xff]
    %v149 = vld [vmem:[%s1 + $0x520] sm:$0xff]
    %v150 = vld [vmem:[%s1 + $0x530] sm:$0xff]
    %v151 = vld [vmem:[%s1 + $0x540] sm:$0xff]
    %v152 = vld [vmem:[%s1 + $0x550] sm:$0xff]
    %v153 = vld [vmem:[%s1 + $0x560] sm:$0xff]
    %v154 = vld [vmem:[%s1 + $0x570] sm:$0xff]
    %v155 = vld [vmem:[%s1 + $0x580] sm:$0xff]
    %v156 = vld [vmem:[%s1 + $0x590] sm:$0xff]
    %v157 = vld [vmem:[%s1 + $0x5a0] sm:$0xff]
    %v158 = vld [vmem:[%s1 + $0x5b0] sm:$0xff]
    %v159 = vld [vmem:[%s1 + $0x5c0] sm:$0xff]
    %v160 = vld [vmem:[%s1 + $0x5d0] sm:$0xff]
    %v161 = vld [vmem:[%s1 + $0x5e0] sm:$0xff]
    %v162 = vld [vmem:[%s1 + $0x5f0] sm:$0xff]
    %v163 = vld [vmem:[%s1 + $0x600] sm:$0xff]
    %v164 = vld [vmem:[%s1 + $0x610] sm:$0xff]
    %v165 = vld [vmem:[%s1 + $0x620] sm:$0xff]
    %v166 = vld [vmem:[%s1 + $0x630] sm:$0xff]
    %v167 = vld [vmem:[%s1 + $0x640] sm:$0xff]
    %v168 = vld [vmem:[%s1 + $0x650] sm:$0xff]
    %v169 = vld [vmem:[%s1 + $0x660] sm:$0xff]
    %v170 = vld [vmem:[%s1 + $0x670] sm:$0xff]
    %v171 = vld [vmem:[%s1 + $0x680] sm:$0xff]
    %v172 = vld [vmem:[%s1 + $0x690] sm:$0xff]
    %v173 = vld [vmem:[%s1 + $0x6a0] sm:$0xff]
    %v174 = vld [vmem:[%s1 + $0x6b0] sm:$0xff]
    %v175 = vld [vmem:[%s1 + $0x6c0] sm:$0xff]
    %v176 = vld [vmem:[%s1 + $0x6d0] sm:$0xff]
    %v177 = vld [vmem:[%s1 + $0x6e0] sm:$0xff]
    %v178 = vld [vmem:[%s1 + $0x6f0] sm:$0xff]
    %v179 = vld [vmem:[%s1 + $0x700] sm:$0xff]
    %v180 = vld [vmem:[%s1 + $0x710] sm:$0xff]
    %v181 = vld [vmem:[%s1 + $0x720] sm:$0xff]
    %v182 = vld [vmem:[%s1 + $0x730] sm:$0xff]
    %v183 = vld [vmem:[%s1 + $0x740] sm:$0xff]
    %v184 = vld [vmem:[%s1 + $0x750] sm:$0xff]
    %v185 = vld [vmem:[%s1 + $0x760] sm:$0xff]
    %v186 = vld [vmem:[%s1 + $0x770] sm:$0xff]
    %v187 = vld [vmem:[%s1 + $0x780] sm:$0xff]
    %v188 = vld [vmem:[%s1 + $0x790] sm:$0xff]
    %v189 = vld [vmem:[%s1 + $0x7a0] sm:$0xff]
    %v190 = vld [vmem:[%s1 + $0x7b0] sm:$0xff]
    %v191 = vld [vmem:[%s1 + $0x7c0] sm:$0xff]
    %v192 = vld [vmem:[%s1 + $0x7d0] sm:$0xff]
    %v193 = vld [vmem:[%s1 + $0x7e0] sm:$0xff]
    %v194 = vld [vmem:[%s1 + $0x7f0] sm:$0xff]
    %v195 = vld [vmem:[%s1 + $0x800] sm:$0xff]
    %v196 = vld [vmem:[%s1 + $0x810] sm:$0xff]
    %v197 = vld [vmem:[%s1 + $0x820] sm:$0xff]
    %v198 = vld [vmem:[%s1 + $0x830] sm:$0xff]
    %v199 = vld [vmem:[%s1 + $0x840] sm:$0xff]
    %v200 = vld [vmem:[%s1 + $0x850] sm:$0xff]
    %v201 = vld [vmem:[%s1 + $0x860] sm:$0xff]
    %v202 = vld [vmem:[%s1 + $0x870] sm:$0xff]
    %v203 = vld [vmem:[%s1 + $0x880] sm:$0xff]
    %v204 = vld [vmem:[%s1 + $0x890] sm:$0xff]
    %v205 = vld [vmem:[%s1 + $0x8a0] sm:$0xff]
    %v206 = vld [vmem:[%s1 + $0x8b0] sm:$0xff]
    %v207 = vld [vmem:[%s1 + $0x8c0] sm:$0xff]
    %v208 = vld [vmem:[%s1 + $0x8d0] sm:$0xff]
    %v209 = vld [vmem:[%s1 + $0x8e0] sm:$0xff]
    %v210 = vld [vmem:[%s1 + $0x8f0] sm:$0xff]
    %v211 = vld [vmem:[%s1 + $0x900] sm:$0xff]
    %v212 = vld [vmem:[%s1 + $0x910] sm:$0xff]
    %v213 = vld [vmem:[%s1 + $0x920] sm:$0xff]
    %v214 = vld [vmem:[%s1 + $0x930] sm:$0xff]
    %v215 = vld [vmem:[%s1 + $0x940] sm:$0xff]
    %v216 = vld [vmem:[%s1 + $0x950] sm:$0xf]
    %v217 = vld [vmem:[%s2] ss:$8 sm:$0x3]
    %s218 = scalar_lea.vmem %s2, 1
    %v219 = vld [vmem:[%s218] ss:$8 sm:$0x3]
    %v220 = vld [vmem:[%s2 + $0x2] ss:$0 sm:$0xff]
    %v221 = vld [vmem:[%s2 + $0x3] ss:$0 sm:$0xff]
    %v222 = vld [vmem:[%s2 + $0x4] ss:$0 sm:$0xff]
    %v223 = vld [vmem:[%s0] sm:$0xff]
    %v224 = vld [vmem:[%s0 + $0x8] sm:$0xff]
    %v225 = vld [vmem:[%s0 + $0x10] sm:$0xff]
    %v226 = vld [vmem:[%s0 + $0x18] sm:$0xff]
    %v227 = vld [vmem:[%s0 + $0x20] sm:$0xff]
    %v228 = vld [vmem:[%s0 + $0x28] sm:$0xff]
    %v229 = vld [vmem:[%s0 + $0x30] sm:$0xff]
    %v230 = vld [vmem:[%s0 + $0x38] sm:$0xff]
    %vm235 = vcmask 1043456
    %v236 = vrot.slane %v227, 4
    %v237 = vrot.slane %v228, 4
    %v238 = vsel %vm235, %v236, %v237
    %v239 = vrot.slane %v229, 4
    %v240 = vsel %vm235, %v237, %v239
    %v241 = vrot.slane %v230, 4
    %v242 = vsel %vm235, %v239, %v241
    %v247 = vsel %vm235, %v226, %v236
    %vm252 = vcmask 1046528
    %v253 = vrot.slane %v223, 1
    %v254 = vrot.slane %v224, 1
    %v255 = vsel %vm252, %v253, %v254
    %v256 = vrot.slane %v225, 1
    %v257 = vsel %vm252, %v254, %v256
    %v258 = vrot.slane %v226, 1
    %v259 = vsel %vm252, %v256, %v258
    %vm261 = vcmask 1042432
    %v262 = vrot.slane %v227, 5
    %v263 = vrot.slane %v228, 5
    %v264 = vsel %vm261, %v262, %v263
    %v265 = vrot.slane %v229, 5
    %v266 = vsel %vm261, %v263, %v265
    %v267 = vrot.slane %v230, 5
    %v268 = vsel %vm261, %v265, %v267
    %v270 = vsel %vm235, %v258, %v262
    %vm271 = vcmask 1045504
    %v272 = vrot.slane %v223, 2
    %v273 = vrot.slane %v224, 2
    %v274 = vsel %vm271, %v272, %v273
    %v275 = vrot.slane %v225, 2
    %v276 = vsel %vm271, %v273, %v275
    %v277 = vrot.slane %v226, 2
    %v278 = vsel %vm271, %v275, %v277
    %vm280 = vcmask 1041408
    %v281 = vrot.slane %v227, 6
    %v282 = vrot.slane %v228, 6
    %v283 = vsel %vm280, %v281, %v282
    %v284 = vrot.slane %v229, 6
    %v285 = vsel %vm280, %v282, %v284
    %v286 = vrot.slane %v230, 6
    %v287 = vsel %vm280, %v284, %v286
    %v289 = vsel %vm235, %v277, %v281
    %vm290 = vcmask 1044480
    %v291 = vrot.slane %v223, 3
    %v292 = vrot.slane %v224, 3
    %v293 = vsel %vm290, %v291, %v292
    %v294 = vrot.slane %v225, 3
    %v295 = vsel %vm290, %v292, %v294
    %v296 = vrot.slane %v226, 3
    %v297 = vsel %vm290, %v294, %v296
    %vm299 = vcmask 1040384
    %v300 = vrot.slane %v227, 7
    %v301 = vrot.slane %v228, 7
    %v302 = vsel %vm299, %v300, %v301
    %v303 = vrot.slane %v229, 7
    %v304 = vsel %vm299, %v301, %v303
    %v305 = vrot.slane %v230, 7
    %v306 = vsel %vm299, %v303, %v305
    %v308 = vsel %vm235, %v296, %v300
    %v309 = vrot.slane %v223, 4
    %v310 = vrot.slane %v224, 4
    %v311 = vsel %vm235, %v309, %v310
    %v312 = vrot.slane %v225, 4
    %v313 = vsel %vm235, %v310, %v312
    %v314 = vrot.slane %v226, 4
    %v315 = vsel %vm235, %v312, %v314
    %v317 = vsel %vm235, %v314, %v227
    %319 = vrot.lane.b32.xlu0 %v255, 32
    %v320 = vpop.permute.xlu0 %319
    %321 = vrot.lane.b32.xlu0 %v257, 32
    %v322 = vpop.permute.xlu0 %321
    %323 = vrot.lane.b32.xlu0 %v259, 32
    %v324 = vpop.permute.xlu0 %323
    %325 = vrot.lane.b32.xlu0 %v270, 32
    %v326 = vpop.permute.xlu0 %325
    %327 = vrot.lane.b32.xlu0 %v264, 32
    %v328 = vpop.permute.xlu0 %327
    %329 = vrot.lane.b32.xlu0 %v266, 32
    %v330 = vpop.permute.xlu0 %329
    %331 = vrot.lane.b32.xlu0 %v268, 32
    %v332 = vpop.permute.xlu0 %331
    %341 = vrot.lane.b32.xlu0 %v274, 64
    %v342 = vpop.permute.xlu0 %341
    %343 = vrot.lane.b32.xlu0 %v276, 64
    %v344 = vpop.permute.xlu0 %343
    %345 = vrot.lane.b32.xlu0 %v278, 64
    %v346 = vpop.permute.xlu0 %345
    %347 = vrot.lane.b32.xlu0 %v289, 64
    %v348 = vpop.permute.xlu0 %347
    %349 = vrot.lane.b32.xlu0 %v283, 64
    %v350 = vpop.permute.xlu0 %349
    %351 = vrot.lane.b32.xlu0 %v285, 64
    %v352 = vpop.permute.xlu0 %351
    %353 = vrot.lane.b32.xlu0 %v287, 64
    %v354 = vpop.permute.xlu0 %353
    %363 = vrot.lane.b32.xlu0 %v293, 96
    %v364 = vpop.permute.xlu0 %363
    %365 = vrot.lane.b32.xlu0 %v295, 96
    %v366 = vpop.permute.xlu0 %365
    %367 = vrot.lane.b32.xlu0 %v297, 96
    %v368 = vpop.permute.xlu0 %367
    %369 = vrot.lane.b32.xlu0 %v308, 96
    %v370 = vpop.permute.xlu0 %369
    %371 = vrot.lane.b32.xlu0 %v302, 96
    %v372 = vpop.permute.xlu0 %371
    %373 = vrot.lane.b32.xlu0 %v304, 96
    %v374 = vpop.permute.xlu0 %373
    %375 = vrot.lane.b32.xlu0 %v306, 96
    %v376 = vpop.permute.xlu0 %375
    %vm384 = vcmask 261120
    %v385 = vsel %vm384, %v223, %v320
    %v386 = vsel %vm384, %v224, %v322
    %v387 = vsel %vm384, %v225, %v324
    %v388 = vsel %vm384, %v247, %v326
    %v389 = vsel %vm384, %v238, %v328
    %v390 = vsel %vm384, %v240, %v330
    %v391 = vsel %vm384, %v242, %v332
    %vm392 = vcmask 523264
    %v393 = vsel %vm392, %v385, %v342
    %v394 = vsel %vm392, %v386, %v344
    %v395 = vsel %vm392, %v387, %v346
    %v396 = vsel %vm392, %v388, %v348
    %v397 = vsel %vm392, %v389, %v350
    %v398 = vsel %vm392, %v390, %v352
    %v399 = vsel %vm392, %v391, %v354
    %vm400 = vcmask 785408
    %v401 = vsel %vm400, %v393, %v364
    %v402 = vsel %vm400, %v394, %v366
    %v403 = vsel %vm400, %v395, %v368
    %v404 = vsel %vm400, %v396, %v370
    %v405 = vsel %vm400, %v397, %v372
    %v406 = vsel %vm400, %v398, %v374
    %v407 = vsel %vm400, %v399, %v376
    %v409 = vperm.slane %v217, 0
    %v410 = vperm.slane %v217, 1
    %v413 = vsel %vm384, %v311, 0
    %v415 = vsel %vm384, %v313, 0
    %v417 = vsel %vm384, %v315, 0
    %v420 = vsel %vm384, %v317, 0
    %v422 = vsel %vm384, %v228, 0
    %v424 = vsel %vm384, %v229, 0
    %v426 = vsel %vm384, %v230, 0
    %v428 = vand.u32 %v45, 4294901760
    %429 = vmatpush.msra.mxu0 %v428
    %v430 = vand.u32 %v43, 4294901760
    %431 = vmatpush.msra.mxu0 %v430
    %v432 = vand.u32 %v41, 4294901760
    %433 = vmatpush.msra.mxu0 %v432
    %v434 = vand.u32 %v39, 4294901760
    %435 = vmatpush.msra.mxu0 %v434
    %v436 = vand.u32 %v37, 4294901760
    %437 = vmatpush.msra.mxu0 %v436
    %v438 = vand.u32 %v35, 4294901760
    %439 = vmatpush.msra.mxu0 %v438
    %v440 = vand.u32 %v33, 4294901760
    %441 = vmatpush.msra.mxu0 %v440
    %v442 = vand.u32 %v31, 4294901760
    %443 = vmatpush.msra.mxu0 %v442
    %v444 = vand.u32 %v29, 4294901760
    %445 = vmatpush.msra.mxu0 %v444
    %v446 = vand.u32 %v27, 4294901760
    %447 = vmatpush.msra.mxu0 %v446
    %v448 = vand.u32 %v25, 4294901760
    %449 = vmatpush.msra.mxu0 %v448
    %v450 = vand.u32 %v23, 4294901760
    %451 = vmatpush.msra.mxu0 %v450
    %v452 = vand.u32 %v21, 4294901760
    %453 = vmatpush.msra.mxu0 %v452
    %v454 = vand.u32 %v19, 4294901760
    %455 = vmatpush.msra.mxu0 %v454
    %v456 = vand.u32 %v17, 4294901760
    %457 = vmatpush.msra.mxu0 %v456
    %v458 = vand.u32 %v15, 4294901760
    %459 = vmatpush.msra.mxu0 %v458
    %v460 = vand.u32 %v401, 4294901760
    %v461 = vsub.f32 %v401, %v460
    %v462 = vand.u32 %v461, 4294901760
    %v463 = vsub.f32 %v461, %v462
    %v464 = vand.u32 %v463, 4294901760
    %465 = vmatmul.f32.gmra.mxu0 %v464
    %v466 = vpop.f32.mrf.mxu0
    %v467 = vadd.f32 %v409, %v466
    %v468 = vand.u32 %v402, 4294901760
    %v469 = vsub.f32 %v402, %v468
    %v470 = vand.u32 %v469, 4294901760
    %v471 = vsub.f32 %v469, %v470
    %v472 = vand.u32 %v471, 4294901760
    %473 = vmatmul.f32.gmra.mxu0 %v472
    %v474 = vpop.f32.mrf.mxu0
    %v475 = vadd.f32 %v409, %v474
    %v476 = vand.u32 %v403, 4294901760
    %v477 = vsub.f32 %v403, %v476
    %v478 = vand.u32 %v477, 4294901760
    %v479 = vsub.f32 %v477, %v478
    %v480 = vand.u32 %v479, 4294901760
    %481 = vmatmul.f32.gmra.mxu0 %v480
    %v482 = vpop.f32.mrf.mxu0
    %v483 = vadd.f32 %v409, %v482
    %v484 = vand.u32 %v404, 4294901760
    %v485 = vsub.f32 %v404, %v484
    %v486 = vand.u32 %v485, 4294901760
    %v487 = vsub.f32 %v485, %v486
    %v488 = vand.u32 %v487, 4294901760
    %489 = vmatmul.f32.gmra.mxu0 %v488
    %v490 = vpop.f32.mrf.mxu0
    %v491 = vadd.f32 %v409, %v490
    %v492 = vand.u32 %v405, 4294901760
    %v493 = vsub.f32 %v405, %v492
    %v494 = vand.u32 %v493, 4294901760
    %v495 = vsub.f32 %v493, %v494
    %v496 = vand.u32 %v495, 4294901760
    %497 = vmatmul.f32.gmra.mxu0 %v496
    %v498 = vpop.f32.mrf.mxu0
    %v499 = vadd.f32 %v409, %v498
    %v500 = vand.u32 %v406, 4294901760
    %v501 = vsub.f32 %v406, %v500
    %v502 = vand.u32 %v501, 4294901760
    %v503 = vsub.f32 %v501, %v502
    %v504 = vand.u32 %v503, 4294901760
    %505 = vmatmul.f32.gmra.mxu0 %v504
    %v506 = vpop.f32.mrf.mxu0
    %v507 = vadd.f32 %v409, %v506
    %v508 = vand.u32 %v407, 4294901760
    %v509 = vsub.f32 %v407, %v508
    %v510 = vand.u32 %v509, 4294901760
    %v511 = vsub.f32 %v509, %v510
    %v512 = vand.u32 %v511, 4294901760
    %513 = vmatmul.f32.gmra.mxu0 %v512
    %v514 = vpop.f32.mrf.mxu0
    %v515 = vadd.f32 %v409, %v514
    %516 = vdwg.mxu0
    %v517 = vand.u32 %v45, 4294901760
    %v518 = vsub.f32 %v45, %v517
    %v519 = vand.u32 %v518, 4294901760
    %v520 = vsub.f32 %v518, %v519
    %v521 = vand.u32 %v520, 4294901760
    %522 = vmatpush.msra.mxu0 %v521
    %v523 = vand.u32 %v43, 4294901760
    %v524 = vsub.f32 %v43, %v523
    %v525 = vand.u32 %v524, 4294901760
    %v526 = vsub.f32 %v524, %v525
    %v527 = vand.u32 %v526, 4294901760
    %528 = vmatpush.msra.mxu0 %v527
    %v529 = vand.u32 %v41, 4294901760
    %v530 = vsub.f32 %v41, %v529
    %v531 = vand.u32 %v530, 4294901760
    %v532 = vsub.f32 %v530, %v531
    %v533 = vand.u32 %v532, 4294901760
    %534 = vmatpush.msra.mxu0 %v533
    %v535 = vand.u32 %v39, 4294901760
    %v536 = vsub.f32 %v39, %v535
    %v537 = vand.u32 %v536, 4294901760
    %v538 = vsub.f32 %v536, %v537
    %v539 = vand.u32 %v538, 4294901760
    %540 = vmatpush.msra.mxu0 %v539
    %v541 = vand.u32 %v37, 4294901760
    %v542 = vsub.f32 %v37, %v541
    %v543 = vand.u32 %v542, 4294901760
    %v544 = vsub.f32 %v542, %v543
    %v545 = vand.u32 %v544, 4294901760
    %546 = vmatpush.msra.mxu0 %v545
    %v547 = vand.u32 %v35, 4294901760
    %v548 = vsub.f32 %v35, %v547
    %v549 = vand.u32 %v548, 4294901760
    %v550 = vsub.f32 %v548, %v549
    %v551 = vand.u32 %v550, 4294901760
    %552 = vmatpush.msra.mxu0 %v551
    %v553 = vand.u32 %v33, 4294901760
    %v554 = vsub.f32 %v33, %v553
    %v555 = vand.u32 %v554, 4294901760
    %v556 = vsub.f32 %v554, %v555
    %v557 = vand.u32 %v556, 4294901760
    %558 = vmatpush.msra.mxu0 %v557
    %v559 = vand.u32 %v31, 4294901760
    %v560 = vsub.f32 %v31, %v559
    %v561 = vand.u32 %v560, 4294901760
    %v562 = vsub.f32 %v560, %v561
    %v563 = vand.u32 %v562, 4294901760
    %564 = vmatpush.msra.mxu0 %v563
    %v565 = vand.u32 %v29, 4294901760
    %v566 = vsub.f32 %v29, %v565
    %v567 = vand.u32 %v566, 4294901760
    %v568 = vsub.f32 %v566, %v567
    %v569 = vand.u32 %v568, 4294901760
    %570 = vmatpush.msra.mxu0 %v569
    %v571 = vand.u32 %v27, 4294901760
    %v572 = vsub.f32 %v27, %v571
    %v573 = vand.u32 %v572, 4294901760
    %v574 = vsub.f32 %v572, %v573
    %v575 = vand.u32 %v574, 4294901760
    %576 = vmatpush.msra.mxu0 %v575
    %v577 = vand.u32 %v25, 4294901760
    %v578 = vsub.f32 %v25, %v577
    %v579 = vand.u32 %v578, 4294901760
    %v580 = vsub.f32 %v578, %v579
    %v581 = vand.u32 %v580, 4294901760
    %582 = vmatpush.msra.mxu0 %v581
    %v583 = vand.u32 %v23, 4294901760
    %v584 = vsub.f32 %v23, %v583
    %v585 = vand.u32 %v584, 4294901760
    %v586 = vsub.f32 %v584, %v585
    %v587 = vand.u32 %v586, 4294901760
    %588 = vmatpush.msra.mxu0 %v587
    %v589 = vand.u32 %v21, 4294901760
    %v590 = vsub.f32 %v21, %v589
    %v591 = vand.u32 %v590, 4294901760
    %v592 = vsub.f32 %v590, %v591
    %v593 = vand.u32 %v592, 4294901760
    %594 = vmatpush.msra.mxu0 %v593
    %v595 = vand.u32 %v19, 4294901760
    %v596 = vsub.f32 %v19, %v595
    %v597 = vand.u32 %v596, 4294901760
    %v598 = vsub.f32 %v596, %v597
    %v599 = vand.u32 %v598, 4294901760
    %600 = vmatpush.msra.mxu0 %v599
    %v601 = vand.u32 %v17, 4294901760
    %v602 = vsub.f32 %v17, %v601
    %v603 = vand.u32 %v602, 4294901760
    %v604 = vsub.f32 %v602, %v603
    %v605 = vand.u32 %v604, 4294901760
    %606 = vmatpush.msra.mxu0 %v605
    %v607 = vand.u32 %v15, 4294901760
    %v608 = vsub.f32 %v15, %v607
    %v609 = vand.u32 %v608, 4294901760
    %v610 = vsub.f32 %v608, %v609
    %v611 = vand.u32 %v610, 4294901760
    %612 = vmatpush.msra.mxu0 %v611
    %v613 = vand.u32 %v401, 4294901760
    %614 = vmatmul.f32.gmra.mxu0 %v613
    %v615 = vpop.f32.mrf.mxu0
    %v616 = vadd.f32 %v467, %v615
    %v617 = vand.u32 %v402, 4294901760
    %618 = vmatmul.f32.gmra.mxu0 %v617
    %v619 = vpop.f32.mrf.mxu0
    %v620 = vadd.f32 %v475, %v619
    %v621 = vand.u32 %v403, 4294901760
    %622 = vmatmul.f32.gmra.mxu0 %v621
    %v623 = vpop.f32.mrf.mxu0
    %v624 = vadd.f32 %v483, %v623
    %v625 = vand.u32 %v404, 4294901760
    %626 = vmatmul.f32.gmra.mxu0 %v625
    %v627 = vpop.f32.mrf.mxu0
    %v628 = vadd.f32 %v491, %v627
    %v629 = vand.u32 %v405, 4294901760
    %630 = vmatmul.f32.gmra.mxu0 %v629
    %v631 = vpop.f32.mrf.mxu0
    %v632 = vadd.f32 %v499, %v631
    %v633 = vand.u32 %v406, 4294901760
    %634 = vmatmul.f32.gmra.mxu0 %v633
    %v635 = vpop.f32.mrf.mxu0
    %v636 = vadd.f32 %v507, %v635
    %v637 = vand.u32 %v407, 4294901760
    %638 = vmatmul.f32.gmra.mxu0 %v637
    %v639 = vpop.f32.mrf.mxu0
    %v640 = vadd.f32 %v515, %v639
    %641 = vdwg.mxu0
    %v642 = vand.u32 %v45, 4294901760
    %v643 = vsub.f32 %v45, %v642
    %644 = vmatpush.msra.mxu0 %v643
    %v645 = vand.u32 %v43, 4294901760
    %v646 = vsub.f32 %v43, %v645
    %647 = vmatpush.msra.mxu0 %v646
    %v648 = vand.u32 %v41, 4294901760
    %v649 = vsub.f32 %v41, %v648
    %650 = vmatpush.msra.mxu0 %v649
    %v651 = vand.u32 %v39, 4294901760
    %v652 = vsub.f32 %v39, %v651
    %653 = vmatpush.msra.mxu0 %v652
    %v654 = vand.u32 %v37, 4294901760
    %v655 = vsub.f32 %v37, %v654
    %656 = vmatpush.msra.mxu0 %v655
    %v657 = vand.u32 %v35, 4294901760
    %v658 = vsub.f32 %v35, %v657
    %659 = vmatpush.msra.mxu0 %v658
    %v660 = vand.u32 %v33, 4294901760
    %v661 = vsub.f32 %v33, %v660
    %662 = vmatpush.msra.mxu0 %v661
    %v663 = vand.u32 %v31, 4294901760
    %v664 = vsub.f32 %v31, %v663
    %665 = vmatpush.msra.mxu0 %v664
    %v666 = vand.u32 %v29, 4294901760
    %v667 = vsub.f32 %v29, %v666
    %668 = vmatpush.msra.mxu0 %v667
    %v669 = vand.u32 %v27, 4294901760
    %v670 = vsub.f32 %v27, %v669
    %671 = vmatpush.msra.mxu0 %v670
    %v672 = vand.u32 %v25, 4294901760
    %v673 = vsub.f32 %v25, %v672
    %674 = vmatpush.msra.mxu0 %v673
    %v675 = vand.u32 %v23, 4294901760
    %v676 = vsub.f32 %v23, %v675
    %677 = vmatpush.msra.mxu0 %v676
    %v678 = vand.u32 %v21, 4294901760
    %v679 = vsub.f32 %v21, %v678
    %680 = vmatpush.msra.mxu0 %v679
    %v681 = vand.u32 %v19, 4294901760
    %v682 = vsub.f32 %v19, %v681
    %683 = vmatpush.msra.mxu0 %v682
    %v684 = vand.u32 %v17, 4294901760
    %v685 = vsub.f32 %v17, %v684
    %686 = vmatpush.msra.mxu0 %v685
    %v687 = vand.u32 %v15, 4294901760
    %v688 = vsub.f32 %v15, %v687
    %689 = vmatpush.msra.mxu0 %v688
    %v690 = vand.u32 %v401, 4294901760
    %v691 = vsub.f32 %v401, %v690
    %692 = vmatmul.f32.gmra.mxu0 %v691
    %v693 = vpop.f32.mrf.mxu0
    %v694 = vadd.f32 %v616, %v693
    %v695 = vand.u32 %v402, 4294901760
    %v696 = vsub.f32 %v402, %v695
    %697 = vmatmul.f32.gmra.mxu0 %v696
    %v698 = vpop.f32.mrf.mxu0
    %v699 = vadd.f32 %v620, %v698
    %v700 = vand.u32 %v403, 4294901760
    %v701 = vsub.f32 %v403, %v700
    %702 = vmatmul.f32.gmra.mxu0 %v701
    %v703 = vpop.f32.mrf.mxu0
    %v704 = vadd.f32 %v624, %v703
    %v705 = vand.u32 %v404, 4294901760
    %v706 = vsub.f32 %v404, %v705
    %707 = vmatmul.f32.gmra.mxu0 %v706
    %v708 = vpop.f32.mrf.mxu0
    %v709 = vadd.f32 %v628, %v708
    %v710 = vand.u32 %v405, 4294901760
    %v711 = vsub.f32 %v405, %v710
    %712 = vmatmul.f32.gmra.mxu0 %v711
    %v713 = vpop.f32.mrf.mxu0
    %v714 = vadd.f32 %v632, %v713
    %v715 = vand.u32 %v406, 4294901760
    %v716 = vsub.f32 %v406, %v715
    %717 = vmatmul.f32.gmra.mxu0 %v716
    %v718 = vpop.f32.mrf.mxu0
    %v719 = vadd.f32 %v636, %v718
    %v720 = vand.u32 %v407, 4294901760
    %v721 = vsub.f32 %v407, %v720
    %722 = vmatmul.f32.gmra.mxu0 %v721
    %v723 = vpop.f32.mrf.mxu0
    %v724 = vadd.f32 %v640, %v723
    %725 = vdwg.mxu0
    %v726 = vand.u32 %v45, 4294901760
    %727 = vmatpush.msra.mxu0 %v726
    %v728 = vand.u32 %v43, 4294901760
    %729 = vmatpush.msra.mxu0 %v728
    %v730 = vand.u32 %v41, 4294901760
    %731 = vmatpush.msra.mxu0 %v730
    %v732 = vand.u32 %v39, 4294901760
    %733 = vmatpush.msra.mxu0 %v732
    %v734 = vand.u32 %v37, 4294901760
    %735 = vmatpush.msra.mxu0 %v734
    %v736 = vand.u32 %v35, 4294901760
    %737 = vmatpush.msra.mxu0 %v736
    %v738 = vand.u32 %v33, 4294901760
    %739 = vmatpush.msra.mxu0 %v738
    %v740 = vand.u32 %v31, 4294901760
    %741 = vmatpush.msra.mxu0 %v740
    %v742 = vand.u32 %v29, 4294901760
    %743 = vmatpush.msra.mxu0 %v742
    %v744 = vand.u32 %v27, 4294901760
    %745 = vmatpush.msra.mxu0 %v744
    %v746 = vand.u32 %v25, 4294901760
    %747 = vmatpush.msra.mxu0 %v746
    %v748 = vand.u32 %v23, 4294901760
    %749 = vmatpush.msra.mxu0 %v748
    %v750 = vand.u32 %v21, 4294901760
    %751 = vmatpush.msra.mxu0 %v750
    %v752 = vand.u32 %v19, 4294901760
    %753 = vmatpush.msra.mxu0 %v752
    %v754 = vand.u32 %v17, 4294901760
    %755 = vmatpush.msra.mxu0 %v754
    %v756 = vand.u32 %v15, 4294901760
    %757 = vmatpush.msra.mxu0 %v756
    %v758 = vand.u32 %v401, 4294901760
    %v759 = vsub.f32 %v401, %v758
    %v760 = vand.u32 %v759, 4294901760
    %761 = vmatmul.f32.gmra.mxu0 %v760
    %v762 = vpop.f32.mrf.mxu0
    %v763 = vadd.f32 %v694, %v762
    %v764 = vand.u32 %v402, 4294901760
    %v765 = vsub.f32 %v402, %v764
    %v766 = vand.u32 %v765, 4294901760
    %767 = vmatmul.f32.gmra.mxu0 %v766
    %v768 = vpop.f32.mrf.mxu0
    %v769 = vadd.f32 %v699, %v768
    %v770 = vand.u32 %v403, 4294901760
    %v771 = vsub.f32 %v403, %v770
    %v772 = vand.u32 %v771, 4294901760
    %773 = vmatmul.f32.gmra.mxu0 %v772
    %v774 = vpop.f32.mrf.mxu0
    %v775 = vadd.f32 %v704, %v774
    %v776 = vand.u32 %v404, 4294901760
    %v777 = vsub.f32 %v404, %v776
    %v778 = vand.u32 %v777, 4294901760
    %779 = vmatmul.f32.gmra.mxu0 %v778
    %v780 = vpop.f32.mrf.mxu0
    %v781 = vadd.f32 %v709, %v780
    %v782 = vand.u32 %v405, 4294901760
    %v783 = vsub.f32 %v405, %v782
    %v784 = vand.u32 %v783, 4294901760
    %785 = vmatmul.f32.gmra.mxu0 %v784
    %v786 = vpop.f32.mrf.mxu0
    %v787 = vadd.f32 %v714, %v786
    %v788 = vand.u32 %v406, 4294901760
    %v789 = vsub.f32 %v406, %v788
    %v790 = vand.u32 %v789, 4294901760
    %791 = vmatmul.f32.gmra.mxu0 %v790
    %v792 = vpop.f32.mrf.mxu0
    %v793 = vadd.f32 %v719, %v792
    %v794 = vand.u32 %v407, 4294901760
    %v795 = vsub.f32 %v407, %v794
    %v796 = vand.u32 %v795, 4294901760
    %797 = vmatmul.f32.gmra.mxu0 %v796
    %v798 = vpop.f32.mrf.mxu0
    %v799 = vadd.f32 %v724, %v798
    %800 = vdwg.mxu0
    %v801 = vand.u32 %v45, 4294901760
    %v802 = vsub.f32 %v45, %v801
    %v803 = vand.u32 %v802, 4294901760
    %804 = vmatpush.msra.mxu0 %v803
    %v805 = vand.u32 %v43, 4294901760
    %v806 = vsub.f32 %v43, %v805
    %v807 = vand.u32 %v806, 4294901760
    %808 = vmatpush.msra.mxu0 %v807
    %v809 = vand.u32 %v41, 4294901760
    %v810 = vsub.f32 %v41, %v809
    %v811 = vand.u32 %v810, 4294901760
    %812 = vmatpush.msra.mxu0 %v811
    %v813 = vand.u32 %v39, 4294901760
    %v814 = vsub.f32 %v39, %v813
    %v815 = vand.u32 %v814, 4294901760
    %816 = vmatpush.msra.mxu0 %v815
    %v817 = vand.u32 %v37, 4294901760
    %v818 = vsub.f32 %v37, %v817
    %v819 = vand.u32 %v818, 4294901760
    %820 = vmatpush.msra.mxu0 %v819
    %v821 = vand.u32 %v35, 4294901760
    %v822 = vsub.f32 %v35, %v821
    %v823 = vand.u32 %v822, 4294901760
    %824 = vmatpush.msra.mxu0 %v823
    %v825 = vand.u32 %v33, 4294901760
    %v826 = vsub.f32 %v33, %v825
    %v827 = vand.u32 %v826, 4294901760
    %828 = vmatpush.msra.mxu0 %v827
    %v829 = vand.u32 %v31, 4294901760
    %v830 = vsub.f32 %v31, %v829
    %v831 = vand.u32 %v830, 4294901760
    %832 = vmatpush.msra.mxu0 %v831
    %v833 = vand.u32 %v29, 4294901760
    %v834 = vsub.f32 %v29, %v833
    %v835 = vand.u32 %v834, 4294901760
    %836 = vmatpush.msra.mxu0 %v835
    %v837 = vand.u32 %v27, 4294901760
    %v838 = vsub.f32 %v27, %v837
    %v839 = vand.u32 %v838, 4294901760
    %840 = vmatpush.msra.mxu0 %v839
    %v841 = vand.u32 %v25, 4294901760
    %v842 = vsub.f32 %v25, %v841
    %v843 = vand.u32 %v842, 4294901760
    %844 = vmatpush.msra.mxu0 %v843
    %v845 = vand.u32 %v23, 4294901760
    %v846 = vsub.f32 %v23, %v845
    %v847 = vand.u32 %v846, 4294901760
    %848 = vmatpush.msra.mxu0 %v847
    %v849 = vand.u32 %v21, 4294901760
    %v850 = vsub.f32 %v21, %v849
    %v851 = vand.u32 %v850, 4294901760
    %852 = vmatpush.msra.mxu0 %v851
    %v853 = vand.u32 %v19, 4294901760
    %v854 = vsub.f32 %v19, %v853
    %v855 = vand.u32 %v854, 4294901760
    %856 = vmatpush.msra.mxu0 %v855
    %v857 = vand.u32 %v17, 4294901760
    %v858 = vsub.f32 %v17, %v857
    %v859 = vand.u32 %v858, 4294901760
    %860 = vmatpush.msra.mxu0 %v859
    %v861 = vand.u32 %v15, 4294901760
    %v862 = vsub.f32 %v15, %v861
    %v863 = vand.u32 %v862, 4294901760
    %864 = vmatpush.msra.mxu0 %v863
    %v865 = vand.u32 %v401, 4294901760
    %866 = vmatmul.f32.gmra.mxu0 %v865
    %v867 = vpop.f32.mrf.mxu0
    %v868 = vadd.f32 %v763, %v867
    %v869 = vand.u32 %v402, 4294901760
    %870 = vmatmul.f32.gmra.mxu0 %v869
    %v871 = vpop.f32.mrf.mxu0
    %v872 = vadd.f32 %v769, %v871
    %v873 = vand.u32 %v403, 4294901760
    %874 = vmatmul.f32.gmra.mxu0 %v873
    %v875 = vpop.f32.mrf.mxu0
    %v876 = vadd.f32 %v775, %v875
    %v877 = vand.u32 %v404, 4294901760
    %878 = vmatmul.f32.gmra.mxu0 %v877
    %v879 = vpop.f32.mrf.mxu0
    %v880 = vadd.f32 %v781, %v879
    %v881 = vand.u32 %v405, 4294901760
    %882 = vmatmul.f32.gmra.mxu0 %v881
    %v883 = vpop.f32.mrf.mxu0
    %v884 = vadd.f32 %v787, %v883
    %v885 = vand.u32 %v406, 4294901760
    %886 = vmatmul.f32.gmra.mxu0 %v885
    %v887 = vpop.f32.mrf.mxu0
    %v888 = vadd.f32 %v793, %v887
    %v889 = vand.u32 %v407, 4294901760
    %890 = vmatmul.f32.gmra.mxu0 %v889
    %v891 = vpop.f32.mrf.mxu0
    %v892 = vadd.f32 %v799, %v891
    %893 = vdwg.mxu0
    %v894 = vand.u32 %v45, 4294901760
    %895 = vmatpush.msra.mxu0 %v894
    %v896 = vand.u32 %v43, 4294901760
    %897 = vmatpush.msra.mxu0 %v896
    %v898 = vand.u32 %v41, 4294901760
    %899 = vmatpush.msra.mxu0 %v898
    %v900 = vand.u32 %v39, 4294901760
    %901 = vmatpush.msra.mxu0 %v900
    %v902 = vand.u32 %v37, 4294901760
    %903 = vmatpush.msra.mxu0 %v902
    %v904 = vand.u32 %v35, 4294901760
    %905 = vmatpush.msra.mxu0 %v904
    %v906 = vand.u32 %v33, 4294901760
    %907 = vmatpush.msra.mxu0 %v906
    %v908 = vand.u32 %v31, 4294901760
    %909 = vmatpush.msra.mxu0 %v908
    %v910 = vand.u32 %v29, 4294901760
    %911 = vmatpush.msra.mxu0 %v910
    %v912 = vand.u32 %v27, 4294901760
    %913 = vmatpush.msra.mxu0 %v912
    %v914 = vand.u32 %v25, 4294901760
    %915 = vmatpush.msra.mxu0 %v914
    %v916 = vand.u32 %v23, 4294901760
    %917 = vmatpush.msra.mxu0 %v916
    %v918 = vand.u32 %v21, 4294901760
    %919 = vmatpush.msra.mxu0 %v918
    %v920 = vand.u32 %v19, 4294901760
    %921 = vmatpush.msra.mxu0 %v920
    %v922 = vand.u32 %v17, 4294901760
    %923 = vmatpush.msra.mxu0 %v922
    %v924 = vand.u32 %v15, 4294901760
    %925 = vmatpush.msra.mxu0 %v924
    %v926 = vand.u32 %v401, 4294901760
    %927 = vmatmul.f32.gmra.mxu0 %v926
    %v928 = vpop.f32.mrf.mxu0
    %v929 = vadd.f32 %v868, %v928
    %v930 = vand.u32 %v402, 4294901760
    %931 = vmatmul.f32.gmra.mxu0 %v930
    %v932 = vpop.f32.mrf.mxu0
    %v933 = vadd.f32 %v872, %v932
    %v934 = vand.u32 %v403, 4294901760
    %935 = vmatmul.f32.gmra.mxu0 %v934
    %v936 = vpop.f32.mrf.mxu0
    %v937 = vadd.f32 %v876, %v936
    %v938 = vand.u32 %v404, 4294901760
    %939 = vmatmul.f32.gmra.mxu0 %v938
    %v940 = vpop.f32.mrf.mxu0
    %v941 = vadd.f32 %v880, %v940
    %v942 = vand.u32 %v405, 4294901760
    %943 = vmatmul.f32.gmra.mxu0 %v942
    %v944 = vpop.f32.mrf.mxu0
    %v945 = vadd.f32 %v884, %v944
    %v946 = vand.u32 %v406, 4294901760
    %947 = vmatmul.f32.gmra.mxu0 %v946
    %v948 = vpop.f32.mrf.mxu0
    %v949 = vadd.f32 %v888, %v948
    %v950 = vand.u32 %v407, 4294901760
    %951 = vmatmul.f32.gmra.mxu0 %v950
    %v952 = vpop.f32.mrf.mxu0
    %v953 = vadd.f32 %v892, %v952
    %954 = vdwg.mxu0
    %955 = vmatpush.msra.mxu0 0.0
    %956 = vmatpush.msra.mxu0 0.0
    %957 = vmatpush.msra.mxu0 0.0
    %958 = vmatpush.msra.mxu0 0.0
    %959 = vmatpush.msra.mxu0 0.0
    %960 = vmatpush.msra.mxu0 0.0
    %961 = vmatpush.msra.mxu0 0.0
    %962 = vmatpush.msra.mxu0 0.0
    %963 = vmatpush.msra.mxu0 0.0
    %964 = vmatpush.msra.mxu0 0.0
    %965 = vmatpush.msra.mxu0 0.0
    %966 = vmatpush.msra.mxu0 0.0
    %v967 = vand.u32 %v53, 4294901760
    %968 = vmatpush.msra.mxu0 %v967
    %v969 = vand.u32 %v51, 4294901760
    %970 = vmatpush.msra.mxu0 %v969
    %v971 = vand.u32 %v49, 4294901760
    %972 = vmatpush.msra.mxu0 %v971
    %v973 = vand.u32 %v47, 4294901760
    %974 = vmatpush.msra.mxu0 %v973
    %v975 = vand.u32 %v413, 4294901760
    %v976 = vsub.f32 %v413, %v975
    %v977 = vand.u32 %v976, 4294901760
    %v978 = vsub.f32 %v976, %v977
    %v979 = vand.u32 %v978, 4294901760
    %980 = vmatmul.f32.gmra.mxu0 %v979
    %v981 = vpop.f32.mrf.mxu0
    %v982 = vadd.f32 %v929, %v981
    %v983 = vand.u32 %v415, 4294901760
    %v984 = vsub.f32 %v415, %v983
    %v985 = vand.u32 %v984, 4294901760
    %v986 = vsub.f32 %v984, %v985
    %v987 = vand.u32 %v986, 4294901760
    %988 = vmatmul.f32.gmra.mxu0 %v987
    %v989 = vpop.f32.mrf.mxu0
    %v990 = vadd.f32 %v933, %v989
    %v991 = vand.u32 %v417, 4294901760
    %v992 = vsub.f32 %v417, %v991
    %v993 = vand.u32 %v992, 4294901760
    %v994 = vsub.f32 %v992, %v993
    %v995 = vand.u32 %v994, 4294901760
    %996 = vmatmul.f32.gmra.mxu0 %v995
    %v997 = vpop.f32.mrf.mxu0
    %v998 = vadd.f32 %v937, %v997
    %v999 = vand.u32 %v420, 4294901760
    %v1000 = vsub.f32 %v420, %v999
    %v1001 = vand.u32 %v1000, 4294901760
    %v1002 = vsub.f32 %v1000, %v1001
    %v1003 = vand.u32 %v1002, 4294901760
    %1004 = vmatmul.f32.gmra.mxu0 %v1003
    %v1005 = vpop.f32.mrf.mxu0
    %v1006 = vadd.f32 %v941, %v1005
    %v1007 = vand.u32 %v422, 4294901760
    %v1008 = vsub.f32 %v422, %v1007
    %v1009 = vand.u32 %v1008, 4294901760
    %v1010 = vsub.f32 %v1008, %v1009
    %v1011 = vand.u32 %v1010, 4294901760
    %1012 = vmatmul.f32.gmra.mxu0 %v1011
    %v1013 = vpop.f32.mrf.mxu0
    %v1014 = vadd.f32 %v945, %v1013
    %v1015 = vand.u32 %v424, 4294901760
    %v1016 = vsub.f32 %v424, %v1015
    %v1017 = vand.u32 %v1016, 4294901760
    %v1018 = vsub.f32 %v1016, %v1017
    %v1019 = vand.u32 %v1018, 4294901760
    %1020 = vmatmul.f32.gmra.mxu0 %v1019
    %v1021 = vpop.f32.mrf.mxu0
    %v1022 = vadd.f32 %v949, %v1021
    %v1023 = vand.u32 %v426, 4294901760
    %v1024 = vsub.f32 %v426, %v1023
    %v1025 = vand.u32 %v1024, 4294901760
    %v1026 = vsub.f32 %v1024, %v1025
    %v1027 = vand.u32 %v1026, 4294901760
    %1028 = vmatmul.f32.gmra.mxu0 %v1027
    %v1029 = vpop.f32.mrf.mxu0
    %v1030 = vadd.f32 %v953, %v1029
    %1031 = vdwg.mxu0
    %1032 = vmatpush.msra.mxu0 0.0
    %1033 = vmatpush.msra.mxu0 0.0
    %1034 = vmatpush.msra.mxu0 0.0
    %1035 = vmatpush.msra.mxu0 0.0
    %1036 = vmatpush.msra.mxu0 0.0
    %1037 = vmatpush.msra.mxu0 0.0
    %1038 = vmatpush.msra.mxu0 0.0
    %1039 = vmatpush.msra.mxu0 0.0
    %1040 = vmatpush.msra.mxu0 0.0
    %1041 = vmatpush.msra.mxu0 0.0
    %1042 = vmatpush.msra.mxu0 0.0
    %1043 = vmatpush.msra.mxu0 0.0
    %v1044 = vand.u32 %v53, 4294901760
    %v1045 = vsub.f32 %v53, %v1044
    %v1046 = vand.u32 %v1045, 4294901760
    %v1047 = vsub.f32 %v1045, %v1046
    %v1048 = vand.u32 %v1047, 4294901760
    %1049 = vmatpush.msra.mxu0 %v1048
    %v1050 = vand.u32 %v51, 4294901760
    %v1051 = vsub.f32 %v51, %v1050
    %v1052 = vand.u32 %v1051, 4294901760
    %v1053 = vsub.f32 %v1051, %v1052
    %v1054 = vand.u32 %v1053, 4294901760
    %1055 = vmatpush.msra.mxu0 %v1054
    %v1056 = vand.u32 %v49, 4294901760
    %v1057 = vsub.f32 %v49, %v1056
    %v1058 = vand.u32 %v1057, 4294901760
    %v1059 = vsub.f32 %v1057, %v1058
    %v1060 = vand.u32 %v1059, 4294901760
    %1061 = vmatpush.msra.mxu0 %v1060
    %v1062 = vand.u32 %v47, 4294901760
    %v1063 = vsub.f32 %v47, %v1062
    %v1064 = vand.u32 %v1063, 4294901760
    %v1065 = vsub.f32 %v1063, %v1064
    %v1066 = vand.u32 %v1065, 4294901760
    %1067 = vmatpush.msra.mxu0 %v1066
    %v1068 = vand.u32 %v413, 4294901760
    %1069 = vmatmul.f32.gmra.mxu0 %v1068
    %v1070 = vpop.f32.mrf.mxu0
    %v1071 = vadd.f32 %v982, %v1070
    %v1072 = vand.u32 %v415, 4294901760
    %1073 = vmatmul.f32.gmra.mxu0 %v1072
    %v1074 = vpop.f32.mrf.mxu0
    %v1075 = vadd.f32 %v990, %v1074
    %v1076 = vand.u32 %v417, 4294901760
    %1077 = vmatmul.f32.gmra.mxu0 %v1076
    %v1078 = vpop.f32.mrf.mxu0
    %v1079 = vadd.f32 %v998, %v1078
    %v1080 = vand.u32 %v420, 4294901760
    %1081 = vmatmul.f32.gmra.mxu0 %v1080
    %v1082 = vpop.f32.mrf.mxu0
    %v1083 = vadd.f32 %v1006, %v1082
    %v1084 = vand.u32 %v422, 4294901760
    %1085 = vmatmul.f32.gmra.mxu0 %v1084
    %v1086 = vpop.f32.mrf.mxu0
    %v1087 = vadd.f32 %v1014, %v1086
    %v1088 = vand.u32 %v424, 4294901760
    %1089 = vmatmul.f32.gmra.mxu0 %v1088
    %v1090 = vpop.f32.mrf.mxu0
    %v1091 = vadd.f32 %v1022, %v1090
    %v1092 = vand.u32 %v426, 4294901760
    %1093 = vmatmul.f32.gmra.mxu0 %v1092
    %v1094 = vpop.f32.mrf.mxu0
    %v1095 = vadd.f32 %v1030, %v1094
    %1096 = vdwg.mxu0
    %1097 = vmatpush.msra.mxu0 0.0
    %1098 = vmatpush.msra.mxu0 0.0
    %1099 = vmatpush.msra.mxu0 0.0
    %1100 = vmatpush.msra.mxu0 0.0
    %1101 = vmatpush.msra.mxu0 0.0
    %1102 = vmatpush.msra.mxu0 0.0
    %1103 = vmatpush.msra.mxu0 0.0
    %1104 = vmatpush.msra.mxu0 0.0
    %1105 = vmatpush.msra.mxu0 0.0
    %1106 = vmatpush.msra.mxu0 0.0
    %1107 = vmatpush.msra.mxu0 0.0
    %1108 = vmatpush.msra.mxu0 0.0
    %v1109 = vand.u32 %v53, 4294901760
    %v1110 = vsub.f32 %v53, %v1109
    %1111 = vmatpush.msra.mxu0 %v1110
    %v1112 = vand.u32 %v51, 4294901760
    %v1113 = vsub.f32 %v51, %v1112
    %1114 = vmatpush.msra.mxu0 %v1113
    %v1115 = vand.u32 %v49, 4294901760
    %v1116 = vsub.f32 %v49, %v1115
    %1117 = vmatpush.msra.mxu0 %v1116
    %v1118 = vand.u32 %v47, 4294901760
    %v1119 = vsub.f32 %v47, %v1118
    %1120 = vmatpush.msra.mxu0 %v1119
    %v1121 = vand.u32 %v413, 4294901760
    %v1122 = vsub.f32 %v413, %v1121
    %1123 = vmatmul.f32.gmra.mxu0 %v1122
    %v1124 = vpop.f32.mrf.mxu0
    %v1125 = vadd.f32 %v1071, %v1124
    %v1126 = vand.u32 %v415, 4294901760
    %v1127 = vsub.f32 %v415, %v1126
    %1128 = vmatmul.f32.gmra.mxu0 %v1127
    %v1129 = vpop.f32.mrf.mxu0
    %v1130 = vadd.f32 %v1075, %v1129
    %v1131 = vand.u32 %v417, 4294901760
    %v1132 = vsub.f32 %v417, %v1131
    %1133 = vmatmul.f32.gmra.mxu0 %v1132
    %v1134 = vpop.f32.mrf.mxu0
    %v1135 = vadd.f32 %v1079, %v1134
    %v1136 = vand.u32 %v420, 4294901760
    %v1137 = vsub.f32 %v420, %v1136
    %1138 = vmatmul.f32.gmra.mxu0 %v1137
    %v1139 = vpop.f32.mrf.mxu0
    %v1140 = vadd.f32 %v1083, %v1139
    %v1141 = vand.u32 %v422, 4294901760
    %v1142 = vsub.f32 %v422, %v1141
    %1143 = vmatmul.f32.gmra.mxu0 %v1142
    %v1144 = vpop.f32.mrf.mxu0
    %v1145 = vadd.f32 %v1087, %v1144
    %v1146 = vand.u32 %v424, 4294901760
    %v1147 = vsub.f32 %v424, %v1146
    %1148 = vmatmul.f32.gmra.mxu0 %v1147
    %v1149 = vpop.f32.mrf.mxu0
    %v1150 = vadd.f32 %v1091, %v1149
    %v1151 = vand.u32 %v426, 4294901760
    %v1152 = vsub.f32 %v426, %v1151
    %1153 = vmatmul.f32.gmra.mxu0 %v1152
    %v1154 = vpop.f32.mrf.mxu0
    %v1155 = vadd.f32 %v1095, %v1154
    %1156 = vdwg.mxu0
    %1157 = vmatpush.msra.mxu0 0.0
    %1158 = vmatpush.msra.mxu0 0.0
    %1159 = vmatpush.msra.mxu0 0.0
    %1160 = vmatpush.msra.mxu0 0.0
    %1161 = vmatpush.msra.mxu0 0.0
    %1162 = vmatpush.msra.mxu0 0.0
    %1163 = vmatpush.msra.mxu0 0.0
    %1164 = vmatpush.msra.mxu0 0.0
    %1165 = vmatpush.msra.mxu0 0.0
    %1166 = vmatpush.msra.mxu0 0.0
    %1167 = vmatpush.msra.mxu0 0.0
    %1168 = vmatpush.msra.mxu0 0.0
    %v1169 = vand.u32 %v53, 4294901760
    %1170 = vmatpush.msra.mxu0 %v1169
    %v1171 = vand.u32 %v51, 4294901760
    %1172 = vmatpush.msra.mxu0 %v1171
    %v1173 = vand.u32 %v49, 4294901760
    %1174 = vmatpush.msra.mxu0 %v1173
    %v1175 = vand.u32 %v47, 4294901760
    %1176 = vmatpush.msra.mxu0 %v1175
    %v1177 = vand.u32 %v413, 4294901760
    %v1178 = vsub.f32 %v413, %v1177
    %v1179 = vand.u32 %v1178, 4294901760
    %1180 = vmatmul.f32.gmra.mxu0 %v1179
    %v1181 = vpop.f32.mrf.mxu0
    %v1182 = vadd.f32 %v1125, %v1181
    %v1183 = vand.u32 %v415, 4294901760
    %v1184 = vsub.f32 %v415, %v1183
    %v1185 = vand.u32 %v1184, 4294901760
    %1186 = vmatmul.f32.gmra.mxu0 %v1185
    %v1187 = vpop.f32.mrf.mxu0
    %v1188 = vadd.f32 %v1130, %v1187
    %v1189 = vand.u32 %v417, 4294901760
    %v1190 = vsub.f32 %v417, %v1189
    %v1191 = vand.u32 %v1190, 4294901760
    %1192 = vmatmul.f32.gmra.mxu0 %v1191
    %v1193 = vpop.f32.mrf.mxu0
    %v1194 = vadd.f32 %v1135, %v1193
    %v1195 = vand.u32 %v420, 4294901760
    %v1196 = vsub.f32 %v420, %v1195
    %v1197 = vand.u32 %v1196, 4294901760
    %1198 = vmatmul.f32.gmra.mxu0 %v1197
    %v1199 = vpop.f32.mrf.mxu0
    %v1200 = vadd.f32 %v1140, %v1199
    %v1201 = vand.u32 %v422, 4294901760
    %v1202 = vsub.f32 %v422, %v1201
    %v1203 = vand.u32 %v1202, 4294901760
    %1204 = vmatmul.f32.gmra.mxu0 %v1203
    %v1205 = vpop.f32.mrf.mxu0
    %v1206 = vadd.f32 %v1145, %v1205
    %v1207 = vand.u32 %v424, 4294901760
    %v1208 = vsub.f32 %v424, %v1207
    %v1209 = vand.u32 %v1208, 4294901760
    %1210 = vmatmul.f32.gmra.mxu0 %v1209
    %v1211 = vpop.f32.mrf.mxu0
    %v1212 = vadd.f32 %v1150, %v1211
    %v1213 = vand.u32 %v426, 4294901760
    %v1214 = vsub.f32 %v426, %v1213
    %v1215 = vand.u32 %v1214, 4294901760
    %1216 = vmatmul.f32.gmra.mxu0 %v1215
    %v1217 = vpop.f32.mrf.mxu0
    %v1218 = vadd.f32 %v1155, %v1217
    %1219 = vdwg.mxu0
    %1220 = vmatpush.msra.mxu0 0.0
    %1221 = vmatpush.msra.mxu0 0.0
    %1222 = vmatpush.msra.mxu0 0.0
    %1223 = vmatpush.msra.mxu0 0.0
    %1224 = vmatpush.msra.mxu0 0.0
    %1225 = vmatpush.msra.mxu0 0.0
    %1226 = vmatpush.msra.mxu0 0.0
    %1227 = vmatpush.msra.mxu0 0.0
    %1228 = vmatpush.msra.mxu0 0.0
    %1229 = vmatpush.msra.mxu0 0.0
    %1230 = vmatpush.msra.mxu0 0.0
    %1231 = vmatpush.msra.mxu0 0.0
    %v1232 = vand.u32 %v53, 4294901760
    %v1233 = vsub.f32 %v53, %v1232
    %v1234 = vand.u32 %v1233, 4294901760
    %1235 = vmatpush.msra.mxu0 %v1234
    %v1236 = vand.u32 %v51, 4294901760
    %v1237 = vsub.f32 %v51, %v1236
    %v1238 = vand.u32 %v1237, 4294901760
    %1239 = vmatpush.msra.mxu0 %v1238
    %v1240 = vand.u32 %v49, 4294901760
    %v1241 = vsub.f32 %v49, %v1240
    %v1242 = vand.u32 %v1241, 4294901760
    %1243 = vmatpush.msra.mxu0 %v1242
    %v1244 = vand.u32 %v47, 4294901760
    %v1245 = vsub.f32 %v47, %v1244
    %v1246 = vand.u32 %v1245, 4294901760
    %1247 = vmatpush.msra.mxu0 %v1246
    %v1248 = vand.u32 %v413, 4294901760
    %1249 = vmatmul.f32.gmra.mxu0 %v1248
    %v1250 = vpop.f32.mrf.mxu0
    %v1251 = vadd.f32 %v1182, %v1250
    %v1252 = vand.u32 %v415, 4294901760
    %1253 = vmatmul.f32.gmra.mxu0 %v1252
    %v1254 = vpop.f32.mrf.mxu0
    %v1255 = vadd.f32 %v1188, %v1254
    %v1256 = vand.u32 %v417, 4294901760
    %1257 = vmatmul.f32.gmra.mxu0 %v1256
    %v1258 = vpop.f32.mrf.mxu0
    %v1259 = vadd.f32 %v1194, %v1258
    %v1260 = vand.u32 %v420, 4294901760
    %1261 = vmatmul.f32.gmra.mxu0 %v1260
    %v1262 = vpop.f32.mrf.mxu0
    %v1263 = vadd.f32 %v1200, %v1262
    %v1264 = vand.u32 %v422, 4294901760
    %1265 = vmatmul.f32.gmra.mxu0 %v1264
    %v1266 = vpop.f32.mrf.mxu0
    %v1267 = vadd.f32 %v1206, %v1266
    %v1268 = vand.u32 %v424, 4294901760
    %1269 = vmatmul.f32.gmra.mxu0 %v1268
    %v1270 = vpop.f32.mrf.mxu0
    %v1271 = vadd.f32 %v1212, %v1270
    %v1272 = vand.u32 %v426, 4294901760
    %1273 = vmatmul.f32.gmra.mxu0 %v1272
    %v1274 = vpop.f32.mrf.mxu0
    %v1275 = vadd.f32 %v1218, %v1274
    %1276 = vdwg.mxu0
    %1277 = vmatpush.msra.mxu0 0.0
    %1278 = vmatpush.msra.mxu0 0.0
    %1279 = vmatpush.msra.mxu0 0.0
    %1280 = vmatpush.msra.mxu0 0.0
    %1281 = vmatpush.msra.mxu0 0.0
    %1282 = vmatpush.msra.mxu0 0.0
    %1283 = vmatpush.msra.mxu0 0.0
    %1284 = vmatpush.msra.mxu0 0.0
    %1285 = vmatpush.msra.mxu0 0.0
    %1286 = vmatpush.msra.mxu0 0.0
    %1287 = vmatpush.msra.mxu0 0.0
    %1288 = vmatpush.msra.mxu0 0.0
    %v1289 = vand.u32 %v53, 4294901760
    %1290 = vmatpush.msra.mxu0 %v1289
    %v1291 = vand.u32 %v51, 4294901760
    %1292 = vmatpush.msra.mxu0 %v1291
    %v1293 = vand.u32 %v49, 4294901760
    %1294 = vmatpush.msra.mxu0 %v1293
    %v1295 = vand.u32 %v47, 4294901760
    %1296 = vmatpush.msra.mxu0 %v1295
    %v1297 = vand.u32 %v413, 4294901760
    %1298 = vmatmul.f32.gmra.mxu0 %v1297
    %v1299 = vpop.f32.mrf.mxu0
    %v1300 = vadd.f32 %v1251, %v1299
    %v1301 = vand.u32 %v415, 4294901760
    %1302 = vmatmul.f32.gmra.mxu0 %v1301
    %v1303 = vpop.f32.mrf.mxu0
    %v1304 = vadd.f32 %v1255, %v1303
    %v1305 = vand.u32 %v417, 4294901760
    %1306 = vmatmul.f32.gmra.mxu0 %v1305
    %v1307 = vpop.f32.mrf.mxu0
    %v1308 = vadd.f32 %v1259, %v1307
    %v1309 = vand.u32 %v420, 4294901760
    %1310 = vmatmul.f32.gmra.mxu0 %v1309
    %v1311 = vpop.f32.mrf.mxu0
    %v1312 = vadd.f32 %v1263, %v1311
    %v1313 = vand.u32 %v422, 4294901760
    %1314 = vmatmul.f32.gmra.mxu0 %v1313
    %v1315 = vpop.f32.mrf.mxu0
    %v1316 = vadd.f32 %v1267, %v1315
    %v1317 = vand.u32 %v424, 4294901760
    %1318 = vmatmul.f32.gmra.mxu0 %v1317
    %v1319 = vpop.f32.mrf.mxu0
    %v1320 = vadd.f32 %v1271, %v1319
    %v1321 = vand.u32 %v426, 4294901760
    %1322 = vmatmul.f32.gmra.mxu0 %v1321
    %v1323 = vpop.f32.mrf.mxu0
    %v1324 = vadd.f32 %v1275, %v1323
    %1325 = vdwg.mxu0
    %v1326 = vand.u32 %v46, 4294901760
    %1327 = vmatpush.msra.mxu0 %v1326
    %v1328 = vand.u32 %v44, 4294901760
    %1329 = vmatpush.msra.mxu0 %v1328
    %v1330 = vand.u32 %v42, 4294901760
    %1331 = vmatpush.msra.mxu0 %v1330
    %v1332 = vand.u32 %v40, 4294901760
    %1333 = vmatpush.msra.mxu0 %v1332
    %v1334 = vand.u32 %v38, 4294901760
    %1335 = vmatpush.msra.mxu0 %v1334
    %v1336 = vand.u32 %v36, 4294901760
    %1337 = vmatpush.msra.mxu0 %v1336
    %v1338 = vand.u32 %v34, 4294901760
    %1339 = vmatpush.msra.mxu0 %v1338
    %v1340 = vand.u32 %v32, 4294901760
    %1341 = vmatpush.msra.mxu0 %v1340
    %v1342 = vand.u32 %v30, 4294901760
    %1343 = vmatpush.msra.mxu0 %v1342
    %v1344 = vand.u32 %v28, 4294901760
    %1345 = vmatpush.msra.mxu0 %v1344
    %v1346 = vand.u32 %v26, 4294901760
    %1347 = vmatpush.msra.mxu0 %v1346
    %v1348 = vand.u32 %v24, 4294901760
    %1349 = vmatpush.msra.mxu0 %v1348
    %v1350 = vand.u32 %v22, 4294901760
    %1351 = vmatpush.msra.mxu0 %v1350
    %v1352 = vand.u32 %v20, 4294901760
    %1353 = vmatpush.msra.mxu0 %v1352
    %v1354 = vand.u32 %v18, 4294901760
    %1355 = vmatpush.msra.mxu0 %v1354
    %v1356 = vand.u32 %v16, 4294901760
    %1357 = vmatpush.msra.mxu0 %v1356
    %v1358 = vand.u32 %v401, 4294901760
    %v1359 = vsub.f32 %v401, %v1358
    %v1360 = vand.u32 %v1359, 4294901760
    %v1361 = vsub.f32 %v1359, %v1360
    %v1362 = vand.u32 %v1361, 4294901760
    %1363 = vmatmul.f32.gmra.mxu0 %v1362
    %v1364 = vpop.f32.mrf.mxu0
    %v1365 = vadd.f32 %v410, %v1364
    %v1366 = vand.u32 %v402, 4294901760
    %v1367 = vsub.f32 %v402, %v1366
    %v1368 = vand.u32 %v1367, 4294901760
    %v1369 = vsub.f32 %v1367, %v1368
    %v1370 = vand.u32 %v1369, 4294901760
    %1371 = vmatmul.f32.gmra.mxu0 %v1370
    %v1372 = vpop.f32.mrf.mxu0
    %v1373 = vadd.f32 %v410, %v1372
    %v1374 = vand.u32 %v403, 4294901760
    %v1375 = vsub.f32 %v403, %v1374
    %v1376 = vand.u32 %v1375, 4294901760
    %v1377 = vsub.f32 %v1375, %v1376
    %v1378 = vand.u32 %v1377, 4294901760
    %1379 = vmatmul.f32.gmra.mxu0 %v1378
    %v1380 = vpop.f32.mrf.mxu0
    %v1381 = vadd.f32 %v410, %v1380
    %v1382 = vand.u32 %v404, 4294901760
    %v1383 = vsub.f32 %v404, %v1382
    %v1384 = vand.u32 %v1383, 4294901760
    %v1385 = vsub.f32 %v1383, %v1384
    %v1386 = vand.u32 %v1385, 4294901760
    %1387 = vmatmul.f32.gmra.mxu0 %v1386
    %v1388 = vpop.f32.mrf.mxu0
    %v1389 = vadd.f32 %v410, %v1388
    %v1390 = vand.u32 %v405, 4294901760
    %v1391 = vsub.f32 %v405, %v1390
    %v1392 = vand.u32 %v1391, 4294901760
    %v1393 = vsub.f32 %v1391, %v1392
    %v1394 = vand.u32 %v1393, 4294901760
    %1395 = vmatmul.f32.gmra.mxu0 %v1394
    %v1396 = vpop.f32.mrf.mxu0
    %v1397 = vadd.f32 %v410, %v1396
    %v1398 = vand.u32 %v406, 4294901760
    %v1399 = vsub.f32 %v406, %v1398
    %v1400 = vand.u32 %v1399, 4294901760
    %v1401 = vsub.f32 %v1399, %v1400
    %v1402 = vand.u32 %v1401, 4294901760
    %1403 = vmatmul.f32.gmra.mxu0 %v1402
    %v1404 = vpop.f32.mrf.mxu0
    %v1405 = vadd.f32 %v410, %v1404
    %v1406 = vand.u32 %v407, 4294901760
    %v1407 = vsub.f32 %v407, %v1406
    %v1408 = vand.u32 %v1407, 4294901760
    %v1409 = vsub.f32 %v1407, %v1408
    %v1410 = vand.u32 %v1409, 4294901760
    %1411 = vmatmul.f32.gmra.mxu0 %v1410
    %v1412 = vpop.f32.mrf.mxu0
    %v1413 = vadd.f32 %v410, %v1412
    %1414 = vdwg.mxu0
    %v1415 = vand.u32 %v46, 4294901760
    %v1416 = vsub.f32 %v46, %v1415
    %v1417 = vand.u32 %v1416, 4294901760
    %v1418 = vsub.f32 %v1416, %v1417
    %v1419 = vand.u32 %v1418, 4294901760
    %1420 = vmatpush.msra.mxu0 %v1419
    %v1421 = vand.u32 %v44, 4294901760
    %v1422 = vsub.f32 %v44, %v1421
    %v1423 = vand.u32 %v1422, 4294901760
    %v1424 = vsub.f32 %v1422, %v1423
    %v1425 = vand.u32 %v1424, 4294901760
    %1426 = vmatpush.msra.mxu0 %v1425
    %v1427 = vand.u32 %v42, 4294901760
    %v1428 = vsub.f32 %v42, %v1427
    %v1429 = vand.u32 %v1428, 4294901760
    %v1430 = vsub.f32 %v1428, %v1429
    %v1431 = vand.u32 %v1430, 4294901760
    %1432 = vmatpush.msra.mxu0 %v1431
    %v1433 = vand.u32 %v40, 4294901760
    %v1434 = vsub.f32 %v40, %v1433
    %v1435 = vand.u32 %v1434, 4294901760
    %v1436 = vsub.f32 %v1434, %v1435
    %v1437 = vand.u32 %v1436, 4294901760
    %1438 = vmatpush.msra.mxu0 %v1437
    %v1439 = vand.u32 %v38, 4294901760
    %v1440 = vsub.f32 %v38, %v1439
    %v1441 = vand.u32 %v1440, 4294901760
    %v1442 = vsub.f32 %v1440, %v1441
    %v1443 = vand.u32 %v1442, 4294901760
    %1444 = vmatpush.msra.mxu0 %v1443
    %v1445 = vand.u32 %v36, 4294901760
    %v1446 = vsub.f32 %v36, %v1445
    %v1447 = vand.u32 %v1446, 4294901760
    %v1448 = vsub.f32 %v1446, %v1447
    %v1449 = vand.u32 %v1448, 4294901760
    %1450 = vmatpush.msra.mxu0 %v1449
    %v1451 = vand.u32 %v34, 4294901760
    %v1452 = vsub.f32 %v34, %v1451
    %v1453 = vand.u32 %v1452, 4294901760
    %v1454 = vsub.f32 %v1452, %v1453
    %v1455 = vand.u32 %v1454, 4294901760
    %1456 = vmatpush.msra.mxu0 %v1455
    %v1457 = vand.u32 %v32, 4294901760
    %v1458 = vsub.f32 %v32, %v1457
    %v1459 = vand.u32 %v1458, 4294901760
    %v1460 = vsub.f32 %v1458, %v1459
    %v1461 = vand.u32 %v1460, 4294901760
    %1462 = vmatpush.msra.mxu0 %v1461
    %v1463 = vand.u32 %v30, 4294901760
    %v1464 = vsub.f32 %v30, %v1463
    %v1465 = vand.u32 %v1464, 4294901760
    %v1466 = vsub.f32 %v1464, %v1465
    %v1467 = vand.u32 %v1466, 4294901760
    %1468 = vmatpush.msra.mxu0 %v1467
    %v1469 = vand.u32 %v28, 4294901760
    %v1470 = vsub.f32 %v28, %v1469
    %v1471 = vand.u32 %v1470, 4294901760
    %v1472 = vsub.f32 %v1470, %v1471
    %v1473 = vand.u32 %v1472, 4294901760
    %1474 = vmatpush.msra.mxu0 %v1473
    %v1475 = vand.u32 %v26, 4294901760
    %v1476 = vsub.f32 %v26, %v1475
    %v1477 = vand.u32 %v1476, 4294901760
    %v1478 = vsub.f32 %v1476, %v1477
    %v1479 = vand.u32 %v1478, 4294901760
    %1480 = vmatpush.msra.mxu0 %v1479
    %v1481 = vand.u32 %v24, 4294901760
    %v1482 = vsub.f32 %v24, %v1481
    %v1483 = vand.u32 %v1482, 4294901760
    %v1484 = vsub.f32 %v1482, %v1483
    %v1485 = vand.u32 %v1484, 4294901760
    %1486 = vmatpush.msra.mxu0 %v1485
    %v1487 = vand.u32 %v22, 4294901760
    %v1488 = vsub.f32 %v22, %v1487
    %v1489 = vand.u32 %v1488, 4294901760
    %v1490 = vsub.f32 %v1488, %v1489
    %v1491 = vand.u32 %v1490, 4294901760
    %1492 = vmatpush.msra.mxu0 %v1491
    %v1493 = vand.u32 %v20, 4294901760
    %v1494 = vsub.f32 %v20, %v1493
    %v1495 = vand.u32 %v1494, 4294901760
    %v1496 = vsub.f32 %v1494, %v1495
    %v1497 = vand.u32 %v1496, 4294901760
    %1498 = vmatpush.msra.mxu0 %v1497
    %v1499 = vand.u32 %v18, 4294901760
    %v1500 = vsub.f32 %v18, %v1499
    %v1501 = vand.u32 %v1500, 4294901760
    %v1502 = vsub.f32 %v1500, %v1501
    %v1503 = vand.u32 %v1502, 4294901760
    %1504 = vmatpush.msra.mxu0 %v1503
    %v1505 = vand.u32 %v16, 4294901760
    %v1506 = vsub.f32 %v16, %v1505
    %v1507 = vand.u32 %v1506, 4294901760
    %v1508 = vsub.f32 %v1506, %v1507
    %v1509 = vand.u32 %v1508, 4294901760
    %1510 = vmatpush.msra.mxu0 %v1509
    %v1511 = vand.u32 %v401, 4294901760
    %1512 = vmatmul.f32.gmra.mxu0 %v1511
    %v1513 = vpop.f32.mrf.mxu0
    %v1514 = vadd.f32 %v1365, %v1513
    %v1515 = vand.u32 %v402, 4294901760
    %1516 = vmatmul.f32.gmra.mxu0 %v1515
    %v1517 = vpop.f32.mrf.mxu0
    %v1518 = vadd.f32 %v1373, %v1517
    %v1519 = vand.u32 %v403, 4294901760
    %1520 = vmatmul.f32.gmra.mxu0 %v1519
    %v1521 = vpop.f32.mrf.mxu0
    %v1522 = vadd.f32 %v1381, %v1521
    %v1523 = vand.u32 %v404, 4294901760
    %1524 = vmatmul.f32.gmra.mxu0 %v1523
    %v1525 = vpop.f32.mrf.mxu0
    %v1526 = vadd.f32 %v1389, %v1525
    %v1527 = vand.u32 %v405, 4294901760
    %1528 = vmatmul.f32.gmra.mxu0 %v1527
    %v1529 = vpop.f32.mrf.mxu0
    %v1530 = vadd.f32 %v1397, %v1529
    %v1531 = vand.u32 %v406, 4294901760
    %1532 = vmatmul.f32.gmra.mxu0 %v1531
    %v1533 = vpop.f32.mrf.mxu0
    %v1534 = vadd.f32 %v1405, %v1533
    %v1535 = vand.u32 %v407, 4294901760
    %1536 = vmatmul.f32.gmra.mxu0 %v1535
    %v1537 = vpop.f32.mrf.mxu0
    %v1538 = vadd.f32 %v1413, %v1537
    %1539 = vdwg.mxu0
    %v1540 = vand.u32 %v46, 4294901760
    %v1541 = vsub.f32 %v46, %v1540
    %1542 = vmatpush.msra.mxu0 %v1541
    %v1543 = vand.u32 %v44, 4294901760
    %v1544 = vsub.f32 %v44, %v1543
    %1545 = vmatpush.msra.mxu0 %v1544
    %v1546 = vand.u32 %v42, 4294901760
    %v1547 = vsub.f32 %v42, %v1546
    %1548 = vmatpush.msra.mxu0 %v1547
    %v1549 = vand.u32 %v40, 4294901760
    %v1550 = vsub.f32 %v40, %v1549
    %1551 = vmatpush.msra.mxu0 %v1550
    %v1552 = vand.u32 %v38, 4294901760
    %v1553 = vsub.f32 %v38, %v1552
    %1554 = vmatpush.msra.mxu0 %v1553
    %v1555 = vand.u32 %v36, 4294901760
    %v1556 = vsub.f32 %v36, %v1555
    %1557 = vmatpush.msra.mxu0 %v1556
    %v1558 = vand.u32 %v34, 4294901760
    %v1559 = vsub.f32 %v34, %v1558
    %1560 = vmatpush.msra.mxu0 %v1559
    %v1561 = vand.u32 %v32, 4294901760
    %v1562 = vsub.f32 %v32, %v1561
    %1563 = vmatpush.msra.mxu0 %v1562
    %v1564 = vand.u32 %v30, 4294901760
    %v1565 = vsub.f32 %v30, %v1564
    %1566 = vmatpush.msra.mxu0 %v1565
    %v1567 = vand.u32 %v28, 4294901760
    %v1568 = vsub.f32 %v28, %v1567
    %1569 = vmatpush.msra.mxu0 %v1568
    %v1570 = vand.u32 %v26, 4294901760
    %v1571 = vsub.f32 %v26, %v1570
    %1572 = vmatpush.msra.mxu0 %v1571
    %v1573 = vand.u32 %v24, 4294901760
    %v1574 = vsub.f32 %v24, %v1573
    %1575 = vmatpush.msra.mxu0 %v1574
    %v1576 = vand.u32 %v22, 4294901760
    %v1577 = vsub.f32 %v22, %v1576
    %1578 = vmatpush.msra.mxu0 %v1577
    %v1579 = vand.u32 %v20, 4294901760
    %v1580 = vsub.f32 %v20, %v1579
    %1581 = vmatpush.msra.mxu0 %v1580
    %v1582 = vand.u32 %v18, 4294901760
    %v1583 = vsub.f32 %v18, %v1582
    %1584 = vmatpush.msra.mxu0 %v1583
    %v1585 = vand.u32 %v16, 4294901760
    %v1586 = vsub.f32 %v16, %v1585
    %1587 = vmatpush.msra.mxu0 %v1586
    %v1588 = vand.u32 %v401, 4294901760
    %v1589 = vsub.f32 %v401, %v1588
    %1590 = vmatmul.f32.gmra.mxu0 %v1589
    %v1591 = vpop.f32.mrf.mxu0
    %v1592 = vadd.f32 %v1514, %v1591
    %v1593 = vand.u32 %v402, 4294901760
    %v1594 = vsub.f32 %v402, %v1593
    %1595 = vmatmul.f32.gmra.mxu0 %v1594
    %v1596 = vpop.f32.mrf.mxu0
    %v1597 = vadd.f32 %v1518, %v1596
    %v1598 = vand.u32 %v403, 4294901760
    %v1599 = vsub.f32 %v403, %v1598
    %1600 = vmatmul.f32.gmra.mxu0 %v1599
    %v1601 = vpop.f32.mrf.mxu0
    %v1602 = vadd.f32 %v1522, %v1601
    %v1603 = vand.u32 %v404, 4294901760
    %v1604 = vsub.f32 %v404, %v1603
    %1605 = vmatmul.f32.gmra.mxu0 %v1604
    %v1606 = vpop.f32.mrf.mxu0
    %v1607 = vadd.f32 %v1526, %v1606
    %v1608 = vand.u32 %v405, 4294901760
    %v1609 = vsub.f32 %v405, %v1608
    %1610 = vmatmul.f32.gmra.mxu0 %v1609
    %v1611 = vpop.f32.mrf.mxu0
    %v1612 = vadd.f32 %v1530, %v1611
    %v1613 = vand.u32 %v406, 4294901760
    %v1614 = vsub.f32 %v406, %v1613
    %1615 = vmatmul.f32.gmra.mxu0 %v1614
    %v1616 = vpop.f32.mrf.mxu0
    %v1617 = vadd.f32 %v1534, %v1616
    %v1618 = vand.u32 %v407, 4294901760
    %v1619 = vsub.f32 %v407, %v1618
    %1620 = vmatmul.f32.gmra.mxu0 %v1619
    %v1621 = vpop.f32.mrf.mxu0
    %v1622 = vadd.f32 %v1538, %v1621
    %1623 = vdwg.mxu0
    %v1624 = vand.u32 %v46, 4294901760
    %1625 = vmatpush.msra.mxu0 %v1624
    %v1626 = vand.u32 %v44, 4294901760
    %1627 = vmatpush.msra.mxu0 %v1626
    %v1628 = vand.u32 %v42, 4294901760
    %1629 = vmatpush.msra.mxu0 %v1628
    %v1630 = vand.u32 %v40, 4294901760
    %1631 = vmatpush.msra.mxu0 %v1630
    %v1632 = vand.u32 %v38, 4294901760
    %1633 = vmatpush.msra.mxu0 %v1632
    %v1634 = vand.u32 %v36, 4294901760
    %1635 = vmatpush.msra.mxu0 %v1634
    %v1636 = vand.u32 %v34, 4294901760
    %1637 = vmatpush.msra.mxu0 %v1636
    %v1638 = vand.u32 %v32, 4294901760
    %1639 = vmatpush.msra.mxu0 %v1638
    %v1640 = vand.u32 %v30, 4294901760
    %1641 = vmatpush.msra.mxu0 %v1640
    %v1642 = vand.u32 %v28, 4294901760
    %1643 = vmatpush.msra.mxu0 %v1642
    %v1644 = vand.u32 %v26, 4294901760
    %1645 = vmatpush.msra.mxu0 %v1644
    %v1646 = vand.u32 %v24, 4294901760
    %1647 = vmatpush.msra.mxu0 %v1646
    %v1648 = vand.u32 %v22, 4294901760
    %1649 = vmatpush.msra.mxu0 %v1648
    %v1650 = vand.u32 %v20, 4294901760
    %1651 = vmatpush.msra.mxu0 %v1650
    %v1652 = vand.u32 %v18, 4294901760
    %1653 = vmatpush.msra.mxu0 %v1652
    %v1654 = vand.u32 %v16, 4294901760
    %1655 = vmatpush.msra.mxu0 %v1654
    %v1656 = vand.u32 %v401, 4294901760
    %v1657 = vsub.f32 %v401, %v1656
    %v1658 = vand.u32 %v1657, 4294901760
    %1659 = vmatmul.f32.gmra.mxu0 %v1658
    %v1660 = vpop.f32.mrf.mxu0
    %v1661 = vadd.f32 %v1592, %v1660
    %v1662 = vand.u32 %v402, 4294901760
    %v1663 = vsub.f32 %v402, %v1662
    %v1664 = vand.u32 %v1663, 4294901760
    %1665 = vmatmul.f32.gmra.mxu0 %v1664
    %v1666 = vpop.f32.mrf.mxu0
    %v1667 = vadd.f32 %v1597, %v1666
    %v1668 = vand.u32 %v403, 4294901760
    %v1669 = vsub.f32 %v403, %v1668
    %v1670 = vand.u32 %v1669, 4294901760
    %1671 = vmatmul.f32.gmra.mxu0 %v1670
    %v1672 = vpop.f32.mrf.mxu0
    %v1673 = vadd.f32 %v1602, %v1672
    %v1674 = vand.u32 %v404, 4294901760
    %v1675 = vsub.f32 %v404, %v1674
    %v1676 = vand.u32 %v1675, 4294901760
    %1677 = vmatmul.f32.gmra.mxu0 %v1676
    %v1678 = vpop.f32.mrf.mxu0
    %v1679 = vadd.f32 %v1607, %v1678
    %v1680 = vand.u32 %v405, 4294901760
    %v1681 = vsub.f32 %v405, %v1680
    %v1682 = vand.u32 %v1681, 4294901760
    %1683 = vmatmul.f32.gmra.mxu0 %v1682
    %v1684 = vpop.f32.mrf.mxu0
    %v1685 = vadd.f32 %v1612, %v1684
    %v1686 = vand.u32 %v406, 4294901760
    %v1687 = vsub.f32 %v406, %v1686
    %v1688 = vand.u32 %v1687, 4294901760
    %1689 = vmatmul.f32.gmra.mxu0 %v1688
    %v1690 = vpop.f32.mrf.mxu0
    %v1691 = vadd.f32 %v1617, %v1690
    %v1692 = vand.u32 %v407, 4294901760
    %v1693 = vsub.f32 %v407, %v1692
    %v1694 = vand.u32 %v1693, 4294901760
    %1695 = vmatmul.f32.gmra.mxu0 %v1694
    %v1696 = vpop.f32.mrf.mxu0
    %v1697 = vadd.f32 %v1622, %v1696
    %1698 = vdwg.mxu0
    %v1699 = vand.u32 %v46, 4294901760
    %v1700 = vsub.f32 %v46, %v1699
    %v1701 = vand.u32 %v1700, 4294901760
    %1702 = vmatpush.msra.mxu0 %v1701
    %v1703 = vand.u32 %v44, 4294901760
    %v1704 = vsub.f32 %v44, %v1703
    %v1705 = vand.u32 %v1704, 4294901760
    %1706 = vmatpush.msra.mxu0 %v1705
    %v1707 = vand.u32 %v42, 4294901760
    %v1708 = vsub.f32 %v42, %v1707
    %v1709 = vand.u32 %v1708, 4294901760
    %1710 = vmatpush.msra.mxu0 %v1709
    %v1711 = vand.u32 %v40, 4294901760
    %v1712 = vsub.f32 %v40, %v1711
    %v1713 = vand.u32 %v1712, 4294901760
    %1714 = vmatpush.msra.mxu0 %v1713
    %v1715 = vand.u32 %v38, 4294901760
    %v1716 = vsub.f32 %v38, %v1715
    %v1717 = vand.u32 %v1716, 4294901760
    %1718 = vmatpush.msra.mxu0 %v1717
    %v1719 = vand.u32 %v36, 4294901760
    %v1720 = vsub.f32 %v36, %v1719
    %v1721 = vand.u32 %v1720, 4294901760
    %1722 = vmatpush.msra.mxu0 %v1721
    %v1723 = vand.u32 %v34, 4294901760
    %v1724 = vsub.f32 %v34, %v1723
    %v1725 = vand.u32 %v1724, 4294901760
    %1726 = vmatpush.msra.mxu0 %v1725
    %v1727 = vand.u32 %v32, 4294901760
    %v1728 = vsub.f32 %v32, %v1727
    %v1729 = vand.u32 %v1728, 4294901760
    %1730 = vmatpush.msra.mxu0 %v1729
    %v1731 = vand.u32 %v30, 4294901760
    %v1732 = vsub.f32 %v30, %v1731
    %v1733 = vand.u32 %v1732, 4294901760
    %1734 = vmatpush.msra.mxu0 %v1733
    %v1735 = vand.u32 %v28, 4294901760
    %v1736 = vsub.f32 %v28, %v1735
    %v1737 = vand.u32 %v1736, 4294901760
    %1738 = vmatpush.msra.mxu0 %v1737
    %v1739 = vand.u32 %v26, 4294901760
    %v1740 = vsub.f32 %v26, %v1739
    %v1741 = vand.u32 %v1740, 4294901760
    %1742 = vmatpush.msra.mxu0 %v1741
    %v1743 = vand.u32 %v24, 4294901760
    %v1744 = vsub.f32 %v24, %v1743
    %v1745 = vand.u32 %v1744, 4294901760
    %1746 = vmatpush.msra.mxu0 %v1745
    %v1747 = vand.u32 %v22, 4294901760
    %v1748 = vsub.f32 %v22, %v1747
    %v1749 = vand.u32 %v1748, 4294901760
    %1750 = vmatpush.msra.mxu0 %v1749
    %v1751 = vand.u32 %v20, 4294901760
    %v1752 = vsub.f32 %v20, %v1751
    %v1753 = vand.u32 %v1752, 4294901760
    %1754 = vmatpush.msra.mxu0 %v1753
    %v1755 = vand.u32 %v18, 4294901760
    %v1756 = vsub.f32 %v18, %v1755
    %v1757 = vand.u32 %v1756, 4294901760
    %1758 = vmatpush.msra.mxu0 %v1757
    %v1759 = vand.u32 %v16, 4294901760
    %v1760 = vsub.f32 %v16, %v1759
    %v1761 = vand.u32 %v1760, 4294901760
    %1762 = vmatpush.msra.mxu0 %v1761
    %v1763 = vand.u32 %v401, 4294901760
    %1764 = vmatmul.f32.gmra.mxu0 %v1763
    %v1765 = vpop.f32.mrf.mxu0
    %v1766 = vadd.f32 %v1661, %v1765
    %v1767 = vand.u32 %v402, 4294901760
    %1768 = vmatmul.f32.gmra.mxu0 %v1767
    %v1769 = vpop.f32.mrf.mxu0
    %v1770 = vadd.f32 %v1667, %v1769
    %v1771 = vand.u32 %v403, 4294901760
    %1772 = vmatmul.f32.gmra.mxu0 %v1771
    %v1773 = vpop.f32.mrf.mxu0
    %v1774 = vadd.f32 %v1673, %v1773
    %v1775 = vand.u32 %v404, 4294901760
    %1776 = vmatmul.f32.gmra.mxu0 %v1775
    %v1777 = vpop.f32.mrf.mxu0
    %v1778 = vadd.f32 %v1679, %v1777
    %v1779 = vand.u32 %v405, 4294901760
    %1780 = vmatmul.f32.gmra.mxu0 %v1779
    %v1781 = vpop.f32.mrf.mxu0
    %v1782 = vadd.f32 %v1685, %v1781
    %v1783 = vand.u32 %v406, 4294901760
    %1784 = vmatmul.f32.gmra.mxu0 %v1783
    %v1785 = vpop.f32.mrf.mxu0
    %v1786 = vadd.f32 %v1691, %v1785
    %v1787 = vand.u32 %v407, 4294901760
    %1788 = vmatmul.f32.gmra.mxu0 %v1787
    %v1789 = vpop.f32.mrf.mxu0
    %v1790 = vadd.f32 %v1697, %v1789
    %1791 = vdwg.mxu0
    %v1792 = vand.u32 %v46, 4294901760
    %1793 = vmatpush.msra.mxu0 %v1792
    %v1794 = vand.u32 %v44, 4294901760
    %1795 = vmatpush.msra.mxu0 %v1794
    %v1796 = vand.u32 %v42, 4294901760
    %1797 = vmatpush.msra.mxu0 %v1796
    %v1798 = vand.u32 %v40, 4294901760
    %1799 = vmatpush.msra.mxu0 %v1798
    %v1800 = vand.u32 %v38, 4294901760
    %1801 = vmatpush.msra.mxu0 %v1800
    %v1802 = vand.u32 %v36, 4294901760
    %1803 = vmatpush.msra.mxu0 %v1802
    %v1804 = vand.u32 %v34, 4294901760
    %1805 = vmatpush.msra.mxu0 %v1804
    %v1806 = vand.u32 %v32, 4294901760
    %1807 = vmatpush.msra.mxu0 %v1806
    %v1808 = vand.u32 %v30, 4294901760
    %1809 = vmatpush.msra.mxu0 %v1808
    %v1810 = vand.u32 %v28, 4294901760
    %1811 = vmatpush.msra.mxu0 %v1810
    %v1812 = vand.u32 %v26, 4294901760
    %1813 = vmatpush.msra.mxu0 %v1812
    %v1814 = vand.u32 %v24, 4294901760
    %1815 = vmatpush.msra.mxu0 %v1814
    %v1816 = vand.u32 %v22, 4294901760
    %1817 = vmatpush.msra.mxu0 %v1816
    %v1818 = vand.u32 %v20, 4294901760
    %1819 = vmatpush.msra.mxu0 %v1818
    %v1820 = vand.u32 %v18, 4294901760
    %1821 = vmatpush.msra.mxu0 %v1820
    %v1822 = vand.u32 %v16, 4294901760
    %1823 = vmatpush.msra.mxu0 %v1822
    %v1824 = vand.u32 %v401, 4294901760
    %1825 = vmatmul.f32.gmra.mxu0 %v1824
    %v1826 = vpop.f32.mrf.mxu0
    %v1827 = vadd.f32 %v1766, %v1826
    %v1828 = vand.u32 %v402, 4294901760
    %1829 = vmatmul.f32.gmra.mxu0 %v1828
    %v1830 = vpop.f32.mrf.mxu0
    %v1831 = vadd.f32 %v1770, %v1830
    %v1832 = vand.u32 %v403, 4294901760
    %1833 = vmatmul.f32.gmra.mxu0 %v1832
    %v1834 = vpop.f32.mrf.mxu0
    %v1835 = vadd.f32 %v1774, %v1834
    %v1836 = vand.u32 %v404, 4294901760
    %1837 = vmatmul.f32.gmra.mxu0 %v1836
    %v1838 = vpop.f32.mrf.mxu0
    %v1839 = vadd.f32 %v1778, %v1838
    %v1840 = vand.u32 %v405, 4294901760
    %1841 = vmatmul.f32.gmra.mxu0 %v1840
    %v1842 = vpop.f32.mrf.mxu0
    %v1843 = vadd.f32 %v1782, %v1842
    %v1844 = vand.u32 %v406, 4294901760
    %1845 = vmatmul.f32.gmra.mxu0 %v1844
    %v1846 = vpop.f32.mrf.mxu0
    %v1847 = vadd.f32 %v1786, %v1846
    %v1848 = vand.u32 %v407, 4294901760
    %1849 = vmatmul.f32.gmra.mxu0 %v1848
    %v1850 = vpop.f32.mrf.mxu0
    %v1851 = vadd.f32 %v1790, %v1850
    %1852 = vdwg.mxu0
    %1853 = vmatpush.msra.mxu0 0.0
    %1854 = vmatpush.msra.mxu0 0.0
    %1855 = vmatpush.msra.mxu0 0.0
    %1856 = vmatpush.msra.mxu0 0.0
    %1857 = vmatpush.msra.mxu0 0.0
    %1858 = vmatpush.msra.mxu0 0.0
    %1859 = vmatpush.msra.mxu0 0.0
    %1860 = vmatpush.msra.mxu0 0.0
    %1861 = vmatpush.msra.mxu0 0.0
    %1862 = vmatpush.msra.mxu0 0.0
    %1863 = vmatpush.msra.mxu0 0.0
    %1864 = vmatpush.msra.mxu0 0.0
    %v1865 = vand.u32 %v54, 4294901760
    %1866 = vmatpush.msra.mxu0 %v1865
    %v1867 = vand.u32 %v52, 4294901760
    %1868 = vmatpush.msra.mxu0 %v1867
    %v1869 = vand.u32 %v50, 4294901760
    %1870 = vmatpush.msra.mxu0 %v1869
    %v1871 = vand.u32 %v48, 4294901760
    %1872 = vmatpush.msra.mxu0 %v1871
    %v1873 = vand.u32 %v413, 4294901760
    %v1874 = vsub.f32 %v413, %v1873
    %v1875 = vand.u32 %v1874, 4294901760
    %v1876 = vsub.f32 %v1874, %v1875
    %v1877 = vand.u32 %v1876, 4294901760
    %1878 = vmatmul.f32.gmra.mxu0 %v1877
    %v1879 = vpop.f32.mrf.mxu0
    %v1880 = vadd.f32 %v1827, %v1879
    %v1881 = vand.u32 %v415, 4294901760
    %v1882 = vsub.f32 %v415, %v1881
    %v1883 = vand.u32 %v1882, 4294901760
    %v1884 = vsub.f32 %v1882, %v1883
    %v1885 = vand.u32 %v1884, 4294901760
    %1886 = vmatmul.f32.gmra.mxu0 %v1885
    %v1887 = vpop.f32.mrf.mxu0
    %v1888 = vadd.f32 %v1831, %v1887
    %v1889 = vand.u32 %v417, 4294901760
    %v1890 = vsub.f32 %v417, %v1889
    %v1891 = vand.u32 %v1890, 4294901760
    %v1892 = vsub.f32 %v1890, %v1891
    %v1893 = vand.u32 %v1892, 4294901760
    %1894 = vmatmul.f32.gmra.mxu0 %v1893
    %v1895 = vpop.f32.mrf.mxu0
    %v1896 = vadd.f32 %v1835, %v1895
    %v1897 = vand.u32 %v420, 4294901760
    %v1898 = vsub.f32 %v420, %v1897
    %v1899 = vand.u32 %v1898, 4294901760
    %v1900 = vsub.f32 %v1898, %v1899
    %v1901 = vand.u32 %v1900, 4294901760
    %1902 = vmatmul.f32.gmra.mxu0 %v1901
    %v1903 = vpop.f32.mrf.mxu0
    %v1904 = vadd.f32 %v1839, %v1903
    %v1905 = vand.u32 %v422, 4294901760
    %v1906 = vsub.f32 %v422, %v1905
    %v1907 = vand.u32 %v1906, 4294901760
    %v1908 = vsub.f32 %v1906, %v1907
    %v1909 = vand.u32 %v1908, 4294901760
    %1910 = vmatmul.f32.gmra.mxu0 %v1909
    %v1911 = vpop.f32.mrf.mxu0
    %v1912 = vadd.f32 %v1843, %v1911
    %v1913 = vand.u32 %v424, 4294901760
    %v1914 = vsub.f32 %v424, %v1913
    %v1915 = vand.u32 %v1914, 4294901760
    %v1916 = vsub.f32 %v1914, %v1915
    %v1917 = vand.u32 %v1916, 4294901760
    %1918 = vmatmul.f32.gmra.mxu0 %v1917
    %v1919 = vpop.f32.mrf.mxu0
    %v1920 = vadd.f32 %v1847, %v1919
    %v1921 = vand.u32 %v426, 4294901760
    %v1922 = vsub.f32 %v426, %v1921
    %v1923 = vand.u32 %v1922, 4294901760
    %v1924 = vsub.f32 %v1922, %v1923
    %v1925 = vand.u32 %v1924, 4294901760
    %1926 = vmatmul.f32.gmra.mxu0 %v1925
    %v1927 = vpop.f32.mrf.mxu0
    %v1928 = vadd.f32 %v1851, %v1927
    %1929 = vdwg.mxu0
    %1930 = vmatpush.msra.mxu0 0.0
    %1931 = vmatpush.msra.mxu0 0.0
    %1932 = vmatpush.msra.mxu0 0.0
    %1933 = vmatpush.msra.mxu0 0.0
    %1934 = vmatpush.msra.mxu0 0.0
    %1935 = vmatpush.msra.mxu0 0.0
    %1936 = vmatpush.msra.mxu0 0.0
    %1937 = vmatpush.msra.mxu0 0.0
    %1938 = vmatpush.msra.mxu0 0.0
    %1939 = vmatpush.msra.mxu0 0.0
    %1940 = vmatpush.msra.mxu0 0.0
    %1941 = vmatpush.msra.mxu0 0.0
    %v1942 = vand.u32 %v54, 4294901760
    %v1943 = vsub.f32 %v54, %v1942
    %v1944 = vand.u32 %v1943, 4294901760
    %v1945 = vsub.f32 %v1943, %v1944
    %v1946 = vand.u32 %v1945, 4294901760
    %1947 = vmatpush.msra.mxu0 %v1946
    %v1948 = vand.u32 %v52, 4294901760
    %v1949 = vsub.f32 %v52, %v1948
    %v1950 = vand.u32 %v1949, 4294901760
    %v1951 = vsub.f32 %v1949, %v1950
    %v1952 = vand.u32 %v1951, 4294901760
    %1953 = vmatpush.msra.mxu0 %v1952
    %v1954 = vand.u32 %v50, 4294901760
    %v1955 = vsub.f32 %v50, %v1954
    %v1956 = vand.u32 %v1955, 4294901760
    %v1957 = vsub.f32 %v1955, %v1956
    %v1958 = vand.u32 %v1957, 4294901760
    %1959 = vmatpush.msra.mxu0 %v1958
    %v1960 = vand.u32 %v48, 4294901760
    %v1961 = vsub.f32 %v48, %v1960
    %v1962 = vand.u32 %v1961, 4294901760
    %v1963 = vsub.f32 %v1961, %v1962
    %v1964 = vand.u32 %v1963, 4294901760
    %1965 = vmatpush.msra.mxu0 %v1964
    %v1966 = vand.u32 %v413, 4294901760
    %1967 = vmatmul.f32.gmra.mxu0 %v1966
    %v1968 = vpop.f32.mrf.mxu0
    %v1969 = vadd.f32 %v1880, %v1968
    %v1970 = vand.u32 %v415, 4294901760
    %1971 = vmatmul.f32.gmra.mxu0 %v1970
    %v1972 = vpop.f32.mrf.mxu0
    %v1973 = vadd.f32 %v1888, %v1972
    %v1974 = vand.u32 %v417, 4294901760
    %1975 = vmatmul.f32.gmra.mxu0 %v1974
    %v1976 = vpop.f32.mrf.mxu0
    %v1977 = vadd.f32 %v1896, %v1976
    %v1978 = vand.u32 %v420, 4294901760
    %1979 = vmatmul.f32.gmra.mxu0 %v1978
    %v1980 = vpop.f32.mrf.mxu0
    %v1981 = vadd.f32 %v1904, %v1980
    %v1982 = vand.u32 %v422, 4294901760
    %1983 = vmatmul.f32.gmra.mxu0 %v1982
    %v1984 = vpop.f32.mrf.mxu0
    %v1985 = vadd.f32 %v1912, %v1984
    %v1986 = vand.u32 %v424, 4294901760
    %1987 = vmatmul.f32.gmra.mxu0 %v1986
    %v1988 = vpop.f32.mrf.mxu0
    %v1989 = vadd.f32 %v1920, %v1988
    %v1990 = vand.u32 %v426, 4294901760
    %1991 = vmatmul.f32.gmra.mxu0 %v1990
    %v1992 = vpop.f32.mrf.mxu0
    %v1993 = vadd.f32 %v1928, %v1992
    %1994 = vdwg.mxu0
    %1995 = vmatpush.msra.mxu0 0.0
    %1996 = vmatpush.msra.mxu0 0.0
    %1997 = vmatpush.msra.mxu0 0.0
    %1998 = vmatpush.msra.mxu0 0.0
    %1999 = vmatpush.msra.mxu0 0.0
    %2000 = vmatpush.msra.mxu0 0.0
    %2001 = vmatpush.msra.mxu0 0.0
    %2002 = vmatpush.msra.mxu0 0.0
    %2003 = vmatpush.msra.mxu0 0.0
    %2004 = vmatpush.msra.mxu0 0.0
    %2005 = vmatpush.msra.mxu0 0.0
    %2006 = vmatpush.msra.mxu0 0.0
    %v2007 = vand.u32 %v54, 4294901760
    %v2008 = vsub.f32 %v54, %v2007
    %2009 = vmatpush.msra.mxu0 %v2008
    %v2010 = vand.u32 %v52, 4294901760
    %v2011 = vsub.f32 %v52, %v2010
    %2012 = vmatpush.msra.mxu0 %v2011
    %v2013 = vand.u32 %v50, 4294901760
    %v2014 = vsub.f32 %v50, %v2013
    %2015 = vmatpush.msra.mxu0 %v2014
    %v2016 = vand.u32 %v48, 4294901760
    %v2017 = vsub.f32 %v48, %v2016
    %2018 = vmatpush.msra.mxu0 %v2017
    %v2019 = vand.u32 %v413, 4294901760
    %v2020 = vsub.f32 %v413, %v2019
    %2021 = vmatmul.f32.gmra.mxu0 %v2020
    %v2022 = vpop.f32.mrf.mxu0
    %v2023 = vadd.f32 %v1969, %v2022
    %v2024 = vand.u32 %v415, 4294901760
    %v2025 = vsub.f32 %v415, %v2024
    %2026 = vmatmul.f32.gmra.mxu0 %v2025
    %v2027 = vpop.f32.mrf.mxu0
    %v2028 = vadd.f32 %v1973, %v2027
    %v2029 = vand.u32 %v417, 4294901760
    %v2030 = vsub.f32 %v417, %v2029
    %2031 = vmatmul.f32.gmra.mxu0 %v2030
    %v2032 = vpop.f32.mrf.mxu0
    %v2033 = vadd.f32 %v1977, %v2032
    %v2034 = vand.u32 %v420, 4294901760
    %v2035 = vsub.f32 %v420, %v2034
    %2036 = vmatmul.f32.gmra.mxu0 %v2035
    %v2037 = vpop.f32.mrf.mxu0
    %v2038 = vadd.f32 %v1981, %v2037
    %v2039 = vand.u32 %v422, 4294901760
    %v2040 = vsub.f32 %v422, %v2039
    %2041 = vmatmul.f32.gmra.mxu0 %v2040
    %v2042 = vpop.f32.mrf.mxu0
    %v2043 = vadd.f32 %v1985, %v2042
    %v2044 = vand.u32 %v424, 4294901760
    %v2045 = vsub.f32 %v424, %v2044
    %2046 = vmatmul.f32.gmra.mxu0 %v2045
    %v2047 = vpop.f32.mrf.mxu0
    %v2048 = vadd.f32 %v1989, %v2047
    %v2049 = vand.u32 %v426, 4294901760
    %v2050 = vsub.f32 %v426, %v2049
    %2051 = vmatmul.f32.gmra.mxu0 %v2050
    %v2052 = vpop.f32.mrf.mxu0
    %v2053 = vadd.f32 %v1993, %v2052
    %2054 = vdwg.mxu0
    %2055 = vmatpush.msra.mxu0 0.0
    %2056 = vmatpush.msra.mxu0 0.0
    %2057 = vmatpush.msra.mxu0 0.0
    %2058 = vmatpush.msra.mxu0 0.0
    %2059 = vmatpush.msra.mxu0 0.0
    %2060 = vmatpush.msra.mxu0 0.0
    %2061 = vmatpush.msra.mxu0 0.0
    %2062 = vmatpush.msra.mxu0 0.0
    %2063 = vmatpush.msra.mxu0 0.0
    %2064 = vmatpush.msra.mxu0 0.0
    %2065 = vmatpush.msra.mxu0 0.0
    %2066 = vmatpush.msra.mxu0 0.0
    %v2067 = vand.u32 %v54, 4294901760
    %2068 = vmatpush.msra.mxu0 %v2067
    %v2069 = vand.u32 %v52, 4294901760
    %2070 = vmatpush.msra.mxu0 %v2069
    %v2071 = vand.u32 %v50, 4294901760
    %2072 = vmatpush.msra.mxu0 %v2071
    %v2073 = vand.u32 %v48, 4294901760
    %2074 = vmatpush.msra.mxu0 %v2073
    %v2075 = vand.u32 %v413, 4294901760
    %v2076 = vsub.f32 %v413, %v2075
    %v2077 = vand.u32 %v2076, 4294901760
    %2078 = vmatmul.f32.gmra.mxu0 %v2077
    %v2079 = vpop.f32.mrf.mxu0
    %v2080 = vadd.f32 %v2023, %v2079
    %v2081 = vand.u32 %v415, 4294901760
    %v2082 = vsub.f32 %v415, %v2081
    %v2083 = vand.u32 %v2082, 4294901760
    %2084 = vmatmul.f32.gmra.mxu0 %v2083
    %v2085 = vpop.f32.mrf.mxu0
    %v2086 = vadd.f32 %v2028, %v2085
    %v2087 = vand.u32 %v417, 4294901760
    %v2088 = vsub.f32 %v417, %v2087
    %v2089 = vand.u32 %v2088, 4294901760
    %2090 = vmatmul.f32.gmra.mxu0 %v2089
    %v2091 = vpop.f32.mrf.mxu0
    %v2092 = vadd.f32 %v2033, %v2091
    %v2093 = vand.u32 %v420, 4294901760
    %v2094 = vsub.f32 %v420, %v2093
    %v2095 = vand.u32 %v2094, 4294901760
    %2096 = vmatmul.f32.gmra.mxu0 %v2095
    %v2097 = vpop.f32.mrf.mxu0
    %v2098 = vadd.f32 %v2038, %v2097
    %v2099 = vand.u32 %v422, 4294901760
    %v2100 = vsub.f32 %v422, %v2099
    %v2101 = vand.u32 %v2100, 4294901760
    %2102 = vmatmul.f32.gmra.mxu0 %v2101
    %v2103 = vpop.f32.mrf.mxu0
    %v2104 = vadd.f32 %v2043, %v2103
    %v2105 = vand.u32 %v424, 4294901760
    %v2106 = vsub.f32 %v424, %v2105
    %v2107 = vand.u32 %v2106, 4294901760
    %2108 = vmatmul.f32.gmra.mxu0 %v2107
    %v2109 = vpop.f32.mrf.mxu0
    %v2110 = vadd.f32 %v2048, %v2109
    %v2111 = vand.u32 %v426, 4294901760
    %v2112 = vsub.f32 %v426, %v2111
    %v2113 = vand.u32 %v2112, 4294901760
    %2114 = vmatmul.f32.gmra.mxu0 %v2113
    %v2115 = vpop.f32.mrf.mxu0
    %v2116 = vadd.f32 %v2053, %v2115
    %2117 = vdwg.mxu0
    %2118 = vmatpush.msra.mxu0 0.0
    %2119 = vmatpush.msra.mxu0 0.0
    %2120 = vmatpush.msra.mxu0 0.0
    %2121 = vmatpush.msra.mxu0 0.0
    %2122 = vmatpush.msra.mxu0 0.0
    %2123 = vmatpush.msra.mxu0 0.0
    %2124 = vmatpush.msra.mxu0 0.0
    %2125 = vmatpush.msra.mxu0 0.0
    %2126 = vmatpush.msra.mxu0 0.0
    %2127 = vmatpush.msra.mxu0 0.0
    %2128 = vmatpush.msra.mxu0 0.0
    %2129 = vmatpush.msra.mxu0 0.0
    %v2130 = vand.u32 %v54, 4294901760
    %v2131 = vsub.f32 %v54, %v2130
    %v2132 = vand.u32 %v2131, 4294901760
    %2133 = vmatpush.msra.mxu0 %v2132
    %v2134 = vand.u32 %v52, 4294901760
    %v2135 = vsub.f32 %v52, %v2134
    %v2136 = vand.u32 %v2135, 4294901760
    %2137 = vmatpush.msra.mxu0 %v2136
    %v2138 = vand.u32 %v50, 4294901760
    %v2139 = vsub.f32 %v50, %v2138
    %v2140 = vand.u32 %v2139, 4294901760
    %2141 = vmatpush.msra.mxu0 %v2140
    %v2142 = vand.u32 %v48, 4294901760
    %v2143 = vsub.f32 %v48, %v2142
    %v2144 = vand.u32 %v2143, 4294901760
    %2145 = vmatpush.msra.mxu0 %v2144
    %v2146 = vand.u32 %v413, 4294901760
    %2147 = vmatmul.f32.gmra.mxu0 %v2146
    %v2148 = vpop.f32.mrf.mxu0
    %v2149 = vadd.f32 %v2080, %v2148
    %v2150 = vand.u32 %v415, 4294901760
    %2151 = vmatmul.f32.gmra.mxu0 %v2150
    %v2152 = vpop.f32.mrf.mxu0
    %v2153 = vadd.f32 %v2086, %v2152
    %v2154 = vand.u32 %v417, 4294901760
    %2155 = vmatmul.f32.gmra.mxu0 %v2154
    %v2156 = vpop.f32.mrf.mxu0
    %v2157 = vadd.f32 %v2092, %v2156
    %v2158 = vand.u32 %v420, 4294901760
    %2159 = vmatmul.f32.gmra.mxu0 %v2158
    %v2160 = vpop.f32.mrf.mxu0
    %v2161 = vadd.f32 %v2098, %v2160
    %v2162 = vand.u32 %v422, 4294901760
    %2163 = vmatmul.f32.gmra.mxu0 %v2162
    %v2164 = vpop.f32.mrf.mxu0
    %v2165 = vadd.f32 %v2104, %v2164
    %v2166 = vand.u32 %v424, 4294901760
    %2167 = vmatmul.f32.gmra.mxu0 %v2166
    %v2168 = vpop.f32.mrf.mxu0
    %v2169 = vadd.f32 %v2110, %v2168
    %v2170 = vand.u32 %v426, 4294901760
    %2171 = vmatmul.f32.gmra.mxu0 %v2170
    %v2172 = vpop.f32.mrf.mxu0
    %v2173 = vadd.f32 %v2116, %v2172
    %2174 = vdwg.mxu0
    %2175 = vmatpush.msra.mxu0 0.0
    %2176 = vmatpush.msra.mxu0 0.0
    %2177 = vmatpush.msra.mxu0 0.0
    %2178 = vmatpush.msra.mxu0 0.0
    %2179 = vmatpush.msra.mxu0 0.0
    %2180 = vmatpush.msra.mxu0 0.0
    %2181 = vmatpush.msra.mxu0 0.0
    %2182 = vmatpush.msra.mxu0 0.0
    %2183 = vmatpush.msra.mxu0 0.0
    %2184 = vmatpush.msra.mxu0 0.0
    %2185 = vmatpush.msra.mxu0 0.0
    %2186 = vmatpush.msra.mxu0 0.0
    %v2187 = vand.u32 %v54, 4294901760
    %2188 = vmatpush.msra.mxu0 %v2187
    %v2189 = vand.u32 %v52, 4294901760
    %2190 = vmatpush.msra.mxu0 %v2189
    %v2191 = vand.u32 %v50, 4294901760
    %2192 = vmatpush.msra.mxu0 %v2191
    %v2193 = vand.u32 %v48, 4294901760
    %2194 = vmatpush.msra.mxu0 %v2193
    %v2195 = vand.u32 %v413, 4294901760
    %2196 = vmatmul.f32.gmra.mxu0 %v2195
    %v2197 = vpop.f32.mrf.mxu0
    %v2198 = vadd.f32 %v2149, %v2197
    %v2199 = vand.u32 %v415, 4294901760
    %2200 = vmatmul.f32.gmra.mxu0 %v2199
    %v2201 = vpop.f32.mrf.mxu0
    %v2202 = vadd.f32 %v2153, %v2201
    %v2203 = vand.u32 %v417, 4294901760
    %2204 = vmatmul.f32.gmra.mxu0 %v2203
    %v2205 = vpop.f32.mrf.mxu0
    %v2206 = vadd.f32 %v2157, %v2205
    %v2207 = vand.u32 %v420, 4294901760
    %2208 = vmatmul.f32.gmra.mxu0 %v2207
    %v2209 = vpop.f32.mrf.mxu0
    %v2210 = vadd.f32 %v2161, %v2209
    %v2211 = vand.u32 %v422, 4294901760
    %2212 = vmatmul.f32.gmra.mxu0 %v2211
    %v2213 = vpop.f32.mrf.mxu0
    %v2214 = vadd.f32 %v2165, %v2213
    %v2215 = vand.u32 %v424, 4294901760
    %2216 = vmatmul.f32.gmra.mxu0 %v2215
    %v2217 = vpop.f32.mrf.mxu0
    %v2218 = vadd.f32 %v2169, %v2217
    %v2219 = vand.u32 %v426, 4294901760
    %2220 = vmatmul.f32.gmra.mxu0 %v2219
    %v2221 = vpop.f32.mrf.mxu0
    %v2222 = vadd.f32 %v2173, %v2221
    %2223 = vdwg.mxu0
    %v2224 = vmax.f32 %v1300, 0.0
    %v2225 = vmax.f32 %v2198, 0.0
    %v2226 = vmax.f32 %v1304, 0.0
    %v2227 = vmax.f32 %v2202, 0.0
    %v2228 = vmax.f32 %v1308, 0.0
    %v2229 = vmax.f32 %v2206, 0.0
    %v2230 = vmax.f32 %v1312, 0.0
    %v2231 = vmax.f32 %v2210, 0.0
    %v2232 = vmax.f32 %v1316, 0.0
    %v2233 = vmax.f32 %v2214, 0.0
    %v2234 = vmax.f32 %v1320, 0.0
    %v2235 = vmax.f32 %v2218, 0.0
    %v2236 = vmax.f32 %v1324, 0.0
    %v2237 = vmax.f32 %v2222, 0.0
    %2252 = vrot.lane.b32.xlu0 %v2224, 127
    %v2253 = vpop.permute.xlu0 %2252
    %2254 = vrot.lane.b32.xlu0 %v2225, 127
    %v2255 = vpop.permute.xlu0 %2254
    %2256 = vrot.lane.b32.xlu0 %v2226, 127
    %v2257 = vpop.permute.xlu0 %2256
    %2258 = vrot.lane.b32.xlu0 %v2227, 127
    %v2259 = vpop.permute.xlu0 %2258
    %2260 = vrot.lane.b32.xlu0 %v2228, 127
    %v2261 = vpop.permute.xlu0 %2260
    %2262 = vrot.lane.b32.xlu0 %v2229, 127
    %v2263 = vpop.permute.xlu0 %2262
    %2264 = vrot.lane.b32.xlu0 %v2230, 127
    %v2265 = vpop.permute.xlu0 %2264
    %2266 = vrot.lane.b32.xlu0 %v2231, 127
    %v2267 = vpop.permute.xlu0 %2266
    %2268 = vrot.lane.b32.xlu0 %v2232, 127
    %v2269 = vpop.permute.xlu0 %2268
    %2270 = vrot.lane.b32.xlu0 %v2233, 127
    %v2271 = vpop.permute.xlu0 %2270
    %2272 = vrot.lane.b32.xlu0 %v2234, 127
    %v2273 = vpop.permute.xlu0 %2272
    %2274 = vrot.lane.b32.xlu0 %v2235, 127
    %v2275 = vpop.permute.xlu0 %2274
    %2276 = vrot.lane.b32.xlu0 %v2236, 127
    %v2277 = vpop.permute.xlu0 %2276
    %2278 = vrot.lane.b32.xlu0 %v2237, 127
    %v2279 = vpop.permute.xlu0 %2278
    %vm2280 = vcmask 1039360
    %v2281 = vsel %vm2280, %v2253, %v2255
    %v2282 = vsel %vm2280, %v2257, %v2259
    %v2283 = vsel %vm2280, %v2261, %v2263
    %v2284 = vsel %vm2280, %v2265, %v2267
    %v2285 = vsel %vm2280, %v2269, %v2271
    %v2286 = vsel %vm2280, %v2273, %v2275
    %v2287 = vsel %vm2280, %v2277, %v2279
    %v2302 = vmax.f32 %v2224, %v2281
    %v2303 = vmax.f32 %v2225, %v2255
    %v2304 = vmax.f32 %v2226, %v2282
    %v2305 = vmax.f32 %v2227, %v2259
    %v2306 = vmax.f32 %v2228, %v2283
    %v2307 = vmax.f32 %v2229, %v2263
    %v2308 = vmax.f32 %v2230, %v2284
    %v2309 = vmax.f32 %v2231, %v2267
    %v2310 = vmax.f32 %v2232, %v2285
    %v2311 = vmax.f32 %v2233, %v2271
    %v2312 = vmax.f32 %v2234, %v2286
    %v2313 = vmax.f32 %v2235, %v2275
    %v2314 = vmax.f32 %v2236, %v2287
    %v2315 = vmax.f32 %v2237, %v2279
    %v2330 = vrot.slane %v2302, 1
    %v2331 = vrot.slane %v2304, 1
    %v2332 = vsel %vm252, %v2330, %v2331
    %v2333 = vrot.slane %v2303, 1
    %v2334 = vrot.slane %v2305, 1
    %v2335 = vsel %vm252, %v2333, %v2334
    %v2336 = vrot.slane %v2306, 1
    %v2337 = vsel %vm252, %v2331, %v2336
    %v2338 = vrot.slane %v2307, 1
    %v2339 = vsel %vm252, %v2334, %v2338
    %v2340 = vrot.slane %v2308, 1
    %v2341 = vsel %vm252, %v2336, %v2340
    %v2342 = vrot.slane %v2309, 1
    %v2343 = vsel %vm252, %v2338, %v2342
    %v2344 = vrot.slane %v2310, 1
    %v2345 = vsel %vm252, %v2340, %v2344
    %v2346 = vrot.slane %v2311, 1
    %v2347 = vsel %vm252, %v2342, %v2346
    %v2348 = vrot.slane %v2312, 1
    %v2349 = vsel %vm252, %v2344, %v2348
    %v2350 = vrot.slane %v2313, 1
    %v2351 = vsel %vm252, %v2346, %v2350
    %v2352 = vrot.slane %v2314, 1
    %v2353 = vsel %vm252, %v2348, %v2352
    %v2354 = vrot.slane %v2315, 1
    %v2355 = vsel %vm252, %v2350, %v2354
    %v2370 = vmax.f32 %v2302, %v2332
    %v2371 = vmax.f32 %v2303, %v2335
    %v2372 = vmax.f32 %v2304, %v2337
    %v2373 = vmax.f32 %v2305, %v2339
    %v2374 = vmax.f32 %v2306, %v2341
    %v2375 = vmax.f32 %v2307, %v2343
    %v2376 = vmax.f32 %v2308, %v2345
    %v2377 = vmax.f32 %v2309, %v2347
    %v2378 = vmax.f32 %v2310, %v2349
    %v2379 = vmax.f32 %v2311, %v2351
    %v2380 = vmax.f32 %v2312, %v2353
    %v2381 = vmax.f32 %v2313, %v2355
    %v2382 = vmax.f32 %v2314, %v2352
    %v2383 = vmax.f32 %v2315, %v2354
    %v2384 = vlaneseq
    %v2385 = vshrl.u32 %v2384, 7
    %v2386 = vadd.s32 %v2385, 8
    %v2387 = vadd.s32 %v2385, 16
    %v2388 = vadd.s32 %v2385, 24
    %v2389 = vlaneseq
    %v2390 = vand.u32 %v2389, 127
    %v2391 = vmul.u32 %v2385, 2
    %v2392 = vmul.u32 %v2386, 2
    %v2393 = vmul.u32 %v2387, 2
    %v2394 = vmul.u32 %v2388, 2
    %vm2395 = vcmp.eq.s32.totalorder %v2390, %v2391
    %vm2396 = vcmp.eq.s32.totalorder %v2390, %v2392
    %vm2397 = vcmp.eq.s32.totalorder %v2390, %v2393
    %vm2398 = vcmp.eq.s32.totalorder %v2390, %v2394
    %v2399 = vsel %vm2395, 1, 0
    %v2400 = vsel %vm2396, 1, 0
    %v2401 = vsel %vm2397, 1, 0
    %v2402 = vsel %vm2398, 1, 0
    %v2403 = vcvt.s32.f32 %v2399
    %v2404 = vcvt.s32.f32 %v2400
    %v2405 = vcvt.s32.f32 %v2401
    %v2406 = vcvt.s32.f32 %v2402
    %vm2407 = vcmask 449536
    %v2409 = vsel %vm2407, %v2403, 0
    %v2412 = vsel %vm2407, %v2404, 0
    %v2415 = vsel %vm2407, %v2405, 0
    %v2418 = vsel %vm2407, %v2406, 0
    %v2421 = vsel %vm252, %v2382, 0
    %v2424 = vsel %vm252, %v2383, 0
    %2426 = vmatpush.msra.mxu0 0.0
    %2427 = vmatpush.msra.mxu0 0.0
    %2428 = vmatpush.msra.mxu0 0.0
    %2429 = vmatpush.msra.mxu0 0.0
    %2430 = vmatpush.msra.mxu0 0.0
    %2431 = vmatpush.msra.mxu0 0.0
    %2432 = vmatpush.msra.mxu0 0.0
    %2433 = vmatpush.msra.mxu0 0.0
    %2434 = vmatpush.msra.mxu0 0.0
    %v2435 = vand.u32 %v2421, 4294901760
    %2436 = vmatpush.msra.mxu0 %v2435
    %v2437 = vand.u32 %v2380, 4294901760
    %2438 = vmatpush.msra.mxu0 %v2437
    %v2439 = vand.u32 %v2378, 4294901760
    %2440 = vmatpush.msra.mxu0 %v2439
    %v2441 = vand.u32 %v2376, 4294901760
    %2442 = vmatpush.msra.mxu0 %v2441
    %v2443 = vand.u32 %v2374, 4294901760
    %2444 = vmatpush.msra.mxu0 %v2443
    %v2445 = vand.u32 %v2372, 4294901760
    %2446 = vmatpush.msra.mxu0 %v2445
    %v2447 = vand.u32 %v2370, 4294901760
    %2448 = vmatpush.msra.mxu0 %v2447
    %v2449 = vand.u32 %v2409, 4294901760
    %v2450 = vsub.f32 %v2409, %v2449
    %v2451 = vand.u32 %v2450, 4294901760
    %v2452 = vsub.f32 %v2450, %v2451
    %v2453 = vand.u32 %v2452, 4294901760
    %2454 = vmatmul.f32.gmra.mxu0 %v2453
    %v2455 = vpop.f32.mrf.mxu0
    %v2456 = vadd.f32 0.0, %v2455
    %v2457 = vand.u32 %v2412, 4294901760
    %v2458 = vsub.f32 %v2412, %v2457
    %v2459 = vand.u32 %v2458, 4294901760
    %v2460 = vsub.f32 %v2458, %v2459
    %v2461 = vand.u32 %v2460, 4294901760
    %2462 = vmatmul.f32.gmra.mxu0 %v2461
    %v2463 = vpop.f32.mrf.mxu0
    %v2464 = vadd.f32 0.0, %v2463
    %v2465 = vand.u32 %v2415, 4294901760
    %v2466 = vsub.f32 %v2415, %v2465
    %v2467 = vand.u32 %v2466, 4294901760
    %v2468 = vsub.f32 %v2466, %v2467
    %v2469 = vand.u32 %v2468, 4294901760
    %2470 = vmatmul.f32.gmra.mxu0 %v2469
    %v2471 = vpop.f32.mrf.mxu0
    %v2472 = vadd.f32 0.0, %v2471
    %v2473 = vand.u32 %v2418, 4294901760
    %v2474 = vsub.f32 %v2418, %v2473
    %v2475 = vand.u32 %v2474, 4294901760
    %v2476 = vsub.f32 %v2474, %v2475
    %v2477 = vand.u32 %v2476, 4294901760
    %2478 = vmatmul.f32.gmra.mxu0 %v2477
    %v2479 = vpop.f32.mrf.mxu0
    %v2480 = vadd.f32 0.0, %v2479
    %2481 = vdwg.mxu0
    %2482 = vmatpush.msra.mxu0 0.0
    %2483 = vmatpush.msra.mxu0 0.0
    %2484 = vmatpush.msra.mxu0 0.0
    %2485 = vmatpush.msra.mxu0 0.0
    %2486 = vmatpush.msra.mxu0 0.0
    %2487 = vmatpush.msra.mxu0 0.0
    %2488 = vmatpush.msra.mxu0 0.0
    %2489 = vmatpush.msra.mxu0 0.0
    %2490 = vmatpush.msra.mxu0 0.0
    %v2491 = vand.u32 %v2421, 4294901760
    %v2492 = vsub.f32 %v2421, %v2491
    %v2493 = vand.u32 %v2492, 4294901760
    %v2494 = vsub.f32 %v2492, %v2493
    %v2495 = vand.u32 %v2494, 4294901760
    %2496 = vmatpush.msra.mxu0 %v2495
    %v2497 = vand.u32 %v2380, 4294901760
    %v2498 = vsub.f32 %v2380, %v2497
    %v2499 = vand.u32 %v2498, 4294901760
    %v2500 = vsub.f32 %v2498, %v2499
    %v2501 = vand.u32 %v2500, 4294901760
    %2502 = vmatpush.msra.mxu0 %v2501
    %v2503 = vand.u32 %v2378, 4294901760
    %v2504 = vsub.f32 %v2378, %v2503
    %v2505 = vand.u32 %v2504, 4294901760
    %v2506 = vsub.f32 %v2504, %v2505
    %v2507 = vand.u32 %v2506, 4294901760
    %2508 = vmatpush.msra.mxu0 %v2507
    %v2509 = vand.u32 %v2376, 4294901760
    %v2510 = vsub.f32 %v2376, %v2509
    %v2511 = vand.u32 %v2510, 4294901760
    %v2512 = vsub.f32 %v2510, %v2511
    %v2513 = vand.u32 %v2512, 4294901760
    %2514 = vmatpush.msra.mxu0 %v2513
    %v2515 = vand.u32 %v2374, 4294901760
    %v2516 = vsub.f32 %v2374, %v2515
    %v2517 = vand.u32 %v2516, 4294901760
    %v2518 = vsub.f32 %v2516, %v2517
    %v2519 = vand.u32 %v2518, 4294901760
    %2520 = vmatpush.msra.mxu0 %v2519
    %v2521 = vand.u32 %v2372, 4294901760
    %v2522 = vsub.f32 %v2372, %v2521
    %v2523 = vand.u32 %v2522, 4294901760
    %v2524 = vsub.f32 %v2522, %v2523
    %v2525 = vand.u32 %v2524, 4294901760
    %2526 = vmatpush.msra.mxu0 %v2525
    %v2527 = vand.u32 %v2370, 4294901760
    %v2528 = vsub.f32 %v2370, %v2527
    %v2529 = vand.u32 %v2528, 4294901760
    %v2530 = vsub.f32 %v2528, %v2529
    %v2531 = vand.u32 %v2530, 4294901760
    %2532 = vmatpush.msra.mxu0 %v2531
    %v2533 = vand.u32 %v2409, 4294901760
    %2534 = vmatmul.f32.gmra.mxu0 %v2533
    %v2535 = vpop.f32.mrf.mxu0
    %v2536 = vadd.f32 %v2456, %v2535
    %v2537 = vand.u32 %v2412, 4294901760
    %2538 = vmatmul.f32.gmra.mxu0 %v2537
    %v2539 = vpop.f32.mrf.mxu0
    %v2540 = vadd.f32 %v2464, %v2539
    %v2541 = vand.u32 %v2415, 4294901760
    %2542 = vmatmul.f32.gmra.mxu0 %v2541
    %v2543 = vpop.f32.mrf.mxu0
    %v2544 = vadd.f32 %v2472, %v2543
    %v2545 = vand.u32 %v2418, 4294901760
    %2546 = vmatmul.f32.gmra.mxu0 %v2545
    %v2547 = vpop.f32.mrf.mxu0
    %v2548 = vadd.f32 %v2480, %v2547
    %2549 = vdwg.mxu0
    %2550 = vmatpush.msra.mxu0 0.0
    %2551 = vmatpush.msra.mxu0 0.0
    %2552 = vmatpush.msra.mxu0 0.0
    %2553 = vmatpush.msra.mxu0 0.0
    %2554 = vmatpush.msra.mxu0 0.0
    %2555 = vmatpush.msra.mxu0 0.0
    %2556 = vmatpush.msra.mxu0 0.0
    %2557 = vmatpush.msra.mxu0 0.0
    %2558 = vmatpush.msra.mxu0 0.0
    %v2559 = vand.u32 %v2421, 4294901760
    %v2560 = vsub.f32 %v2421, %v2559
    %2561 = vmatpush.msra.mxu0 %v2560
    %v2562 = vand.u32 %v2380, 4294901760
    %v2563 = vsub.f32 %v2380, %v2562
    %2564 = vmatpush.msra.mxu0 %v2563
    %v2565 = vand.u32 %v2378, 4294901760
    %v2566 = vsub.f32 %v2378, %v2565
    %2567 = vmatpush.msra.mxu0 %v2566
    %v2568 = vand.u32 %v2376, 4294901760
    %v2569 = vsub.f32 %v2376, %v2568
    %2570 = vmatpush.msra.mxu0 %v2569
    %v2571 = vand.u32 %v2374, 4294901760
    %v2572 = vsub.f32 %v2374, %v2571
    %2573 = vmatpush.msra.mxu0 %v2572
    %v2574 = vand.u32 %v2372, 4294901760
    %v2575 = vsub.f32 %v2372, %v2574
    %2576 = vmatpush.msra.mxu0 %v2575
    %v2577 = vand.u32 %v2370, 4294901760
    %v2578 = vsub.f32 %v2370, %v2577
    %2579 = vmatpush.msra.mxu0 %v2578
    %v2580 = vand.u32 %v2409, 4294901760
    %v2581 = vsub.f32 %v2409, %v2580
    %2582 = vmatmul.f32.gmra.mxu0 %v2581
    %v2583 = vpop.f32.mrf.mxu0
    %v2584 = vadd.f32 %v2536, %v2583
    %v2585 = vand.u32 %v2412, 4294901760
    %v2586 = vsub.f32 %v2412, %v2585
    %2587 = vmatmul.f32.gmra.mxu0 %v2586
    %v2588 = vpop.f32.mrf.mxu0
    %v2589 = vadd.f32 %v2540, %v2588
    %v2590 = vand.u32 %v2415, 4294901760
    %v2591 = vsub.f32 %v2415, %v2590
    %2592 = vmatmul.f32.gmra.mxu0 %v2591
    %v2593 = vpop.f32.mrf.mxu0
    %v2594 = vadd.f32 %v2544, %v2593
    %v2595 = vand.u32 %v2418, 4294901760
    %v2596 = vsub.f32 %v2418, %v2595
    %2597 = vmatmul.f32.gmra.mxu0 %v2596
    %v2598 = vpop.f32.mrf.mxu0
    %v2599 = vadd.f32 %v2548, %v2598
    %2600 = vdwg.mxu0
    %2601 = vmatpush.msra.mxu0 0.0
    %2602 = vmatpush.msra.mxu0 0.0
    %2603 = vmatpush.msra.mxu0 0.0
    %2604 = vmatpush.msra.mxu0 0.0
    %2605 = vmatpush.msra.mxu0 0.0
    %2606 = vmatpush.msra.mxu0 0.0
    %2607 = vmatpush.msra.mxu0 0.0
    %2608 = vmatpush.msra.mxu0 0.0
    %2609 = vmatpush.msra.mxu0 0.0
    %v2610 = vand.u32 %v2421, 4294901760
    %2611 = vmatpush.msra.mxu0 %v2610
    %v2612 = vand.u32 %v2380, 4294901760
    %2613 = vmatpush.msra.mxu0 %v2612
    %v2614 = vand.u32 %v2378, 4294901760
    %2615 = vmatpush.msra.mxu0 %v2614
    %v2616 = vand.u32 %v2376, 4294901760
    %2617 = vmatpush.msra.mxu0 %v2616
    %v2618 = vand.u32 %v2374, 4294901760
    %2619 = vmatpush.msra.mxu0 %v2618
    %v2620 = vand.u32 %v2372, 4294901760
    %2621 = vmatpush.msra.mxu0 %v2620
    %v2622 = vand.u32 %v2370, 4294901760
    %2623 = vmatpush.msra.mxu0 %v2622
    %v2624 = vand.u32 %v2409, 4294901760
    %v2625 = vsub.f32 %v2409, %v2624
    %v2626 = vand.u32 %v2625, 4294901760
    %2627 = vmatmul.f32.gmra.mxu0 %v2626
    %v2628 = vpop.f32.mrf.mxu0
    %v2629 = vadd.f32 %v2584, %v2628
    %v2630 = vand.u32 %v2412, 4294901760
    %v2631 = vsub.f32 %v2412, %v2630
    %v2632 = vand.u32 %v2631, 4294901760
    %2633 = vmatmul.f32.gmra.mxu0 %v2632
    %v2634 = vpop.f32.mrf.mxu0
    %v2635 = vadd.f32 %v2589, %v2634
    %v2636 = vand.u32 %v2415, 4294901760
    %v2637 = vsub.f32 %v2415, %v2636
    %v2638 = vand.u32 %v2637, 4294901760
    %2639 = vmatmul.f32.gmra.mxu0 %v2638
    %v2640 = vpop.f32.mrf.mxu0
    %v2641 = vadd.f32 %v2594, %v2640
    %v2642 = vand.u32 %v2418, 4294901760
    %v2643 = vsub.f32 %v2418, %v2642
    %v2644 = vand.u32 %v2643, 4294901760
    %2645 = vmatmul.f32.gmra.mxu0 %v2644
    %v2646 = vpop.f32.mrf.mxu0
    %v2647 = vadd.f32 %v2599, %v2646
    %2648 = vdwg.mxu0
    %2649 = vmatpush.msra.mxu0 0.0
    %2650 = vmatpush.msra.mxu0 0.0
    %2651 = vmatpush.msra.mxu0 0.0
    %2652 = vmatpush.msra.mxu0 0.0
    %2653 = vmatpush.msra.mxu0 0.0
    %2654 = vmatpush.msra.mxu0 0.0
    %2655 = vmatpush.msra.mxu0 0.0
    %2656 = vmatpush.msra.mxu0 0.0
    %2657 = vmatpush.msra.mxu0 0.0
    %v2658 = vand.u32 %v2421, 4294901760
    %v2659 = vsub.f32 %v2421, %v2658
    %v2660 = vand.u32 %v2659, 4294901760
    %2661 = vmatpush.msra.mxu0 %v2660
    %v2662 = vand.u32 %v2380, 4294901760
    %v2663 = vsub.f32 %v2380, %v2662
    %v2664 = vand.u32 %v2663, 4294901760
    %2665 = vmatpush.msra.mxu0 %v2664
    %v2666 = vand.u32 %v2378, 4294901760
    %v2667 = vsub.f32 %v2378, %v2666
    %v2668 = vand.u32 %v2667, 4294901760
    %2669 = vmatpush.msra.mxu0 %v2668
    %v2670 = vand.u32 %v2376, 4294901760
    %v2671 = vsub.f32 %v2376, %v2670
    %v2672 = vand.u32 %v2671, 4294901760
    %2673 = vmatpush.msra.mxu0 %v2672
    %v2674 = vand.u32 %v2374, 4294901760
    %v2675 = vsub.f32 %v2374, %v2674
    %v2676 = vand.u32 %v2675, 4294901760
    %2677 = vmatpush.msra.mxu0 %v2676
    %v2678 = vand.u32 %v2372, 4294901760
    %v2679 = vsub.f32 %v2372, %v2678
    %v2680 = vand.u32 %v2679, 4294901760
    %2681 = vmatpush.msra.mxu0 %v2680
    %v2682 = vand.u32 %v2370, 4294901760
    %v2683 = vsub.f32 %v2370, %v2682
    %v2684 = vand.u32 %v2683, 4294901760
    %2685 = vmatpush.msra.mxu0 %v2684
    %v2686 = vand.u32 %v2409, 4294901760
    %2687 = vmatmul.f32.gmra.mxu0 %v2686
    %v2688 = vpop.f32.mrf.mxu0
    %v2689 = vadd.f32 %v2629, %v2688
    %v2690 = vand.u32 %v2412, 4294901760
    %2691 = vmatmul.f32.gmra.mxu0 %v2690
    %v2692 = vpop.f32.mrf.mxu0
    %v2693 = vadd.f32 %v2635, %v2692
    %v2694 = vand.u32 %v2415, 4294901760
    %2695 = vmatmul.f32.gmra.mxu0 %v2694
    %v2696 = vpop.f32.mrf.mxu0
    %v2697 = vadd.f32 %v2641, %v2696
    %v2698 = vand.u32 %v2418, 4294901760
    %2699 = vmatmul.f32.gmra.mxu0 %v2698
    %v2700 = vpop.f32.mrf.mxu0
    %v2701 = vadd.f32 %v2647, %v2700
    %2702 = vdwg.mxu0
    %2703 = vmatpush.msra.mxu0 0.0
    %2704 = vmatpush.msra.mxu0 0.0
    %2705 = vmatpush.msra.mxu0 0.0
    %2706 = vmatpush.msra.mxu0 0.0
    %2707 = vmatpush.msra.mxu0 0.0
    %2708 = vmatpush.msra.mxu0 0.0
    %2709 = vmatpush.msra.mxu0 0.0
    %2710 = vmatpush.msra.mxu0 0.0
    %2711 = vmatpush.msra.mxu0 0.0
    %v2712 = vand.u32 %v2421, 4294901760
    %2713 = vmatpush.msra.mxu0 %v2712
    %v2714 = vand.u32 %v2380, 4294901760
    %2715 = vmatpush.msra.mxu0 %v2714
    %v2716 = vand.u32 %v2378, 4294901760
    %2717 = vmatpush.msra.mxu0 %v2716
    %v2718 = vand.u32 %v2376, 4294901760
    %2719 = vmatpush.msra.mxu0 %v2718
    %v2720 = vand.u32 %v2374, 4294901760
    %2721 = vmatpush.msra.mxu0 %v2720
    %v2722 = vand.u32 %v2372, 4294901760
    %2723 = vmatpush.msra.mxu0 %v2722
    %v2724 = vand.u32 %v2370, 4294901760
    %2725 = vmatpush.msra.mxu0 %v2724
    %v2726 = vand.u32 %v2409, 4294901760
    %2727 = vmatmul.f32.gmra.mxu0 %v2726
    %v2728 = vpop.f32.mrf.mxu0
    %v2729 = vadd.f32 %v2689, %v2728
    %v2730 = vand.u32 %v2412, 4294901760
    %2731 = vmatmul.f32.gmra.mxu0 %v2730
    %v2732 = vpop.f32.mrf.mxu0
    %v2733 = vadd.f32 %v2693, %v2732
    %v2734 = vand.u32 %v2415, 4294901760
    %2735 = vmatmul.f32.gmra.mxu0 %v2734
    %v2736 = vpop.f32.mrf.mxu0
    %v2737 = vadd.f32 %v2697, %v2736
    %v2738 = vand.u32 %v2418, 4294901760
    %2739 = vmatmul.f32.gmra.mxu0 %v2738
    %v2740 = vpop.f32.mrf.mxu0
    %v2741 = vadd.f32 %v2701, %v2740
    %2742 = vdwg.mxu0
    %2743 = vmatpush.msra.mxu0 0.0
    %2744 = vmatpush.msra.mxu0 0.0
    %2745 = vmatpush.msra.mxu0 0.0
    %2746 = vmatpush.msra.mxu0 0.0
    %2747 = vmatpush.msra.mxu0 0.0
    %2748 = vmatpush.msra.mxu0 0.0
    %2749 = vmatpush.msra.mxu0 0.0
    %2750 = vmatpush.msra.mxu0 0.0
    %2751 = vmatpush.msra.mxu0 0.0
    %v2752 = vand.u32 %v2424, 4294901760
    %2753 = vmatpush.msra.mxu0 %v2752
    %v2754 = vand.u32 %v2381, 4294901760
    %2755 = vmatpush.msra.mxu0 %v2754
    %v2756 = vand.u32 %v2379, 4294901760
    %2757 = vmatpush.msra.mxu0 %v2756
    %v2758 = vand.u32 %v2377, 4294901760
    %2759 = vmatpush.msra.mxu0 %v2758
    %v2760 = vand.u32 %v2375, 4294901760
    %2761 = vmatpush.msra.mxu0 %v2760
    %v2762 = vand.u32 %v2373, 4294901760
    %2763 = vmatpush.msra.mxu0 %v2762
    %v2764 = vand.u32 %v2371, 4294901760
    %2765 = vmatpush.msra.mxu0 %v2764
    %v2766 = vand.u32 %v2409, 4294901760
    %v2767 = vsub.f32 %v2409, %v2766
    %v2768 = vand.u32 %v2767, 4294901760
    %v2769 = vsub.f32 %v2767, %v2768
    %v2770 = vand.u32 %v2769, 4294901760
    %2771 = vmatmul.f32.gmra.mxu0 %v2770
    %v2772 = vpop.f32.mrf.mxu0
    %v2773 = vadd.f32 0.0, %v2772
    %v2774 = vand.u32 %v2412, 4294901760
    %v2775 = vsub.f32 %v2412, %v2774
    %v2776 = vand.u32 %v2775, 4294901760
    %v2777 = vsub.f32 %v2775, %v2776
    %v2778 = vand.u32 %v2777, 4294901760
    %2779 = vmatmul.f32.gmra.mxu0 %v2778
    %v2780 = vpop.f32.mrf.mxu0
    %v2781 = vadd.f32 0.0, %v2780
    %v2782 = vand.u32 %v2415, 4294901760
    %v2783 = vsub.f32 %v2415, %v2782
    %v2784 = vand.u32 %v2783, 4294901760
    %v2785 = vsub.f32 %v2783, %v2784
    %v2786 = vand.u32 %v2785, 4294901760
    %2787 = vmatmul.f32.gmra.mxu0 %v2786
    %v2788 = vpop.f32.mrf.mxu0
    %v2789 = vadd.f32 0.0, %v2788
    %v2790 = vand.u32 %v2418, 4294901760
    %v2791 = vsub.f32 %v2418, %v2790
    %v2792 = vand.u32 %v2791, 4294901760
    %v2793 = vsub.f32 %v2791, %v2792
    %v2794 = vand.u32 %v2793, 4294901760
    %2795 = vmatmul.f32.gmra.mxu0 %v2794
    %v2796 = vpop.f32.mrf.mxu0
    %v2797 = vadd.f32 0.0, %v2796
    %2798 = vdwg.mxu0
    %2799 = vmatpush.msra.mxu0 0.0
    %2800 = vmatpush.msra.mxu0 0.0
    %2801 = vmatpush.msra.mxu0 0.0
    %2802 = vmatpush.msra.mxu0 0.0
    %2803 = vmatpush.msra.mxu0 0.0
    %2804 = vmatpush.msra.mxu0 0.0
    %2805 = vmatpush.msra.mxu0 0.0
    %2806 = vmatpush.msra.mxu0 0.0
    %2807 = vmatpush.msra.mxu0 0.0
    %v2808 = vand.u32 %v2424, 4294901760
    %v2809 = vsub.f32 %v2424, %v2808
    %v2810 = vand.u32 %v2809, 4294901760
    %v2811 = vsub.f32 %v2809, %v2810
    %v2812 = vand.u32 %v2811, 4294901760
    %2813 = vmatpush.msra.mxu0 %v2812
    %v2814 = vand.u32 %v2381, 4294901760
    %v2815 = vsub.f32 %v2381, %v2814
    %v2816 = vand.u32 %v2815, 4294901760
    %v2817 = vsub.f32 %v2815, %v2816
    %v2818 = vand.u32 %v2817, 4294901760
    %2819 = vmatpush.msra.mxu0 %v2818
    %v2820 = vand.u32 %v2379, 4294901760
    %v2821 = vsub.f32 %v2379, %v2820
    %v2822 = vand.u32 %v2821, 4294901760
    %v2823 = vsub.f32 %v2821, %v2822
    %v2824 = vand.u32 %v2823, 4294901760
    %2825 = vmatpush.msra.mxu0 %v2824
    %v2826 = vand.u32 %v2377, 4294901760
    %v2827 = vsub.f32 %v2377, %v2826
    %v2828 = vand.u32 %v2827, 4294901760
    %v2829 = vsub.f32 %v2827, %v2828
    %v2830 = vand.u32 %v2829, 4294901760
    %2831 = vmatpush.msra.mxu0 %v2830
    %v2832 = vand.u32 %v2375, 4294901760
    %v2833 = vsub.f32 %v2375, %v2832
    %v2834 = vand.u32 %v2833, 4294901760
    %v2835 = vsub.f32 %v2833, %v2834
    %v2836 = vand.u32 %v2835, 4294901760
    %2837 = vmatpush.msra.mxu0 %v2836
    %v2838 = vand.u32 %v2373, 4294901760
    %v2839 = vsub.f32 %v2373, %v2838
    %v2840 = vand.u32 %v2839, 4294901760
    %v2841 = vsub.f32 %v2839, %v2840
    %v2842 = vand.u32 %v2841, 4294901760
    %2843 = vmatpush.msra.mxu0 %v2842
    %v2844 = vand.u32 %v2371, 4294901760
    %v2845 = vsub.f32 %v2371, %v2844
    %v2846 = vand.u32 %v2845, 4294901760
    %v2847 = vsub.f32 %v2845, %v2846
    %v2848 = vand.u32 %v2847, 4294901760
    %2849 = vmatpush.msra.mxu0 %v2848
    %v2850 = vand.u32 %v2409, 4294901760
    %2851 = vmatmul.f32.gmra.mxu0 %v2850
    %v2852 = vpop.f32.mrf.mxu0
    %v2853 = vadd.f32 %v2773, %v2852
    %v2854 = vand.u32 %v2412, 4294901760
    %2855 = vmatmul.f32.gmra.mxu0 %v2854
    %v2856 = vpop.f32.mrf.mxu0
    %v2857 = vadd.f32 %v2781, %v2856
    %v2858 = vand.u32 %v2415, 4294901760
    %2859 = vmatmul.f32.gmra.mxu0 %v2858
    %v2860 = vpop.f32.mrf.mxu0
    %v2861 = vadd.f32 %v2789, %v2860
    %v2862 = vand.u32 %v2418, 4294901760
    %2863 = vmatmul.f32.gmra.mxu0 %v2862
    %v2864 = vpop.f32.mrf.mxu0
    %v2865 = vadd.f32 %v2797, %v2864
    %2866 = vdwg.mxu0
    %2867 = vmatpush.msra.mxu0 0.0
    %2868 = vmatpush.msra.mxu0 0.0
    %2869 = vmatpush.msra.mxu0 0.0
    %2870 = vmatpush.msra.mxu0 0.0
    %2871 = vmatpush.msra.mxu0 0.0
    %2872 = vmatpush.msra.mxu0 0.0
    %2873 = vmatpush.msra.mxu0 0.0
    %2874 = vmatpush.msra.mxu0 0.0
    %2875 = vmatpush.msra.mxu0 0.0
    %v2876 = vand.u32 %v2424, 4294901760
    %v2877 = vsub.f32 %v2424, %v2876
    %2878 = vmatpush.msra.mxu0 %v2877
    %v2879 = vand.u32 %v2381, 4294901760
    %v2880 = vsub.f32 %v2381, %v2879
    %2881 = vmatpush.msra.mxu0 %v2880
    %v2882 = vand.u32 %v2379, 4294901760
    %v2883 = vsub.f32 %v2379, %v2882
    %2884 = vmatpush.msra.mxu0 %v2883
    %v2885 = vand.u32 %v2377, 4294901760
    %v2886 = vsub.f32 %v2377, %v2885
    %2887 = vmatpush.msra.mxu0 %v2886
    %v2888 = vand.u32 %v2375, 4294901760
    %v2889 = vsub.f32 %v2375, %v2888
    %2890 = vmatpush.msra.mxu0 %v2889
    %v2891 = vand.u32 %v2373, 4294901760
    %v2892 = vsub.f32 %v2373, %v2891
    %2893 = vmatpush.msra.mxu0 %v2892
    %v2894 = vand.u32 %v2371, 4294901760
    %v2895 = vsub.f32 %v2371, %v2894
    %2896 = vmatpush.msra.mxu0 %v2895
    %v2897 = vand.u32 %v2409, 4294901760
    %v2898 = vsub.f32 %v2409, %v2897
    %2899 = vmatmul.f32.gmra.mxu0 %v2898
    %v2900 = vpop.f32.mrf.mxu0
    %v2901 = vadd.f32 %v2853, %v2900
    %v2902 = vand.u32 %v2412, 4294901760
    %v2903 = vsub.f32 %v2412, %v2902
    %2904 = vmatmul.f32.gmra.mxu0 %v2903
    %v2905 = vpop.f32.mrf.mxu0
    %v2906 = vadd.f32 %v2857, %v2905
    %v2907 = vand.u32 %v2415, 4294901760
    %v2908 = vsub.f32 %v2415, %v2907
    %2909 = vmatmul.f32.gmra.mxu0 %v2908
    %v2910 = vpop.f32.mrf.mxu0
    %v2911 = vadd.f32 %v2861, %v2910
    %v2912 = vand.u32 %v2418, 4294901760
    %v2913 = vsub.f32 %v2418, %v2912
    %2914 = vmatmul.f32.gmra.mxu0 %v2913
    %v2915 = vpop.f32.mrf.mxu0
    %v2916 = vadd.f32 %v2865, %v2915
    %2917 = vdwg.mxu0
    %2918 = vmatpush.msra.mxu0 0.0
    %2919 = vmatpush.msra.mxu0 0.0
    %2920 = vmatpush.msra.mxu0 0.0
    %2921 = vmatpush.msra.mxu0 0.0
    %2922 = vmatpush.msra.mxu0 0.0
    %2923 = vmatpush.msra.mxu0 0.0
    %2924 = vmatpush.msra.mxu0 0.0
    %2925 = vmatpush.msra.mxu0 0.0
    %2926 = vmatpush.msra.mxu0 0.0
    %v2927 = vand.u32 %v2424, 4294901760
    %2928 = vmatpush.msra.mxu0 %v2927
    %v2929 = vand.u32 %v2381, 4294901760
    %2930 = vmatpush.msra.mxu0 %v2929
    %v2931 = vand.u32 %v2379, 4294901760
    %2932 = vmatpush.msra.mxu0 %v2931
    %v2933 = vand.u32 %v2377, 4294901760
    %2934 = vmatpush.msra.mxu0 %v2933
    %v2935 = vand.u32 %v2375, 4294901760
    %2936 = vmatpush.msra.mxu0 %v2935
    %v2937 = vand.u32 %v2373, 4294901760
    %2938 = vmatpush.msra.mxu0 %v2937
    %v2939 = vand.u32 %v2371, 4294901760
    %2940 = vmatpush.msra.mxu0 %v2939
    %v2941 = vand.u32 %v2409, 4294901760
    %v2942 = vsub.f32 %v2409, %v2941
    %v2943 = vand.u32 %v2942, 4294901760
    %2944 = vmatmul.f32.gmra.mxu0 %v2943
    %v2945 = vpop.f32.mrf.mxu0
    %v2946 = vadd.f32 %v2901, %v2945
    %v2947 = vand.u32 %v2412, 4294901760
    %v2948 = vsub.f32 %v2412, %v2947
    %v2949 = vand.u32 %v2948, 4294901760
    %2950 = vmatmul.f32.gmra.mxu0 %v2949
    %v2951 = vpop.f32.mrf.mxu0
    %v2952 = vadd.f32 %v2906, %v2951
    %v2953 = vand.u32 %v2415, 4294901760
    %v2954 = vsub.f32 %v2415, %v2953
    %v2955 = vand.u32 %v2954, 4294901760
    %2956 = vmatmul.f32.gmra.mxu0 %v2955
    %v2957 = vpop.f32.mrf.mxu0
    %v2958 = vadd.f32 %v2911, %v2957
    %v2959 = vand.u32 %v2418, 4294901760
    %v2960 = vsub.f32 %v2418, %v2959
    %v2961 = vand.u32 %v2960, 4294901760
    %2962 = vmatmul.f32.gmra.mxu0 %v2961
    %v2963 = vpop.f32.mrf.mxu0
    %v2964 = vadd.f32 %v2916, %v2963
    %2965 = vdwg.mxu0
    %2966 = vmatpush.msra.mxu0 0.0
    %2967 = vmatpush.msra.mxu0 0.0
    %2968 = vmatpush.msra.mxu0 0.0
    %2969 = vmatpush.msra.mxu0 0.0
    %2970 = vmatpush.msra.mxu0 0.0
    %2971 = vmatpush.msra.mxu0 0.0
    %2972 = vmatpush.msra.mxu0 0.0
    %2973 = vmatpush.msra.mxu0 0.0
    %2974 = vmatpush.msra.mxu0 0.0
    %v2975 = vand.u32 %v2424, 4294901760
    %v2976 = vsub.f32 %v2424, %v2975
    %v2977 = vand.u32 %v2976, 4294901760
    %2978 = vmatpush.msra.mxu0 %v2977
    %v2979 = vand.u32 %v2381, 4294901760
    %v2980 = vsub.f32 %v2381, %v2979
    %v2981 = vand.u32 %v2980, 4294901760
    %2982 = vmatpush.msra.mxu0 %v2981
    %v2983 = vand.u32 %v2379, 4294901760
    %v2984 = vsub.f32 %v2379, %v2983
    %v2985 = vand.u32 %v2984, 4294901760
    %2986 = vmatpush.msra.mxu0 %v2985
    %v2987 = vand.u32 %v2377, 4294901760
    %v2988 = vsub.f32 %v2377, %v2987
    %v2989 = vand.u32 %v2988, 4294901760
    %2990 = vmatpush.msra.mxu0 %v2989
    %v2991 = vand.u32 %v2375, 4294901760
    %v2992 = vsub.f32 %v2375, %v2991
    %v2993 = vand.u32 %v2992, 4294901760
    %2994 = vmatpush.msra.mxu0 %v2993
    %v2995 = vand.u32 %v2373, 4294901760
    %v2996 = vsub.f32 %v2373, %v2995
    %v2997 = vand.u32 %v2996, 4294901760
    %2998 = vmatpush.msra.mxu0 %v2997
    %v2999 = vand.u32 %v2371, 4294901760
    %v3000 = vsub.f32 %v2371, %v2999
    %v3001 = vand.u32 %v3000, 4294901760
    %3002 = vmatpush.msra.mxu0 %v3001
    %v3003 = vand.u32 %v2409, 4294901760
    %3004 = vmatmul.f32.gmra.mxu0 %v3003
    %v3005 = vpop.f32.mrf.mxu0
    %v3006 = vadd.f32 %v2946, %v3005
    %v3007 = vand.u32 %v2412, 4294901760
    %3008 = vmatmul.f32.gmra.mxu0 %v3007
    %v3009 = vpop.f32.mrf.mxu0
    %v3010 = vadd.f32 %v2952, %v3009
    %v3011 = vand.u32 %v2415, 4294901760
    %3012 = vmatmul.f32.gmra.mxu0 %v3011
    %v3013 = vpop.f32.mrf.mxu0
    %v3014 = vadd.f32 %v2958, %v3013
    %v3015 = vand.u32 %v2418, 4294901760
    %3016 = vmatmul.f32.gmra.mxu0 %v3015
    %v3017 = vpop.f32.mrf.mxu0
    %v3018 = vadd.f32 %v2964, %v3017
    %3019 = vdwg.mxu0
    %3020 = vmatpush.msra.mxu0 0.0
    %3021 = vmatpush.msra.mxu0 0.0
    %3022 = vmatpush.msra.mxu0 0.0
    %3023 = vmatpush.msra.mxu0 0.0
    %3024 = vmatpush.msra.mxu0 0.0
    %3025 = vmatpush.msra.mxu0 0.0
    %3026 = vmatpush.msra.mxu0 0.0
    %3027 = vmatpush.msra.mxu0 0.0
    %3028 = vmatpush.msra.mxu0 0.0
    %v3029 = vand.u32 %v2424, 4294901760
    %3030 = vmatpush.msra.mxu0 %v3029
    %v3031 = vand.u32 %v2381, 4294901760
    %3032 = vmatpush.msra.mxu0 %v3031
    %v3033 = vand.u32 %v2379, 4294901760
    %3034 = vmatpush.msra.mxu0 %v3033
    %v3035 = vand.u32 %v2377, 4294901760
    %3036 = vmatpush.msra.mxu0 %v3035
    %v3037 = vand.u32 %v2375, 4294901760
    %3038 = vmatpush.msra.mxu0 %v3037
    %v3039 = vand.u32 %v2373, 4294901760
    %3040 = vmatpush.msra.mxu0 %v3039
    %v3041 = vand.u32 %v2371, 4294901760
    %3042 = vmatpush.msra.mxu0 %v3041
    %v3043 = vand.u32 %v2409, 4294901760
    %3044 = vmatmul.f32.gmra.mxu0 %v3043
    %v3045 = vpop.f32.mrf.mxu0
    %v3046 = vadd.f32 %v3006, %v3045
    %v3047 = vand.u32 %v2412, 4294901760
    %3048 = vmatmul.f32.gmra.mxu0 %v3047
    %v3049 = vpop.f32.mrf.mxu0
    %v3050 = vadd.f32 %v3010, %v3049
    %v3051 = vand.u32 %v2415, 4294901760
    %3052 = vmatmul.f32.gmra.mxu0 %v3051
    %v3053 = vpop.f32.mrf.mxu0
    %v3054 = vadd.f32 %v3014, %v3053
    %v3055 = vand.u32 %v2418, 4294901760
    %3056 = vmatmul.f32.gmra.mxu0 %v3055
    %v3057 = vpop.f32.mrf.mxu0
    %v3058 = vadd.f32 %v3018, %v3057
    %3059 = vdwg.mxu0
    %v3060 = vadd.s32 %v2385, 32
    %v3061 = vadd.s32 %v2385, 40
    %v3062 = vadd.s32 %v2385, 48
    %v3063 = vadd.s32 %v2385, 56
    %v3064 = vadd.s32 %v2385, 64
    %v3065 = vadd.s32 %v2385, 72
    %v3066 = vadd.s32 %v2385, 80
    %v3067 = vadd.s32 %v2385, 88
    %v3068 = vadd.s32 %v2385, 96
    %v3069 = vadd.s32 %v2385, 104
    %v3070 = vadd.s32 %v2385, 112
    %v3071 = vadd.s32 %v2385, 120
    %v3072 = vadd.s32 %v2385, 128
    %v3073 = vadd.s32 %v2385, 136
    %v3074 = vadd.s32 %v2385, 144
    %v3075 = vadd.s32 %v2385, 152
    %v3076 = vadd.s32 %v2385, 160
    %v3077 = vmul.u32 %v2390, 2
    %vm3078 = vcmp.eq.s32.totalorder %v2385, %v3077
    %vm3079 = vcmp.eq.s32.totalorder %v2386, %v3077
    %vm3080 = vcmp.eq.s32.totalorder %v2387, %v3077
    %vm3081 = vcmp.eq.s32.totalorder %v2388, %v3077
    %vm3082 = vcmp.eq.s32.totalorder %v3060, %v3077
    %vm3083 = vcmp.eq.s32.totalorder %v3061, %v3077
    %vm3084 = vcmp.eq.s32.totalorder %v3062, %v3077
    %vm3085 = vcmp.eq.s32.totalorder %v3063, %v3077
    %vm3086 = vcmp.eq.s32.totalorder %v3064, %v3077
    %vm3087 = vcmp.eq.s32.totalorder %v3065, %v3077
    %vm3088 = vcmp.eq.s32.totalorder %v3066, %v3077
    %vm3089 = vcmp.eq.s32.totalorder %v3067, %v3077
    %vm3090 = vcmp.eq.s32.totalorder %v3068, %v3077
    %vm3091 = vcmp.eq.s32.totalorder %v3069, %v3077
    %vm3092 = vcmp.eq.s32.totalorder %v3070, %v3077
    %vm3093 = vcmp.eq.s32.totalorder %v3071, %v3077
    %vm3094 = vcmp.eq.s32.totalorder %v3072, %v3077
    %vm3095 = vcmp.eq.s32.totalorder %v3073, %v3077
    %vm3096 = vcmp.eq.s32.totalorder %v3074, %v3077
    %vm3097 = vcmp.eq.s32.totalorder %v3075, %v3077
    %vm3098 = vcmp.eq.s32.totalorder %v3076, %v3077
    %v3099 = vsel %vm3078, 1, 0
    %v3100 = vsel %vm3079, 1, 0
    %v3101 = vsel %vm3080, 1, 0
    %v3102 = vsel %vm3081, 1, 0
    %v3103 = vsel %vm3082, 1, 0
    %v3104 = vsel %vm3083, 1, 0
    %v3105 = vsel %vm3084, 1, 0
    %v3106 = vsel %vm3085, 1, 0
    %v3107 = vsel %vm3086, 1, 0
    %v3108 = vsel %vm3087, 1, 0
    %v3109 = vsel %vm3088, 1, 0
    %v3110 = vsel %vm3089, 1, 0
    %v3111 = vsel %vm3090, 1, 0
    %v3112 = vsel %vm3091, 1, 0
    %v3113 = vsel %vm3092, 1, 0
    %v3114 = vsel %vm3093, 1, 0
    %v3115 = vsel %vm3094, 1, 0
    %v3116 = vsel %vm3095, 1, 0
    %v3117 = vsel %vm3096, 1, 0
    %v3118 = vsel %vm3097, 1, 0
    %v3119 = vsel %vm3098, 1, 0
    %v3120 = vcvt.s32.f32 %v3099
    %v3121 = vcvt.s32.f32 %v3100
    %v3122 = vcvt.s32.f32 %v3101
    %v3123 = vcvt.s32.f32 %v3102
    %v3124 = vcvt.s32.f32 %v3103
    %v3125 = vcvt.s32.f32 %v3104
    %v3126 = vcvt.s32.f32 %v3105
    %v3127 = vcvt.s32.f32 %v3106
    %v3128 = vcvt.s32.f32 %v3107
    %v3129 = vcvt.s32.f32 %v3108
    %v3130 = vcvt.s32.f32 %v3109
    %v3131 = vcvt.s32.f32 %v3110
    %v3132 = vcvt.s32.f32 %v3111
    %v3133 = vcvt.s32.f32 %v3112
    %v3134 = vcvt.s32.f32 %v3113
    %v3135 = vcvt.s32.f32 %v3114
    %v3136 = vcvt.s32.f32 %v3115
    %v3137 = vcvt.s32.f32 %v3116
    %v3138 = vcvt.s32.f32 %v3117
    %v3139 = vcvt.s32.f32 %v3118
    %v3140 = vcvt.s32.f32 %v3119
    %vm3141 = vcmask 318464
    %v3143 = vsel %vm3141, %v3046, 0
    %v3146 = vsel %vm3141, %v3050, 0
    %v3149 = vsel %vm3141, %v3054, 0
    %v3152 = vsel %vm3141, %v3058, 0
    %v3155 = vsel %vm252, %v3140, 0
    %v3157 = vand.u32 %v3135, 4294901760
    %3158 = vmatpush.msra.mxu0 %v3157
    %v3159 = vand.u32 %v3134, 4294901760
    %3160 = vmatpush.msra.mxu0 %v3159
    %v3161 = vand.u32 %v3133, 4294901760
    %3162 = vmatpush.msra.mxu0 %v3161
    %v3163 = vand.u32 %v3132, 4294901760
    %3164 = vmatpush.msra.mxu0 %v3163
    %v3165 = vand.u32 %v3131, 4294901760
    %3166 = vmatpush.msra.mxu0 %v3165
    %v3167 = vand.u32 %v3130, 4294901760
    %3168 = vmatpush.msra.mxu0 %v3167
    %v3169 = vand.u32 %v3129, 4294901760
    %3170 = vmatpush.msra.mxu0 %v3169
    %v3171 = vand.u32 %v3128, 4294901760
    %3172 = vmatpush.msra.mxu0 %v3171
    %v3173 = vand.u32 %v3127, 4294901760
    %3174 = vmatpush.msra.mxu0 %v3173
    %v3175 = vand.u32 %v3126, 4294901760
    %3176 = vmatpush.msra.mxu0 %v3175
    %v3177 = vand.u32 %v3125, 4294901760
    %3178 = vmatpush.msra.mxu0 %v3177
    %v3179 = vand.u32 %v3124, 4294901760
    %3180 = vmatpush.msra.mxu0 %v3179
    %v3181 = vand.u32 %v3123, 4294901760
    %3182 = vmatpush.msra.mxu0 %v3181
    %v3183 = vand.u32 %v3122, 4294901760
    %3184 = vmatpush.msra.mxu0 %v3183
    %v3185 = vand.u32 %v3121, 4294901760
    %3186 = vmatpush.msra.mxu0 %v3185
    %v3187 = vand.u32 %v3120, 4294901760
    %3188 = vmatpush.msra.mxu0 %v3187
    %v3189 = vand.u32 %v2729, 4294901760
    %v3190 = vsub.f32 %v2729, %v3189
    %v3191 = vand.u32 %v3190, 4294901760
    %v3192 = vsub.f32 %v3190, %v3191
    %v3193 = vand.u32 %v3192, 4294901760
    %3194 = vmatmul.f32.gmra.mxu0 %v3193
    %v3195 = vpop.f32.mrf.mxu0
    %v3196 = vadd.f32 0.0, %v3195
    %v3197 = vand.u32 %v2733, 4294901760
    %v3198 = vsub.f32 %v2733, %v3197
    %v3199 = vand.u32 %v3198, 4294901760
    %v3200 = vsub.f32 %v3198, %v3199
    %v3201 = vand.u32 %v3200, 4294901760
    %3202 = vmatmul.f32.gmra.mxu0 %v3201
    %v3203 = vpop.f32.mrf.mxu0
    %v3204 = vadd.f32 0.0, %v3203
    %v3205 = vand.u32 %v2737, 4294901760
    %v3206 = vsub.f32 %v2737, %v3205
    %v3207 = vand.u32 %v3206, 4294901760
    %v3208 = vsub.f32 %v3206, %v3207
    %v3209 = vand.u32 %v3208, 4294901760
    %3210 = vmatmul.f32.gmra.mxu0 %v3209
    %v3211 = vpop.f32.mrf.mxu0
    %v3212 = vadd.f32 0.0, %v3211
    %v3213 = vand.u32 %v2741, 4294901760
    %v3214 = vsub.f32 %v2741, %v3213
    %v3215 = vand.u32 %v3214, 4294901760
    %v3216 = vsub.f32 %v3214, %v3215
    %v3217 = vand.u32 %v3216, 4294901760
    %3218 = vmatmul.f32.gmra.mxu0 %v3217
    %v3219 = vpop.f32.mrf.mxu0
    %v3220 = vadd.f32 0.0, %v3219
    %3221 = vdwg.mxu0
    %v3222 = vand.u32 %v3135, 4294901760
    %v3223 = vsub.f32 %v3135, %v3222
    %v3224 = vand.u32 %v3223, 4294901760
    %v3225 = vsub.f32 %v3223, %v3224
    %v3226 = vand.u32 %v3225, 4294901760
    %3227 = vmatpush.msra.mxu0 %v3226
    %v3228 = vand.u32 %v3134, 4294901760
    %v3229 = vsub.f32 %v3134, %v3228
    %v3230 = vand.u32 %v3229, 4294901760
    %v3231 = vsub.f32 %v3229, %v3230
    %v3232 = vand.u32 %v3231, 4294901760
    %3233 = vmatpush.msra.mxu0 %v3232
    %v3234 = vand.u32 %v3133, 4294901760
    %v3235 = vsub.f32 %v3133, %v3234
    %v3236 = vand.u32 %v3235, 4294901760
    %v3237 = vsub.f32 %v3235, %v3236
    %v3238 = vand.u32 %v3237, 4294901760
    %3239 = vmatpush.msra.mxu0 %v3238
    %v3240 = vand.u32 %v3132, 4294901760
    %v3241 = vsub.f32 %v3132, %v3240
    %v3242 = vand.u32 %v3241, 4294901760
    %v3243 = vsub.f32 %v3241, %v3242
    %v3244 = vand.u32 %v3243, 4294901760
    %3245 = vmatpush.msra.mxu0 %v3244
    %v3246 = vand.u32 %v3131, 4294901760
    %v3247 = vsub.f32 %v3131, %v3246
    %v3248 = vand.u32 %v3247, 4294901760
    %v3249 = vsub.f32 %v3247, %v3248
    %v3250 = vand.u32 %v3249, 4294901760
    %3251 = vmatpush.msra.mxu0 %v3250
    %v3252 = vand.u32 %v3130, 4294901760
    %v3253 = vsub.f32 %v3130, %v3252
    %v3254 = vand.u32 %v3253, 4294901760
    %v3255 = vsub.f32 %v3253, %v3254
    %v3256 = vand.u32 %v3255, 4294901760
    %3257 = vmatpush.msra.mxu0 %v3256
    %v3258 = vand.u32 %v3129, 4294901760
    %v3259 = vsub.f32 %v3129, %v3258
    %v3260 = vand.u32 %v3259, 4294901760
    %v3261 = vsub.f32 %v3259, %v3260
    %v3262 = vand.u32 %v3261, 4294901760
    %3263 = vmatpush.msra.mxu0 %v3262
    %v3264 = vand.u32 %v3128, 4294901760
    %v3265 = vsub.f32 %v3128, %v3264
    %v3266 = vand.u32 %v3265, 4294901760
    %v3267 = vsub.f32 %v3265, %v3266
    %v3268 = vand.u32 %v3267, 4294901760
    %3269 = vmatpush.msra.mxu0 %v3268
    %v3270 = vand.u32 %v3127, 4294901760
    %v3271 = vsub.f32 %v3127, %v3270
    %v3272 = vand.u32 %v3271, 4294901760
    %v3273 = vsub.f32 %v3271, %v3272
    %v3274 = vand.u32 %v3273, 4294901760
    %3275 = vmatpush.msra.mxu0 %v3274
    %v3276 = vand.u32 %v3126, 4294901760
    %v3277 = vsub.f32 %v3126, %v3276
    %v3278 = vand.u32 %v3277, 4294901760
    %v3279 = vsub.f32 %v3277, %v3278
    %v3280 = vand.u32 %v3279, 4294901760
    %3281 = vmatpush.msra.mxu0 %v3280
    %v3282 = vand.u32 %v3125, 4294901760
    %v3283 = vsub.f32 %v3125, %v3282
    %v3284 = vand.u32 %v3283, 4294901760
    %v3285 = vsub.f32 %v3283, %v3284
    %v3286 = vand.u32 %v3285, 4294901760
    %3287 = vmatpush.msra.mxu0 %v3286
    %v3288 = vand.u32 %v3124, 4294901760
    %v3289 = vsub.f32 %v3124, %v3288
    %v3290 = vand.u32 %v3289, 4294901760
    %v3291 = vsub.f32 %v3289, %v3290
    %v3292 = vand.u32 %v3291, 4294901760
    %3293 = vmatpush.msra.mxu0 %v3292
    %v3294 = vand.u32 %v3123, 4294901760
    %v3295 = vsub.f32 %v3123, %v3294
    %v3296 = vand.u32 %v3295, 4294901760
    %v3297 = vsub.f32 %v3295, %v3296
    %v3298 = vand.u32 %v3297, 4294901760
    %3299 = vmatpush.msra.mxu0 %v3298
    %v3300 = vand.u32 %v3122, 4294901760
    %v3301 = vsub.f32 %v3122, %v3300
    %v3302 = vand.u32 %v3301, 4294901760
    %v3303 = vsub.f32 %v3301, %v3302
    %v3304 = vand.u32 %v3303, 4294901760
    %3305 = vmatpush.msra.mxu0 %v3304
    %v3306 = vand.u32 %v3121, 4294901760
    %v3307 = vsub.f32 %v3121, %v3306
    %v3308 = vand.u32 %v3307, 4294901760
    %v3309 = vsub.f32 %v3307, %v3308
    %v3310 = vand.u32 %v3309, 4294901760
    %3311 = vmatpush.msra.mxu0 %v3310
    %v3312 = vand.u32 %v3120, 4294901760
    %v3313 = vsub.f32 %v3120, %v3312
    %v3314 = vand.u32 %v3313, 4294901760
    %v3315 = vsub.f32 %v3313, %v3314
    %v3316 = vand.u32 %v3315, 4294901760
    %3317 = vmatpush.msra.mxu0 %v3316
    %v3318 = vand.u32 %v2729, 4294901760
    %3319 = vmatmul.f32.gmra.mxu0 %v3318
    %v3320 = vpop.f32.mrf.mxu0
    %v3321 = vadd.f32 %v3196, %v3320
    %v3322 = vand.u32 %v2733, 4294901760
    %3323 = vmatmul.f32.gmra.mxu0 %v3322
    %v3324 = vpop.f32.mrf.mxu0
    %v3325 = vadd.f32 %v3204, %v3324
    %v3326 = vand.u32 %v2737, 4294901760
    %3327 = vmatmul.f32.gmra.mxu0 %v3326
    %v3328 = vpop.f32.mrf.mxu0
    %v3329 = vadd.f32 %v3212, %v3328
    %v3330 = vand.u32 %v2741, 4294901760
    %3331 = vmatmul.f32.gmra.mxu0 %v3330
    %v3332 = vpop.f32.mrf.mxu0
    %v3333 = vadd.f32 %v3220, %v3332
    %3334 = vdwg.mxu0
    %v3335 = vand.u32 %v3135, 4294901760
    %v3336 = vsub.f32 %v3135, %v3335
    %3337 = vmatpush.msra.mxu0 %v3336
    %v3338 = vand.u32 %v3134, 4294901760
    %v3339 = vsub.f32 %v3134, %v3338
    %3340 = vmatpush.msra.mxu0 %v3339
    %v3341 = vand.u32 %v3133, 4294901760
    %v3342 = vsub.f32 %v3133, %v3341
    %3343 = vmatpush.msra.mxu0 %v3342
    %v3344 = vand.u32 %v3132, 4294901760
    %v3345 = vsub.f32 %v3132, %v3344
    %3346 = vmatpush.msra.mxu0 %v3345
    %v3347 = vand.u32 %v3131, 4294901760
    %v3348 = vsub.f32 %v3131, %v3347
    %3349 = vmatpush.msra.mxu0 %v3348
    %v3350 = vand.u32 %v3130, 4294901760
    %v3351 = vsub.f32 %v3130, %v3350
    %3352 = vmatpush.msra.mxu0 %v3351
    %v3353 = vand.u32 %v3129, 4294901760
    %v3354 = vsub.f32 %v3129, %v3353
    %3355 = vmatpush.msra.mxu0 %v3354
    %v3356 = vand.u32 %v3128, 4294901760
    %v3357 = vsub.f32 %v3128, %v3356
    %3358 = vmatpush.msra.mxu0 %v3357
    %v3359 = vand.u32 %v3127, 4294901760
    %v3360 = vsub.f32 %v3127, %v3359
    %3361 = vmatpush.msra.mxu0 %v3360
    %v3362 = vand.u32 %v3126, 4294901760
    %v3363 = vsub.f32 %v3126, %v3362
    %3364 = vmatpush.msra.mxu0 %v3363
    %v3365 = vand.u32 %v3125, 4294901760
    %v3366 = vsub.f32 %v3125, %v3365
    %3367 = vmatpush.msra.mxu0 %v3366
    %v3368 = vand.u32 %v3124, 4294901760
    %v3369 = vsub.f32 %v3124, %v3368
    %3370 = vmatpush.msra.mxu0 %v3369
    %v3371 = vand.u32 %v3123, 4294901760
    %v3372 = vsub.f32 %v3123, %v3371
    %3373 = vmatpush.msra.mxu0 %v3372
    %v3374 = vand.u32 %v3122, 4294901760
    %v3375 = vsub.f32 %v3122, %v3374
    %3376 = vmatpush.msra.mxu0 %v3375
    %v3377 = vand.u32 %v3121, 4294901760
    %v3378 = vsub.f32 %v3121, %v3377
    %3379 = vmatpush.msra.mxu0 %v3378
    %v3380 = vand.u32 %v3120, 4294901760
    %v3381 = vsub.f32 %v3120, %v3380
    %3382 = vmatpush.msra.mxu0 %v3381
    %v3383 = vand.u32 %v2729, 4294901760
    %v3384 = vsub.f32 %v2729, %v3383
    %3385 = vmatmul.f32.gmra.mxu0 %v3384
    %v3386 = vpop.f32.mrf.mxu0
    %v3387 = vadd.f32 %v3321, %v3386
    %v3388 = vand.u32 %v2733, 4294901760
    %v3389 = vsub.f32 %v2733, %v3388
    %3390 = vmatmul.f32.gmra.mxu0 %v3389
    %v3391 = vpop.f32.mrf.mxu0
    %v3392 = vadd.f32 %v3325, %v3391
    %v3393 = vand.u32 %v2737, 4294901760
    %v3394 = vsub.f32 %v2737, %v3393
    %3395 = vmatmul.f32.gmra.mxu0 %v3394
    %v3396 = vpop.f32.mrf.mxu0
    %v3397 = vadd.f32 %v3329, %v3396
    %v3398 = vand.u32 %v2741, 4294901760
    %v3399 = vsub.f32 %v2741, %v3398
    %3400 = vmatmul.f32.gmra.mxu0 %v3399
    %v3401 = vpop.f32.mrf.mxu0
    %v3402 = vadd.f32 %v3333, %v3401
    %3403 = vdwg.mxu0
    %v3404 = vand.u32 %v3135, 4294901760
    %3405 = vmatpush.msra.mxu0 %v3404
    %v3406 = vand.u32 %v3134, 4294901760
    %3407 = vmatpush.msra.mxu0 %v3406
    %v3408 = vand.u32 %v3133, 4294901760
    %3409 = vmatpush.msra.mxu0 %v3408
    %v3410 = vand.u32 %v3132, 4294901760
    %3411 = vmatpush.msra.mxu0 %v3410
    %v3412 = vand.u32 %v3131, 4294901760
    %3413 = vmatpush.msra.mxu0 %v3412
    %v3414 = vand.u32 %v3130, 4294901760
    %3415 = vmatpush.msra.mxu0 %v3414
    %v3416 = vand.u32 %v3129, 4294901760
    %3417 = vmatpush.msra.mxu0 %v3416
    %v3418 = vand.u32 %v3128, 4294901760
    %3419 = vmatpush.msra.mxu0 %v3418
    %v3420 = vand.u32 %v3127, 4294901760
    %3421 = vmatpush.msra.mxu0 %v3420
    %v3422 = vand.u32 %v3126, 4294901760
    %3423 = vmatpush.msra.mxu0 %v3422
    %v3424 = vand.u32 %v3125, 4294901760
    %3425 = vmatpush.msra.mxu0 %v3424
    %v3426 = vand.u32 %v3124, 4294901760
    %3427 = vmatpush.msra.mxu0 %v3426
    %v3428 = vand.u32 %v3123, 4294901760
    %3429 = vmatpush.msra.mxu0 %v3428
    %v3430 = vand.u32 %v3122, 4294901760
    %3431 = vmatpush.msra.mxu0 %v3430
    %v3432 = vand.u32 %v3121, 4294901760
    %3433 = vmatpush.msra.mxu0 %v3432
    %v3434 = vand.u32 %v3120, 4294901760
    %3435 = vmatpush.msra.mxu0 %v3434
    %v3436 = vand.u32 %v2729, 4294901760
    %v3437 = vsub.f32 %v2729, %v3436
    %v3438 = vand.u32 %v3437, 4294901760
    %3439 = vmatmul.f32.gmra.mxu0 %v3438
    %v3440 = vpop.f32.mrf.mxu0
    %v3441 = vadd.f32 %v3387, %v3440
    %v3442 = vand.u32 %v2733, 4294901760
    %v3443 = vsub.f32 %v2733, %v3442
    %v3444 = vand.u32 %v3443, 4294901760
    %3445 = vmatmul.f32.gmra.mxu0 %v3444
    %v3446 = vpop.f32.mrf.mxu0
    %v3447 = vadd.f32 %v3392, %v3446
    %v3448 = vand.u32 %v2737, 4294901760
    %v3449 = vsub.f32 %v2737, %v3448
    %v3450 = vand.u32 %v3449, 4294901760
    %3451 = vmatmul.f32.gmra.mxu0 %v3450
    %v3452 = vpop.f32.mrf.mxu0
    %v3453 = vadd.f32 %v3397, %v3452
    %v3454 = vand.u32 %v2741, 4294901760
    %v3455 = vsub.f32 %v2741, %v3454
    %v3456 = vand.u32 %v3455, 4294901760
    %3457 = vmatmul.f32.gmra.mxu0 %v3456
    %v3458 = vpop.f32.mrf.mxu0
    %v3459 = vadd.f32 %v3402, %v3458
    %3460 = vdwg.mxu0
    %v3461 = vand.u32 %v3135, 4294901760
    %v3462 = vsub.f32 %v3135, %v3461
    %v3463 = vand.u32 %v3462, 4294901760
    %3464 = vmatpush.msra.mxu0 %v3463
    %v3465 = vand.u32 %v3134, 4294901760
    %v3466 = vsub.f32 %v3134, %v3465
    %v3467 = vand.u32 %v3466, 4294901760
    %3468 = vmatpush.msra.mxu0 %v3467
    %v3469 = vand.u32 %v3133, 4294901760
    %v3470 = vsub.f32 %v3133, %v3469
    %v3471 = vand.u32 %v3470, 4294901760
    %3472 = vmatpush.msra.mxu0 %v3471
    %v3473 = vand.u32 %v3132, 4294901760
    %v3474 = vsub.f32 %v3132, %v3473
    %v3475 = vand.u32 %v3474, 4294901760
    %3476 = vmatpush.msra.mxu0 %v3475
    %v3477 = vand.u32 %v3131, 4294901760
    %v3478 = vsub.f32 %v3131, %v3477
    %v3479 = vand.u32 %v3478, 4294901760
    %3480 = vmatpush.msra.mxu0 %v3479
    %v3481 = vand.u32 %v3130, 4294901760
    %v3482 = vsub.f32 %v3130, %v3481
    %v3483 = vand.u32 %v3482, 4294901760
    %3484 = vmatpush.msra.mxu0 %v3483
    %v3485 = vand.u32 %v3129, 4294901760
    %v3486 = vsub.f32 %v3129, %v3485
    %v3487 = vand.u32 %v3486, 4294901760
    %3488 = vmatpush.msra.mxu0 %v3487
    %v3489 = vand.u32 %v3128, 4294901760
    %v3490 = vsub.f32 %v3128, %v3489
    %v3491 = vand.u32 %v3490, 4294901760
    %3492 = vmatpush.msra.mxu0 %v3491
    %v3493 = vand.u32 %v3127, 4294901760
    %v3494 = vsub.f32 %v3127, %v3493
    %v3495 = vand.u32 %v3494, 4294901760
    %3496 = vmatpush.msra.mxu0 %v3495
    %v3497 = vand.u32 %v3126, 4294901760
    %v3498 = vsub.f32 %v3126, %v3497
    %v3499 = vand.u32 %v3498, 4294901760
    %3500 = vmatpush.msra.mxu0 %v3499
    %v3501 = vand.u32 %v3125, 4294901760
    %v3502 = vsub.f32 %v3125, %v3501
    %v3503 = vand.u32 %v3502, 4294901760
    %3504 = vmatpush.msra.mxu0 %v3503
    %v3505 = vand.u32 %v3124, 4294901760
    %v3506 = vsub.f32 %v3124, %v3505
    %v3507 = vand.u32 %v3506, 4294901760
    %3508 = vmatpush.msra.mxu0 %v3507
    %v3509 = vand.u32 %v3123, 4294901760
    %v3510 = vsub.f32 %v3123, %v3509
    %v3511 = vand.u32 %v3510, 4294901760
    %3512 = vmatpush.msra.mxu0 %v3511
    %v3513 = vand.u32 %v3122, 4294901760
    %v3514 = vsub.f32 %v3122, %v3513
    %v3515 = vand.u32 %v3514, 4294901760
    %3516 = vmatpush.msra.mxu0 %v3515
    %v3517 = vand.u32 %v3121, 4294901760
    %v3518 = vsub.f32 %v3121, %v3517
    %v3519 = vand.u32 %v3518, 4294901760
    %3520 = vmatpush.msra.mxu0 %v3519
    %v3521 = vand.u32 %v3120, 4294901760
    %v3522 = vsub.f32 %v3120, %v3521
    %v3523 = vand.u32 %v3522, 4294901760
    %3524 = vmatpush.msra.mxu0 %v3523
    %v3525 = vand.u32 %v2729, 4294901760
    %3526 = vmatmul.f32.gmra.mxu0 %v3525
    %v3527 = vpop.f32.mrf.mxu0
    %v3528 = vadd.f32 %v3441, %v3527
    %v3529 = vand.u32 %v2733, 4294901760
    %3530 = vmatmul.f32.gmra.mxu0 %v3529
    %v3531 = vpop.f32.mrf.mxu0
    %v3532 = vadd.f32 %v3447, %v3531
    %v3533 = vand.u32 %v2737, 4294901760
    %3534 = vmatmul.f32.gmra.mxu0 %v3533
    %v3535 = vpop.f32.mrf.mxu0
    %v3536 = vadd.f32 %v3453, %v3535
    %v3537 = vand.u32 %v2741, 4294901760
    %3538 = vmatmul.f32.gmra.mxu0 %v3537
    %v3539 = vpop.f32.mrf.mxu0
    %v3540 = vadd.f32 %v3459, %v3539
    %3541 = vdwg.mxu0
    %v3542 = vand.u32 %v3135, 4294901760
    %3543 = vmatpush.msra.mxu0 %v3542
    %v3544 = vand.u32 %v3134, 4294901760
    %3545 = vmatpush.msra.mxu0 %v3544
    %v3546 = vand.u32 %v3133, 4294901760
    %3547 = vmatpush.msra.mxu0 %v3546
    %v3548 = vand.u32 %v3132, 4294901760
    %3549 = vmatpush.msra.mxu0 %v3548
    %v3550 = vand.u32 %v3131, 4294901760
    %3551 = vmatpush.msra.mxu0 %v3550
    %v3552 = vand.u32 %v3130, 4294901760
    %3553 = vmatpush.msra.mxu0 %v3552
    %v3554 = vand.u32 %v3129, 4294901760
    %3555 = vmatpush.msra.mxu0 %v3554
    %v3556 = vand.u32 %v3128, 4294901760
    %3557 = vmatpush.msra.mxu0 %v3556
    %v3558 = vand.u32 %v3127, 4294901760
    %3559 = vmatpush.msra.mxu0 %v3558
    %v3560 = vand.u32 %v3126, 4294901760
    %3561 = vmatpush.msra.mxu0 %v3560
    %v3562 = vand.u32 %v3125, 4294901760
    %3563 = vmatpush.msra.mxu0 %v3562
    %v3564 = vand.u32 %v3124, 4294901760
    %3565 = vmatpush.msra.mxu0 %v3564
    %v3566 = vand.u32 %v3123, 4294901760
    %3567 = vmatpush.msra.mxu0 %v3566
    %v3568 = vand.u32 %v3122, 4294901760
    %3569 = vmatpush.msra.mxu0 %v3568
    %v3570 = vand.u32 %v3121, 4294901760
    %3571 = vmatpush.msra.mxu0 %v3570
    %v3572 = vand.u32 %v3120, 4294901760
    %3573 = vmatpush.msra.mxu0 %v3572
    %v3574 = vand.u32 %v2729, 4294901760
    %3575 = vmatmul.f32.gmra.mxu0 %v3574
    %v3576 = vpop.f32.mrf.mxu0
    %v3577 = vadd.f32 %v3528, %v3576
    %v3578 = vand.u32 %v2733, 4294901760
    %3579 = vmatmul.f32.gmra.mxu0 %v3578
    %v3580 = vpop.f32.mrf.mxu0
    %v3581 = vadd.f32 %v3532, %v3580
    %v3582 = vand.u32 %v2737, 4294901760
    %3583 = vmatmul.f32.gmra.mxu0 %v3582
    %v3584 = vpop.f32.mrf.mxu0
    %v3585 = vadd.f32 %v3536, %v3584
    %v3586 = vand.u32 %v2741, 4294901760
    %3587 = vmatmul.f32.gmra.mxu0 %v3586
    %v3588 = vpop.f32.mrf.mxu0
    %v3589 = vadd.f32 %v3540, %v3588
    %3590 = vdwg.mxu0
    %3591 = vmatpush.msra.mxu0 0.0
    %3592 = vmatpush.msra.mxu0 0.0
    %3593 = vmatpush.msra.mxu0 0.0
    %3594 = vmatpush.msra.mxu0 0.0
    %3595 = vmatpush.msra.mxu0 0.0
    %3596 = vmatpush.msra.mxu0 0.0
    %3597 = vmatpush.msra.mxu0 0.0
    %3598 = vmatpush.msra.mxu0 0.0
    %3599 = vmatpush.msra.mxu0 0.0
    %3600 = vmatpush.msra.mxu0 0.0
    %3601 = vmatpush.msra.mxu0 0.0
    %v3602 = vand.u32 %v3155, 4294901760
    %3603 = vmatpush.msra.mxu0 %v3602
    %v3604 = vand.u32 %v3139, 4294901760
    %3605 = vmatpush.msra.mxu0 %v3604
    %v3606 = vand.u32 %v3138, 4294901760
    %3607 = vmatpush.msra.mxu0 %v3606
    %v3608 = vand.u32 %v3137, 4294901760
    %3609 = vmatpush.msra.mxu0 %v3608
    %v3610 = vand.u32 %v3136, 4294901760
    %3611 = vmatpush.msra.mxu0 %v3610
    %v3612 = vand.u32 %v3143, 4294901760
    %v3613 = vsub.f32 %v3143, %v3612
    %v3614 = vand.u32 %v3613, 4294901760
    %v3615 = vsub.f32 %v3613, %v3614
    %v3616 = vand.u32 %v3615, 4294901760
    %3617 = vmatmul.f32.gmra.mxu0 %v3616
    %v3618 = vpop.f32.mrf.mxu0
    %v3619 = vadd.f32 %v3577, %v3618
    %v3620 = vand.u32 %v3146, 4294901760
    %v3621 = vsub.f32 %v3146, %v3620
    %v3622 = vand.u32 %v3621, 4294901760
    %v3623 = vsub.f32 %v3621, %v3622
    %v3624 = vand.u32 %v3623, 4294901760
    %3625 = vmatmul.f32.gmra.mxu0 %v3624
    %v3626 = vpop.f32.mrf.mxu0
    %v3627 = vadd.f32 %v3581, %v3626
    %v3628 = vand.u32 %v3149, 4294901760
    %v3629 = vsub.f32 %v3149, %v3628
    %v3630 = vand.u32 %v3629, 4294901760
    %v3631 = vsub.f32 %v3629, %v3630
    %v3632 = vand.u32 %v3631, 4294901760
    %3633 = vmatmul.f32.gmra.mxu0 %v3632
    %v3634 = vpop.f32.mrf.mxu0
    %v3635 = vadd.f32 %v3585, %v3634
    %v3636 = vand.u32 %v3152, 4294901760
    %v3637 = vsub.f32 %v3152, %v3636
    %v3638 = vand.u32 %v3637, 4294901760
    %v3639 = vsub.f32 %v3637, %v3638
    %v3640 = vand.u32 %v3639, 4294901760
    %3641 = vmatmul.f32.gmra.mxu0 %v3640
    %v3642 = vpop.f32.mrf.mxu0
    %v3643 = vadd.f32 %v3589, %v3642
    %3644 = vdwg.mxu0
    %3645 = vmatpush.msra.mxu0 0.0
    %3646 = vmatpush.msra.mxu0 0.0
    %3647 = vmatpush.msra.mxu0 0.0
    %3648 = vmatpush.msra.mxu0 0.0
    %3649 = vmatpush.msra.mxu0 0.0
    %3650 = vmatpush.msra.mxu0 0.0
    %3651 = vmatpush.msra.mxu0 0.0
    %3652 = vmatpush.msra.mxu0 0.0
    %3653 = vmatpush.msra.mxu0 0.0
    %3654 = vmatpush.msra.mxu0 0.0
    %3655 = vmatpush.msra.mxu0 0.0
    %v3656 = vand.u32 %v3155, 4294901760
    %v3657 = vsub.f32 %v3155, %v3656
    %v3658 = vand.u32 %v3657, 4294901760
    %v3659 = vsub.f32 %v3657, %v3658
    %v3660 = vand.u32 %v3659, 4294901760
    %3661 = vmatpush.msra.mxu0 %v3660
    %v3662 = vand.u32 %v3139, 4294901760
    %v3663 = vsub.f32 %v3139, %v3662
    %v3664 = vand.u32 %v3663, 4294901760
    %v3665 = vsub.f32 %v3663, %v3664
    %v3666 = vand.u32 %v3665, 4294901760
    %3667 = vmatpush.msra.mxu0 %v3666
    %v3668 = vand.u32 %v3138, 4294901760
    %v3669 = vsub.f32 %v3138, %v3668
    %v3670 = vand.u32 %v3669, 4294901760
    %v3671 = vsub.f32 %v3669, %v3670
    %v3672 = vand.u32 %v3671, 4294901760
    %3673 = vmatpush.msra.mxu0 %v3672
    %v3674 = vand.u32 %v3137, 4294901760
    %v3675 = vsub.f32 %v3137, %v3674
    %v3676 = vand.u32 %v3675, 4294901760
    %v3677 = vsub.f32 %v3675, %v3676
    %v3678 = vand.u32 %v3677, 4294901760
    %3679 = vmatpush.msra.mxu0 %v3678
    %v3680 = vand.u32 %v3136, 4294901760
    %v3681 = vsub.f32 %v3136, %v3680
    %v3682 = vand.u32 %v3681, 4294901760
    %v3683 = vsub.f32 %v3681, %v3682
    %v3684 = vand.u32 %v3683, 4294901760
    %3685 = vmatpush.msra.mxu0 %v3684
    %v3686 = vand.u32 %v3143, 4294901760
    %3687 = vmatmul.f32.gmra.mxu0 %v3686
    %v3688 = vpop.f32.mrf.mxu0
    %v3689 = vadd.f32 %v3619, %v3688
    %v3690 = vand.u32 %v3146, 4294901760
    %3691 = vmatmul.f32.gmra.mxu0 %v3690
    %v3692 = vpop.f32.mrf.mxu0
    %v3693 = vadd.f32 %v3627, %v3692
    %v3694 = vand.u32 %v3149, 4294901760
    %3695 = vmatmul.f32.gmra.mxu0 %v3694
    %v3696 = vpop.f32.mrf.mxu0
    %v3697 = vadd.f32 %v3635, %v3696
    %v3698 = vand.u32 %v3152, 4294901760
    %3699 = vmatmul.f32.gmra.mxu0 %v3698
    %v3700 = vpop.f32.mrf.mxu0
    %v3701 = vadd.f32 %v3643, %v3700
    %3702 = vdwg.mxu0
    %3703 = vmatpush.msra.mxu0 0.0
    %3704 = vmatpush.msra.mxu0 0.0
    %3705 = vmatpush.msra.mxu0 0.0
    %3706 = vmatpush.msra.mxu0 0.0
    %3707 = vmatpush.msra.mxu0 0.0
    %3708 = vmatpush.msra.mxu0 0.0
    %3709 = vmatpush.msra.mxu0 0.0
    %3710 = vmatpush.msra.mxu0 0.0
    %3711 = vmatpush.msra.mxu0 0.0
    %3712 = vmatpush.msra.mxu0 0.0
    %3713 = vmatpush.msra.mxu0 0.0
    %v3714 = vand.u32 %v3155, 4294901760
    %v3715 = vsub.f32 %v3155, %v3714
    %3716 = vmatpush.msra.mxu0 %v3715
    %v3717 = vand.u32 %v3139, 4294901760
    %v3718 = vsub.f32 %v3139, %v3717
    %3719 = vmatpush.msra.mxu0 %v3718
    %v3720 = vand.u32 %v3138, 4294901760
    %v3721 = vsub.f32 %v3138, %v3720
    %3722 = vmatpush.msra.mxu0 %v3721
    %v3723 = vand.u32 %v3137, 4294901760
    %v3724 = vsub.f32 %v3137, %v3723
    %3725 = vmatpush.msra.mxu0 %v3724
    %v3726 = vand.u32 %v3136, 4294901760
    %v3727 = vsub.f32 %v3136, %v3726
    %3728 = vmatpush.msra.mxu0 %v3727
    %v3729 = vand.u32 %v3143, 4294901760
    %v3730 = vsub.f32 %v3143, %v3729
    %3731 = vmatmul.f32.gmra.mxu0 %v3730
    %v3732 = vpop.f32.mrf.mxu0
    %v3733 = vadd.f32 %v3689, %v3732
    %v3734 = vand.u32 %v3146, 4294901760
    %v3735 = vsub.f32 %v3146, %v3734
    %3736 = vmatmul.f32.gmra.mxu0 %v3735
    %v3737 = vpop.f32.mrf.mxu0
    %v3738 = vadd.f32 %v3693, %v3737
    %v3739 = vand.u32 %v3149, 4294901760
    %v3740 = vsub.f32 %v3149, %v3739
    %3741 = vmatmul.f32.gmra.mxu0 %v3740
    %v3742 = vpop.f32.mrf.mxu0
    %v3743 = vadd.f32 %v3697, %v3742
    %v3744 = vand.u32 %v3152, 4294901760
    %v3745 = vsub.f32 %v3152, %v3744
    %3746 = vmatmul.f32.gmra.mxu0 %v3745
    %v3747 = vpop.f32.mrf.mxu0
    %v3748 = vadd.f32 %v3701, %v3747
    %3749 = vdwg.mxu0
    %3750 = vmatpush.msra.mxu0 0.0
    %3751 = vmatpush.msra.mxu0 0.0
    %3752 = vmatpush.msra.mxu0 0.0
    %3753 = vmatpush.msra.mxu0 0.0
    %3754 = vmatpush.msra.mxu0 0.0
    %3755 = vmatpush.msra.mxu0 0.0
    %3756 = vmatpush.msra.mxu0 0.0
    %3757 = vmatpush.msra.mxu0 0.0
    %3758 = vmatpush.msra.mxu0 0.0
    %3759 = vmatpush.msra.mxu0 0.0
    %3760 = vmatpush.msra.mxu0 0.0
    %v3761 = vand.u32 %v3155, 4294901760
    %3762 = vmatpush.msra.mxu0 %v3761
    %v3763 = vand.u32 %v3139, 4294901760
    %3764 = vmatpush.msra.mxu0 %v3763
    %v3765 = vand.u32 %v3138, 4294901760
    %3766 = vmatpush.msra.mxu0 %v3765
    %v3767 = vand.u32 %v3137, 4294901760
    %3768 = vmatpush.msra.mxu0 %v3767
    %v3769 = vand.u32 %v3136, 4294901760
    %3770 = vmatpush.msra.mxu0 %v3769
    %v3771 = vand.u32 %v3143, 4294901760
    %v3772 = vsub.f32 %v3143, %v3771
    %v3773 = vand.u32 %v3772, 4294901760
    %3774 = vmatmul.f32.gmra.mxu0 %v3773
    %v3775 = vpop.f32.mrf.mxu0
    %v3776 = vadd.f32 %v3733, %v3775
    %v3777 = vand.u32 %v3146, 4294901760
    %v3778 = vsub.f32 %v3146, %v3777
    %v3779 = vand.u32 %v3778, 4294901760
    %3780 = vmatmul.f32.gmra.mxu0 %v3779
    %v3781 = vpop.f32.mrf.mxu0
    %v3782 = vadd.f32 %v3738, %v3781
    %v3783 = vand.u32 %v3149, 4294901760
    %v3784 = vsub.f32 %v3149, %v3783
    %v3785 = vand.u32 %v3784, 4294901760
    %3786 = vmatmul.f32.gmra.mxu0 %v3785
    %v3787 = vpop.f32.mrf.mxu0
    %v3788 = vadd.f32 %v3743, %v3787
    %v3789 = vand.u32 %v3152, 4294901760
    %v3790 = vsub.f32 %v3152, %v3789
    %v3791 = vand.u32 %v3790, 4294901760
    %3792 = vmatmul.f32.gmra.mxu0 %v3791
    %v3793 = vpop.f32.mrf.mxu0
    %v3794 = vadd.f32 %v3748, %v3793
    %3795 = vdwg.mxu0
    %3796 = vmatpush.msra.mxu0 0.0
    %3797 = vmatpush.msra.mxu0 0.0
    %3798 = vmatpush.msra.mxu0 0.0
    %3799 = vmatpush.msra.mxu0 0.0
    %3800 = vmatpush.msra.mxu0 0.0
    %3801 = vmatpush.msra.mxu0 0.0
    %3802 = vmatpush.msra.mxu0 0.0
    %3803 = vmatpush.msra.mxu0 0.0
    %3804 = vmatpush.msra.mxu0 0.0
    %3805 = vmatpush.msra.mxu0 0.0
    %3806 = vmatpush.msra.mxu0 0.0
    %v3807 = vand.u32 %v3155, 4294901760
    %v3808 = vsub.f32 %v3155, %v3807
    %v3809 = vand.u32 %v3808, 4294901760
    %3810 = vmatpush.msra.mxu0 %v3809
    %v3811 = vand.u32 %v3139, 4294901760
    %v3812 = vsub.f32 %v3139, %v3811
    %v3813 = vand.u32 %v3812, 4294901760
    %3814 = vmatpush.msra.mxu0 %v3813
    %v3815 = vand.u32 %v3138, 4294901760
    %v3816 = vsub.f32 %v3138, %v3815
    %v3817 = vand.u32 %v3816, 4294901760
    %3818 = vmatpush.msra.mxu0 %v3817
    %v3819 = vand.u32 %v3137, 4294901760
    %v3820 = vsub.f32 %v3137, %v3819
    %v3821 = vand.u32 %v3820, 4294901760
    %3822 = vmatpush.msra.mxu0 %v3821
    %v3823 = vand.u32 %v3136, 4294901760
    %v3824 = vsub.f32 %v3136, %v3823
    %v3825 = vand.u32 %v3824, 4294901760
    %3826 = vmatpush.msra.mxu0 %v3825
    %v3827 = vand.u32 %v3143, 4294901760
    %3828 = vmatmul.f32.gmra.mxu0 %v3827
    %v3829 = vpop.f32.mrf.mxu0
    %v3830 = vadd.f32 %v3776, %v3829
    %v3831 = vand.u32 %v3146, 4294901760
    %3832 = vmatmul.f32.gmra.mxu0 %v3831
    %v3833 = vpop.f32.mrf.mxu0
    %v3834 = vadd.f32 %v3782, %v3833
    %v3835 = vand.u32 %v3149, 4294901760
    %3836 = vmatmul.f32.gmra.mxu0 %v3835
    %v3837 = vpop.f32.mrf.mxu0
    %v3838 = vadd.f32 %v3788, %v3837
    %v3839 = vand.u32 %v3152, 4294901760
    %3840 = vmatmul.f32.gmra.mxu0 %v3839
    %v3841 = vpop.f32.mrf.mxu0
    %v3842 = vadd.f32 %v3794, %v3841
    %3843 = vdwg.mxu0
    %3844 = vmatpush.msra.mxu0 0.0
    %3845 = vmatpush.msra.mxu0 0.0
    %3846 = vmatpush.msra.mxu0 0.0
    %3847 = vmatpush.msra.mxu0 0.0
    %3848 = vmatpush.msra.mxu0 0.0
    %3849 = vmatpush.msra.mxu0 0.0
    %3850 = vmatpush.msra.mxu0 0.0
    %3851 = vmatpush.msra.mxu0 0.0
    %3852 = vmatpush.msra.mxu0 0.0
    %3853 = vmatpush.msra.mxu0 0.0
    %3854 = vmatpush.msra.mxu0 0.0
    %v3855 = vand.u32 %v3155, 4294901760
    %3856 = vmatpush.msra.mxu0 %v3855
    %v3857 = vand.u32 %v3139, 4294901760
    %3858 = vmatpush.msra.mxu0 %v3857
    %v3859 = vand.u32 %v3138, 4294901760
    %3860 = vmatpush.msra.mxu0 %v3859
    %v3861 = vand.u32 %v3137, 4294901760
    %3862 = vmatpush.msra.mxu0 %v3861
    %v3863 = vand.u32 %v3136, 4294901760
    %3864 = vmatpush.msra.mxu0 %v3863
    %v3865 = vand.u32 %v3143, 4294901760
    %3866 = vmatmul.f32.gmra.mxu0 %v3865
    %v3867 = vpop.f32.mrf.mxu0
    %v3868 = vadd.f32 %v3830, %v3867
    %v3869 = vand.u32 %v3146, 4294901760
    %3870 = vmatmul.f32.gmra.mxu0 %v3869
    %v3871 = vpop.f32.mrf.mxu0
    %v3872 = vadd.f32 %v3834, %v3871
    %v3873 = vand.u32 %v3149, 4294901760
    %3874 = vmatmul.f32.gmra.mxu0 %v3873
    %v3875 = vpop.f32.mrf.mxu0
    %v3876 = vadd.f32 %v3838, %v3875
    %v3877 = vand.u32 %v3152, 4294901760
    %3878 = vmatmul.f32.gmra.mxu0 %v3877
    %v3879 = vpop.f32.mrf.mxu0
    %v3880 = vadd.f32 %v3842, %v3879
    %3881 = vdwg.mxu0
    %v3885 = vrot.slane %v3872, 2
    %v3886 = vrot.slane %v3876, 2
    %v3887 = vsel %vm271, %v3885, %v3886
    %v3888 = vrot.slane %v3880, 2
    %v3889 = vsel %vm271, %v3886, %v3888
    %v3892 = vsel %vm235, %v3872, %v3887
    %v3894 = vrot.slane %v3868, 1
    %v3895 = vrot.slane %v3872, 1
    %v3896 = vsel %vm252, %v3894, %v3895
    %v3898 = vrot.slane %v3872, 3
    %v3899 = vrot.slane %v3876, 3
    %v3900 = vsel %vm290, %v3898, %v3899
    %v3901 = vrot.slane %v3880, 3
    %v3902 = vsel %vm290, %v3899, %v3901
    %v3904 = vsel %vm235, %v3895, %v3900
    %v3905 = vrot.slane %v3868, 2
    %v3906 = vsel %vm271, %v3905, %v3885
    %v3908 = vrot.slane %v3876, 4
    %v3909 = vrot.slane %v3880, 4
    %v3910 = vsel %vm235, %v3908, %v3909
    %v3912 = vsel %vm235, %v3885, %v3908
    %3914 = vrot.lane.b32.xlu0 %v3896, 84
    %v3915 = vpop.permute.xlu0 %3914
    %3916 = vrot.lane.b32.xlu0 %v3904, 84
    %v3917 = vpop.permute.xlu0 %3916
    %3918 = vrot.lane.b32.xlu0 %v3902, 84
    %v3919 = vpop.permute.xlu0 %3918
    %3924 = vrot.lane.b32.xlu0 %v3906, 40
    %v3925 = vpop.permute.xlu0 %3924
    %3926 = vrot.lane.b32.xlu0 %v3912, 40
    %v3927 = vpop.permute.xlu0 %3926
    %3928 = vrot.lane.b32.xlu0 %v3910, 40
    %v3929 = vpop.permute.xlu0 %3928
    %vm3933 = vcmask 687104
    %v3934 = vsel %vm3933, %v3868, %v3915
    %v3935 = vsel %vm3933, %v3892, %v3917
    %v3936 = vsel %vm3933, %v3889, %v3919
    %vm3937 = vcmask 326656
    %v3938 = vsel %vm3937, %v3915, %v3925
    %v3939 = vsel %vm3937, %v3917, %v3927
    %v3940 = vsel %vm3937, %v3919, %v3929
    %v3942 = vperm.slane %v219, 0
    %v3943 = vperm.slane %v219, 1
    %vm3946 = vcmask 1014784
    %v3948 = vsel %vm3946, %v3938, 0
    %v3951 = vsel %vm3946, %v3939, 0
    %v3954 = vsel %vm3946, %v3940, 0
    %v3957 = vsel %vm235, %v117, 0
    %v3960 = vsel %vm235, %v118, 0
    %v3962 = vand.u32 %v85, 4294901760
    %3963 = vmatpush.msra.mxu0 %v3962
    %v3964 = vand.u32 %v83, 4294901760
    %3965 = vmatpush.msra.mxu0 %v3964
    %v3966 = vand.u32 %v81, 4294901760
    %3967 = vmatpush.msra.mxu0 %v3966
    %v3968 = vand.u32 %v79, 4294901760
    %3969 = vmatpush.msra.mxu0 %v3968
    %v3970 = vand.u32 %v77, 4294901760
    %3971 = vmatpush.msra.mxu0 %v3970
    %v3972 = vand.u32 %v75, 4294901760
    %3973 = vmatpush.msra.mxu0 %v3972
    %v3974 = vand.u32 %v73, 4294901760
    %3975 = vmatpush.msra.mxu0 %v3974
    %v3976 = vand.u32 %v71, 4294901760
    %3977 = vmatpush.msra.mxu0 %v3976
    %v3978 = vand.u32 %v69, 4294901760
    %3979 = vmatpush.msra.mxu0 %v3978
    %v3980 = vand.u32 %v67, 4294901760
    %3981 = vmatpush.msra.mxu0 %v3980
    %v3982 = vand.u32 %v65, 4294901760
    %3983 = vmatpush.msra.mxu0 %v3982
    %v3984 = vand.u32 %v63, 4294901760
    %3985 = vmatpush.msra.mxu0 %v3984
    %v3986 = vand.u32 %v61, 4294901760
    %3987 = vmatpush.msra.mxu0 %v3986
    %v3988 = vand.u32 %v59, 4294901760
    %3989 = vmatpush.msra.mxu0 %v3988
    %v3990 = vand.u32 %v57, 4294901760
    %3991 = vmatpush.msra.mxu0 %v3990
    %v3992 = vand.u32 %v55, 4294901760
    %3993 = vmatpush.msra.mxu0 %v3992
    %v3994 = vand.u32 %v3934, 4294901760
    %v3995 = vsub.f32 %v3934, %v3994
    %v3996 = vand.u32 %v3995, 4294901760
    %v3997 = vsub.f32 %v3995, %v3996
    %v3998 = vand.u32 %v3997, 4294901760
    %3999 = vmatmul.f32.gmra.mxu0 %v3998
    %v4000 = vpop.f32.mrf.mxu0
    %v4001 = vadd.f32 %v3942, %v4000
    %v4002 = vand.u32 %v3935, 4294901760
    %v4003 = vsub.f32 %v3935, %v4002
    %v4004 = vand.u32 %v4003, 4294901760
    %v4005 = vsub.f32 %v4003, %v4004
    %v4006 = vand.u32 %v4005, 4294901760
    %4007 = vmatmul.f32.gmra.mxu0 %v4006
    %v4008 = vpop.f32.mrf.mxu0
    %v4009 = vadd.f32 %v3942, %v4008
    %v4010 = vand.u32 %v3936, 4294901760
    %v4011 = vsub.f32 %v3936, %v4010
    %v4012 = vand.u32 %v4011, 4294901760
    %v4013 = vsub.f32 %v4011, %v4012
    %v4014 = vand.u32 %v4013, 4294901760
    %4015 = vmatmul.f32.gmra.mxu0 %v4014
    %v4016 = vpop.f32.mrf.mxu0
    %v4017 = vadd.f32 %v3942, %v4016
    %4018 = vdwg.mxu0
    %v4019 = vand.u32 %v85, 4294901760
    %v4020 = vsub.f32 %v85, %v4019
    %v4021 = vand.u32 %v4020, 4294901760
    %v4022 = vsub.f32 %v4020, %v4021
    %v4023 = vand.u32 %v4022, 4294901760
    %4024 = vmatpush.msra.mxu0 %v4023
    %v4025 = vand.u32 %v83, 4294901760
    %v4026 = vsub.f32 %v83, %v4025
    %v4027 = vand.u32 %v4026, 4294901760
    %v4028 = vsub.f32 %v4026, %v4027
    %v4029 = vand.u32 %v4028, 4294901760
    %4030 = vmatpush.msra.mxu0 %v4029
    %v4031 = vand.u32 %v81, 4294901760
    %v4032 = vsub.f32 %v81, %v4031
    %v4033 = vand.u32 %v4032, 4294901760
    %v4034 = vsub.f32 %v4032, %v4033
    %v4035 = vand.u32 %v4034, 4294901760
    %4036 = vmatpush.msra.mxu0 %v4035
    %v4037 = vand.u32 %v79, 4294901760
    %v4038 = vsub.f32 %v79, %v4037
    %v4039 = vand.u32 %v4038, 4294901760
    %v4040 = vsub.f32 %v4038, %v4039
    %v4041 = vand.u32 %v4040, 4294901760
    %4042 = vmatpush.msra.mxu0 %v4041
    %v4043 = vand.u32 %v77, 4294901760
    %v4044 = vsub.f32 %v77, %v4043
    %v4045 = vand.u32 %v4044, 4294901760
    %v4046 = vsub.f32 %v4044, %v4045
    %v4047 = vand.u32 %v4046, 4294901760
    %4048 = vmatpush.msra.mxu0 %v4047
    %v4049 = vand.u32 %v75, 4294901760
    %v4050 = vsub.f32 %v75, %v4049
    %v4051 = vand.u32 %v4050, 4294901760
    %v4052 = vsub.f32 %v4050, %v4051
    %v4053 = vand.u32 %v4052, 4294901760
    %4054 = vmatpush.msra.mxu0 %v4053
    %v4055 = vand.u32 %v73, 4294901760
    %v4056 = vsub.f32 %v73, %v4055
    %v4057 = vand.u32 %v4056, 4294901760
    %v4058 = vsub.f32 %v4056, %v4057
    %v4059 = vand.u32 %v4058, 4294901760
    %4060 = vmatpush.msra.mxu0 %v4059
    %v4061 = vand.u32 %v71, 4294901760
    %v4062 = vsub.f32 %v71, %v4061
    %v4063 = vand.u32 %v4062, 4294901760
    %v4064 = vsub.f32 %v4062, %v4063
    %v4065 = vand.u32 %v4064, 4294901760
    %4066 = vmatpush.msra.mxu0 %v4065
    %v4067 = vand.u32 %v69, 4294901760
    %v4068 = vsub.f32 %v69, %v4067
    %v4069 = vand.u32 %v4068, 4294901760
    %v4070 = vsub.f32 %v4068, %v4069
    %v4071 = vand.u32 %v4070, 4294901760
    %4072 = vmatpush.msra.mxu0 %v4071
    %v4073 = vand.u32 %v67, 4294901760
    %v4074 = vsub.f32 %v67, %v4073
    %v4075 = vand.u32 %v4074, 4294901760
    %v4076 = vsub.f32 %v4074, %v4075
    %v4077 = vand.u32 %v4076, 4294901760
    %4078 = vmatpush.msra.mxu0 %v4077
    %v4079 = vand.u32 %v65, 4294901760
    %v4080 = vsub.f32 %v65, %v4079
    %v4081 = vand.u32 %v4080, 4294901760
    %v4082 = vsub.f32 %v4080, %v4081
    %v4083 = vand.u32 %v4082, 4294901760
    %4084 = vmatpush.msra.mxu0 %v4083
    %v4085 = vand.u32 %v63, 4294901760
    %v4086 = vsub.f32 %v63, %v4085
    %v4087 = vand.u32 %v4086, 4294901760
    %v4088 = vsub.f32 %v4086, %v4087
    %v4089 = vand.u32 %v4088, 4294901760
    %4090 = vmatpush.msra.mxu0 %v4089
    %v4091 = vand.u32 %v61, 4294901760
    %v4092 = vsub.f32 %v61, %v4091
    %v4093 = vand.u32 %v4092, 4294901760
    %v4094 = vsub.f32 %v4092, %v4093
    %v4095 = vand.u32 %v4094, 4294901760
    %4096 = vmatpush.msra.mxu0 %v4095
    %v4097 = vand.u32 %v59, 4294901760
    %v4098 = vsub.f32 %v59, %v4097
    %v4099 = vand.u32 %v4098, 4294901760
    %v4100 = vsub.f32 %v4098, %v4099
    %v4101 = vand.u32 %v4100, 4294901760
    %4102 = vmatpush.msra.mxu0 %v4101
    %v4103 = vand.u32 %v57, 4294901760
    %v4104 = vsub.f32 %v57, %v4103
    %v4105 = vand.u32 %v4104, 4294901760
    %v4106 = vsub.f32 %v4104, %v4105
    %v4107 = vand.u32 %v4106, 4294901760
    %4108 = vmatpush.msra.mxu0 %v4107
    %v4109 = vand.u32 %v55, 4294901760
    %v4110 = vsub.f32 %v55, %v4109
    %v4111 = vand.u32 %v4110, 4294901760
    %v4112 = vsub.f32 %v4110, %v4111
    %v4113 = vand.u32 %v4112, 4294901760
    %4114 = vmatpush.msra.mxu0 %v4113
    %v4115 = vand.u32 %v3934, 4294901760
    %4116 = vmatmul.f32.gmra.mxu0 %v4115
    %v4117 = vpop.f32.mrf.mxu0
    %v4118 = vadd.f32 %v4001, %v4117
    %v4119 = vand.u32 %v3935, 4294901760
    %4120 = vmatmul.f32.gmra.mxu0 %v4119
    %v4121 = vpop.f32.mrf.mxu0
    %v4122 = vadd.f32 %v4009, %v4121
    %v4123 = vand.u32 %v3936, 4294901760
    %4124 = vmatmul.f32.gmra.mxu0 %v4123
    %v4125 = vpop.f32.mrf.mxu0
    %v4126 = vadd.f32 %v4017, %v4125
    %4127 = vdwg.mxu0
    %v4128 = vand.u32 %v85, 4294901760
    %v4129 = vsub.f32 %v85, %v4128
    %4130 = vmatpush.msra.mxu0 %v4129
    %v4131 = vand.u32 %v83, 4294901760
    %v4132 = vsub.f32 %v83, %v4131
    %4133 = vmatpush.msra.mxu0 %v4132
    %v4134 = vand.u32 %v81, 4294901760
    %v4135 = vsub.f32 %v81, %v4134
    %4136 = vmatpush.msra.mxu0 %v4135
    %v4137 = vand.u32 %v79, 4294901760
    %v4138 = vsub.f32 %v79, %v4137
    %4139 = vmatpush.msra.mxu0 %v4138
    %v4140 = vand.u32 %v77, 4294901760
    %v4141 = vsub.f32 %v77, %v4140
    %4142 = vmatpush.msra.mxu0 %v4141
    %v4143 = vand.u32 %v75, 4294901760
    %v4144 = vsub.f32 %v75, %v4143
    %4145 = vmatpush.msra.mxu0 %v4144
    %v4146 = vand.u32 %v73, 4294901760
    %v4147 = vsub.f32 %v73, %v4146
    %4148 = vmatpush.msra.mxu0 %v4147
    %v4149 = vand.u32 %v71, 4294901760
    %v4150 = vsub.f32 %v71, %v4149
    %4151 = vmatpush.msra.mxu0 %v4150
    %v4152 = vand.u32 %v69, 4294901760
    %v4153 = vsub.f32 %v69, %v4152
    %4154 = vmatpush.msra.mxu0 %v4153
    %v4155 = vand.u32 %v67, 4294901760
    %v4156 = vsub.f32 %v67, %v4155
    %4157 = vmatpush.msra.mxu0 %v4156
    %v4158 = vand.u32 %v65, 4294901760
    %v4159 = vsub.f32 %v65, %v4158
    %4160 = vmatpush.msra.mxu0 %v4159
    %v4161 = vand.u32 %v63, 4294901760
    %v4162 = vsub.f32 %v63, %v4161
    %4163 = vmatpush.msra.mxu0 %v4162
    %v4164 = vand.u32 %v61, 4294901760
    %v4165 = vsub.f32 %v61, %v4164
    %4166 = vmatpush.msra.mxu0 %v4165
    %v4167 = vand.u32 %v59, 4294901760
    %v4168 = vsub.f32 %v59, %v4167
    %4169 = vmatpush.msra.mxu0 %v4168
    %v4170 = vand.u32 %v57, 4294901760
    %v4171 = vsub.f32 %v57, %v4170
    %4172 = vmatpush.msra.mxu0 %v4171
    %v4173 = vand.u32 %v55, 4294901760
    %v4174 = vsub.f32 %v55, %v4173
    %4175 = vmatpush.msra.mxu0 %v4174
    %v4176 = vand.u32 %v3934, 4294901760
    %v4177 = vsub.f32 %v3934, %v4176
    %4178 = vmatmul.f32.gmra.mxu0 %v4177
    %v4179 = vpop.f32.mrf.mxu0
    %v4180 = vadd.f32 %v4118, %v4179
    %v4181 = vand.u32 %v3935, 4294901760
    %v4182 = vsub.f32 %v3935, %v4181
    %4183 = vmatmul.f32.gmra.mxu0 %v4182
    %v4184 = vpop.f32.mrf.mxu0
    %v4185 = vadd.f32 %v4122, %v4184
    %v4186 = vand.u32 %v3936, 4294901760
    %v4187 = vsub.f32 %v3936, %v4186
    %4188 = vmatmul.f32.gmra.mxu0 %v4187
    %v4189 = vpop.f32.mrf.mxu0
    %v4190 = vadd.f32 %v4126, %v4189
    %4191 = vdwg.mxu0
    %v4192 = vand.u32 %v85, 4294901760
    %4193 = vmatpush.msra.mxu0 %v4192
    %v4194 = vand.u32 %v83, 4294901760
    %4195 = vmatpush.msra.mxu0 %v4194
    %v4196 = vand.u32 %v81, 4294901760
    %4197 = vmatpush.msra.mxu0 %v4196
    %v4198 = vand.u32 %v79, 4294901760
    %4199 = vmatpush.msra.mxu0 %v4198
    %v4200 = vand.u32 %v77, 4294901760
    %4201 = vmatpush.msra.mxu0 %v4200
    %v4202 = vand.u32 %v75, 4294901760
    %4203 = vmatpush.msra.mxu0 %v4202
    %v4204 = vand.u32 %v73, 4294901760
    %4205 = vmatpush.msra.mxu0 %v4204
    %v4206 = vand.u32 %v71, 4294901760
    %4207 = vmatpush.msra.mxu0 %v4206
    %v4208 = vand.u32 %v69, 4294901760
    %4209 = vmatpush.msra.mxu0 %v4208
    %v4210 = vand.u32 %v67, 4294901760
    %4211 = vmatpush.msra.mxu0 %v4210
    %v4212 = vand.u32 %v65, 4294901760
    %4213 = vmatpush.msra.mxu0 %v4212
    %v4214 = vand.u32 %v63, 4294901760
    %4215 = vmatpush.msra.mxu0 %v4214
    %v4216 = vand.u32 %v61, 4294901760
    %4217 = vmatpush.msra.mxu0 %v4216
    %v4218 = vand.u32 %v59, 4294901760
    %4219 = vmatpush.msra.mxu0 %v4218
    %v4220 = vand.u32 %v57, 4294901760
    %4221 = vmatpush.msra.mxu0 %v4220
    %v4222 = vand.u32 %v55, 4294901760
    %4223 = vmatpush.msra.mxu0 %v4222
    %v4224 = vand.u32 %v3934, 4294901760
    %v4225 = vsub.f32 %v3934, %v4224
    %v4226 = vand.u32 %v4225, 4294901760
    %4227 = vmatmul.f32.gmra.mxu0 %v4226
    %v4228 = vpop.f32.mrf.mxu0
    %v4229 = vadd.f32 %v4180, %v4228
    %v4230 = vand.u32 %v3935, 4294901760
    %v4231 = vsub.f32 %v3935, %v4230
    %v4232 = vand.u32 %v4231, 4294901760
    %4233 = vmatmul.f32.gmra.mxu0 %v4232
    %v4234 = vpop.f32.mrf.mxu0
    %v4235 = vadd.f32 %v4185, %v4234
    %v4236 = vand.u32 %v3936, 4294901760
    %v4237 = vsub.f32 %v3936, %v4236
    %v4238 = vand.u32 %v4237, 4294901760
    %4239 = vmatmul.f32.gmra.mxu0 %v4238
    %v4240 = vpop.f32.mrf.mxu0
    %v4241 = vadd.f32 %v4190, %v4240
    %4242 = vdwg.mxu0
    %v4243 = vand.u32 %v85, 4294901760
    %v4244 = vsub.f32 %v85, %v4243
    %v4245 = vand.u32 %v4244, 4294901760
    %4246 = vmatpush.msra.mxu0 %v4245
    %v4247 = vand.u32 %v83, 4294901760
    %v4248 = vsub.f32 %v83, %v4247
    %v4249 = vand.u32 %v4248, 4294901760
    %4250 = vmatpush.msra.mxu0 %v4249
    %v4251 = vand.u32 %v81, 4294901760
    %v4252 = vsub.f32 %v81, %v4251
    %v4253 = vand.u32 %v4252, 4294901760
    %4254 = vmatpush.msra.mxu0 %v4253
    %v4255 = vand.u32 %v79, 4294901760
    %v4256 = vsub.f32 %v79, %v4255
    %v4257 = vand.u32 %v4256, 4294901760
    %4258 = vmatpush.msra.mxu0 %v4257
    %v4259 = vand.u32 %v77, 4294901760
    %v4260 = vsub.f32 %v77, %v4259
    %v4261 = vand.u32 %v4260, 4294901760
    %4262 = vmatpush.msra.mxu0 %v4261
    %v4263 = vand.u32 %v75, 4294901760
    %v4264 = vsub.f32 %v75, %v4263
    %v4265 = vand.u32 %v4264, 4294901760
    %4266 = vmatpush.msra.mxu0 %v4265
    %v4267 = vand.u32 %v73, 4294901760
    %v4268 = vsub.f32 %v73, %v4267
    %v4269 = vand.u32 %v4268, 4294901760
    %4270 = vmatpush.msra.mxu0 %v4269
    %v4271 = vand.u32 %v71, 4294901760
    %v4272 = vsub.f32 %v71, %v4271
    %v4273 = vand.u32 %v4272, 4294901760
    %4274 = vmatpush.msra.mxu0 %v4273
    %v4275 = vand.u32 %v69, 4294901760
    %v4276 = vsub.f32 %v69, %v4275
    %v4277 = vand.u32 %v4276, 4294901760
    %4278 = vmatpush.msra.mxu0 %v4277
    %v4279 = vand.u32 %v67, 4294901760
    %v4280 = vsub.f32 %v67, %v4279
    %v4281 = vand.u32 %v4280, 4294901760
    %4282 = vmatpush.msra.mxu0 %v4281
    %v4283 = vand.u32 %v65, 4294901760
    %v4284 = vsub.f32 %v65, %v4283
    %v4285 = vand.u32 %v4284, 4294901760
    %4286 = vmatpush.msra.mxu0 %v4285
    %v4287 = vand.u32 %v63, 4294901760
    %v4288 = vsub.f32 %v63, %v4287
    %v4289 = vand.u32 %v4288, 4294901760
    %4290 = vmatpush.msra.mxu0 %v4289
    %v4291 = vand.u32 %v61, 4294901760
    %v4292 = vsub.f32 %v61, %v4291
    %v4293 = vand.u32 %v4292, 4294901760
    %4294 = vmatpush.msra.mxu0 %v4293
    %v4295 = vand.u32 %v59, 4294901760
    %v4296 = vsub.f32 %v59, %v4295
    %v4297 = vand.u32 %v4296, 4294901760
    %4298 = vmatpush.msra.mxu0 %v4297
    %v4299 = vand.u32 %v57, 4294901760
    %v4300 = vsub.f32 %v57, %v4299
    %v4301 = vand.u32 %v4300, 4294901760
    %4302 = vmatpush.msra.mxu0 %v4301
    %v4303 = vand.u32 %v55, 4294901760
    %v4304 = vsub.f32 %v55, %v4303
    %v4305 = vand.u32 %v4304, 4294901760
    %4306 = vmatpush.msra.mxu0 %v4305
    %v4307 = vand.u32 %v3934, 4294901760
    %4308 = vmatmul.f32.gmra.mxu0 %v4307
    %v4309 = vpop.f32.mrf.mxu0
    %v4310 = vadd.f32 %v4229, %v4309
    %v4311 = vand.u32 %v3935, 4294901760
    %4312 = vmatmul.f32.gmra.mxu0 %v4311
    %v4313 = vpop.f32.mrf.mxu0
    %v4314 = vadd.f32 %v4235, %v4313
    %v4315 = vand.u32 %v3936, 4294901760
    %4316 = vmatmul.f32.gmra.mxu0 %v4315
    %v4317 = vpop.f32.mrf.mxu0
    %v4318 = vadd.f32 %v4241, %v4317
    %4319 = vdwg.mxu0
    %v4320 = vand.u32 %v85, 4294901760
    %4321 = vmatpush.msra.mxu0 %v4320
    %v4322 = vand.u32 %v83, 4294901760
    %4323 = vmatpush.msra.mxu0 %v4322
    %v4324 = vand.u32 %v81, 4294901760
    %4325 = vmatpush.msra.mxu0 %v4324
    %v4326 = vand.u32 %v79, 4294901760
    %4327 = vmatpush.msra.mxu0 %v4326
    %v4328 = vand.u32 %v77, 4294901760
    %4329 = vmatpush.msra.mxu0 %v4328
    %v4330 = vand.u32 %v75, 4294901760
    %4331 = vmatpush.msra.mxu0 %v4330
    %v4332 = vand.u32 %v73, 4294901760
    %4333 = vmatpush.msra.mxu0 %v4332
    %v4334 = vand.u32 %v71, 4294901760
    %4335 = vmatpush.msra.mxu0 %v4334
    %v4336 = vand.u32 %v69, 4294901760
    %4337 = vmatpush.msra.mxu0 %v4336
    %v4338 = vand.u32 %v67, 4294901760
    %4339 = vmatpush.msra.mxu0 %v4338
    %v4340 = vand.u32 %v65, 4294901760
    %4341 = vmatpush.msra.mxu0 %v4340
    %v4342 = vand.u32 %v63, 4294901760
    %4343 = vmatpush.msra.mxu0 %v4342
    %v4344 = vand.u32 %v61, 4294901760
    %4345 = vmatpush.msra.mxu0 %v4344
    %v4346 = vand.u32 %v59, 4294901760
    %4347 = vmatpush.msra.mxu0 %v4346
    %v4348 = vand.u32 %v57, 4294901760
    %4349 = vmatpush.msra.mxu0 %v4348
    %v4350 = vand.u32 %v55, 4294901760
    %4351 = vmatpush.msra.mxu0 %v4350
    %v4352 = vand.u32 %v3934, 4294901760
    %4353 = vmatmul.f32.gmra.mxu0 %v4352
    %v4354 = vpop.f32.mrf.mxu0
    %v4355 = vadd.f32 %v4310, %v4354
    %v4356 = vand.u32 %v3935, 4294901760
    %4357 = vmatmul.f32.gmra.mxu0 %v4356
    %v4358 = vpop.f32.mrf.mxu0
    %v4359 = vadd.f32 %v4314, %v4358
    %v4360 = vand.u32 %v3936, 4294901760
    %4361 = vmatmul.f32.gmra.mxu0 %v4360
    %v4362 = vpop.f32.mrf.mxu0
    %v4363 = vadd.f32 %v4318, %v4362
    %4364 = vdwg.mxu0
    %v4365 = vand.u32 %v3957, 4294901760
    %4366 = vmatpush.msra.mxu0 %v4365
    %v4367 = vand.u32 %v115, 4294901760
    %4368 = vmatpush.msra.mxu0 %v4367
    %v4369 = vand.u32 %v113, 4294901760
    %4370 = vmatpush.msra.mxu0 %v4369
    %v4371 = vand.u32 %v111, 4294901760
    %4372 = vmatpush.msra.mxu0 %v4371
    %v4373 = vand.u32 %v109, 4294901760
    %4374 = vmatpush.msra.mxu0 %v4373
    %v4375 = vand.u32 %v107, 4294901760
    %4376 = vmatpush.msra.mxu0 %v4375
    %v4377 = vand.u32 %v105, 4294901760
    %4378 = vmatpush.msra.mxu0 %v4377
    %v4379 = vand.u32 %v103, 4294901760
    %4380 = vmatpush.msra.mxu0 %v4379
    %v4381 = vand.u32 %v101, 4294901760
    %4382 = vmatpush.msra.mxu0 %v4381
    %v4383 = vand.u32 %v99, 4294901760
    %4384 = vmatpush.msra.mxu0 %v4383
    %v4385 = vand.u32 %v97, 4294901760
    %4386 = vmatpush.msra.mxu0 %v4385
    %v4387 = vand.u32 %v95, 4294901760
    %4388 = vmatpush.msra.mxu0 %v4387
    %v4389 = vand.u32 %v93, 4294901760
    %4390 = vmatpush.msra.mxu0 %v4389
    %v4391 = vand.u32 %v91, 4294901760
    %4392 = vmatpush.msra.mxu0 %v4391
    %v4393 = vand.u32 %v89, 4294901760
    %4394 = vmatpush.msra.mxu0 %v4393
    %v4395 = vand.u32 %v87, 4294901760
    %4396 = vmatpush.msra.mxu0 %v4395
    %v4397 = vand.u32 %v3948, 4294901760
    %v4398 = vsub.f32 %v3948, %v4397
    %v4399 = vand.u32 %v4398, 4294901760
    %v4400 = vsub.f32 %v4398, %v4399
    %v4401 = vand.u32 %v4400, 4294901760
    %4402 = vmatmul.f32.gmra.mxu0 %v4401
    %v4403 = vpop.f32.mrf.mxu0
    %v4404 = vadd.f32 %v4355, %v4403
    %v4405 = vand.u32 %v3951, 4294901760
    %v4406 = vsub.f32 %v3951, %v4405
    %v4407 = vand.u32 %v4406, 4294901760
    %v4408 = vsub.f32 %v4406, %v4407
    %v4409 = vand.u32 %v4408, 4294901760
    %4410 = vmatmul.f32.gmra.mxu0 %v4409
    %v4411 = vpop.f32.mrf.mxu0
    %v4412 = vadd.f32 %v4359, %v4411
    %v4413 = vand.u32 %v3954, 4294901760
    %v4414 = vsub.f32 %v3954, %v4413
    %v4415 = vand.u32 %v4414, 4294901760
    %v4416 = vsub.f32 %v4414, %v4415
    %v4417 = vand.u32 %v4416, 4294901760
    %4418 = vmatmul.f32.gmra.mxu0 %v4417
    %v4419 = vpop.f32.mrf.mxu0
    %v4420 = vadd.f32 %v4363, %v4419
    %4421 = vdwg.mxu0
    %v4422 = vand.u32 %v3957, 4294901760
    %v4423 = vsub.f32 %v3957, %v4422
    %v4424 = vand.u32 %v4423, 4294901760
    %v4425 = vsub.f32 %v4423, %v4424
    %v4426 = vand.u32 %v4425, 4294901760
    %4427 = vmatpush.msra.mxu0 %v4426
    %v4428 = vand.u32 %v115, 4294901760
    %v4429 = vsub.f32 %v115, %v4428
    %v4430 = vand.u32 %v4429, 4294901760
    %v4431 = vsub.f32 %v4429, %v4430
    %v4432 = vand.u32 %v4431, 4294901760
    %4433 = vmatpush.msra.mxu0 %v4432
    %v4434 = vand.u32 %v113, 4294901760
    %v4435 = vsub.f32 %v113, %v4434
    %v4436 = vand.u32 %v4435, 4294901760
    %v4437 = vsub.f32 %v4435, %v4436
    %v4438 = vand.u32 %v4437, 4294901760
    %4439 = vmatpush.msra.mxu0 %v4438
    %v4440 = vand.u32 %v111, 4294901760
    %v4441 = vsub.f32 %v111, %v4440
    %v4442 = vand.u32 %v4441, 4294901760
    %v4443 = vsub.f32 %v4441, %v4442
    %v4444 = vand.u32 %v4443, 4294901760
    %4445 = vmatpush.msra.mxu0 %v4444
    %v4446 = vand.u32 %v109, 4294901760
    %v4447 = vsub.f32 %v109, %v4446
    %v4448 = vand.u32 %v4447, 4294901760
    %v4449 = vsub.f32 %v4447, %v4448
    %v4450 = vand.u32 %v4449, 4294901760
    %4451 = vmatpush.msra.mxu0 %v4450
    %v4452 = vand.u32 %v107, 4294901760
    %v4453 = vsub.f32 %v107, %v4452
    %v4454 = vand.u32 %v4453, 4294901760
    %v4455 = vsub.f32 %v4453, %v4454
    %v4456 = vand.u32 %v4455, 4294901760
    %4457 = vmatpush.msra.mxu0 %v4456
    %v4458 = vand.u32 %v105, 4294901760
    %v4459 = vsub.f32 %v105, %v4458
    %v4460 = vand.u32 %v4459, 4294901760
    %v4461 = vsub.f32 %v4459, %v4460
    %v4462 = vand.u32 %v4461, 4294901760
    %4463 = vmatpush.msra.mxu0 %v4462
    %v4464 = vand.u32 %v103, 4294901760
    %v4465 = vsub.f32 %v103, %v4464
    %v4466 = vand.u32 %v4465, 4294901760
    %v4467 = vsub.f32 %v4465, %v4466
    %v4468 = vand.u32 %v4467, 4294901760
    %4469 = vmatpush.msra.mxu0 %v4468
    %v4470 = vand.u32 %v101, 4294901760
    %v4471 = vsub.f32 %v101, %v4470
    %v4472 = vand.u32 %v4471, 4294901760
    %v4473 = vsub.f32 %v4471, %v4472
    %v4474 = vand.u32 %v4473, 4294901760
    %4475 = vmatpush.msra.mxu0 %v4474
    %v4476 = vand.u32 %v99, 4294901760
    %v4477 = vsub.f32 %v99, %v4476
    %v4478 = vand.u32 %v4477, 4294901760
    %v4479 = vsub.f32 %v4477, %v4478
    %v4480 = vand.u32 %v4479, 4294901760
    %4481 = vmatpush.msra.mxu0 %v4480
    %v4482 = vand.u32 %v97, 4294901760
    %v4483 = vsub.f32 %v97, %v4482
    %v4484 = vand.u32 %v4483, 4294901760
    %v4485 = vsub.f32 %v4483, %v4484
    %v4486 = vand.u32 %v4485, 4294901760
    %4487 = vmatpush.msra.mxu0 %v4486
    %v4488 = vand.u32 %v95, 4294901760
    %v4489 = vsub.f32 %v95, %v4488
    %v4490 = vand.u32 %v4489, 4294901760
    %v4491 = vsub.f32 %v4489, %v4490
    %v4492 = vand.u32 %v4491, 4294901760
    %4493 = vmatpush.msra.mxu0 %v4492
    %v4494 = vand.u32 %v93, 4294901760
    %v4495 = vsub.f32 %v93, %v4494
    %v4496 = vand.u32 %v4495, 4294901760
    %v4497 = vsub.f32 %v4495, %v4496
    %v4498 = vand.u32 %v4497, 4294901760
    %4499 = vmatpush.msra.mxu0 %v4498
    %v4500 = vand.u32 %v91, 4294901760
    %v4501 = vsub.f32 %v91, %v4500
    %v4502 = vand.u32 %v4501, 4294901760
    %v4503 = vsub.f32 %v4501, %v4502
    %v4504 = vand.u32 %v4503, 4294901760
    %4505 = vmatpush.msra.mxu0 %v4504
    %v4506 = vand.u32 %v89, 4294901760
    %v4507 = vsub.f32 %v89, %v4506
    %v4508 = vand.u32 %v4507, 4294901760
    %v4509 = vsub.f32 %v4507, %v4508
    %v4510 = vand.u32 %v4509, 4294901760
    %4511 = vmatpush.msra.mxu0 %v4510
    %v4512 = vand.u32 %v87, 4294901760
    %v4513 = vsub.f32 %v87, %v4512
    %v4514 = vand.u32 %v4513, 4294901760
    %v4515 = vsub.f32 %v4513, %v4514
    %v4516 = vand.u32 %v4515, 4294901760
    %4517 = vmatpush.msra.mxu0 %v4516
    %v4518 = vand.u32 %v3948, 4294901760
    %4519 = vmatmul.f32.gmra.mxu0 %v4518
    %v4520 = vpop.f32.mrf.mxu0
    %v4521 = vadd.f32 %v4404, %v4520
    %v4522 = vand.u32 %v3951, 4294901760
    %4523 = vmatmul.f32.gmra.mxu0 %v4522
    %v4524 = vpop.f32.mrf.mxu0
    %v4525 = vadd.f32 %v4412, %v4524
    %v4526 = vand.u32 %v3954, 4294901760
    %4527 = vmatmul.f32.gmra.mxu0 %v4526
    %v4528 = vpop.f32.mrf.mxu0
    %v4529 = vadd.f32 %v4420, %v4528
    %4530 = vdwg.mxu0
    %v4531 = vand.u32 %v3957, 4294901760
    %v4532 = vsub.f32 %v3957, %v4531
    %4533 = vmatpush.msra.mxu0 %v4532
    %v4534 = vand.u32 %v115, 4294901760
    %v4535 = vsub.f32 %v115, %v4534
    %4536 = vmatpush.msra.mxu0 %v4535
    %v4537 = vand.u32 %v113, 4294901760
    %v4538 = vsub.f32 %v113, %v4537
    %4539 = vmatpush.msra.mxu0 %v4538
    %v4540 = vand.u32 %v111, 4294901760
    %v4541 = vsub.f32 %v111, %v4540
    %4542 = vmatpush.msra.mxu0 %v4541
    %v4543 = vand.u32 %v109, 4294901760
    %v4544 = vsub.f32 %v109, %v4543
    %4545 = vmatpush.msra.mxu0 %v4544
    %v4546 = vand.u32 %v107, 4294901760
    %v4547 = vsub.f32 %v107, %v4546
    %4548 = vmatpush.msra.mxu0 %v4547
    %v4549 = vand.u32 %v105, 4294901760
    %v4550 = vsub.f32 %v105, %v4549
    %4551 = vmatpush.msra.mxu0 %v4550
    %v4552 = vand.u32 %v103, 4294901760
    %v4553 = vsub.f32 %v103, %v4552
    %4554 = vmatpush.msra.mxu0 %v4553
    %v4555 = vand.u32 %v101, 4294901760
    %v4556 = vsub.f32 %v101, %v4555
    %4557 = vmatpush.msra.mxu0 %v4556
    %v4558 = vand.u32 %v99, 4294901760
    %v4559 = vsub.f32 %v99, %v4558
    %4560 = vmatpush.msra.mxu0 %v4559
    %v4561 = vand.u32 %v97, 4294901760
    %v4562 = vsub.f32 %v97, %v4561
    %4563 = vmatpush.msra.mxu0 %v4562
    %v4564 = vand.u32 %v95, 4294901760
    %v4565 = vsub.f32 %v95, %v4564
    %4566 = vmatpush.msra.mxu0 %v4565
    %v4567 = vand.u32 %v93, 4294901760
    %v4568 = vsub.f32 %v93, %v4567
    %4569 = vmatpush.msra.mxu0 %v4568
    %v4570 = vand.u32 %v91, 4294901760
    %v4571 = vsub.f32 %v91, %v4570
    %4572 = vmatpush.msra.mxu0 %v4571
    %v4573 = vand.u32 %v89, 4294901760
    %v4574 = vsub.f32 %v89, %v4573
    %4575 = vmatpush.msra.mxu0 %v4574
    %v4576 = vand.u32 %v87, 4294901760
    %v4577 = vsub.f32 %v87, %v4576
    %4578 = vmatpush.msra.mxu0 %v4577
    %v4579 = vand.u32 %v3948, 4294901760
    %v4580 = vsub.f32 %v3948, %v4579
    %4581 = vmatmul.f32.gmra.mxu0 %v4580
    %v4582 = vpop.f32.mrf.mxu0
    %v4583 = vadd.f32 %v4521, %v4582
    %v4584 = vand.u32 %v3951, 4294901760
    %v4585 = vsub.f32 %v3951, %v4584
    %4586 = vmatmul.f32.gmra.mxu0 %v4585
    %v4587 = vpop.f32.mrf.mxu0
    %v4588 = vadd.f32 %v4525, %v4587
    %v4589 = vand.u32 %v3954, 4294901760
    %v4590 = vsub.f32 %v3954, %v4589
    %4591 = vmatmul.f32.gmra.mxu0 %v4590
    %v4592 = vpop.f32.mrf.mxu0
    %v4593 = vadd.f32 %v4529, %v4592
    %4594 = vdwg.mxu0
    %v4595 = vand.u32 %v3957, 4294901760
    %4596 = vmatpush.msra.mxu0 %v4595
    %v4597 = vand.u32 %v115, 4294901760
    %4598 = vmatpush.msra.mxu0 %v4597
    %v4599 = vand.u32 %v113, 4294901760
    %4600 = vmatpush.msra.mxu0 %v4599
    %v4601 = vand.u32 %v111, 4294901760
    %4602 = vmatpush.msra.mxu0 %v4601
    %v4603 = vand.u32 %v109, 4294901760
    %4604 = vmatpush.msra.mxu0 %v4603
    %v4605 = vand.u32 %v107, 4294901760
    %4606 = vmatpush.msra.mxu0 %v4605
    %v4607 = vand.u32 %v105, 4294901760
    %4608 = vmatpush.msra.mxu0 %v4607
    %v4609 = vand.u32 %v103, 4294901760
    %4610 = vmatpush.msra.mxu0 %v4609
    %v4611 = vand.u32 %v101, 4294901760
    %4612 = vmatpush.msra.mxu0 %v4611
    %v4613 = vand.u32 %v99, 4294901760
    %4614 = vmatpush.msra.mxu0 %v4613
    %v4615 = vand.u32 %v97, 4294901760
    %4616 = vmatpush.msra.mxu0 %v4615
    %v4617 = vand.u32 %v95, 4294901760
    %4618 = vmatpush.msra.mxu0 %v4617
    %v4619 = vand.u32 %v93, 4294901760
    %4620 = vmatpush.msra.mxu0 %v4619
    %v4621 = vand.u32 %v91, 4294901760
    %4622 = vmatpush.msra.mxu0 %v4621
    %v4623 = vand.u32 %v89, 4294901760
    %4624 = vmatpush.msra.mxu0 %v4623
    %v4625 = vand.u32 %v87, 4294901760
    %4626 = vmatpush.msra.mxu0 %v4625
    %v4627 = vand.u32 %v3948, 4294901760
    %v4628 = vsub.f32 %v3948, %v4627
    %v4629 = vand.u32 %v4628, 4294901760
    %4630 = vmatmul.f32.gmra.mxu0 %v4629
    %v4631 = vpop.f32.mrf.mxu0
    %v4632 = vadd.f32 %v4583, %v4631
    %v4633 = vand.u32 %v3951, 4294901760
    %v4634 = vsub.f32 %v3951, %v4633
    %v4635 = vand.u32 %v4634, 4294901760
    %4636 = vmatmul.f32.gmra.mxu0 %v4635
    %v4637 = vpop.f32.mrf.mxu0
    %v4638 = vadd.f32 %v4588, %v4637
    %v4639 = vand.u32 %v3954, 4294901760
    %v4640 = vsub.f32 %v3954, %v4639
    %v4641 = vand.u32 %v4640, 4294901760
    %4642 = vmatmul.f32.gmra.mxu0 %v4641
    %v4643 = vpop.f32.mrf.mxu0
    %v4644 = vadd.f32 %v4593, %v4643
    %4645 = vdwg.mxu0
    %v4646 = vand.u32 %v3957, 4294901760
    %v4647 = vsub.f32 %v3957, %v4646
    %v4648 = vand.u32 %v4647, 4294901760
    %4649 = vmatpush.msra.mxu0 %v4648
    %v4650 = vand.u32 %v115, 4294901760
    %v4651 = vsub.f32 %v115, %v4650
    %v4652 = vand.u32 %v4651, 4294901760
    %4653 = vmatpush.msra.mxu0 %v4652
    %v4654 = vand.u32 %v113, 4294901760
    %v4655 = vsub.f32 %v113, %v4654
    %v4656 = vand.u32 %v4655, 4294901760
    %4657 = vmatpush.msra.mxu0 %v4656
    %v4658 = vand.u32 %v111, 4294901760
    %v4659 = vsub.f32 %v111, %v4658
    %v4660 = vand.u32 %v4659, 4294901760
    %4661 = vmatpush.msra.mxu0 %v4660
    %v4662 = vand.u32 %v109, 4294901760
    %v4663 = vsub.f32 %v109, %v4662
    %v4664 = vand.u32 %v4663, 4294901760
    %4665 = vmatpush.msra.mxu0 %v4664
    %v4666 = vand.u32 %v107, 4294901760
    %v4667 = vsub.f32 %v107, %v4666
    %v4668 = vand.u32 %v4667, 4294901760
    %4669 = vmatpush.msra.mxu0 %v4668
    %v4670 = vand.u32 %v105, 4294901760
    %v4671 = vsub.f32 %v105, %v4670
    %v4672 = vand.u32 %v4671, 4294901760
    %4673 = vmatpush.msra.mxu0 %v4672
    %v4674 = vand.u32 %v103, 4294901760
    %v4675 = vsub.f32 %v103, %v4674
    %v4676 = vand.u32 %v4675, 4294901760
    %4677 = vmatpush.msra.mxu0 %v4676
    %v4678 = vand.u32 %v101, 4294901760
    %v4679 = vsub.f32 %v101, %v4678
    %v4680 = vand.u32 %v4679, 4294901760
    %4681 = vmatpush.msra.mxu0 %v4680
    %v4682 = vand.u32 %v99, 4294901760
    %v4683 = vsub.f32 %v99, %v4682
    %v4684 = vand.u32 %v4683, 4294901760
    %4685 = vmatpush.msra.mxu0 %v4684
    %v4686 = vand.u32 %v97, 4294901760
    %v4687 = vsub.f32 %v97, %v4686
    %v4688 = vand.u32 %v4687, 4294901760
    %4689 = vmatpush.msra.mxu0 %v4688
    %v4690 = vand.u32 %v95, 4294901760
    %v4691 = vsub.f32 %v95, %v4690
    %v4692 = vand.u32 %v4691, 4294901760
    %4693 = vmatpush.msra.mxu0 %v4692
    %v4694 = vand.u32 %v93, 4294901760
    %v4695 = vsub.f32 %v93, %v4694
    %v4696 = vand.u32 %v4695, 4294901760
    %4697 = vmatpush.msra.mxu0 %v4696
    %v4698 = vand.u32 %v91, 4294901760
    %v4699 = vsub.f32 %v91, %v4698
    %v4700 = vand.u32 %v4699, 4294901760
    %4701 = vmatpush.msra.mxu0 %v4700
    %v4702 = vand.u32 %v89, 4294901760
    %v4703 = vsub.f32 %v89, %v4702
    %v4704 = vand.u32 %v4703, 4294901760
    %4705 = vmatpush.msra.mxu0 %v4704
    %v4706 = vand.u32 %v87, 4294901760
    %v4707 = vsub.f32 %v87, %v4706
    %v4708 = vand.u32 %v4707, 4294901760
    %4709 = vmatpush.msra.mxu0 %v4708
    %v4710 = vand.u32 %v3948, 4294901760
    %4711 = vmatmul.f32.gmra.mxu0 %v4710
    %v4712 = vpop.f32.mrf.mxu0
    %v4713 = vadd.f32 %v4632, %v4712
    %v4714 = vand.u32 %v3951, 4294901760
    %4715 = vmatmul.f32.gmra.mxu0 %v4714
    %v4716 = vpop.f32.mrf.mxu0
    %v4717 = vadd.f32 %v4638, %v4716
    %v4718 = vand.u32 %v3954, 4294901760
    %4719 = vmatmul.f32.gmra.mxu0 %v4718
    %v4720 = vpop.f32.mrf.mxu0
    %v4721 = vadd.f32 %v4644, %v4720
    %4722 = vdwg.mxu0
    %v4723 = vand.u32 %v3957, 4294901760
    %4724 = vmatpush.msra.mxu0 %v4723
    %v4725 = vand.u32 %v115, 4294901760
    %4726 = vmatpush.msra.mxu0 %v4725
    %v4727 = vand.u32 %v113, 4294901760
    %4728 = vmatpush.msra.mxu0 %v4727
    %v4729 = vand.u32 %v111, 4294901760
    %4730 = vmatpush.msra.mxu0 %v4729
    %v4731 = vand.u32 %v109, 4294901760
    %4732 = vmatpush.msra.mxu0 %v4731
    %v4733 = vand.u32 %v107, 4294901760
    %4734 = vmatpush.msra.mxu0 %v4733
    %v4735 = vand.u32 %v105, 4294901760
    %4736 = vmatpush.msra.mxu0 %v4735
    %v4737 = vand.u32 %v103, 4294901760
    %4738 = vmatpush.msra.mxu0 %v4737
    %v4739 = vand.u32 %v101, 4294901760
    %4740 = vmatpush.msra.mxu0 %v4739
    %v4741 = vand.u32 %v99, 4294901760
    %4742 = vmatpush.msra.mxu0 %v4741
    %v4743 = vand.u32 %v97, 4294901760
    %4744 = vmatpush.msra.mxu0 %v4743
    %v4745 = vand.u32 %v95, 4294901760
    %4746 = vmatpush.msra.mxu0 %v4745
    %v4747 = vand.u32 %v93, 4294901760
    %4748 = vmatpush.msra.mxu0 %v4747
    %v4749 = vand.u32 %v91, 4294901760
    %4750 = vmatpush.msra.mxu0 %v4749
    %v4751 = vand.u32 %v89, 4294901760
    %4752 = vmatpush.msra.mxu0 %v4751
    %v4753 = vand.u32 %v87, 4294901760
    %4754 = vmatpush.msra.mxu0 %v4753
    %v4755 = vand.u32 %v3948, 4294901760
    %4756 = vmatmul.f32.gmra.mxu0 %v4755
    %v4757 = vpop.f32.mrf.mxu0
    %v4758 = vadd.f32 %v4713, %v4757
    %v4759 = vand.u32 %v3951, 4294901760
    %4760 = vmatmul.f32.gmra.mxu0 %v4759
    %v4761 = vpop.f32.mrf.mxu0
    %v4762 = vadd.f32 %v4717, %v4761
    %v4763 = vand.u32 %v3954, 4294901760
    %4764 = vmatmul.f32.gmra.mxu0 %v4763
    %v4765 = vpop.f32.mrf.mxu0
    %v4766 = vadd.f32 %v4721, %v4765
    %4767 = vdwg.mxu0
    %v4768 = vand.u32 %v86, 4294901760
    %4769 = vmatpush.msra.mxu0 %v4768
    %v4770 = vand.u32 %v84, 4294901760
    %4771 = vmatpush.msra.mxu0 %v4770
    %v4772 = vand.u32 %v82, 4294901760
    %4773 = vmatpush.msra.mxu0 %v4772
    %v4774 = vand.u32 %v80, 4294901760
    %4775 = vmatpush.msra.mxu0 %v4774
    %v4776 = vand.u32 %v78, 4294901760
    %4777 = vmatpush.msra.mxu0 %v4776
    %v4778 = vand.u32 %v76, 4294901760
    %4779 = vmatpush.msra.mxu0 %v4778
    %v4780 = vand.u32 %v74, 4294901760
    %4781 = vmatpush.msra.mxu0 %v4780
    %v4782 = vand.u32 %v72, 4294901760
    %4783 = vmatpush.msra.mxu0 %v4782
    %v4784 = vand.u32 %v70, 4294901760
    %4785 = vmatpush.msra.mxu0 %v4784
    %v4786 = vand.u32 %v68, 4294901760
    %4787 = vmatpush.msra.mxu0 %v4786
    %v4788 = vand.u32 %v66, 4294901760
    %4789 = vmatpush.msra.mxu0 %v4788
    %v4790 = vand.u32 %v64, 4294901760
    %4791 = vmatpush.msra.mxu0 %v4790
    %v4792 = vand.u32 %v62, 4294901760
    %4793 = vmatpush.msra.mxu0 %v4792
    %v4794 = vand.u32 %v60, 4294901760
    %4795 = vmatpush.msra.mxu0 %v4794
    %v4796 = vand.u32 %v58, 4294901760
    %4797 = vmatpush.msra.mxu0 %v4796
    %v4798 = vand.u32 %v56, 4294901760
    %4799 = vmatpush.msra.mxu0 %v4798
    %v4800 = vand.u32 %v3934, 4294901760
    %v4801 = vsub.f32 %v3934, %v4800
    %v4802 = vand.u32 %v4801, 4294901760
    %v4803 = vsub.f32 %v4801, %v4802
    %v4804 = vand.u32 %v4803, 4294901760
    %4805 = vmatmul.f32.gmra.mxu0 %v4804
    %v4806 = vpop.f32.mrf.mxu0
    %v4807 = vadd.f32 %v3943, %v4806
    %v4808 = vand.u32 %v3935, 4294901760
    %v4809 = vsub.f32 %v3935, %v4808
    %v4810 = vand.u32 %v4809, 4294901760
    %v4811 = vsub.f32 %v4809, %v4810
    %v4812 = vand.u32 %v4811, 4294901760
    %4813 = vmatmul.f32.gmra.mxu0 %v4812
    %v4814 = vpop.f32.mrf.mxu0
    %v4815 = vadd.f32 %v3943, %v4814
    %v4816 = vand.u32 %v3936, 4294901760
    %v4817 = vsub.f32 %v3936, %v4816
    %v4818 = vand.u32 %v4817, 4294901760
    %v4819 = vsub.f32 %v4817, %v4818
    %v4820 = vand.u32 %v4819, 4294901760
    %4821 = vmatmul.f32.gmra.mxu0 %v4820
    %v4822 = vpop.f32.mrf.mxu0
    %v4823 = vadd.f32 %v3943, %v4822
    %4824 = vdwg.mxu0
    %v4825 = vand.u32 %v86, 4294901760
    %v4826 = vsub.f32 %v86, %v4825
    %v4827 = vand.u32 %v4826, 4294901760
    %v4828 = vsub.f32 %v4826, %v4827
    %v4829 = vand.u32 %v4828, 4294901760
    %4830 = vmatpush.msra.mxu0 %v4829
    %v4831 = vand.u32 %v84, 4294901760
    %v4832 = vsub.f32 %v84, %v4831
    %v4833 = vand.u32 %v4832, 4294901760
    %v4834 = vsub.f32 %v4832, %v4833
    %v4835 = vand.u32 %v4834, 4294901760
    %4836 = vmatpush.msra.mxu0 %v4835
    %v4837 = vand.u32 %v82, 4294901760
    %v4838 = vsub.f32 %v82, %v4837
    %v4839 = vand.u32 %v4838, 4294901760
    %v4840 = vsub.f32 %v4838, %v4839
    %v4841 = vand.u32 %v4840, 4294901760
    %4842 = vmatpush.msra.mxu0 %v4841
    %v4843 = vand.u32 %v80, 4294901760
    %v4844 = vsub.f32 %v80, %v4843
    %v4845 = vand.u32 %v4844, 4294901760
    %v4846 = vsub.f32 %v4844, %v4845
    %v4847 = vand.u32 %v4846, 4294901760
    %4848 = vmatpush.msra.mxu0 %v4847
    %v4849 = vand.u32 %v78, 4294901760
    %v4850 = vsub.f32 %v78, %v4849
    %v4851 = vand.u32 %v4850, 4294901760
    %v4852 = vsub.f32 %v4850, %v4851
    %v4853 = vand.u32 %v4852, 4294901760
    %4854 = vmatpush.msra.mxu0 %v4853
    %v4855 = vand.u32 %v76, 4294901760
    %v4856 = vsub.f32 %v76, %v4855
    %v4857 = vand.u32 %v4856, 4294901760
    %v4858 = vsub.f32 %v4856, %v4857
    %v4859 = vand.u32 %v4858, 4294901760
    %4860 = vmatpush.msra.mxu0 %v4859
    %v4861 = vand.u32 %v74, 4294901760
    %v4862 = vsub.f32 %v74, %v4861
    %v4863 = vand.u32 %v4862, 4294901760
    %v4864 = vsub.f32 %v4862, %v4863
    %v4865 = vand.u32 %v4864, 4294901760
    %4866 = vmatpush.msra.mxu0 %v4865
    %v4867 = vand.u32 %v72, 4294901760
    %v4868 = vsub.f32 %v72, %v4867
    %v4869 = vand.u32 %v4868, 4294901760
    %v4870 = vsub.f32 %v4868, %v4869
    %v4871 = vand.u32 %v4870, 4294901760
    %4872 = vmatpush.msra.mxu0 %v4871
    %v4873 = vand.u32 %v70, 4294901760
    %v4874 = vsub.f32 %v70, %v4873
    %v4875 = vand.u32 %v4874, 4294901760
    %v4876 = vsub.f32 %v4874, %v4875
    %v4877 = vand.u32 %v4876, 4294901760
    %4878 = vmatpush.msra.mxu0 %v4877
    %v4879 = vand.u32 %v68, 4294901760
    %v4880 = vsub.f32 %v68, %v4879
    %v4881 = vand.u32 %v4880, 4294901760
    %v4882 = vsub.f32 %v4880, %v4881
    %v4883 = vand.u32 %v4882, 4294901760
    %4884 = vmatpush.msra.mxu0 %v4883
    %v4885 = vand.u32 %v66, 4294901760
    %v4886 = vsub.f32 %v66, %v4885
    %v4887 = vand.u32 %v4886, 4294901760
    %v4888 = vsub.f32 %v4886, %v4887
    %v4889 = vand.u32 %v4888, 4294901760
    %4890 = vmatpush.msra.mxu0 %v4889
    %v4891 = vand.u32 %v64, 4294901760
    %v4892 = vsub.f32 %v64, %v4891
    %v4893 = vand.u32 %v4892, 4294901760
    %v4894 = vsub.f32 %v4892, %v4893
    %v4895 = vand.u32 %v4894, 4294901760
    %4896 = vmatpush.msra.mxu0 %v4895
    %v4897 = vand.u32 %v62, 4294901760
    %v4898 = vsub.f32 %v62, %v4897
    %v4899 = vand.u32 %v4898, 4294901760
    %v4900 = vsub.f32 %v4898, %v4899
    %v4901 = vand.u32 %v4900, 4294901760
    %4902 = vmatpush.msra.mxu0 %v4901
    %v4903 = vand.u32 %v60, 4294901760
    %v4904 = vsub.f32 %v60, %v4903
    %v4905 = vand.u32 %v4904, 4294901760
    %v4906 = vsub.f32 %v4904, %v4905
    %v4907 = vand.u32 %v4906, 4294901760
    %4908 = vmatpush.msra.mxu0 %v4907
    %v4909 = vand.u32 %v58, 4294901760
    %v4910 = vsub.f32 %v58, %v4909
    %v4911 = vand.u32 %v4910, 4294901760
    %v4912 = vsub.f32 %v4910, %v4911
    %v4913 = vand.u32 %v4912, 4294901760
    %4914 = vmatpush.msra.mxu0 %v4913
    %v4915 = vand.u32 %v56, 4294901760
    %v4916 = vsub.f32 %v56, %v4915
    %v4917 = vand.u32 %v4916, 4294901760
    %v4918 = vsub.f32 %v4916, %v4917
    %v4919 = vand.u32 %v4918, 4294901760
    %4920 = vmatpush.msra.mxu0 %v4919
    %v4921 = vand.u32 %v3934, 4294901760
    %4922 = vmatmul.f32.gmra.mxu0 %v4921
    %v4923 = vpop.f32.mrf.mxu0
    %v4924 = vadd.f32 %v4807, %v4923
    %v4925 = vand.u32 %v3935, 4294901760
    %4926 = vmatmul.f32.gmra.mxu0 %v4925
    %v4927 = vpop.f32.mrf.mxu0
    %v4928 = vadd.f32 %v4815, %v4927
    %v4929 = vand.u32 %v3936, 4294901760
    %4930 = vmatmul.f32.gmra.mxu0 %v4929
    %v4931 = vpop.f32.mrf.mxu0
    %v4932 = vadd.f32 %v4823, %v4931
    %4933 = vdwg.mxu0
    %v4934 = vand.u32 %v86, 4294901760
    %v4935 = vsub.f32 %v86, %v4934
    %4936 = vmatpush.msra.mxu0 %v4935
    %v4937 = vand.u32 %v84, 4294901760
    %v4938 = vsub.f32 %v84, %v4937
    %4939 = vmatpush.msra.mxu0 %v4938
    %v4940 = vand.u32 %v82, 4294901760
    %v4941 = vsub.f32 %v82, %v4940
    %4942 = vmatpush.msra.mxu0 %v4941
    %v4943 = vand.u32 %v80, 4294901760
    %v4944 = vsub.f32 %v80, %v4943
    %4945 = vmatpush.msra.mxu0 %v4944
    %v4946 = vand.u32 %v78, 4294901760
    %v4947 = vsub.f32 %v78, %v4946
    %4948 = vmatpush.msra.mxu0 %v4947
    %v4949 = vand.u32 %v76, 4294901760
    %v4950 = vsub.f32 %v76, %v4949
    %4951 = vmatpush.msra.mxu0 %v4950
    %v4952 = vand.u32 %v74, 4294901760
    %v4953 = vsub.f32 %v74, %v4952
    %4954 = vmatpush.msra.mxu0 %v4953
    %v4955 = vand.u32 %v72, 4294901760
    %v4956 = vsub.f32 %v72, %v4955
    %4957 = vmatpush.msra.mxu0 %v4956
    %v4958 = vand.u32 %v70, 4294901760
    %v4959 = vsub.f32 %v70, %v4958
    %4960 = vmatpush.msra.mxu0 %v4959
    %v4961 = vand.u32 %v68, 4294901760
    %v4962 = vsub.f32 %v68, %v4961
    %4963 = vmatpush.msra.mxu0 %v4962
    %v4964 = vand.u32 %v66, 4294901760
    %v4965 = vsub.f32 %v66, %v4964
    %4966 = vmatpush.msra.mxu0 %v4965
    %v4967 = vand.u32 %v64, 4294901760
    %v4968 = vsub.f32 %v64, %v4967
    %4969 = vmatpush.msra.mxu0 %v4968
    %v4970 = vand.u32 %v62, 4294901760
    %v4971 = vsub.f32 %v62, %v4970
    %4972 = vmatpush.msra.mxu0 %v4971
    %v4973 = vand.u32 %v60, 4294901760
    %v4974 = vsub.f32 %v60, %v4973
    %4975 = vmatpush.msra.mxu0 %v4974
    %v4976 = vand.u32 %v58, 4294901760
    %v4977 = vsub.f32 %v58, %v4976
    %4978 = vmatpush.msra.mxu0 %v4977
    %v4979 = vand.u32 %v56, 4294901760
    %v4980 = vsub.f32 %v56, %v4979
    %4981 = vmatpush.msra.mxu0 %v4980
    %v4982 = vand.u32 %v3934, 4294901760
    %v4983 = vsub.f32 %v3934, %v4982
    %4984 = vmatmul.f32.gmra.mxu0 %v4983
    %v4985 = vpop.f32.mrf.mxu0
    %v4986 = vadd.f32 %v4924, %v4985
    %v4987 = vand.u32 %v3935, 4294901760
    %v4988 = vsub.f32 %v3935, %v4987
    %4989 = vmatmul.f32.gmra.mxu0 %v4988
    %v4990 = vpop.f32.mrf.mxu0
    %v4991 = vadd.f32 %v4928, %v4990
    %v4992 = vand.u32 %v3936, 4294901760
    %v4993 = vsub.f32 %v3936, %v4992
    %4994 = vmatmul.f32.gmra.mxu0 %v4993
    %v4995 = vpop.f32.mrf.mxu0
    %v4996 = vadd.f32 %v4932, %v4995
    %4997 = vdwg.mxu0
    %v4998 = vand.u32 %v86, 4294901760
    %4999 = vmatpush.msra.mxu0 %v4998
    %v5000 = vand.u32 %v84, 4294901760
    %5001 = vmatpush.msra.mxu0 %v5000
    %v5002 = vand.u32 %v82, 4294901760
    %5003 = vmatpush.msra.mxu0 %v5002
    %v5004 = vand.u32 %v80, 4294901760
    %5005 = vmatpush.msra.mxu0 %v5004
    %v5006 = vand.u32 %v78, 4294901760
    %5007 = vmatpush.msra.mxu0 %v5006
    %v5008 = vand.u32 %v76, 4294901760
    %5009 = vmatpush.msra.mxu0 %v5008
    %v5010 = vand.u32 %v74, 4294901760
    %5011 = vmatpush.msra.mxu0 %v5010
    %v5012 = vand.u32 %v72, 4294901760
    %5013 = vmatpush.msra.mxu0 %v5012
    %v5014 = vand.u32 %v70, 4294901760
    %5015 = vmatpush.msra.mxu0 %v5014
    %v5016 = vand.u32 %v68, 4294901760
    %5017 = vmatpush.msra.mxu0 %v5016
    %v5018 = vand.u32 %v66, 4294901760
    %5019 = vmatpush.msra.mxu0 %v5018
    %v5020 = vand.u32 %v64, 4294901760
    %5021 = vmatpush.msra.mxu0 %v5020
    %v5022 = vand.u32 %v62, 4294901760
    %5023 = vmatpush.msra.mxu0 %v5022
    %v5024 = vand.u32 %v60, 4294901760
    %5025 = vmatpush.msra.mxu0 %v5024
    %v5026 = vand.u32 %v58, 4294901760
    %5027 = vmatpush.msra.mxu0 %v5026
    %v5028 = vand.u32 %v56, 4294901760
    %5029 = vmatpush.msra.mxu0 %v5028
    %v5030 = vand.u32 %v3934, 4294901760
    %v5031 = vsub.f32 %v3934, %v5030
    %v5032 = vand.u32 %v5031, 4294901760
    %5033 = vmatmul.f32.gmra.mxu0 %v5032
    %v5034 = vpop.f32.mrf.mxu0
    %v5035 = vadd.f32 %v4986, %v5034
    %v5036 = vand.u32 %v3935, 4294901760
    %v5037 = vsub.f32 %v3935, %v5036
    %v5038 = vand.u32 %v5037, 4294901760
    %5039 = vmatmul.f32.gmra.mxu0 %v5038
    %v5040 = vpop.f32.mrf.mxu0
    %v5041 = vadd.f32 %v4991, %v5040
    %v5042 = vand.u32 %v3936, 4294901760
    %v5043 = vsub.f32 %v3936, %v5042
    %v5044 = vand.u32 %v5043, 4294901760
    %5045 = vmatmul.f32.gmra.mxu0 %v5044
    %v5046 = vpop.f32.mrf.mxu0
    %v5047 = vadd.f32 %v4996, %v5046
    %5048 = vdwg.mxu0
    %v5049 = vand.u32 %v86, 4294901760
    %v5050 = vsub.f32 %v86, %v5049
    %v5051 = vand.u32 %v5050, 4294901760
    %5052 = vmatpush.msra.mxu0 %v5051
    %v5053 = vand.u32 %v84, 4294901760
    %v5054 = vsub.f32 %v84, %v5053
    %v5055 = vand.u32 %v5054, 4294901760
    %5056 = vmatpush.msra.mxu0 %v5055
    %v5057 = vand.u32 %v82, 4294901760
    %v5058 = vsub.f32 %v82, %v5057
    %v5059 = vand.u32 %v5058, 4294901760
    %5060 = vmatpush.msra.mxu0 %v5059
    %v5061 = vand.u32 %v80, 4294901760
    %v5062 = vsub.f32 %v80, %v5061
    %v5063 = vand.u32 %v5062, 4294901760
    %5064 = vmatpush.msra.mxu0 %v5063
    %v5065 = vand.u32 %v78, 4294901760
    %v5066 = vsub.f32 %v78, %v5065
    %v5067 = vand.u32 %v5066, 4294901760
    %5068 = vmatpush.msra.mxu0 %v5067
    %v5069 = vand.u32 %v76, 4294901760
    %v5070 = vsub.f32 %v76, %v5069
    %v5071 = vand.u32 %v5070, 4294901760
    %5072 = vmatpush.msra.mxu0 %v5071
    %v5073 = vand.u32 %v74, 4294901760
    %v5074 = vsub.f32 %v74, %v5073
    %v5075 = vand.u32 %v5074, 4294901760
    %5076 = vmatpush.msra.mxu0 %v5075
    %v5077 = vand.u32 %v72, 4294901760
    %v5078 = vsub.f32 %v72, %v5077
    %v5079 = vand.u32 %v5078, 4294901760
    %5080 = vmatpush.msra.mxu0 %v5079
    %v5081 = vand.u32 %v70, 4294901760
    %v5082 = vsub.f32 %v70, %v5081
    %v5083 = vand.u32 %v5082, 4294901760
    %5084 = vmatpush.msra.mxu0 %v5083
    %v5085 = vand.u32 %v68, 4294901760
    %v5086 = vsub.f32 %v68, %v5085
    %v5087 = vand.u32 %v5086, 4294901760
    %5088 = vmatpush.msra.mxu0 %v5087
    %v5089 = vand.u32 %v66, 4294901760
    %v5090 = vsub.f32 %v66, %v5089
    %v5091 = vand.u32 %v5090, 4294901760
    %5092 = vmatpush.msra.mxu0 %v5091
    %v5093 = vand.u32 %v64, 4294901760
    %v5094 = vsub.f32 %v64, %v5093
    %v5095 = vand.u32 %v5094, 4294901760
    %5096 = vmatpush.msra.mxu0 %v5095
    %v5097 = vand.u32 %v62, 4294901760
    %v5098 = vsub.f32 %v62, %v5097
    %v5099 = vand.u32 %v5098, 4294901760
    %5100 = vmatpush.msra.mxu0 %v5099
    %v5101 = vand.u32 %v60, 4294901760
    %v5102 = vsub.f32 %v60, %v5101
    %v5103 = vand.u32 %v5102, 4294901760
    %5104 = vmatpush.msra.mxu0 %v5103
    %v5105 = vand.u32 %v58, 4294901760
    %v5106 = vsub.f32 %v58, %v5105
    %v5107 = vand.u32 %v5106, 4294901760
    %5108 = vmatpush.msra.mxu0 %v5107
    %v5109 = vand.u32 %v56, 4294901760
    %v5110 = vsub.f32 %v56, %v5109
    %v5111 = vand.u32 %v5110, 4294901760
    %5112 = vmatpush.msra.mxu0 %v5111
    %v5113 = vand.u32 %v3934, 4294901760
    %5114 = vmatmul.f32.gmra.mxu0 %v5113
    %v5115 = vpop.f32.mrf.mxu0
    %v5116 = vadd.f32 %v5035, %v5115
    %v5117 = vand.u32 %v3935, 4294901760
    %5118 = vmatmul.f32.gmra.mxu0 %v5117
    %v5119 = vpop.f32.mrf.mxu0
    %v5120 = vadd.f32 %v5041, %v5119
    %v5121 = vand.u32 %v3936, 4294901760
    %5122 = vmatmul.f32.gmra.mxu0 %v5121
    %v5123 = vpop.f32.mrf.mxu0
    %v5124 = vadd.f32 %v5047, %v5123
    %5125 = vdwg.mxu0
    %v5126 = vand.u32 %v86, 4294901760
    %5127 = vmatpush.msra.mxu0 %v5126
    %v5128 = vand.u32 %v84, 4294901760
    %5129 = vmatpush.msra.mxu0 %v5128
    %v5130 = vand.u32 %v82, 4294901760
    %5131 = vmatpush.msra.mxu0 %v5130
    %v5132 = vand.u32 %v80, 4294901760
    %5133 = vmatpush.msra.mxu0 %v5132
    %v5134 = vand.u32 %v78, 4294901760
    %5135 = vmatpush.msra.mxu0 %v5134
    %v5136 = vand.u32 %v76, 4294901760
    %5137 = vmatpush.msra.mxu0 %v5136
    %v5138 = vand.u32 %v74, 4294901760
    %5139 = vmatpush.msra.mxu0 %v5138
    %v5140 = vand.u32 %v72, 4294901760
    %5141 = vmatpush.msra.mxu0 %v5140
    %v5142 = vand.u32 %v70, 4294901760
    %5143 = vmatpush.msra.mxu0 %v5142
    %v5144 = vand.u32 %v68, 4294901760
    %5145 = vmatpush.msra.mxu0 %v5144
    %v5146 = vand.u32 %v66, 4294901760
    %5147 = vmatpush.msra.mxu0 %v5146
    %v5148 = vand.u32 %v64, 4294901760
    %5149 = vmatpush.msra.mxu0 %v5148
    %v5150 = vand.u32 %v62, 4294901760
    %5151 = vmatpush.msra.mxu0 %v5150
    %v5152 = vand.u32 %v60, 4294901760
    %5153 = vmatpush.msra.mxu0 %v5152
    %v5154 = vand.u32 %v58, 4294901760
    %5155 = vmatpush.msra.mxu0 %v5154
    %v5156 = vand.u32 %v56, 4294901760
    %5157 = vmatpush.msra.mxu0 %v5156
    %v5158 = vand.u32 %v3934, 4294901760
    %5159 = vmatmul.f32.gmra.mxu0 %v5158
    %v5160 = vpop.f32.mrf.mxu0
    %v5161 = vadd.f32 %v5116, %v5160
    %v5162 = vand.u32 %v3935, 4294901760
    %5163 = vmatmul.f32.gmra.mxu0 %v5162
    %v5164 = vpop.f32.mrf.mxu0
    %v5165 = vadd.f32 %v5120, %v5164
    %v5166 = vand.u32 %v3936, 4294901760
    %5167 = vmatmul.f32.gmra.mxu0 %v5166
    %v5168 = vpop.f32.mrf.mxu0
    %v5169 = vadd.f32 %v5124, %v5168
    %5170 = vdwg.mxu0
    %v5171 = vand.u32 %v3960, 4294901760
    %5172 = vmatpush.msra.mxu0 %v5171
    %v5173 = vand.u32 %v116, 4294901760
    %5174 = vmatpush.msra.mxu0 %v5173
    %v5175 = vand.u32 %v114, 4294901760
    %5176 = vmatpush.msra.mxu0 %v5175
    %v5177 = vand.u32 %v112, 4294901760
    %5178 = vmatpush.msra.mxu0 %v5177
    %v5179 = vand.u32 %v110, 4294901760
    %5180 = vmatpush.msra.mxu0 %v5179
    %v5181 = vand.u32 %v108, 4294901760
    %5182 = vmatpush.msra.mxu0 %v5181
    %v5183 = vand.u32 %v106, 4294901760
    %5184 = vmatpush.msra.mxu0 %v5183
    %v5185 = vand.u32 %v104, 4294901760
    %5186 = vmatpush.msra.mxu0 %v5185
    %v5187 = vand.u32 %v102, 4294901760
    %5188 = vmatpush.msra.mxu0 %v5187
    %v5189 = vand.u32 %v100, 4294901760
    %5190 = vmatpush.msra.mxu0 %v5189
    %v5191 = vand.u32 %v98, 4294901760
    %5192 = vmatpush.msra.mxu0 %v5191
    %v5193 = vand.u32 %v96, 4294901760
    %5194 = vmatpush.msra.mxu0 %v5193
    %v5195 = vand.u32 %v94, 4294901760
    %5196 = vmatpush.msra.mxu0 %v5195
    %v5197 = vand.u32 %v92, 4294901760
    %5198 = vmatpush.msra.mxu0 %v5197
    %v5199 = vand.u32 %v90, 4294901760
    %5200 = vmatpush.msra.mxu0 %v5199
    %v5201 = vand.u32 %v88, 4294901760
    %5202 = vmatpush.msra.mxu0 %v5201
    %v5203 = vand.u32 %v3948, 4294901760
    %v5204 = vsub.f32 %v3948, %v5203
    %v5205 = vand.u32 %v5204, 4294901760
    %v5206 = vsub.f32 %v5204, %v5205
    %v5207 = vand.u32 %v5206, 4294901760
    %5208 = vmatmul.f32.gmra.mxu0 %v5207
    %v5209 = vpop.f32.mrf.mxu0
    %v5210 = vadd.f32 %v5161, %v5209
    %v5211 = vand.u32 %v3951, 4294901760
    %v5212 = vsub.f32 %v3951, %v5211
    %v5213 = vand.u32 %v5212, 4294901760
    %v5214 = vsub.f32 %v5212, %v5213
    %v5215 = vand.u32 %v5214, 4294901760
    %5216 = vmatmul.f32.gmra.mxu0 %v5215
    %v5217 = vpop.f32.mrf.mxu0
    %v5218 = vadd.f32 %v5165, %v5217
    %v5219 = vand.u32 %v3954, 4294901760
    %v5220 = vsub.f32 %v3954, %v5219
    %v5221 = vand.u32 %v5220, 4294901760
    %v5222 = vsub.f32 %v5220, %v5221
    %v5223 = vand.u32 %v5222, 4294901760
    %5224 = vmatmul.f32.gmra.mxu0 %v5223
    %v5225 = vpop.f32.mrf.mxu0
    %v5226 = vadd.f32 %v5169, %v5225
    %5227 = vdwg.mxu0
    %v5228 = vand.u32 %v3960, 4294901760
    %v5229 = vsub.f32 %v3960, %v5228
    %v5230 = vand.u32 %v5229, 4294901760
    %v5231 = vsub.f32 %v5229, %v5230
    %v5232 = vand.u32 %v5231, 4294901760
    %5233 = vmatpush.msra.mxu0 %v5232
    %v5234 = vand.u32 %v116, 4294901760
    %v5235 = vsub.f32 %v116, %v5234
    %v5236 = vand.u32 %v5235, 4294901760
    %v5237 = vsub.f32 %v5235, %v5236
    %v5238 = vand.u32 %v5237, 4294901760
    %5239 = vmatpush.msra.mxu0 %v5238
    %v5240 = vand.u32 %v114, 4294901760
    %v5241 = vsub.f32 %v114, %v5240
    %v5242 = vand.u32 %v5241, 4294901760
    %v5243 = vsub.f32 %v5241, %v5242
    %v5244 = vand.u32 %v5243, 4294901760
    %5245 = vmatpush.msra.mxu0 %v5244
    %v5246 = vand.u32 %v112, 4294901760
    %v5247 = vsub.f32 %v112, %v5246
    %v5248 = vand.u32 %v5247, 4294901760
    %v5249 = vsub.f32 %v5247, %v5248
    %v5250 = vand.u32 %v5249, 4294901760
    %5251 = vmatpush.msra.mxu0 %v5250
    %v5252 = vand.u32 %v110, 4294901760
    %v5253 = vsub.f32 %v110, %v5252
    %v5254 = vand.u32 %v5253, 4294901760
    %v5255 = vsub.f32 %v5253, %v5254
    %v5256 = vand.u32 %v5255, 4294901760
    %5257 = vmatpush.msra.mxu0 %v5256
    %v5258 = vand.u32 %v108, 4294901760
    %v5259 = vsub.f32 %v108, %v5258
    %v5260 = vand.u32 %v5259, 4294901760
    %v5261 = vsub.f32 %v5259, %v5260
    %v5262 = vand.u32 %v5261, 4294901760
    %5263 = vmatpush.msra.mxu0 %v5262
    %v5264 = vand.u32 %v106, 4294901760
    %v5265 = vsub.f32 %v106, %v5264
    %v5266 = vand.u32 %v5265, 4294901760
    %v5267 = vsub.f32 %v5265, %v5266
    %v5268 = vand.u32 %v5267, 4294901760
    %5269 = vmatpush.msra.mxu0 %v5268
    %v5270 = vand.u32 %v104, 4294901760
    %v5271 = vsub.f32 %v104, %v5270
    %v5272 = vand.u32 %v5271, 4294901760
    %v5273 = vsub.f32 %v5271, %v5272
    %v5274 = vand.u32 %v5273, 4294901760
    %5275 = vmatpush.msra.mxu0 %v5274
    %v5276 = vand.u32 %v102, 4294901760
    %v5277 = vsub.f32 %v102, %v5276
    %v5278 = vand.u32 %v5277, 4294901760
    %v5279 = vsub.f32 %v5277, %v5278
    %v5280 = vand.u32 %v5279, 4294901760
    %5281 = vmatpush.msra.mxu0 %v5280
    %v5282 = vand.u32 %v100, 4294901760
    %v5283 = vsub.f32 %v100, %v5282
    %v5284 = vand.u32 %v5283, 4294901760
    %v5285 = vsub.f32 %v5283, %v5284
    %v5286 = vand.u32 %v5285, 4294901760
    %5287 = vmatpush.msra.mxu0 %v5286
    %v5288 = vand.u32 %v98, 4294901760
    %v5289 = vsub.f32 %v98, %v5288
    %v5290 = vand.u32 %v5289, 4294901760
    %v5291 = vsub.f32 %v5289, %v5290
    %v5292 = vand.u32 %v5291, 4294901760
    %5293 = vmatpush.msra.mxu0 %v5292
    %v5294 = vand.u32 %v96, 4294901760
    %v5295 = vsub.f32 %v96, %v5294
    %v5296 = vand.u32 %v5295, 4294901760
    %v5297 = vsub.f32 %v5295, %v5296
    %v5298 = vand.u32 %v5297, 4294901760
    %5299 = vmatpush.msra.mxu0 %v5298
    %v5300 = vand.u32 %v94, 4294901760
    %v5301 = vsub.f32 %v94, %v5300
    %v5302 = vand.u32 %v5301, 4294901760
    %v5303 = vsub.f32 %v5301, %v5302
    %v5304 = vand.u32 %v5303, 4294901760
    %5305 = vmatpush.msra.mxu0 %v5304
    %v5306 = vand.u32 %v92, 4294901760
    %v5307 = vsub.f32 %v92, %v5306
    %v5308 = vand.u32 %v5307, 4294901760
    %v5309 = vsub.f32 %v5307, %v5308
    %v5310 = vand.u32 %v5309, 4294901760
    %5311 = vmatpush.msra.mxu0 %v5310
    %v5312 = vand.u32 %v90, 4294901760
    %v5313 = vsub.f32 %v90, %v5312
    %v5314 = vand.u32 %v5313, 4294901760
    %v5315 = vsub.f32 %v5313, %v5314
    %v5316 = vand.u32 %v5315, 4294901760
    %5317 = vmatpush.msra.mxu0 %v5316
    %v5318 = vand.u32 %v88, 4294901760
    %v5319 = vsub.f32 %v88, %v5318
    %v5320 = vand.u32 %v5319, 4294901760
    %v5321 = vsub.f32 %v5319, %v5320
    %v5322 = vand.u32 %v5321, 4294901760
    %5323 = vmatpush.msra.mxu0 %v5322
    %v5324 = vand.u32 %v3948, 4294901760
    %5325 = vmatmul.f32.gmra.mxu0 %v5324
    %v5326 = vpop.f32.mrf.mxu0
    %v5327 = vadd.f32 %v5210, %v5326
    %v5328 = vand.u32 %v3951, 4294901760
    %5329 = vmatmul.f32.gmra.mxu0 %v5328
    %v5330 = vpop.f32.mrf.mxu0
    %v5331 = vadd.f32 %v5218, %v5330
    %v5332 = vand.u32 %v3954, 4294901760
    %5333 = vmatmul.f32.gmra.mxu0 %v5332
    %v5334 = vpop.f32.mrf.mxu0
    %v5335 = vadd.f32 %v5226, %v5334
    %5336 = vdwg.mxu0
    %v5337 = vand.u32 %v3960, 4294901760
    %v5338 = vsub.f32 %v3960, %v5337
    %5339 = vmatpush.msra.mxu0 %v5338
    %v5340 = vand.u32 %v116, 4294901760
    %v5341 = vsub.f32 %v116, %v5340
    %5342 = vmatpush.msra.mxu0 %v5341
    %v5343 = vand.u32 %v114, 4294901760
    %v5344 = vsub.f32 %v114, %v5343
    %5345 = vmatpush.msra.mxu0 %v5344
    %v5346 = vand.u32 %v112, 4294901760
    %v5347 = vsub.f32 %v112, %v5346
    %5348 = vmatpush.msra.mxu0 %v5347
    %v5349 = vand.u32 %v110, 4294901760
    %v5350 = vsub.f32 %v110, %v5349
    %5351 = vmatpush.msra.mxu0 %v5350
    %v5352 = vand.u32 %v108, 4294901760
    %v5353 = vsub.f32 %v108, %v5352
    %5354 = vmatpush.msra.mxu0 %v5353
    %v5355 = vand.u32 %v106, 4294901760
    %v5356 = vsub.f32 %v106, %v5355
    %5357 = vmatpush.msra.mxu0 %v5356
    %v5358 = vand.u32 %v104, 4294901760
    %v5359 = vsub.f32 %v104, %v5358
    %5360 = vmatpush.msra.mxu0 %v5359
    %v5361 = vand.u32 %v102, 4294901760
    %v5362 = vsub.f32 %v102, %v5361
    %5363 = vmatpush.msra.mxu0 %v5362
    %v5364 = vand.u32 %v100, 4294901760
    %v5365 = vsub.f32 %v100, %v5364
    %5366 = vmatpush.msra.mxu0 %v5365
    %v5367 = vand.u32 %v98, 4294901760
    %v5368 = vsub.f32 %v98, %v5367
    %5369 = vmatpush.msra.mxu0 %v5368
    %v5370 = vand.u32 %v96, 4294901760
    %v5371 = vsub.f32 %v96, %v5370
    %5372 = vmatpush.msra.mxu0 %v5371
    %v5373 = vand.u32 %v94, 4294901760
    %v5374 = vsub.f32 %v94, %v5373
    %5375 = vmatpush.msra.mxu0 %v5374
    %v5376 = vand.u32 %v92, 4294901760
    %v5377 = vsub.f32 %v92, %v5376
    %5378 = vmatpush.msra.mxu0 %v5377
    %v5379 = vand.u32 %v90, 4294901760
    %v5380 = vsub.f32 %v90, %v5379
    %5381 = vmatpush.msra.mxu0 %v5380
    %v5382 = vand.u32 %v88, 4294901760
    %v5383 = vsub.f32 %v88, %v5382
    %5384 = vmatpush.msra.mxu0 %v5383
    %v5385 = vand.u32 %v3948, 4294901760
    %v5386 = vsub.f32 %v3948, %v5385
    %5387 = vmatmul.f32.gmra.mxu0 %v5386
    %v5388 = vpop.f32.mrf.mxu0
    %v5389 = vadd.f32 %v5327, %v5388
    %v5390 = vand.u32 %v3951, 4294901760
    %v5391 = vsub.f32 %v3951, %v5390
    %5392 = vmatmul.f32.gmra.mxu0 %v5391
    %v5393 = vpop.f32.mrf.mxu0
    %v5394 = vadd.f32 %v5331, %v5393
    %v5395 = vand.u32 %v3954, 4294901760
    %v5396 = vsub.f32 %v3954, %v5395
    %5397 = vmatmul.f32.gmra.mxu0 %v5396
    %v5398 = vpop.f32.mrf.mxu0
    %v5399 = vadd.f32 %v5335, %v5398
    %5400 = vdwg.mxu0
    %v5401 = vand.u32 %v3960, 4294901760
    %5402 = vmatpush.msra.mxu0 %v5401
    %v5403 = vand.u32 %v116, 4294901760
    %5404 = vmatpush.msra.mxu0 %v5403
    %v5405 = vand.u32 %v114, 4294901760
    %5406 = vmatpush.msra.mxu0 %v5405
    %v5407 = vand.u32 %v112, 4294901760
    %5408 = vmatpush.msra.mxu0 %v5407
    %v5409 = vand.u32 %v110, 4294901760
    %5410 = vmatpush.msra.mxu0 %v5409
    %v5411 = vand.u32 %v108, 4294901760
    %5412 = vmatpush.msra.mxu0 %v5411
    %v5413 = vand.u32 %v106, 4294901760
    %5414 = vmatpush.msra.mxu0 %v5413
    %v5415 = vand.u32 %v104, 4294901760
    %5416 = vmatpush.msra.mxu0 %v5415
    %v5417 = vand.u32 %v102, 4294901760
    %5418 = vmatpush.msra.mxu0 %v5417
    %v5419 = vand.u32 %v100, 4294901760
    %5420 = vmatpush.msra.mxu0 %v5419
    %v5421 = vand.u32 %v98, 4294901760
    %5422 = vmatpush.msra.mxu0 %v5421
    %v5423 = vand.u32 %v96, 4294901760
    %5424 = vmatpush.msra.mxu0 %v5423
    %v5425 = vand.u32 %v94, 4294901760
    %5426 = vmatpush.msra.mxu0 %v5425
    %v5427 = vand.u32 %v92, 4294901760
    %5428 = vmatpush.msra.mxu0 %v5427
    %v5429 = vand.u32 %v90, 4294901760
    %5430 = vmatpush.msra.mxu0 %v5429
    %v5431 = vand.u32 %v88, 4294901760
    %5432 = vmatpush.msra.mxu0 %v5431
    %v5433 = vand.u32 %v3948, 4294901760
    %v5434 = vsub.f32 %v3948, %v5433
    %v5435 = vand.u32 %v5434, 4294901760
    %5436 = vmatmul.f32.gmra.mxu0 %v5435
    %v5437 = vpop.f32.mrf.mxu0
    %v5438 = vadd.f32 %v5389, %v5437
    %v5439 = vand.u32 %v3951, 4294901760
    %v5440 = vsub.f32 %v3951, %v5439
    %v5441 = vand.u32 %v5440, 4294901760
    %5442 = vmatmul.f32.gmra.mxu0 %v5441
    %v5443 = vpop.f32.mrf.mxu0
    %v5444 = vadd.f32 %v5394, %v5443
    %v5445 = vand.u32 %v3954, 4294901760
    %v5446 = vsub.f32 %v3954, %v5445
    %v5447 = vand.u32 %v5446, 4294901760
    %5448 = vmatmul.f32.gmra.mxu0 %v5447
    %v5449 = vpop.f32.mrf.mxu0
    %v5450 = vadd.f32 %v5399, %v5449
    %5451 = vdwg.mxu0
    %v5452 = vand.u32 %v3960, 4294901760
    %v5453 = vsub.f32 %v3960, %v5452
    %v5454 = vand.u32 %v5453, 4294901760
    %5455 = vmatpush.msra.mxu0 %v5454
    %v5456 = vand.u32 %v116, 4294901760
    %v5457 = vsub.f32 %v116, %v5456
    %v5458 = vand.u32 %v5457, 4294901760
    %5459 = vmatpush.msra.mxu0 %v5458
    %v5460 = vand.u32 %v114, 4294901760
    %v5461 = vsub.f32 %v114, %v5460
    %v5462 = vand.u32 %v5461, 4294901760
    %5463 = vmatpush.msra.mxu0 %v5462
    %v5464 = vand.u32 %v112, 4294901760
    %v5465 = vsub.f32 %v112, %v5464
    %v5466 = vand.u32 %v5465, 4294901760
    %5467 = vmatpush.msra.mxu0 %v5466
    %v5468 = vand.u32 %v110, 4294901760
    %v5469 = vsub.f32 %v110, %v5468
    %v5470 = vand.u32 %v5469, 4294901760
    %5471 = vmatpush.msra.mxu0 %v5470
    %v5472 = vand.u32 %v108, 4294901760
    %v5473 = vsub.f32 %v108, %v5472
    %v5474 = vand.u32 %v5473, 4294901760
    %5475 = vmatpush.msra.mxu0 %v5474
    %v5476 = vand.u32 %v106, 4294901760
    %v5477 = vsub.f32 %v106, %v5476
    %v5478 = vand.u32 %v5477, 4294901760
    %5479 = vmatpush.msra.mxu0 %v5478
    %v5480 = vand.u32 %v104, 4294901760
    %v5481 = vsub.f32 %v104, %v5480
    %v5482 = vand.u32 %v5481, 4294901760
    %5483 = vmatpush.msra.mxu0 %v5482
    %v5484 = vand.u32 %v102, 4294901760
    %v5485 = vsub.f32 %v102, %v5484
    %v5486 = vand.u32 %v5485, 4294901760
    %5487 = vmatpush.msra.mxu0 %v5486
    %v5488 = vand.u32 %v100, 4294901760
    %v5489 = vsub.f32 %v100, %v5488
    %v5490 = vand.u32 %v5489, 4294901760
    %5491 = vmatpush.msra.mxu0 %v5490
    %v5492 = vand.u32 %v98, 4294901760
    %v5493 = vsub.f32 %v98, %v5492
    %v5494 = vand.u32 %v5493, 4294901760
    %5495 = vmatpush.msra.mxu0 %v5494
    %v5496 = vand.u32 %v96, 4294901760
    %v5497 = vsub.f32 %v96, %v5496
    %v5498 = vand.u32 %v5497, 4294901760
    %5499 = vmatpush.msra.mxu0 %v5498
    %v5500 = vand.u32 %v94, 4294901760
    %v5501 = vsub.f32 %v94, %v5500
    %v5502 = vand.u32 %v5501, 4294901760
    %5503 = vmatpush.msra.mxu0 %v5502
    %v5504 = vand.u32 %v92, 4294901760
    %v5505 = vsub.f32 %v92, %v5504
    %v5506 = vand.u32 %v5505, 4294901760
    %5507 = vmatpush.msra.mxu0 %v5506
    %v5508 = vand.u32 %v90, 4294901760
    %v5509 = vsub.f32 %v90, %v5508
    %v5510 = vand.u32 %v5509, 4294901760
    %5511 = vmatpush.msra.mxu0 %v5510
    %v5512 = vand.u32 %v88, 4294901760
    %v5513 = vsub.f32 %v88, %v5512
    %v5514 = vand.u32 %v5513, 4294901760
    %5515 = vmatpush.msra.mxu0 %v5514
    %v5516 = vand.u32 %v3948, 4294901760
    %5517 = vmatmul.f32.gmra.mxu0 %v5516
    %v5518 = vpop.f32.mrf.mxu0
    %v5519 = vadd.f32 %v5438, %v5518
    %v5520 = vand.u32 %v3951, 4294901760
    %5521 = vmatmul.f32.gmra.mxu0 %v5520
    %v5522 = vpop.f32.mrf.mxu0
    %v5523 = vadd.f32 %v5444, %v5522
    %v5524 = vand.u32 %v3954, 4294901760
    %5525 = vmatmul.f32.gmra.mxu0 %v5524
    %v5526 = vpop.f32.mrf.mxu0
    %v5527 = vadd.f32 %v5450, %v5526
    %5528 = vdwg.mxu0
    %v5529 = vand.u32 %v3960, 4294901760
    %5530 = vmatpush.msra.mxu0 %v5529
    %v5531 = vand.u32 %v116, 4294901760
    %5532 = vmatpush.msra.mxu0 %v5531
    %v5533 = vand.u32 %v114, 4294901760
    %5534 = vmatpush.msra.mxu0 %v5533
    %v5535 = vand.u32 %v112, 4294901760
    %5536 = vmatpush.msra.mxu0 %v5535
    %v5537 = vand.u32 %v110, 4294901760
    %5538 = vmatpush.msra.mxu0 %v5537
    %v5539 = vand.u32 %v108, 4294901760
    %5540 = vmatpush.msra.mxu0 %v5539
    %v5541 = vand.u32 %v106, 4294901760
    %5542 = vmatpush.msra.mxu0 %v5541
    %v5543 = vand.u32 %v104, 4294901760
    %5544 = vmatpush.msra.mxu0 %v5543
    %v5545 = vand.u32 %v102, 4294901760
    %5546 = vmatpush.msra.mxu0 %v5545
    %v5547 = vand.u32 %v100, 4294901760
    %5548 = vmatpush.msra.mxu0 %v5547
    %v5549 = vand.u32 %v98, 4294901760
    %5550 = vmatpush.msra.mxu0 %v5549
    %v5551 = vand.u32 %v96, 4294901760
    %5552 = vmatpush.msra.mxu0 %v5551
    %v5553 = vand.u32 %v94, 4294901760
    %5554 = vmatpush.msra.mxu0 %v5553
    %v5555 = vand.u32 %v92, 4294901760
    %5556 = vmatpush.msra.mxu0 %v5555
    %v5557 = vand.u32 %v90, 4294901760
    %5558 = vmatpush.msra.mxu0 %v5557
    %v5559 = vand.u32 %v88, 4294901760
    %5560 = vmatpush.msra.mxu0 %v5559
    %v5561 = vand.u32 %v3948, 4294901760
    %5562 = vmatmul.f32.gmra.mxu0 %v5561
    %v5563 = vpop.f32.mrf.mxu0
    %v5564 = vadd.f32 %v5519, %v5563
    %v5565 = vand.u32 %v3951, 4294901760
    %5566 = vmatmul.f32.gmra.mxu0 %v5565
    %v5567 = vpop.f32.mrf.mxu0
    %v5568 = vadd.f32 %v5523, %v5567
    %v5569 = vand.u32 %v3954, 4294901760
    %5570 = vmatmul.f32.gmra.mxu0 %v5569
    %v5571 = vpop.f32.mrf.mxu0
    %v5572 = vadd.f32 %v5527, %v5571
    %5573 = vdwg.mxu0
    %v5574 = vmax.f32 %v4758, 0.0
    %v5575 = vmax.f32 %v5564, 0.0
    %v5576 = vmax.f32 %v4762, 0.0
    %v5577 = vmax.f32 %v5568, 0.0
    %v5578 = vmax.f32 %v4766, 0.0
    %v5579 = vmax.f32 %v5572, 0.0
    %5586 = vrot.lane.b32.xlu0 %v5574, 127
    %v5587 = vpop.permute.xlu0 %5586
    %5588 = vrot.lane.b32.xlu0 %v5575, 127
    %v5589 = vpop.permute.xlu0 %5588
    %5590 = vrot.lane.b32.xlu0 %v5576, 127
    %v5591 = vpop.permute.xlu0 %5590
    %5592 = vrot.lane.b32.xlu0 %v5577, 127
    %v5593 = vpop.permute.xlu0 %5592
    %5594 = vrot.lane.b32.xlu0 %v5578, 127
    %v5595 = vpop.permute.xlu0 %5594
    %5596 = vrot.lane.b32.xlu0 %v5579, 127
    %v5597 = vpop.permute.xlu0 %5596
    %v5598 = vsel %vm2280, %v5587, %v5589
    %v5599 = vsel %vm2280, %v5591, %v5593
    %v5600 = vsel %vm2280, %v5595, %v5597
    %v5607 = vmax.f32 %v5574, %v5598
    %v5608 = vmax.f32 %v5575, %v5589
    %v5609 = vmax.f32 %v5576, %v5599
    %v5610 = vmax.f32 %v5577, %v5593
    %v5611 = vmax.f32 %v5578, %v5600
    %v5612 = vmax.f32 %v5579, %v5597
    %v5619 = vrot.slane %v5607, 1
    %v5620 = vrot.slane %v5609, 1
    %v5621 = vsel %vm252, %v5619, %v5620
    %v5622 = vrot.slane %v5608, 1
    %v5623 = vrot.slane %v5610, 1
    %v5624 = vsel %vm252, %v5622, %v5623
    %v5625 = vrot.slane %v5611, 1
    %v5626 = vsel %vm252, %v5620, %v5625
    %v5627 = vrot.slane %v5612, 1
    %v5628 = vsel %vm252, %v5623, %v5627
    %v5635 = vmax.f32 %v5607, %v5621
    %v5636 = vmax.f32 %v5608, %v5624
    %v5637 = vmax.f32 %v5609, %v5626
    %v5638 = vmax.f32 %v5610, %v5628
    %v5639 = vmax.f32 %v5611, %v5625
    %v5640 = vmax.f32 %v5612, %v5627
    %vm5641 = vcmask 187392
    %v5642 = vsel %vm5641, %v2403, 0
    %v5644 = vsel %vm5641, %v2404, 0
    %v5647 = vsel %vm252, %v5639, 0
    %v5650 = vsel %vm252, %v5640, 0
    %5652 = vmatpush.msra.mxu0 0.0
    %5653 = vmatpush.msra.mxu0 0.0
    %5654 = vmatpush.msra.mxu0 0.0
    %5655 = vmatpush.msra.mxu0 0.0
    %5656 = vmatpush.msra.mxu0 0.0
    %5657 = vmatpush.msra.mxu0 0.0
    %5658 = vmatpush.msra.mxu0 0.0
    %5659 = vmatpush.msra.mxu0 0.0
    %5660 = vmatpush.msra.mxu0 0.0
    %5661 = vmatpush.msra.mxu0 0.0
    %5662 = vmatpush.msra.mxu0 0.0
    %5663 = vmatpush.msra.mxu0 0.0
    %5664 = vmatpush.msra.mxu0 0.0
    %v5665 = vand.u32 %v5647, 4294901760
    %5666 = vmatpush.msra.mxu0 %v5665
    %v5667 = vand.u32 %v5637, 4294901760
    %5668 = vmatpush.msra.mxu0 %v5667
    %v5669 = vand.u32 %v5635, 4294901760
    %5670 = vmatpush.msra.mxu0 %v5669
    %v5671 = vand.u32 %v5642, 4294901760
    %v5672 = vsub.f32 %v5642, %v5671
    %v5673 = vand.u32 %v5672, 4294901760
    %v5674 = vsub.f32 %v5672, %v5673
    %v5675 = vand.u32 %v5674, 4294901760
    %5676 = vmatmul.f32.gmra.mxu0 %v5675
    %v5677 = vpop.f32.mrf.mxu0
    %v5678 = vadd.f32 0.0, %v5677
    %v5679 = vand.u32 %v5644, 4294901760
    %v5680 = vsub.f32 %v5644, %v5679
    %v5681 = vand.u32 %v5680, 4294901760
    %v5682 = vsub.f32 %v5680, %v5681
    %v5683 = vand.u32 %v5682, 4294901760
    %5684 = vmatmul.f32.gmra.mxu0 %v5683
    %v5685 = vpop.f32.mrf.mxu0
    %v5686 = vadd.f32 0.0, %v5685
    %5687 = vdwg.mxu0
    %5688 = vmatpush.msra.mxu0 0.0
    %5689 = vmatpush.msra.mxu0 0.0
    %5690 = vmatpush.msra.mxu0 0.0
    %5691 = vmatpush.msra.mxu0 0.0
    %5692 = vmatpush.msra.mxu0 0.0
    %5693 = vmatpush.msra.mxu0 0.0
    %5694 = vmatpush.msra.mxu0 0.0
    %5695 = vmatpush.msra.mxu0 0.0
    %5696 = vmatpush.msra.mxu0 0.0
    %5697 = vmatpush.msra.mxu0 0.0
    %5698 = vmatpush.msra.mxu0 0.0
    %5699 = vmatpush.msra.mxu0 0.0
    %5700 = vmatpush.msra.mxu0 0.0
    %v5701 = vand.u32 %v5647, 4294901760
    %v5702 = vsub.f32 %v5647, %v5701
    %v5703 = vand.u32 %v5702, 4294901760
    %v5704 = vsub.f32 %v5702, %v5703
    %v5705 = vand.u32 %v5704, 4294901760
    %5706 = vmatpush.msra.mxu0 %v5705
    %v5707 = vand.u32 %v5637, 4294901760
    %v5708 = vsub.f32 %v5637, %v5707
    %v5709 = vand.u32 %v5708, 4294901760
    %v5710 = vsub.f32 %v5708, %v5709
    %v5711 = vand.u32 %v5710, 4294901760
    %5712 = vmatpush.msra.mxu0 %v5711
    %v5713 = vand.u32 %v5635, 4294901760
    %v5714 = vsub.f32 %v5635, %v5713
    %v5715 = vand.u32 %v5714, 4294901760
    %v5716 = vsub.f32 %v5714, %v5715
    %v5717 = vand.u32 %v5716, 4294901760
    %5718 = vmatpush.msra.mxu0 %v5717
    %v5719 = vand.u32 %v5642, 4294901760
    %5720 = vmatmul.f32.gmra.mxu0 %v5719
    %v5721 = vpop.f32.mrf.mxu0
    %v5722 = vadd.f32 %v5678, %v5721
    %v5723 = vand.u32 %v5644, 4294901760
    %5724 = vmatmul.f32.gmra.mxu0 %v5723
    %v5725 = vpop.f32.mrf.mxu0
    %v5726 = vadd.f32 %v5686, %v5725
    %5727 = vdwg.mxu0
    %5728 = vmatpush.msra.mxu0 0.0
    %5729 = vmatpush.msra.mxu0 0.0
    %5730 = vmatpush.msra.mxu0 0.0
    %5731 = vmatpush.msra.mxu0 0.0
    %5732 = vmatpush.msra.mxu0 0.0
    %5733 = vmatpush.msra.mxu0 0.0
    %5734 = vmatpush.msra.mxu0 0.0
    %5735 = vmatpush.msra.mxu0 0.0
    %5736 = vmatpush.msra.mxu0 0.0
    %5737 = vmatpush.msra.mxu0 0.0
    %5738 = vmatpush.msra.mxu0 0.0
    %5739 = vmatpush.msra.mxu0 0.0
    %5740 = vmatpush.msra.mxu0 0.0
    %v5741 = vand.u32 %v5647, 4294901760
    %v5742 = vsub.f32 %v5647, %v5741
    %5743 = vmatpush.msra.mxu0 %v5742
    %v5744 = vand.u32 %v5637, 4294901760
    %v5745 = vsub.f32 %v5637, %v5744
    %5746 = vmatpush.msra.mxu0 %v5745
    %v5747 = vand.u32 %v5635, 4294901760
    %v5748 = vsub.f32 %v5635, %v5747
    %5749 = vmatpush.msra.mxu0 %v5748
    %v5750 = vand.u32 %v5642, 4294901760
    %v5751 = vsub.f32 %v5642, %v5750
    %5752 = vmatmul.f32.gmra.mxu0 %v5751
    %v5753 = vpop.f32.mrf.mxu0
    %v5754 = vadd.f32 %v5722, %v5753
    %v5755 = vand.u32 %v5644, 4294901760
    %v5756 = vsub.f32 %v5644, %v5755
    %5757 = vmatmul.f32.gmra.mxu0 %v5756
    %v5758 = vpop.f32.mrf.mxu0
    %v5759 = vadd.f32 %v5726, %v5758
    %5760 = vdwg.mxu0
    %5761 = vmatpush.msra.mxu0 0.0
    %5762 = vmatpush.msra.mxu0 0.0
    %5763 = vmatpush.msra.mxu0 0.0
    %5764 = vmatpush.msra.mxu0 0.0
    %5765 = vmatpush.msra.mxu0 0.0
    %5766 = vmatpush.msra.mxu0 0.0
    %5767 = vmatpush.msra.mxu0 0.0
    %5768 = vmatpush.msra.mxu0 0.0
    %5769 = vmatpush.msra.mxu0 0.0
    %5770 = vmatpush.msra.mxu0 0.0
    %5771 = vmatpush.msra.mxu0 0.0
    %5772 = vmatpush.msra.mxu0 0.0
    %5773 = vmatpush.msra.mxu0 0.0
    %v5774 = vand.u32 %v5647, 4294901760
    %5775 = vmatpush.msra.mxu0 %v5774
    %v5776 = vand.u32 %v5637, 4294901760
    %5777 = vmatpush.msra.mxu0 %v5776
    %v5778 = vand.u32 %v5635, 4294901760
    %5779 = vmatpush.msra.mxu0 %v5778
    %v5780 = vand.u32 %v5642, 4294901760
    %v5781 = vsub.f32 %v5642, %v5780
    %v5782 = vand.u32 %v5781, 4294901760
    %5783 = vmatmul.f32.gmra.mxu0 %v5782
    %v5784 = vpop.f32.mrf.mxu0
    %v5785 = vadd.f32 %v5754, %v5784
    %v5786 = vand.u32 %v5644, 4294901760
    %v5787 = vsub.f32 %v5644, %v5786
    %v5788 = vand.u32 %v5787, 4294901760
    %5789 = vmatmul.f32.gmra.mxu0 %v5788
    %v5790 = vpop.f32.mrf.mxu0
    %v5791 = vadd.f32 %v5759, %v5790
    %5792 = vdwg.mxu0
    %5793 = vmatpush.msra.mxu0 0.0
    %5794 = vmatpush.msra.mxu0 0.0
    %5795 = vmatpush.msra.mxu0 0.0
    %5796 = vmatpush.msra.mxu0 0.0
    %5797 = vmatpush.msra.mxu0 0.0
    %5798 = vmatpush.msra.mxu0 0.0
    %5799 = vmatpush.msra.mxu0 0.0
    %5800 = vmatpush.msra.mxu0 0.0
    %5801 = vmatpush.msra.mxu0 0.0
    %5802 = vmatpush.msra.mxu0 0.0
    %5803 = vmatpush.msra.mxu0 0.0
    %5804 = vmatpush.msra.mxu0 0.0
    %5805 = vmatpush.msra.mxu0 0.0
    %v5806 = vand.u32 %v5647, 4294901760
    %v5807 = vsub.f32 %v5647, %v5806
    %v5808 = vand.u32 %v5807, 4294901760
    %5809 = vmatpush.msra.mxu0 %v5808
    %v5810 = vand.u32 %v5637, 4294901760
    %v5811 = vsub.f32 %v5637, %v5810
    %v5812 = vand.u32 %v5811, 4294901760
    %5813 = vmatpush.msra.mxu0 %v5812
    %v5814 = vand.u32 %v5635, 4294901760
    %v5815 = vsub.f32 %v5635, %v5814
    %v5816 = vand.u32 %v5815, 4294901760
    %5817 = vmatpush.msra.mxu0 %v5816
    %v5818 = vand.u32 %v5642, 4294901760
    %5819 = vmatmul.f32.gmra.mxu0 %v5818
    %v5820 = vpop.f32.mrf.mxu0
    %v5821 = vadd.f32 %v5785, %v5820
    %v5822 = vand.u32 %v5644, 4294901760
    %5823 = vmatmul.f32.gmra.mxu0 %v5822
    %v5824 = vpop.f32.mrf.mxu0
    %v5825 = vadd.f32 %v5791, %v5824
    %5826 = vdwg.mxu0
    %5827 = vmatpush.msra.mxu0 0.0
    %5828 = vmatpush.msra.mxu0 0.0
    %5829 = vmatpush.msra.mxu0 0.0
    %5830 = vmatpush.msra.mxu0 0.0
    %5831 = vmatpush.msra.mxu0 0.0
    %5832 = vmatpush.msra.mxu0 0.0
    %5833 = vmatpush.msra.mxu0 0.0
    %5834 = vmatpush.msra.mxu0 0.0
    %5835 = vmatpush.msra.mxu0 0.0
    %5836 = vmatpush.msra.mxu0 0.0
    %5837 = vmatpush.msra.mxu0 0.0
    %5838 = vmatpush.msra.mxu0 0.0
    %5839 = vmatpush.msra.mxu0 0.0
    %v5840 = vand.u32 %v5647, 4294901760
    %5841 = vmatpush.msra.mxu0 %v5840
    %v5842 = vand.u32 %v5637, 4294901760
    %5843 = vmatpush.msra.mxu0 %v5842
    %v5844 = vand.u32 %v5635, 4294901760
    %5845 = vmatpush.msra.mxu0 %v5844
    %v5846 = vand.u32 %v5642, 4294901760
    %5847 = vmatmul.f32.gmra.mxu0 %v5846
    %v5848 = vpop.f32.mrf.mxu0
    %v5849 = vadd.f32 %v5821, %v5848
    %v5850 = vand.u32 %v5644, 4294901760
    %5851 = vmatmul.f32.gmra.mxu0 %v5850
    %v5852 = vpop.f32.mrf.mxu0
    %v5853 = vadd.f32 %v5825, %v5852
    %5854 = vdwg.mxu0
    %5855 = vmatpush.msra.mxu0 0.0
    %5856 = vmatpush.msra.mxu0 0.0
    %5857 = vmatpush.msra.mxu0 0.0
    %5858 = vmatpush.msra.mxu0 0.0
    %5859 = vmatpush.msra.mxu0 0.0
    %5860 = vmatpush.msra.mxu0 0.0
    %5861 = vmatpush.msra.mxu0 0.0
    %5862 = vmatpush.msra.mxu0 0.0
    %5863 = vmatpush.msra.mxu0 0.0
    %5864 = vmatpush.msra.mxu0 0.0
    %5865 = vmatpush.msra.mxu0 0.0
    %5866 = vmatpush.msra.mxu0 0.0
    %5867 = vmatpush.msra.mxu0 0.0
    %v5868 = vand.u32 %v5650, 4294901760
    %5869 = vmatpush.msra.mxu0 %v5868
    %v5870 = vand.u32 %v5638, 4294901760
    %5871 = vmatpush.msra.mxu0 %v5870
    %v5872 = vand.u32 %v5636, 4294901760
    %5873 = vmatpush.msra.mxu0 %v5872
    %v5874 = vand.u32 %v5642, 4294901760
    %v5875 = vsub.f32 %v5642, %v5874
    %v5876 = vand.u32 %v5875, 4294901760
    %v5877 = vsub.f32 %v5875, %v5876
    %v5878 = vand.u32 %v5877, 4294901760
    %5879 = vmatmul.f32.gmra.mxu0 %v5878
    %v5880 = vpop.f32.mrf.mxu0
    %v5881 = vadd.f32 0.0, %v5880
    %v5882 = vand.u32 %v5644, 4294901760
    %v5883 = vsub.f32 %v5644, %v5882
    %v5884 = vand.u32 %v5883, 4294901760
    %v5885 = vsub.f32 %v5883, %v5884
    %v5886 = vand.u32 %v5885, 4294901760
    %5887 = vmatmul.f32.gmra.mxu0 %v5886
    %v5888 = vpop.f32.mrf.mxu0
    %v5889 = vadd.f32 0.0, %v5888
    %5890 = vdwg.mxu0
    %5891 = vmatpush.msra.mxu0 0.0
    %5892 = vmatpush.msra.mxu0 0.0
    %5893 = vmatpush.msra.mxu0 0.0
    %5894 = vmatpush.msra.mxu0 0.0
    %5895 = vmatpush.msra.mxu0 0.0
    %5896 = vmatpush.msra.mxu0 0.0
    %5897 = vmatpush.msra.mxu0 0.0
    %5898 = vmatpush.msra.mxu0 0.0
    %5899 = vmatpush.msra.mxu0 0.0
    %5900 = vmatpush.msra.mxu0 0.0
    %5901 = vmatpush.msra.mxu0 0.0
    %5902 = vmatpush.msra.mxu0 0.0
    %5903 = vmatpush.msra.mxu0 0.0
    %v5904 = vand.u32 %v5650, 4294901760
    %v5905 = vsub.f32 %v5650, %v5904
    %v5906 = vand.u32 %v5905, 4294901760
    %v5907 = vsub.f32 %v5905, %v5906
    %v5908 = vand.u32 %v5907, 4294901760
    %5909 = vmatpush.msra.mxu0 %v5908
    %v5910 = vand.u32 %v5638, 4294901760
    %v5911 = vsub.f32 %v5638, %v5910
    %v5912 = vand.u32 %v5911, 4294901760
    %v5913 = vsub.f32 %v5911, %v5912
    %v5914 = vand.u32 %v5913, 4294901760
    %5915 = vmatpush.msra.mxu0 %v5914
    %v5916 = vand.u32 %v5636, 4294901760
    %v5917 = vsub.f32 %v5636, %v5916
    %v5918 = vand.u32 %v5917, 4294901760
    %v5919 = vsub.f32 %v5917, %v5918
    %v5920 = vand.u32 %v5919, 4294901760
    %5921 = vmatpush.msra.mxu0 %v5920
    %v5922 = vand.u32 %v5642, 4294901760
    %5923 = vmatmul.f32.gmra.mxu0 %v5922
    %v5924 = vpop.f32.mrf.mxu0
    %v5925 = vadd.f32 %v5881, %v5924
    %v5926 = vand.u32 %v5644, 4294901760
    %5927 = vmatmul.f32.gmra.mxu0 %v5926
    %v5928 = vpop.f32.mrf.mxu0
    %v5929 = vadd.f32 %v5889, %v5928
    %5930 = vdwg.mxu0
    %5931 = vmatpush.msra.mxu0 0.0
    %5932 = vmatpush.msra.mxu0 0.0
    %5933 = vmatpush.msra.mxu0 0.0
    %5934 = vmatpush.msra.mxu0 0.0
    %5935 = vmatpush.msra.mxu0 0.0
    %5936 = vmatpush.msra.mxu0 0.0
    %5937 = vmatpush.msra.mxu0 0.0
    %5938 = vmatpush.msra.mxu0 0.0
    %5939 = vmatpush.msra.mxu0 0.0
    %5940 = vmatpush.msra.mxu0 0.0
    %5941 = vmatpush.msra.mxu0 0.0
    %5942 = vmatpush.msra.mxu0 0.0
    %5943 = vmatpush.msra.mxu0 0.0
    %v5944 = vand.u32 %v5650, 4294901760
    %v5945 = vsub.f32 %v5650, %v5944
    %5946 = vmatpush.msra.mxu0 %v5945
    %v5947 = vand.u32 %v5638, 4294901760
    %v5948 = vsub.f32 %v5638, %v5947
    %5949 = vmatpush.msra.mxu0 %v5948
    %v5950 = vand.u32 %v5636, 4294901760
    %v5951 = vsub.f32 %v5636, %v5950
    %5952 = vmatpush.msra.mxu0 %v5951
    %v5953 = vand.u32 %v5642, 4294901760
    %v5954 = vsub.f32 %v5642, %v5953
    %5955 = vmatmul.f32.gmra.mxu0 %v5954
    %v5956 = vpop.f32.mrf.mxu0
    %v5957 = vadd.f32 %v5925, %v5956
    %v5958 = vand.u32 %v5644, 4294901760
    %v5959 = vsub.f32 %v5644, %v5958
    %5960 = vmatmul.f32.gmra.mxu0 %v5959
    %v5961 = vpop.f32.mrf.mxu0
    %v5962 = vadd.f32 %v5929, %v5961
    %5963 = vdwg.mxu0
    %5964 = vmatpush.msra.mxu0 0.0
    %5965 = vmatpush.msra.mxu0 0.0
    %5966 = vmatpush.msra.mxu0 0.0
    %5967 = vmatpush.msra.mxu0 0.0
    %5968 = vmatpush.msra.mxu0 0.0
    %5969 = vmatpush.msra.mxu0 0.0
    %5970 = vmatpush.msra.mxu0 0.0
    %5971 = vmatpush.msra.mxu0 0.0
    %5972 = vmatpush.msra.mxu0 0.0
    %5973 = vmatpush.msra.mxu0 0.0
    %5974 = vmatpush.msra.mxu0 0.0
    %5975 = vmatpush.msra.mxu0 0.0
    %5976 = vmatpush.msra.mxu0 0.0
    %v5977 = vand.u32 %v5650, 4294901760
    %5978 = vmatpush.msra.mxu0 %v5977
    %v5979 = vand.u32 %v5638, 4294901760
    %5980 = vmatpush.msra.mxu0 %v5979
    %v5981 = vand.u32 %v5636, 4294901760
    %5982 = vmatpush.msra.mxu0 %v5981
    %v5983 = vand.u32 %v5642, 4294901760
    %v5984 = vsub.f32 %v5642, %v5983
    %v5985 = vand.u32 %v5984, 4294901760
    %5986 = vmatmul.f32.gmra.mxu0 %v5985
    %v5987 = vpop.f32.mrf.mxu0
    %v5988 = vadd.f32 %v5957, %v5987
    %v5989 = vand.u32 %v5644, 4294901760
    %v5990 = vsub.f32 %v5644, %v5989
    %v5991 = vand.u32 %v5990, 4294901760
    %5992 = vmatmul.f32.gmra.mxu0 %v5991
    %v5993 = vpop.f32.mrf.mxu0
    %v5994 = vadd.f32 %v5962, %v5993
    %5995 = vdwg.mxu0
    %5996 = vmatpush.msra.mxu0 0.0
    %5997 = vmatpush.msra.mxu0 0.0
    %5998 = vmatpush.msra.mxu0 0.0
    %5999 = vmatpush.msra.mxu0 0.0
    %6000 = vmatpush.msra.mxu0 0.0
    %6001 = vmatpush.msra.mxu0 0.0
    %6002 = vmatpush.msra.mxu0 0.0
    %6003 = vmatpush.msra.mxu0 0.0
    %6004 = vmatpush.msra.mxu0 0.0
    %6005 = vmatpush.msra.mxu0 0.0
    %6006 = vmatpush.msra.mxu0 0.0
    %6007 = vmatpush.msra.mxu0 0.0
    %6008 = vmatpush.msra.mxu0 0.0
    %v6009 = vand.u32 %v5650, 4294901760
    %v6010 = vsub.f32 %v5650, %v6009
    %v6011 = vand.u32 %v6010, 4294901760
    %6012 = vmatpush.msra.mxu0 %v6011
    %v6013 = vand.u32 %v5638, 4294901760
    %v6014 = vsub.f32 %v5638, %v6013
    %v6015 = vand.u32 %v6014, 4294901760
    %6016 = vmatpush.msra.mxu0 %v6015
    %v6017 = vand.u32 %v5636, 4294901760
    %v6018 = vsub.f32 %v5636, %v6017
    %v6019 = vand.u32 %v6018, 4294901760
    %6020 = vmatpush.msra.mxu0 %v6019
    %v6021 = vand.u32 %v5642, 4294901760
    %6022 = vmatmul.f32.gmra.mxu0 %v6021
    %v6023 = vpop.f32.mrf.mxu0
    %v6024 = vadd.f32 %v5988, %v6023
    %v6025 = vand.u32 %v5644, 4294901760
    %6026 = vmatmul.f32.gmra.mxu0 %v6025
    %v6027 = vpop.f32.mrf.mxu0
    %v6028 = vadd.f32 %v5994, %v6027
    %6029 = vdwg.mxu0
    %6030 = vmatpush.msra.mxu0 0.0
    %6031 = vmatpush.msra.mxu0 0.0
    %6032 = vmatpush.msra.mxu0 0.0
    %6033 = vmatpush.msra.mxu0 0.0
    %6034 = vmatpush.msra.mxu0 0.0
    %6035 = vmatpush.msra.mxu0 0.0
    %6036 = vmatpush.msra.mxu0 0.0
    %6037 = vmatpush.msra.mxu0 0.0
    %6038 = vmatpush.msra.mxu0 0.0
    %6039 = vmatpush.msra.mxu0 0.0
    %6040 = vmatpush.msra.mxu0 0.0
    %6041 = vmatpush.msra.mxu0 0.0
    %6042 = vmatpush.msra.mxu0 0.0
    %v6043 = vand.u32 %v5650, 4294901760
    %6044 = vmatpush.msra.mxu0 %v6043
    %v6045 = vand.u32 %v5638, 4294901760
    %6046 = vmatpush.msra.mxu0 %v6045
    %v6047 = vand.u32 %v5636, 4294901760
    %6048 = vmatpush.msra.mxu0 %v6047
    %v6049 = vand.u32 %v5642, 4294901760
    %6050 = vmatmul.f32.gmra.mxu0 %v6049
    %v6051 = vpop.f32.mrf.mxu0
    %v6052 = vadd.f32 %v6024, %v6051
    %v6053 = vand.u32 %v5644, 4294901760
    %6054 = vmatmul.f32.gmra.mxu0 %v6053
    %v6055 = vpop.f32.mrf.mxu0
    %v6056 = vadd.f32 %v6028, %v6055
    %6057 = vdwg.mxu0
    %v6058 = vadd.s32 %v2385, 168
    %v6059 = vadd.s32 %v2385, 176
    %v6060 = vadd.s32 %v2385, 184
    %vm6061 = vcmp.eq.s32.totalorder %v6058, %v3077
    %vm6062 = vcmp.eq.s32.totalorder %v6059, %v3077
    %vm6063 = vcmp.eq.s32.totalorder %v6060, %v3077
    %v6064 = vsel %vm6061, 1, 0
    %v6065 = vsel %vm6062, 1, 0
    %v6066 = vsel %vm6063, 1, 0
    %v6067 = vcvt.s32.f32 %v6064
    %v6068 = vcvt.s32.f32 %v6065
    %v6069 = vcvt.s32.f32 %v6066
    %vm6070 = vcmask 515072
    %v6072 = vsel %vm6070, %v6052, 0
    %v6075 = vsel %vm6070, %v6056, 0
    %v6078 = vsel %vm252, %v6069, 0
    %v6080 = vand.u32 %v3135, 4294901760
    %6081 = vmatpush.msra.mxu0 %v6080
    %v6082 = vand.u32 %v3134, 4294901760
    %6083 = vmatpush.msra.mxu0 %v6082
    %v6084 = vand.u32 %v3133, 4294901760
    %6085 = vmatpush.msra.mxu0 %v6084
    %v6086 = vand.u32 %v3132, 4294901760
    %6087 = vmatpush.msra.mxu0 %v6086
    %v6088 = vand.u32 %v3131, 4294901760
    %6089 = vmatpush.msra.mxu0 %v6088
    %v6090 = vand.u32 %v3130, 4294901760
    %6091 = vmatpush.msra.mxu0 %v6090
    %v6092 = vand.u32 %v3129, 4294901760
    %6093 = vmatpush.msra.mxu0 %v6092
    %v6094 = vand.u32 %v3128, 4294901760
    %6095 = vmatpush.msra.mxu0 %v6094
    %v6096 = vand.u32 %v3127, 4294901760
    %6097 = vmatpush.msra.mxu0 %v6096
    %v6098 = vand.u32 %v3126, 4294901760
    %6099 = vmatpush.msra.mxu0 %v6098
    %v6100 = vand.u32 %v3125, 4294901760
    %6101 = vmatpush.msra.mxu0 %v6100
    %v6102 = vand.u32 %v3124, 4294901760
    %6103 = vmatpush.msra.mxu0 %v6102
    %v6104 = vand.u32 %v3123, 4294901760
    %6105 = vmatpush.msra.mxu0 %v6104
    %v6106 = vand.u32 %v3122, 4294901760
    %6107 = vmatpush.msra.mxu0 %v6106
    %v6108 = vand.u32 %v3121, 4294901760
    %6109 = vmatpush.msra.mxu0 %v6108
    %v6110 = vand.u32 %v3120, 4294901760
    %6111 = vmatpush.msra.mxu0 %v6110
    %v6112 = vand.u32 %v5849, 4294901760
    %v6113 = vsub.f32 %v5849, %v6112
    %v6114 = vand.u32 %v6113, 4294901760
    %v6115 = vsub.f32 %v6113, %v6114
    %v6116 = vand.u32 %v6115, 4294901760
    %6117 = vmatmul.f32.gmra.mxu0 %v6116
    %v6118 = vpop.f32.mrf.mxu0
    %v6119 = vadd.f32 0.0, %v6118
    %v6120 = vand.u32 %v5853, 4294901760
    %v6121 = vsub.f32 %v5853, %v6120
    %v6122 = vand.u32 %v6121, 4294901760
    %v6123 = vsub.f32 %v6121, %v6122
    %v6124 = vand.u32 %v6123, 4294901760
    %6125 = vmatmul.f32.gmra.mxu0 %v6124
    %v6126 = vpop.f32.mrf.mxu0
    %v6127 = vadd.f32 0.0, %v6126
    %6128 = vdwg.mxu0
    %v6129 = vand.u32 %v3135, 4294901760
    %v6130 = vsub.f32 %v3135, %v6129
    %v6131 = vand.u32 %v6130, 4294901760
    %v6132 = vsub.f32 %v6130, %v6131
    %v6133 = vand.u32 %v6132, 4294901760
    %6134 = vmatpush.msra.mxu0 %v6133
    %v6135 = vand.u32 %v3134, 4294901760
    %v6136 = vsub.f32 %v3134, %v6135
    %v6137 = vand.u32 %v6136, 4294901760
    %v6138 = vsub.f32 %v6136, %v6137
    %v6139 = vand.u32 %v6138, 4294901760
    %6140 = vmatpush.msra.mxu0 %v6139
    %v6141 = vand.u32 %v3133, 4294901760
    %v6142 = vsub.f32 %v3133, %v6141
    %v6143 = vand.u32 %v6142, 4294901760
    %v6144 = vsub.f32 %v6142, %v6143
    %v6145 = vand.u32 %v6144, 4294901760
    %6146 = vmatpush.msra.mxu0 %v6145
    %v6147 = vand.u32 %v3132, 4294901760
    %v6148 = vsub.f32 %v3132, %v6147
    %v6149 = vand.u32 %v6148, 4294901760
    %v6150 = vsub.f32 %v6148, %v6149
    %v6151 = vand.u32 %v6150, 4294901760
    %6152 = vmatpush.msra.mxu0 %v6151
    %v6153 = vand.u32 %v3131, 4294901760
    %v6154 = vsub.f32 %v3131, %v6153
    %v6155 = vand.u32 %v6154, 4294901760
    %v6156 = vsub.f32 %v6154, %v6155
    %v6157 = vand.u32 %v6156, 4294901760
    %6158 = vmatpush.msra.mxu0 %v6157
    %v6159 = vand.u32 %v3130, 4294901760
    %v6160 = vsub.f32 %v3130, %v6159
    %v6161 = vand.u32 %v6160, 4294901760
    %v6162 = vsub.f32 %v6160, %v6161
    %v6163 = vand.u32 %v6162, 4294901760
    %6164 = vmatpush.msra.mxu0 %v6163
    %v6165 = vand.u32 %v3129, 4294901760
    %v6166 = vsub.f32 %v3129, %v6165
    %v6167 = vand.u32 %v6166, 4294901760
    %v6168 = vsub.f32 %v6166, %v6167
    %v6169 = vand.u32 %v6168, 4294901760
    %6170 = vmatpush.msra.mxu0 %v6169
    %v6171 = vand.u32 %v3128, 4294901760
    %v6172 = vsub.f32 %v3128, %v6171
    %v6173 = vand.u32 %v6172, 4294901760
    %v6174 = vsub.f32 %v6172, %v6173
    %v6175 = vand.u32 %v6174, 4294901760
    %6176 = vmatpush.msra.mxu0 %v6175
    %v6177 = vand.u32 %v3127, 4294901760
    %v6178 = vsub.f32 %v3127, %v6177
    %v6179 = vand.u32 %v6178, 4294901760
    %v6180 = vsub.f32 %v6178, %v6179
    %v6181 = vand.u32 %v6180, 4294901760
    %6182 = vmatpush.msra.mxu0 %v6181
    %v6183 = vand.u32 %v3126, 4294901760
    %v6184 = vsub.f32 %v3126, %v6183
    %v6185 = vand.u32 %v6184, 4294901760
    %v6186 = vsub.f32 %v6184, %v6185
    %v6187 = vand.u32 %v6186, 4294901760
    %6188 = vmatpush.msra.mxu0 %v6187
    %v6189 = vand.u32 %v3125, 4294901760
    %v6190 = vsub.f32 %v3125, %v6189
    %v6191 = vand.u32 %v6190, 4294901760
    %v6192 = vsub.f32 %v6190, %v6191
    %v6193 = vand.u32 %v6192, 4294901760
    %6194 = vmatpush.msra.mxu0 %v6193
    %v6195 = vand.u32 %v3124, 4294901760
    %v6196 = vsub.f32 %v3124, %v6195
    %v6197 = vand.u32 %v6196, 4294901760
    %v6198 = vsub.f32 %v6196, %v6197
    %v6199 = vand.u32 %v6198, 4294901760
    %6200 = vmatpush.msra.mxu0 %v6199
    %v6201 = vand.u32 %v3123, 4294901760
    %v6202 = vsub.f32 %v3123, %v6201
    %v6203 = vand.u32 %v6202, 4294901760
    %v6204 = vsub.f32 %v6202, %v6203
    %v6205 = vand.u32 %v6204, 4294901760
    %6206 = vmatpush.msra.mxu0 %v6205
    %v6207 = vand.u32 %v3122, 4294901760
    %v6208 = vsub.f32 %v3122, %v6207
    %v6209 = vand.u32 %v6208, 4294901760
    %v6210 = vsub.f32 %v6208, %v6209
    %v6211 = vand.u32 %v6210, 4294901760
    %6212 = vmatpush.msra.mxu0 %v6211
    %v6213 = vand.u32 %v3121, 4294901760
    %v6214 = vsub.f32 %v3121, %v6213
    %v6215 = vand.u32 %v6214, 4294901760
    %v6216 = vsub.f32 %v6214, %v6215
    %v6217 = vand.u32 %v6216, 4294901760
    %6218 = vmatpush.msra.mxu0 %v6217
    %v6219 = vand.u32 %v3120, 4294901760
    %v6220 = vsub.f32 %v3120, %v6219
    %v6221 = vand.u32 %v6220, 4294901760
    %v6222 = vsub.f32 %v6220, %v6221
    %v6223 = vand.u32 %v6222, 4294901760
    %6224 = vmatpush.msra.mxu0 %v6223
    %v6225 = vand.u32 %v5849, 4294901760
    %6226 = vmatmul.f32.gmra.mxu0 %v6225
    %v6227 = vpop.f32.mrf.mxu0
    %v6228 = vadd.f32 %v6119, %v6227
    %v6229 = vand.u32 %v5853, 4294901760
    %6230 = vmatmul.f32.gmra.mxu0 %v6229
    %v6231 = vpop.f32.mrf.mxu0
    %v6232 = vadd.f32 %v6127, %v6231
    %6233 = vdwg.mxu0
    %v6234 = vand.u32 %v3135, 4294901760
    %v6235 = vsub.f32 %v3135, %v6234
    %6236 = vmatpush.msra.mxu0 %v6235
    %v6237 = vand.u32 %v3134, 4294901760
    %v6238 = vsub.f32 %v3134, %v6237
    %6239 = vmatpush.msra.mxu0 %v6238
    %v6240 = vand.u32 %v3133, 4294901760
    %v6241 = vsub.f32 %v3133, %v6240
    %6242 = vmatpush.msra.mxu0 %v6241
    %v6243 = vand.u32 %v3132, 4294901760
    %v6244 = vsub.f32 %v3132, %v6243
    %6245 = vmatpush.msra.mxu0 %v6244
    %v6246 = vand.u32 %v3131, 4294901760
    %v6247 = vsub.f32 %v3131, %v6246
    %6248 = vmatpush.msra.mxu0 %v6247
    %v6249 = vand.u32 %v3130, 4294901760
    %v6250 = vsub.f32 %v3130, %v6249
    %6251 = vmatpush.msra.mxu0 %v6250
    %v6252 = vand.u32 %v3129, 4294901760
    %v6253 = vsub.f32 %v3129, %v6252
    %6254 = vmatpush.msra.mxu0 %v6253
    %v6255 = vand.u32 %v3128, 4294901760
    %v6256 = vsub.f32 %v3128, %v6255
    %6257 = vmatpush.msra.mxu0 %v6256
    %v6258 = vand.u32 %v3127, 4294901760
    %v6259 = vsub.f32 %v3127, %v6258
    %6260 = vmatpush.msra.mxu0 %v6259
    %v6261 = vand.u32 %v3126, 4294901760
    %v6262 = vsub.f32 %v3126, %v6261
    %6263 = vmatpush.msra.mxu0 %v6262
    %v6264 = vand.u32 %v3125, 4294901760
    %v6265 = vsub.f32 %v3125, %v6264
    %6266 = vmatpush.msra.mxu0 %v6265
    %v6267 = vand.u32 %v3124, 4294901760
    %v6268 = vsub.f32 %v3124, %v6267
    %6269 = vmatpush.msra.mxu0 %v6268
    %v6270 = vand.u32 %v3123, 4294901760
    %v6271 = vsub.f32 %v3123, %v6270
    %6272 = vmatpush.msra.mxu0 %v6271
    %v6273 = vand.u32 %v3122, 4294901760
    %v6274 = vsub.f32 %v3122, %v6273
    %6275 = vmatpush.msra.mxu0 %v6274
    %v6276 = vand.u32 %v3121, 4294901760
    %v6277 = vsub.f32 %v3121, %v6276
    %6278 = vmatpush.msra.mxu0 %v6277
    %v6279 = vand.u32 %v3120, 4294901760
    %v6280 = vsub.f32 %v3120, %v6279
    %6281 = vmatpush.msra.mxu0 %v6280
    %v6282 = vand.u32 %v5849, 4294901760
    %v6283 = vsub.f32 %v5849, %v6282
    %6284 = vmatmul.f32.gmra.mxu0 %v6283
    %v6285 = vpop.f32.mrf.mxu0
    %v6286 = vadd.f32 %v6228, %v6285
    %v6287 = vand.u32 %v5853, 4294901760
    %v6288 = vsub.f32 %v5853, %v6287
    %6289 = vmatmul.f32.gmra.mxu0 %v6288
    %v6290 = vpop.f32.mrf.mxu0
    %v6291 = vadd.f32 %v6232, %v6290
    %6292 = vdwg.mxu0
    %v6293 = vand.u32 %v3135, 4294901760
    %6294 = vmatpush.msra.mxu0 %v6293
    %v6295 = vand.u32 %v3134, 4294901760
    %6296 = vmatpush.msra.mxu0 %v6295
    %v6297 = vand.u32 %v3133, 4294901760
    %6298 = vmatpush.msra.mxu0 %v6297
    %v6299 = vand.u32 %v3132, 4294901760
    %6300 = vmatpush.msra.mxu0 %v6299
    %v6301 = vand.u32 %v3131, 4294901760
    %6302 = vmatpush.msra.mxu0 %v6301
    %v6303 = vand.u32 %v3130, 4294901760
    %6304 = vmatpush.msra.mxu0 %v6303
    %v6305 = vand.u32 %v3129, 4294901760
    %6306 = vmatpush.msra.mxu0 %v6305
    %v6307 = vand.u32 %v3128, 4294901760
    %6308 = vmatpush.msra.mxu0 %v6307
    %v6309 = vand.u32 %v3127, 4294901760
    %6310 = vmatpush.msra.mxu0 %v6309
    %v6311 = vand.u32 %v3126, 4294901760
    %6312 = vmatpush.msra.mxu0 %v6311
    %v6313 = vand.u32 %v3125, 4294901760
    %6314 = vmatpush.msra.mxu0 %v6313
    %v6315 = vand.u32 %v3124, 4294901760
    %6316 = vmatpush.msra.mxu0 %v6315
    %v6317 = vand.u32 %v3123, 4294901760
    %6318 = vmatpush.msra.mxu0 %v6317
    %v6319 = vand.u32 %v3122, 4294901760
    %6320 = vmatpush.msra.mxu0 %v6319
    %v6321 = vand.u32 %v3121, 4294901760
    %6322 = vmatpush.msra.mxu0 %v6321
    %v6323 = vand.u32 %v3120, 4294901760
    %6324 = vmatpush.msra.mxu0 %v6323
    %v6325 = vand.u32 %v5849, 4294901760
    %v6326 = vsub.f32 %v5849, %v6325
    %v6327 = vand.u32 %v6326, 4294901760
    %6328 = vmatmul.f32.gmra.mxu0 %v6327
    %v6329 = vpop.f32.mrf.mxu0
    %v6330 = vadd.f32 %v6286, %v6329
    %v6331 = vand.u32 %v5853, 4294901760
    %v6332 = vsub.f32 %v5853, %v6331
    %v6333 = vand.u32 %v6332, 4294901760
    %6334 = vmatmul.f32.gmra.mxu0 %v6333
    %v6335 = vpop.f32.mrf.mxu0
    %v6336 = vadd.f32 %v6291, %v6335
    %6337 = vdwg.mxu0
    %v6338 = vand.u32 %v3135, 4294901760
    %v6339 = vsub.f32 %v3135, %v6338
    %v6340 = vand.u32 %v6339, 4294901760
    %6341 = vmatpush.msra.mxu0 %v6340
    %v6342 = vand.u32 %v3134, 4294901760
    %v6343 = vsub.f32 %v3134, %v6342
    %v6344 = vand.u32 %v6343, 4294901760
    %6345 = vmatpush.msra.mxu0 %v6344
    %v6346 = vand.u32 %v3133, 4294901760
    %v6347 = vsub.f32 %v3133, %v6346
    %v6348 = vand.u32 %v6347, 4294901760
    %6349 = vmatpush.msra.mxu0 %v6348
    %v6350 = vand.u32 %v3132, 4294901760
    %v6351 = vsub.f32 %v3132, %v6350
    %v6352 = vand.u32 %v6351, 4294901760
    %6353 = vmatpush.msra.mxu0 %v6352
    %v6354 = vand.u32 %v3131, 4294901760
    %v6355 = vsub.f32 %v3131, %v6354
    %v6356 = vand.u32 %v6355, 4294901760
    %6357 = vmatpush.msra.mxu0 %v6356
    %v6358 = vand.u32 %v3130, 4294901760
    %v6359 = vsub.f32 %v3130, %v6358
    %v6360 = vand.u32 %v6359, 4294901760
    %6361 = vmatpush.msra.mxu0 %v6360
    %v6362 = vand.u32 %v3129, 4294901760
    %v6363 = vsub.f32 %v3129, %v6362
    %v6364 = vand.u32 %v6363, 4294901760
    %6365 = vmatpush.msra.mxu0 %v6364
    %v6366 = vand.u32 %v3128, 4294901760
    %v6367 = vsub.f32 %v3128, %v6366
    %v6368 = vand.u32 %v6367, 4294901760
    %6369 = vmatpush.msra.mxu0 %v6368
    %v6370 = vand.u32 %v3127, 4294901760
    %v6371 = vsub.f32 %v3127, %v6370
    %v6372 = vand.u32 %v6371, 4294901760
    %6373 = vmatpush.msra.mxu0 %v6372
    %v6374 = vand.u32 %v3126, 4294901760
    %v6375 = vsub.f32 %v3126, %v6374
    %v6376 = vand.u32 %v6375, 4294901760
    %6377 = vmatpush.msra.mxu0 %v6376
    %v6378 = vand.u32 %v3125, 4294901760
    %v6379 = vsub.f32 %v3125, %v6378
    %v6380 = vand.u32 %v6379, 4294901760
    %6381 = vmatpush.msra.mxu0 %v6380
    %v6382 = vand.u32 %v3124, 4294901760
    %v6383 = vsub.f32 %v3124, %v6382
    %v6384 = vand.u32 %v6383, 4294901760
    %6385 = vmatpush.msra.mxu0 %v6384
    %v6386 = vand.u32 %v3123, 4294901760
    %v6387 = vsub.f32 %v3123, %v6386
    %v6388 = vand.u32 %v6387, 4294901760
    %6389 = vmatpush.msra.mxu0 %v6388
    %v6390 = vand.u32 %v3122, 4294901760
    %v6391 = vsub.f32 %v3122, %v6390
    %v6392 = vand.u32 %v6391, 4294901760
    %6393 = vmatpush.msra.mxu0 %v6392
    %v6394 = vand.u32 %v3121, 4294901760
    %v6395 = vsub.f32 %v3121, %v6394
    %v6396 = vand.u32 %v6395, 4294901760
    %6397 = vmatpush.msra.mxu0 %v6396
    %v6398 = vand.u32 %v3120, 4294901760
    %v6399 = vsub.f32 %v3120, %v6398
    %v6400 = vand.u32 %v6399, 4294901760
    %6401 = vmatpush.msra.mxu0 %v6400
    %v6402 = vand.u32 %v5849, 4294901760
    %6403 = vmatmul.f32.gmra.mxu0 %v6402
    %v6404 = vpop.f32.mrf.mxu0
    %v6405 = vadd.f32 %v6330, %v6404
    %v6406 = vand.u32 %v5853, 4294901760
    %6407 = vmatmul.f32.gmra.mxu0 %v6406
    %v6408 = vpop.f32.mrf.mxu0
    %v6409 = vadd.f32 %v6336, %v6408
    %6410 = vdwg.mxu0
    %v6411 = vand.u32 %v3135, 4294901760
    %6412 = vmatpush.msra.mxu0 %v6411
    %v6413 = vand.u32 %v3134, 4294901760
    %6414 = vmatpush.msra.mxu0 %v6413
    %v6415 = vand.u32 %v3133, 4294901760
    %6416 = vmatpush.msra.mxu0 %v6415
    %v6417 = vand.u32 %v3132, 4294901760
    %6418 = vmatpush.msra.mxu0 %v6417
    %v6419 = vand.u32 %v3131, 4294901760
    %6420 = vmatpush.msra.mxu0 %v6419
    %v6421 = vand.u32 %v3130, 4294901760
    %6422 = vmatpush.msra.mxu0 %v6421
    %v6423 = vand.u32 %v3129, 4294901760
    %6424 = vmatpush.msra.mxu0 %v6423
    %v6425 = vand.u32 %v3128, 4294901760
    %6426 = vmatpush.msra.mxu0 %v6425
    %v6427 = vand.u32 %v3127, 4294901760
    %6428 = vmatpush.msra.mxu0 %v6427
    %v6429 = vand.u32 %v3126, 4294901760
    %6430 = vmatpush.msra.mxu0 %v6429
    %v6431 = vand.u32 %v3125, 4294901760
    %6432 = vmatpush.msra.mxu0 %v6431
    %v6433 = vand.u32 %v3124, 4294901760
    %6434 = vmatpush.msra.mxu0 %v6433
    %v6435 = vand.u32 %v3123, 4294901760
    %6436 = vmatpush.msra.mxu0 %v6435
    %v6437 = vand.u32 %v3122, 4294901760
    %6438 = vmatpush.msra.mxu0 %v6437
    %v6439 = vand.u32 %v3121, 4294901760
    %6440 = vmatpush.msra.mxu0 %v6439
    %v6441 = vand.u32 %v3120, 4294901760
    %6442 = vmatpush.msra.mxu0 %v6441
    %v6443 = vand.u32 %v5849, 4294901760
    %6444 = vmatmul.f32.gmra.mxu0 %v6443
    %v6445 = vpop.f32.mrf.mxu0
    %v6446 = vadd.f32 %v6405, %v6445
    %v6447 = vand.u32 %v5853, 4294901760
    %6448 = vmatmul.f32.gmra.mxu0 %v6447
    %v6449 = vpop.f32.mrf.mxu0
    %v6450 = vadd.f32 %v6409, %v6449
    %6451 = vdwg.mxu0
    %6452 = vmatpush.msra.mxu0 0.0
    %6453 = vmatpush.msra.mxu0 0.0
    %6454 = vmatpush.msra.mxu0 0.0
    %6455 = vmatpush.msra.mxu0 0.0
    %6456 = vmatpush.msra.mxu0 0.0
    %6457 = vmatpush.msra.mxu0 0.0
    %6458 = vmatpush.msra.mxu0 0.0
    %6459 = vmatpush.msra.mxu0 0.0
    %v6460 = vand.u32 %v6078, 4294901760
    %6461 = vmatpush.msra.mxu0 %v6460
    %v6462 = vand.u32 %v6068, 4294901760
    %6463 = vmatpush.msra.mxu0 %v6462
    %v6464 = vand.u32 %v6067, 4294901760
    %6465 = vmatpush.msra.mxu0 %v6464
    %v6466 = vand.u32 %v3140, 4294901760
    %6467 = vmatpush.msra.mxu0 %v6466
    %v6468 = vand.u32 %v3139, 4294901760
    %6469 = vmatpush.msra.mxu0 %v6468
    %v6470 = vand.u32 %v3138, 4294901760
    %6471 = vmatpush.msra.mxu0 %v6470
    %v6472 = vand.u32 %v3137, 4294901760
    %6473 = vmatpush.msra.mxu0 %v6472
    %v6474 = vand.u32 %v3136, 4294901760
    %6475 = vmatpush.msra.mxu0 %v6474
    %v6476 = vand.u32 %v6072, 4294901760
    %v6477 = vsub.f32 %v6072, %v6476
    %v6478 = vand.u32 %v6477, 4294901760
    %v6479 = vsub.f32 %v6477, %v6478
    %v6480 = vand.u32 %v6479, 4294901760
    %6481 = vmatmul.f32.gmra.mxu0 %v6480
    %v6482 = vpop.f32.mrf.mxu0
    %v6483 = vadd.f32 %v6446, %v6482
    %v6484 = vand.u32 %v6075, 4294901760
    %v6485 = vsub.f32 %v6075, %v6484
    %v6486 = vand.u32 %v6485, 4294901760
    %v6487 = vsub.f32 %v6485, %v6486
    %v6488 = vand.u32 %v6487, 4294901760
    %6489 = vmatmul.f32.gmra.mxu0 %v6488
    %v6490 = vpop.f32.mrf.mxu0
    %v6491 = vadd.f32 %v6450, %v6490
    %6492 = vdwg.mxu0
    %6493 = vmatpush.msra.mxu0 0.0
    %6494 = vmatpush.msra.mxu0 0.0
    %6495 = vmatpush.msra.mxu0 0.0
    %6496 = vmatpush.msra.mxu0 0.0
    %6497 = vmatpush.msra.mxu0 0.0
    %6498 = vmatpush.msra.mxu0 0.0
    %6499 = vmatpush.msra.mxu0 0.0
    %6500 = vmatpush.msra.mxu0 0.0
    %v6501 = vand.u32 %v6078, 4294901760
    %v6502 = vsub.f32 %v6078, %v6501
    %v6503 = vand.u32 %v6502, 4294901760
    %v6504 = vsub.f32 %v6502, %v6503
    %v6505 = vand.u32 %v6504, 4294901760
    %6506 = vmatpush.msra.mxu0 %v6505
    %v6507 = vand.u32 %v6068, 4294901760
    %v6508 = vsub.f32 %v6068, %v6507
    %v6509 = vand.u32 %v6508, 4294901760
    %v6510 = vsub.f32 %v6508, %v6509
    %v6511 = vand.u32 %v6510, 4294901760
    %6512 = vmatpush.msra.mxu0 %v6511
    %v6513 = vand.u32 %v6067, 4294901760
    %v6514 = vsub.f32 %v6067, %v6513
    %v6515 = vand.u32 %v6514, 4294901760
    %v6516 = vsub.f32 %v6514, %v6515
    %v6517 = vand.u32 %v6516, 4294901760
    %6518 = vmatpush.msra.mxu0 %v6517
    %v6519 = vand.u32 %v3140, 4294901760
    %v6520 = vsub.f32 %v3140, %v6519
    %v6521 = vand.u32 %v6520, 4294901760
    %v6522 = vsub.f32 %v6520, %v6521
    %v6523 = vand.u32 %v6522, 4294901760
    %6524 = vmatpush.msra.mxu0 %v6523
    %v6525 = vand.u32 %v3139, 4294901760
    %v6526 = vsub.f32 %v3139, %v6525
    %v6527 = vand.u32 %v6526, 4294901760
    %v6528 = vsub.f32 %v6526, %v6527
    %v6529 = vand.u32 %v6528, 4294901760
    %6530 = vmatpush.msra.mxu0 %v6529
    %v6531 = vand.u32 %v3138, 4294901760
    %v6532 = vsub.f32 %v3138, %v6531
    %v6533 = vand.u32 %v6532, 4294901760
    %v6534 = vsub.f32 %v6532, %v6533
    %v6535 = vand.u32 %v6534, 4294901760
    %6536 = vmatpush.msra.mxu0 %v6535
    %v6537 = vand.u32 %v3137, 4294901760
    %v6538 = vsub.f32 %v3137, %v6537
    %v6539 = vand.u32 %v6538, 4294901760
    %v6540 = vsub.f32 %v6538, %v6539
    %v6541 = vand.u32 %v6540, 4294901760
    %6542 = vmatpush.msra.mxu0 %v6541
    %v6543 = vand.u32 %v3136, 4294901760
    %v6544 = vsub.f32 %v3136, %v6543
    %v6545 = vand.u32 %v6544, 4294901760
    %v6546 = vsub.f32 %v6544, %v6545
    %v6547 = vand.u32 %v6546, 4294901760
    %6548 = vmatpush.msra.mxu0 %v6547
    %v6549 = vand.u32 %v6072, 4294901760
    %6550 = vmatmul.f32.gmra.mxu0 %v6549
    %v6551 = vpop.f32.mrf.mxu0
    %v6552 = vadd.f32 %v6483, %v6551
    %v6553 = vand.u32 %v6075, 4294901760
    %6554 = vmatmul.f32.gmra.mxu0 %v6553
    %v6555 = vpop.f32.mrf.mxu0
    %v6556 = vadd.f32 %v6491, %v6555
    %6557 = vdwg.mxu0
    %6558 = vmatpush.msra.mxu0 0.0
    %6559 = vmatpush.msra.mxu0 0.0
    %6560 = vmatpush.msra.mxu0 0.0
    %6561 = vmatpush.msra.mxu0 0.0
    %6562 = vmatpush.msra.mxu0 0.0
    %6563 = vmatpush.msra.mxu0 0.0
    %6564 = vmatpush.msra.mxu0 0.0
    %6565 = vmatpush.msra.mxu0 0.0
    %v6566 = vand.u32 %v6078, 4294901760
    %v6567 = vsub.f32 %v6078, %v6566
    %6568 = vmatpush.msra.mxu0 %v6567
    %v6569 = vand.u32 %v6068, 4294901760
    %v6570 = vsub.f32 %v6068, %v6569
    %6571 = vmatpush.msra.mxu0 %v6570
    %v6572 = vand.u32 %v6067, 4294901760
    %v6573 = vsub.f32 %v6067, %v6572
    %6574 = vmatpush.msra.mxu0 %v6573
    %v6575 = vand.u32 %v3140, 4294901760
    %v6576 = vsub.f32 %v3140, %v6575
    %6577 = vmatpush.msra.mxu0 %v6576
    %v6578 = vand.u32 %v3139, 4294901760
    %v6579 = vsub.f32 %v3139, %v6578
    %6580 = vmatpush.msra.mxu0 %v6579
    %v6581 = vand.u32 %v3138, 4294901760
    %v6582 = vsub.f32 %v3138, %v6581
    %6583 = vmatpush.msra.mxu0 %v6582
    %v6584 = vand.u32 %v3137, 4294901760
    %v6585 = vsub.f32 %v3137, %v6584
    %6586 = vmatpush.msra.mxu0 %v6585
    %v6587 = vand.u32 %v3136, 4294901760
    %v6588 = vsub.f32 %v3136, %v6587
    %6589 = vmatpush.msra.mxu0 %v6588
    %v6590 = vand.u32 %v6072, 4294901760
    %v6591 = vsub.f32 %v6072, %v6590
    %6592 = vmatmul.f32.gmra.mxu0 %v6591
    %v6593 = vpop.f32.mrf.mxu0
    %v6594 = vadd.f32 %v6552, %v6593
    %v6595 = vand.u32 %v6075, 4294901760
    %v6596 = vsub.f32 %v6075, %v6595
    %6597 = vmatmul.f32.gmra.mxu0 %v6596
    %v6598 = vpop.f32.mrf.mxu0
    %v6599 = vadd.f32 %v6556, %v6598
    %6600 = vdwg.mxu0
    %6601 = vmatpush.msra.mxu0 0.0
    %6602 = vmatpush.msra.mxu0 0.0
    %6603 = vmatpush.msra.mxu0 0.0
    %6604 = vmatpush.msra.mxu0 0.0
    %6605 = vmatpush.msra.mxu0 0.0
    %6606 = vmatpush.msra.mxu0 0.0
    %6607 = vmatpush.msra.mxu0 0.0
    %6608 = vmatpush.msra.mxu0 0.0
    %v6609 = vand.u32 %v6078, 4294901760
    %6610 = vmatpush.msra.mxu0 %v6609
    %v6611 = vand.u32 %v6068, 4294901760
    %6612 = vmatpush.msra.mxu0 %v6611
    %v6613 = vand.u32 %v6067, 4294901760
    %6614 = vmatpush.msra.mxu0 %v6613
    %v6615 = vand.u32 %v3140, 4294901760
    %6616 = vmatpush.msra.mxu0 %v6615
    %v6617 = vand.u32 %v3139, 4294901760
    %6618 = vmatpush.msra.mxu0 %v6617
    %v6619 = vand.u32 %v3138, 4294901760
    %6620 = vmatpush.msra.mxu0 %v6619
    %v6621 = vand.u32 %v3137, 4294901760
    %6622 = vmatpush.msra.mxu0 %v6621
    %v6623 = vand.u32 %v3136, 4294901760
    %6624 = vmatpush.msra.mxu0 %v6623
    %v6625 = vand.u32 %v6072, 4294901760
    %v6626 = vsub.f32 %v6072, %v6625
    %v6627 = vand.u32 %v6626, 4294901760
    %6628 = vmatmul.f32.gmra.mxu0 %v6627
    %v6629 = vpop.f32.mrf.mxu0
    %v6630 = vadd.f32 %v6594, %v6629
    %v6631 = vand.u32 %v6075, 4294901760
    %v6632 = vsub.f32 %v6075, %v6631
    %v6633 = vand.u32 %v6632, 4294901760
    %6634 = vmatmul.f32.gmra.mxu0 %v6633
    %v6635 = vpop.f32.mrf.mxu0
    %v6636 = vadd.f32 %v6599, %v6635
    %6637 = vdwg.mxu0
    %6638 = vmatpush.msra.mxu0 0.0
    %6639 = vmatpush.msra.mxu0 0.0
    %6640 = vmatpush.msra.mxu0 0.0
    %6641 = vmatpush.msra.mxu0 0.0
    %6642 = vmatpush.msra.mxu0 0.0
    %6643 = vmatpush.msra.mxu0 0.0
    %6644 = vmatpush.msra.mxu0 0.0
    %6645 = vmatpush.msra.mxu0 0.0
    %v6646 = vand.u32 %v6078, 4294901760
    %v6647 = vsub.f32 %v6078, %v6646
    %v6648 = vand.u32 %v6647, 4294901760
    %6649 = vmatpush.msra.mxu0 %v6648
    %v6650 = vand.u32 %v6068, 4294901760
    %v6651 = vsub.f32 %v6068, %v6650
    %v6652 = vand.u32 %v6651, 4294901760
    %6653 = vmatpush.msra.mxu0 %v6652
    %v6654 = vand.u32 %v6067, 4294901760
    %v6655 = vsub.f32 %v6067, %v6654
    %v6656 = vand.u32 %v6655, 4294901760
    %6657 = vmatpush.msra.mxu0 %v6656
    %v6658 = vand.u32 %v3140, 4294901760
    %v6659 = vsub.f32 %v3140, %v6658
    %v6660 = vand.u32 %v6659, 4294901760
    %6661 = vmatpush.msra.mxu0 %v6660
    %v6662 = vand.u32 %v3139, 4294901760
    %v6663 = vsub.f32 %v3139, %v6662
    %v6664 = vand.u32 %v6663, 4294901760
    %6665 = vmatpush.msra.mxu0 %v6664
    %v6666 = vand.u32 %v3138, 4294901760
    %v6667 = vsub.f32 %v3138, %v6666
    %v6668 = vand.u32 %v6667, 4294901760
    %6669 = vmatpush.msra.mxu0 %v6668
    %v6670 = vand.u32 %v3137, 4294901760
    %v6671 = vsub.f32 %v3137, %v6670
    %v6672 = vand.u32 %v6671, 4294901760
    %6673 = vmatpush.msra.mxu0 %v6672
    %v6674 = vand.u32 %v3136, 4294901760
    %v6675 = vsub.f32 %v3136, %v6674
    %v6676 = vand.u32 %v6675, 4294901760
    %6677 = vmatpush.msra.mxu0 %v6676
    %v6678 = vand.u32 %v6072, 4294901760
    %6679 = vmatmul.f32.gmra.mxu0 %v6678
    %v6680 = vpop.f32.mrf.mxu0
    %v6681 = vadd.f32 %v6630, %v6680
    %v6682 = vand.u32 %v6075, 4294901760
    %6683 = vmatmul.f32.gmra.mxu0 %v6682
    %v6684 = vpop.f32.mrf.mxu0
    %v6685 = vadd.f32 %v6636, %v6684
    %6686 = vdwg.mxu0
    %6687 = vmatpush.msra.mxu0 0.0
    %6688 = vmatpush.msra.mxu0 0.0
    %6689 = vmatpush.msra.mxu0 0.0
    %6690 = vmatpush.msra.mxu0 0.0
    %6691 = vmatpush.msra.mxu0 0.0
    %6692 = vmatpush.msra.mxu0 0.0
    %6693 = vmatpush.msra.mxu0 0.0
    %6694 = vmatpush.msra.mxu0 0.0
    %v6695 = vand.u32 %v6078, 4294901760
    %6696 = vmatpush.msra.mxu0 %v6695
    %v6697 = vand.u32 %v6068, 4294901760
    %6698 = vmatpush.msra.mxu0 %v6697
    %v6699 = vand.u32 %v6067, 4294901760
    %6700 = vmatpush.msra.mxu0 %v6699
    %v6701 = vand.u32 %v3140, 4294901760
    %6702 = vmatpush.msra.mxu0 %v6701
    %v6703 = vand.u32 %v3139, 4294901760
    %6704 = vmatpush.msra.mxu0 %v6703
    %v6705 = vand.u32 %v3138, 4294901760
    %6706 = vmatpush.msra.mxu0 %v6705
    %v6707 = vand.u32 %v3137, 4294901760
    %6708 = vmatpush.msra.mxu0 %v6707
    %v6709 = vand.u32 %v3136, 4294901760
    %6710 = vmatpush.msra.mxu0 %v6709
    %v6711 = vand.u32 %v6072, 4294901760
    %6712 = vmatmul.f32.gmra.mxu0 %v6711
    %v6713 = vpop.f32.mrf.mxu0
    %v6714 = vadd.f32 %v6681, %v6713
    %v6715 = vand.u32 %v6075, 4294901760
    %6716 = vmatmul.f32.gmra.mxu0 %v6715
    %v6717 = vpop.f32.mrf.mxu0
    %v6718 = vadd.f32 %v6685, %v6717
    %6719 = vdwg.mxu0
    %v6721 = vrot.slane %v6714, 1
    %6722 = vrot.lane.b32.xlu0 %v6721, 96
    %v6723 = vpop.permute.xlu0 %6722
    %v6725 = vrot.slane %v6714, 2
    %6726 = vrot.lane.b32.xlu0 %v6725, 64
    %v6727 = vpop.permute.xlu0 %6726
    %v6729 = vrot.slane %v6714, 3
    %6730 = vrot.lane.b32.xlu0 %v6729, 32
    %v6731 = vpop.permute.xlu0 %6730
    %v6733 = vrot.slane %v6714, 4
    %v6735 = vrot.slane %v6714, 5
    %6736 = vrot.lane.b32.xlu0 %v6735, 96
    %v6737 = vpop.permute.xlu0 %6736
    %v6739 = vsel %vm400, %v6714, %v6723
    %v6740 = vsel %vm392, %v6723, %v6727
    %v6741 = vsel %vm384, %v6727, %v6731
    %v6742 = vsel %vm400, %v6733, %v6737
    %v6744 = vrot.slane %v6718, 2
    %6745 = vrot.lane.b32.xlu0 %v6744, 64
    %v6746 = vpop.permute.xlu0 %6745
    %v6748 = vrot.slane %v6718, 3
    %6749 = vrot.lane.b32.xlu0 %v6748, 32
    %v6750 = vpop.permute.xlu0 %6749
    %v6752 = vrot.slane %v6718, 4
    %v6754 = vrot.slane %v6718, 5
    %6755 = vrot.lane.b32.xlu0 %v6754, 96
    %v6756 = vpop.permute.xlu0 %6755
    %v6758 = vsel %vm392, %v6723, %v6746
    %v6759 = vsel %vm384, %v6746, %v6750
    %v6760 = vsel %vm400, %v6752, %v6756
    %v6765 = vrot.slane %v6739, 5
    %v6766 = vrot.slane %v6758, 5
    %v6767 = vrot.slane %v6759, 5
    %v6768 = vrot.slane %v6760, 5
    %v6769 = vrot.slane %v6756, 5
    %v6775 = vsel %vm299, %v6739, %v6765
    %v6776 = vsel %vm299, %v6740, %v6766
    %v6777 = vsel %vm299, %v6741, %v6767
    %v6778 = vsel %vm299, %v6742, %v6768
    %v6779 = vsel %vm299, %v6737, %v6769
    %v6781 = vsel %vm392, %v6779, 0
    %v6783 = vand.u32 %v134, 4294901760
    %6784 = vmatpush.msra.mxu0 %v6783
    %v6785 = vand.u32 %v133, 4294901760
    %6786 = vmatpush.msra.mxu0 %v6785
    %v6787 = vand.u32 %v132, 4294901760
    %6788 = vmatpush.msra.mxu0 %v6787
    %v6789 = vand.u32 %v131, 4294901760
    %6790 = vmatpush.msra.mxu0 %v6789
    %v6791 = vand.u32 %v130, 4294901760
    %6792 = vmatpush.msra.mxu0 %v6791
    %v6793 = vand.u32 %v129, 4294901760
    %6794 = vmatpush.msra.mxu0 %v6793
    %v6795 = vand.u32 %v128, 4294901760
    %6796 = vmatpush.msra.mxu0 %v6795
    %v6797 = vand.u32 %v127, 4294901760
    %6798 = vmatpush.msra.mxu0 %v6797
    %v6799 = vand.u32 %v126, 4294901760
    %6800 = vmatpush.msra.mxu0 %v6799
    %v6801 = vand.u32 %v125, 4294901760
    %6802 = vmatpush.msra.mxu0 %v6801
    %v6803 = vand.u32 %v124, 4294901760
    %6804 = vmatpush.msra.mxu0 %v6803
    %v6805 = vand.u32 %v123, 4294901760
    %6806 = vmatpush.msra.mxu0 %v6805
    %v6807 = vand.u32 %v122, 4294901760
    %6808 = vmatpush.msra.mxu0 %v6807
    %v6809 = vand.u32 %v121, 4294901760
    %6810 = vmatpush.msra.mxu0 %v6809
    %v6811 = vand.u32 %v120, 4294901760
    %6812 = vmatpush.msra.mxu0 %v6811
    %v6813 = vand.u32 %v119, 4294901760
    %6814 = vmatpush.msra.mxu0 %v6813
    %v6815 = vand.u32 %v6775, 4294901760
    %v6816 = vsub.f32 %v6775, %v6815
    %v6817 = vand.u32 %v6816, 4294901760
    %v6818 = vsub.f32 %v6816, %v6817
    %v6819 = vand.u32 %v6818, 4294901760
    %6820 = vmatmul.f32.gmra.mxu0 %v6819
    %v6821 = vpop.f32.mrf.mxu0
    %v6822 = vadd.f32 %v220, %v6821
    %6823 = vdwg.mxu0
    %v6824 = vand.u32 %v134, 4294901760
    %v6825 = vsub.f32 %v134, %v6824
    %v6826 = vand.u32 %v6825, 4294901760
    %v6827 = vsub.f32 %v6825, %v6826
    %v6828 = vand.u32 %v6827, 4294901760
    %6829 = vmatpush.msra.mxu0 %v6828
    %v6830 = vand.u32 %v133, 4294901760
    %v6831 = vsub.f32 %v133, %v6830
    %v6832 = vand.u32 %v6831, 4294901760
    %v6833 = vsub.f32 %v6831, %v6832
    %v6834 = vand.u32 %v6833, 4294901760
    %6835 = vmatpush.msra.mxu0 %v6834
    %v6836 = vand.u32 %v132, 4294901760
    %v6837 = vsub.f32 %v132, %v6836
    %v6838 = vand.u32 %v6837, 4294901760
    %v6839 = vsub.f32 %v6837, %v6838
    %v6840 = vand.u32 %v6839, 4294901760
    %6841 = vmatpush.msra.mxu0 %v6840
    %v6842 = vand.u32 %v131, 4294901760
    %v6843 = vsub.f32 %v131, %v6842
    %v6844 = vand.u32 %v6843, 4294901760
    %v6845 = vsub.f32 %v6843, %v6844
    %v6846 = vand.u32 %v6845, 4294901760
    %6847 = vmatpush.msra.mxu0 %v6846
    %v6848 = vand.u32 %v130, 4294901760
    %v6849 = vsub.f32 %v130, %v6848
    %v6850 = vand.u32 %v6849, 4294901760
    %v6851 = vsub.f32 %v6849, %v6850
    %v6852 = vand.u32 %v6851, 4294901760
    %6853 = vmatpush.msra.mxu0 %v6852
    %v6854 = vand.u32 %v129, 4294901760
    %v6855 = vsub.f32 %v129, %v6854
    %v6856 = vand.u32 %v6855, 4294901760
    %v6857 = vsub.f32 %v6855, %v6856
    %v6858 = vand.u32 %v6857, 4294901760
    %6859 = vmatpush.msra.mxu0 %v6858
    %v6860 = vand.u32 %v128, 4294901760
    %v6861 = vsub.f32 %v128, %v6860
    %v6862 = vand.u32 %v6861, 4294901760
    %v6863 = vsub.f32 %v6861, %v6862
    %v6864 = vand.u32 %v6863, 4294901760
    %6865 = vmatpush.msra.mxu0 %v6864
    %v6866 = vand.u32 %v127, 4294901760
    %v6867 = vsub.f32 %v127, %v6866
    %v6868 = vand.u32 %v6867, 4294901760
    %v6869 = vsub.f32 %v6867, %v6868
    %v6870 = vand.u32 %v6869, 4294901760
    %6871 = vmatpush.msra.mxu0 %v6870
    %v6872 = vand.u32 %v126, 4294901760
    %v6873 = vsub.f32 %v126, %v6872
    %v6874 = vand.u32 %v6873, 4294901760
    %v6875 = vsub.f32 %v6873, %v6874
    %v6876 = vand.u32 %v6875, 4294901760
    %6877 = vmatpush.msra.mxu0 %v6876
    %v6878 = vand.u32 %v125, 4294901760
    %v6879 = vsub.f32 %v125, %v6878
    %v6880 = vand.u32 %v6879, 4294901760
    %v6881 = vsub.f32 %v6879, %v6880
    %v6882 = vand.u32 %v6881, 4294901760
    %6883 = vmatpush.msra.mxu0 %v6882
    %v6884 = vand.u32 %v124, 4294901760
    %v6885 = vsub.f32 %v124, %v6884
    %v6886 = vand.u32 %v6885, 4294901760
    %v6887 = vsub.f32 %v6885, %v6886
    %v6888 = vand.u32 %v6887, 4294901760
    %6889 = vmatpush.msra.mxu0 %v6888
    %v6890 = vand.u32 %v123, 4294901760
    %v6891 = vsub.f32 %v123, %v6890
    %v6892 = vand.u32 %v6891, 4294901760
    %v6893 = vsub.f32 %v6891, %v6892
    %v6894 = vand.u32 %v6893, 4294901760
    %6895 = vmatpush.msra.mxu0 %v6894
    %v6896 = vand.u32 %v122, 4294901760
    %v6897 = vsub.f32 %v122, %v6896
    %v6898 = vand.u32 %v6897, 4294901760
    %v6899 = vsub.f32 %v6897, %v6898
    %v6900 = vand.u32 %v6899, 4294901760
    %6901 = vmatpush.msra.mxu0 %v6900
    %v6902 = vand.u32 %v121, 4294901760
    %v6903 = vsub.f32 %v121, %v6902
    %v6904 = vand.u32 %v6903, 4294901760
    %v6905 = vsub.f32 %v6903, %v6904
    %v6906 = vand.u32 %v6905, 4294901760
    %6907 = vmatpush.msra.mxu0 %v6906
    %v6908 = vand.u32 %v120, 4294901760
    %v6909 = vsub.f32 %v120, %v6908
    %v6910 = vand.u32 %v6909, 4294901760
    %v6911 = vsub.f32 %v6909, %v6910
    %v6912 = vand.u32 %v6911, 4294901760
    %6913 = vmatpush.msra.mxu0 %v6912
    %v6914 = vand.u32 %v119, 4294901760
    %v6915 = vsub.f32 %v119, %v6914
    %v6916 = vand.u32 %v6915, 4294901760
    %v6917 = vsub.f32 %v6915, %v6916
    %v6918 = vand.u32 %v6917, 4294901760
    %6919 = vmatpush.msra.mxu0 %v6918
    %v6920 = vand.u32 %v6775, 4294901760
    %6921 = vmatmul.f32.gmra.mxu0 %v6920
    %v6922 = vpop.f32.mrf.mxu0
    %v6923 = vadd.f32 %v6822, %v6922
    %6924 = vdwg.mxu0
    %v6925 = vand.u32 %v134, 4294901760
    %v6926 = vsub.f32 %v134, %v6925
    %6927 = vmatpush.msra.mxu0 %v6926
    %v6928 = vand.u32 %v133, 4294901760
    %v6929 = vsub.f32 %v133, %v6928
    %6930 = vmatpush.msra.mxu0 %v6929
    %v6931 = vand.u32 %v132, 4294901760
    %v6932 = vsub.f32 %v132, %v6931
    %6933 = vmatpush.msra.mxu0 %v6932
    %v6934 = vand.u32 %v131, 4294901760
    %v6935 = vsub.f32 %v131, %v6934
    %6936 = vmatpush.msra.mxu0 %v6935
    %v6937 = vand.u32 %v130, 4294901760
    %v6938 = vsub.f32 %v130, %v6937
    %6939 = vmatpush.msra.mxu0 %v6938
    %v6940 = vand.u32 %v129, 4294901760
    %v6941 = vsub.f32 %v129, %v6940
    %6942 = vmatpush.msra.mxu0 %v6941
    %v6943 = vand.u32 %v128, 4294901760
    %v6944 = vsub.f32 %v128, %v6943
    %6945 = vmatpush.msra.mxu0 %v6944
    %v6946 = vand.u32 %v127, 4294901760
    %v6947 = vsub.f32 %v127, %v6946
    %6948 = vmatpush.msra.mxu0 %v6947
    %v6949 = vand.u32 %v126, 4294901760
    %v6950 = vsub.f32 %v126, %v6949
    %6951 = vmatpush.msra.mxu0 %v6950
    %v6952 = vand.u32 %v125, 4294901760
    %v6953 = vsub.f32 %v125, %v6952
    %6954 = vmatpush.msra.mxu0 %v6953
    %v6955 = vand.u32 %v124, 4294901760
    %v6956 = vsub.f32 %v124, %v6955
    %6957 = vmatpush.msra.mxu0 %v6956
    %v6958 = vand.u32 %v123, 4294901760
    %v6959 = vsub.f32 %v123, %v6958
    %6960 = vmatpush.msra.mxu0 %v6959
    %v6961 = vand.u32 %v122, 4294901760
    %v6962 = vsub.f32 %v122, %v6961
    %6963 = vmatpush.msra.mxu0 %v6962
    %v6964 = vand.u32 %v121, 4294901760
    %v6965 = vsub.f32 %v121, %v6964
    %6966 = vmatpush.msra.mxu0 %v6965
    %v6967 = vand.u32 %v120, 4294901760
    %v6968 = vsub.f32 %v120, %v6967
    %6969 = vmatpush.msra.mxu0 %v6968
    %v6970 = vand.u32 %v119, 4294901760
    %v6971 = vsub.f32 %v119, %v6970
    %6972 = vmatpush.msra.mxu0 %v6971
    %v6973 = vand.u32 %v6775, 4294901760
    %v6974 = vsub.f32 %v6775, %v6973
    %6975 = vmatmul.f32.gmra.mxu0 %v6974
    %v6976 = vpop.f32.mrf.mxu0
    %v6977 = vadd.f32 %v6923, %v6976
    %6978 = vdwg.mxu0
    %v6979 = vand.u32 %v134, 4294901760
    %6980 = vmatpush.msra.mxu0 %v6979
    %v6981 = vand.u32 %v133, 4294901760
    %6982 = vmatpush.msra.mxu0 %v6981
    %v6983 = vand.u32 %v132, 4294901760
    %6984 = vmatpush.msra.mxu0 %v6983
    %v6985 = vand.u32 %v131, 4294901760
    %6986 = vmatpush.msra.mxu0 %v6985
    %v6987 = vand.u32 %v130, 4294901760
    %6988 = vmatpush.msra.mxu0 %v6987
    %v6989 = vand.u32 %v129, 4294901760
    %6990 = vmatpush.msra.mxu0 %v6989
    %v6991 = vand.u32 %v128, 4294901760
    %6992 = vmatpush.msra.mxu0 %v6991
    %v6993 = vand.u32 %v127, 4294901760
    %6994 = vmatpush.msra.mxu0 %v6993
    %v6995 = vand.u32 %v126, 4294901760
    %6996 = vmatpush.msra.mxu0 %v6995
    %v6997 = vand.u32 %v125, 4294901760
    %6998 = vmatpush.msra.mxu0 %v6997
    %v6999 = vand.u32 %v124, 4294901760
    %7000 = vmatpush.msra.mxu0 %v6999
    %v7001 = vand.u32 %v123, 4294901760
    %7002 = vmatpush.msra.mxu0 %v7001
    %v7003 = vand.u32 %v122, 4294901760
    %7004 = vmatpush.msra.mxu0 %v7003
    %v7005 = vand.u32 %v121, 4294901760
    %7006 = vmatpush.msra.mxu0 %v7005
    %v7007 = vand.u32 %v120, 4294901760
    %7008 = vmatpush.msra.mxu0 %v7007
    %v7009 = vand.u32 %v119, 4294901760
    %7010 = vmatpush.msra.mxu0 %v7009
    %v7011 = vand.u32 %v6775, 4294901760
    %v7012 = vsub.f32 %v6775, %v7011
    %v7013 = vand.u32 %v7012, 4294901760
    %7014 = vmatmul.f32.gmra.mxu0 %v7013
    %v7015 = vpop.f32.mrf.mxu0
    %v7016 = vadd.f32 %v6977, %v7015
    %7017 = vdwg.mxu0
    %v7018 = vand.u32 %v134, 4294901760
    %v7019 = vsub.f32 %v134, %v7018
    %v7020 = vand.u32 %v7019, 4294901760
    %7021 = vmatpush.msra.mxu0 %v7020
    %v7022 = vand.u32 %v133, 4294901760
    %v7023 = vsub.f32 %v133, %v7022
    %v7024 = vand.u32 %v7023, 4294901760
    %7025 = vmatpush.msra.mxu0 %v7024
    %v7026 = vand.u32 %v132, 4294901760
    %v7027 = vsub.f32 %v132, %v7026
    %v7028 = vand.u32 %v7027, 4294901760
    %7029 = vmatpush.msra.mxu0 %v7028
    %v7030 = vand.u32 %v131, 4294901760
    %v7031 = vsub.f32 %v131, %v7030
    %v7032 = vand.u32 %v7031, 4294901760
    %7033 = vmatpush.msra.mxu0 %v7032
    %v7034 = vand.u32 %v130, 4294901760
    %v7035 = vsub.f32 %v130, %v7034
    %v7036 = vand.u32 %v7035, 4294901760
    %7037 = vmatpush.msra.mxu0 %v7036
    %v7038 = vand.u32 %v129, 4294901760
    %v7039 = vsub.f32 %v129, %v7038
    %v7040 = vand.u32 %v7039, 4294901760
    %7041 = vmatpush.msra.mxu0 %v7040
    %v7042 = vand.u32 %v128, 4294901760
    %v7043 = vsub.f32 %v128, %v7042
    %v7044 = vand.u32 %v7043, 4294901760
    %7045 = vmatpush.msra.mxu0 %v7044
    %v7046 = vand.u32 %v127, 4294901760
    %v7047 = vsub.f32 %v127, %v7046
    %v7048 = vand.u32 %v7047, 4294901760
    %7049 = vmatpush.msra.mxu0 %v7048
    %v7050 = vand.u32 %v126, 4294901760
    %v7051 = vsub.f32 %v126, %v7050
    %v7052 = vand.u32 %v7051, 4294901760
    %7053 = vmatpush.msra.mxu0 %v7052
    %v7054 = vand.u32 %v125, 4294901760
    %v7055 = vsub.f32 %v125, %v7054
    %v7056 = vand.u32 %v7055, 4294901760
    %7057 = vmatpush.msra.mxu0 %v7056
    %v7058 = vand.u32 %v124, 4294901760
    %v7059 = vsub.f32 %v124, %v7058
    %v7060 = vand.u32 %v7059, 4294901760
    %7061 = vmatpush.msra.mxu0 %v7060
    %v7062 = vand.u32 %v123, 4294901760
    %v7063 = vsub.f32 %v123, %v7062
    %v7064 = vand.u32 %v7063, 4294901760
    %7065 = vmatpush.msra.mxu0 %v7064
    %v7066 = vand.u32 %v122, 4294901760
    %v7067 = vsub.f32 %v122, %v7066
    %v7068 = vand.u32 %v7067, 4294901760
    %7069 = vmatpush.msra.mxu0 %v7068
    %v7070 = vand.u32 %v121, 4294901760
    %v7071 = vsub.f32 %v121, %v7070
    %v7072 = vand.u32 %v7071, 4294901760
    %7073 = vmatpush.msra.mxu0 %v7072
    %v7074 = vand.u32 %v120, 4294901760
    %v7075 = vsub.f32 %v120, %v7074
    %v7076 = vand.u32 %v7075, 4294901760
    %7077 = vmatpush.msra.mxu0 %v7076
    %v7078 = vand.u32 %v119, 4294901760
    %v7079 = vsub.f32 %v119, %v7078
    %v7080 = vand.u32 %v7079, 4294901760
    %7081 = vmatpush.msra.mxu0 %v7080
    %v7082 = vand.u32 %v6775, 4294901760
    %7083 = vmatmul.f32.gmra.mxu0 %v7082
    %v7084 = vpop.f32.mrf.mxu0
    %v7085 = vadd.f32 %v7016, %v7084
    %7086 = vdwg.mxu0
    %v7087 = vand.u32 %v134, 4294901760
    %7088 = vmatpush.msra.mxu0 %v7087
    %v7089 = vand.u32 %v133, 4294901760
    %7090 = vmatpush.msra.mxu0 %v7089
    %v7091 = vand.u32 %v132, 4294901760
    %7092 = vmatpush.msra.mxu0 %v7091
    %v7093 = vand.u32 %v131, 4294901760
    %7094 = vmatpush.msra.mxu0 %v7093
    %v7095 = vand.u32 %v130, 4294901760
    %7096 = vmatpush.msra.mxu0 %v7095
    %v7097 = vand.u32 %v129, 4294901760
    %7098 = vmatpush.msra.mxu0 %v7097
    %v7099 = vand.u32 %v128, 4294901760
    %7100 = vmatpush.msra.mxu0 %v7099
    %v7101 = vand.u32 %v127, 4294901760
    %7102 = vmatpush.msra.mxu0 %v7101
    %v7103 = vand.u32 %v126, 4294901760
    %7104 = vmatpush.msra.mxu0 %v7103
    %v7105 = vand.u32 %v125, 4294901760
    %7106 = vmatpush.msra.mxu0 %v7105
    %v7107 = vand.u32 %v124, 4294901760
    %7108 = vmatpush.msra.mxu0 %v7107
    %v7109 = vand.u32 %v123, 4294901760
    %7110 = vmatpush.msra.mxu0 %v7109
    %v7111 = vand.u32 %v122, 4294901760
    %7112 = vmatpush.msra.mxu0 %v7111
    %v7113 = vand.u32 %v121, 4294901760
    %7114 = vmatpush.msra.mxu0 %v7113
    %v7115 = vand.u32 %v120, 4294901760
    %7116 = vmatpush.msra.mxu0 %v7115
    %v7117 = vand.u32 %v119, 4294901760
    %7118 = vmatpush.msra.mxu0 %v7117
    %v7119 = vand.u32 %v6775, 4294901760
    %7120 = vmatmul.f32.gmra.mxu0 %v7119
    %v7121 = vpop.f32.mrf.mxu0
    %v7122 = vadd.f32 %v7085, %v7121
    %7123 = vdwg.mxu0
    %v7124 = vand.u32 %v150, 4294901760
    %7125 = vmatpush.msra.mxu0 %v7124
    %v7126 = vand.u32 %v149, 4294901760
    %7127 = vmatpush.msra.mxu0 %v7126
    %v7128 = vand.u32 %v148, 4294901760
    %7129 = vmatpush.msra.mxu0 %v7128
    %v7130 = vand.u32 %v147, 4294901760
    %7131 = vmatpush.msra.mxu0 %v7130
    %v7132 = vand.u32 %v146, 4294901760
    %7133 = vmatpush.msra.mxu0 %v7132
    %v7134 = vand.u32 %v145, 4294901760
    %7135 = vmatpush.msra.mxu0 %v7134
    %v7136 = vand.u32 %v144, 4294901760
    %7137 = vmatpush.msra.mxu0 %v7136
    %v7138 = vand.u32 %v143, 4294901760
    %7139 = vmatpush.msra.mxu0 %v7138
    %v7140 = vand.u32 %v142, 4294901760
    %7141 = vmatpush.msra.mxu0 %v7140
    %v7142 = vand.u32 %v141, 4294901760
    %7143 = vmatpush.msra.mxu0 %v7142
    %v7144 = vand.u32 %v140, 4294901760
    %7145 = vmatpush.msra.mxu0 %v7144
    %v7146 = vand.u32 %v139, 4294901760
    %7147 = vmatpush.msra.mxu0 %v7146
    %v7148 = vand.u32 %v138, 4294901760
    %7149 = vmatpush.msra.mxu0 %v7148
    %v7150 = vand.u32 %v137, 4294901760
    %7151 = vmatpush.msra.mxu0 %v7150
    %v7152 = vand.u32 %v136, 4294901760
    %7153 = vmatpush.msra.mxu0 %v7152
    %v7154 = vand.u32 %v135, 4294901760
    %7155 = vmatpush.msra.mxu0 %v7154
    %v7156 = vand.u32 %v6776, 4294901760
    %v7157 = vsub.f32 %v6776, %v7156
    %v7158 = vand.u32 %v7157, 4294901760
    %v7159 = vsub.f32 %v7157, %v7158
    %v7160 = vand.u32 %v7159, 4294901760
    %7161 = vmatmul.f32.gmra.mxu0 %v7160
    %v7162 = vpop.f32.mrf.mxu0
    %v7163 = vadd.f32 %v7122, %v7162
    %7164 = vdwg.mxu0
    %v7165 = vand.u32 %v150, 4294901760
    %v7166 = vsub.f32 %v150, %v7165
    %v7167 = vand.u32 %v7166, 4294901760
    %v7168 = vsub.f32 %v7166, %v7167
    %v7169 = vand.u32 %v7168, 4294901760
    %7170 = vmatpush.msra.mxu0 %v7169
    %v7171 = vand.u32 %v149, 4294901760
    %v7172 = vsub.f32 %v149, %v7171
    %v7173 = vand.u32 %v7172, 4294901760
    %v7174 = vsub.f32 %v7172, %v7173
    %v7175 = vand.u32 %v7174, 4294901760
    %7176 = vmatpush.msra.mxu0 %v7175
    %v7177 = vand.u32 %v148, 4294901760
    %v7178 = vsub.f32 %v148, %v7177
    %v7179 = vand.u32 %v7178, 4294901760
    %v7180 = vsub.f32 %v7178, %v7179
    %v7181 = vand.u32 %v7180, 4294901760
    %7182 = vmatpush.msra.mxu0 %v7181
    %v7183 = vand.u32 %v147, 4294901760
    %v7184 = vsub.f32 %v147, %v7183
    %v7185 = vand.u32 %v7184, 4294901760
    %v7186 = vsub.f32 %v7184, %v7185
    %v7187 = vand.u32 %v7186, 4294901760
    %7188 = vmatpush.msra.mxu0 %v7187
    %v7189 = vand.u32 %v146, 4294901760
    %v7190 = vsub.f32 %v146, %v7189
    %v7191 = vand.u32 %v7190, 4294901760
    %v7192 = vsub.f32 %v7190, %v7191
    %v7193 = vand.u32 %v7192, 4294901760
    %7194 = vmatpush.msra.mxu0 %v7193
    %v7195 = vand.u32 %v145, 4294901760
    %v7196 = vsub.f32 %v145, %v7195
    %v7197 = vand.u32 %v7196, 4294901760
    %v7198 = vsub.f32 %v7196, %v7197
    %v7199 = vand.u32 %v7198, 4294901760
    %7200 = vmatpush.msra.mxu0 %v7199
    %v7201 = vand.u32 %v144, 4294901760
    %v7202 = vsub.f32 %v144, %v7201
    %v7203 = vand.u32 %v7202, 4294901760
    %v7204 = vsub.f32 %v7202, %v7203
    %v7205 = vand.u32 %v7204, 4294901760
    %7206 = vmatpush.msra.mxu0 %v7205
    %v7207 = vand.u32 %v143, 4294901760
    %v7208 = vsub.f32 %v143, %v7207
    %v7209 = vand.u32 %v7208, 4294901760
    %v7210 = vsub.f32 %v7208, %v7209
    %v7211 = vand.u32 %v7210, 4294901760
    %7212 = vmatpush.msra.mxu0 %v7211
    %v7213 = vand.u32 %v142, 4294901760
    %v7214 = vsub.f32 %v142, %v7213
    %v7215 = vand.u32 %v7214, 4294901760
    %v7216 = vsub.f32 %v7214, %v7215
    %v7217 = vand.u32 %v7216, 4294901760
    %7218 = vmatpush.msra.mxu0 %v7217
    %v7219 = vand.u32 %v141, 4294901760
    %v7220 = vsub.f32 %v141, %v7219
    %v7221 = vand.u32 %v7220, 4294901760
    %v7222 = vsub.f32 %v7220, %v7221
    %v7223 = vand.u32 %v7222, 4294901760
    %7224 = vmatpush.msra.mxu0 %v7223
    %v7225 = vand.u32 %v140, 4294901760
    %v7226 = vsub.f32 %v140, %v7225
    %v7227 = vand.u32 %v7226, 4294901760
    %v7228 = vsub.f32 %v7226, %v7227
    %v7229 = vand.u32 %v7228, 4294901760
    %7230 = vmatpush.msra.mxu0 %v7229
    %v7231 = vand.u32 %v139, 4294901760
    %v7232 = vsub.f32 %v139, %v7231
    %v7233 = vand.u32 %v7232, 4294901760
    %v7234 = vsub.f32 %v7232, %v7233
    %v7235 = vand.u32 %v7234, 4294901760
    %7236 = vmatpush.msra.mxu0 %v7235
    %v7237 = vand.u32 %v138, 4294901760
    %v7238 = vsub.f32 %v138, %v7237
    %v7239 = vand.u32 %v7238, 4294901760
    %v7240 = vsub.f32 %v7238, %v7239
    %v7241 = vand.u32 %v7240, 4294901760
    %7242 = vmatpush.msra.mxu0 %v7241
    %v7243 = vand.u32 %v137, 4294901760
    %v7244 = vsub.f32 %v137, %v7243
    %v7245 = vand.u32 %v7244, 4294901760
    %v7246 = vsub.f32 %v7244, %v7245
    %v7247 = vand.u32 %v7246, 4294901760
    %7248 = vmatpush.msra.mxu0 %v7247
    %v7249 = vand.u32 %v136, 4294901760
    %v7250 = vsub.f32 %v136, %v7249
    %v7251 = vand.u32 %v7250, 4294901760
    %v7252 = vsub.f32 %v7250, %v7251
    %v7253 = vand.u32 %v7252, 4294901760
    %7254 = vmatpush.msra.mxu0 %v7253
    %v7255 = vand.u32 %v135, 4294901760
    %v7256 = vsub.f32 %v135, %v7255
    %v7257 = vand.u32 %v7256, 4294901760
    %v7258 = vsub.f32 %v7256, %v7257
    %v7259 = vand.u32 %v7258, 4294901760
    %7260 = vmatpush.msra.mxu0 %v7259
    %v7261 = vand.u32 %v6776, 4294901760
    %7262 = vmatmul.f32.gmra.mxu0 %v7261
    %v7263 = vpop.f32.mrf.mxu0
    %v7264 = vadd.f32 %v7163, %v7263
    %7265 = vdwg.mxu0
    %v7266 = vand.u32 %v150, 4294901760
    %v7267 = vsub.f32 %v150, %v7266
    %7268 = vmatpush.msra.mxu0 %v7267
    %v7269 = vand.u32 %v149, 4294901760
    %v7270 = vsub.f32 %v149, %v7269
    %7271 = vmatpush.msra.mxu0 %v7270
    %v7272 = vand.u32 %v148, 4294901760
    %v7273 = vsub.f32 %v148, %v7272
    %7274 = vmatpush.msra.mxu0 %v7273
    %v7275 = vand.u32 %v147, 4294901760
    %v7276 = vsub.f32 %v147, %v7275
    %7277 = vmatpush.msra.mxu0 %v7276
    %v7278 = vand.u32 %v146, 4294901760
    %v7279 = vsub.f32 %v146, %v7278
    %7280 = vmatpush.msra.mxu0 %v7279
    %v7281 = vand.u32 %v145, 4294901760
    %v7282 = vsub.f32 %v145, %v7281
    %7283 = vmatpush.msra.mxu0 %v7282
    %v7284 = vand.u32 %v144, 4294901760
    %v7285 = vsub.f32 %v144, %v7284
    %7286 = vmatpush.msra.mxu0 %v7285
    %v7287 = vand.u32 %v143, 4294901760
    %v7288 = vsub.f32 %v143, %v7287
    %7289 = vmatpush.msra.mxu0 %v7288
    %v7290 = vand.u32 %v142, 4294901760
    %v7291 = vsub.f32 %v142, %v7290
    %7292 = vmatpush.msra.mxu0 %v7291
    %v7293 = vand.u32 %v141, 4294901760
    %v7294 = vsub.f32 %v141, %v7293
    %7295 = vmatpush.msra.mxu0 %v7294
    %v7296 = vand.u32 %v140, 4294901760
    %v7297 = vsub.f32 %v140, %v7296
    %7298 = vmatpush.msra.mxu0 %v7297
    %v7299 = vand.u32 %v139, 4294901760
    %v7300 = vsub.f32 %v139, %v7299
    %7301 = vmatpush.msra.mxu0 %v7300
    %v7302 = vand.u32 %v138, 4294901760
    %v7303 = vsub.f32 %v138, %v7302
    %7304 = vmatpush.msra.mxu0 %v7303
    %v7305 = vand.u32 %v137, 4294901760
    %v7306 = vsub.f32 %v137, %v7305
    %7307 = vmatpush.msra.mxu0 %v7306
    %v7308 = vand.u32 %v136, 4294901760
    %v7309 = vsub.f32 %v136, %v7308
    %7310 = vmatpush.msra.mxu0 %v7309
    %v7311 = vand.u32 %v135, 4294901760
    %v7312 = vsub.f32 %v135, %v7311
    %7313 = vmatpush.msra.mxu0 %v7312
    %v7314 = vand.u32 %v6776, 4294901760
    %v7315 = vsub.f32 %v6776, %v7314
    %7316 = vmatmul.f32.gmra.mxu0 %v7315
    %v7317 = vpop.f32.mrf.mxu0
    %v7318 = vadd.f32 %v7264, %v7317
    %7319 = vdwg.mxu0
    %v7320 = vand.u32 %v150, 4294901760
    %7321 = vmatpush.msra.mxu0 %v7320
    %v7322 = vand.u32 %v149, 4294901760
    %7323 = vmatpush.msra.mxu0 %v7322
    %v7324 = vand.u32 %v148, 4294901760
    %7325 = vmatpush.msra.mxu0 %v7324
    %v7326 = vand.u32 %v147, 4294901760
    %7327 = vmatpush.msra.mxu0 %v7326
    %v7328 = vand.u32 %v146, 4294901760
    %7329 = vmatpush.msra.mxu0 %v7328
    %v7330 = vand.u32 %v145, 4294901760
    %7331 = vmatpush.msra.mxu0 %v7330
    %v7332 = vand.u32 %v144, 4294901760
    %7333 = vmatpush.msra.mxu0 %v7332
    %v7334 = vand.u32 %v143, 4294901760
    %7335 = vmatpush.msra.mxu0 %v7334
    %v7336 = vand.u32 %v142, 4294901760
    %7337 = vmatpush.msra.mxu0 %v7336
    %v7338 = vand.u32 %v141, 4294901760
    %7339 = vmatpush.msra.mxu0 %v7338
    %v7340 = vand.u32 %v140, 4294901760
    %7341 = vmatpush.msra.mxu0 %v7340
    %v7342 = vand.u32 %v139, 4294901760
    %7343 = vmatpush.msra.mxu0 %v7342
    %v7344 = vand.u32 %v138, 4294901760
    %7345 = vmatpush.msra.mxu0 %v7344
    %v7346 = vand.u32 %v137, 4294901760
    %7347 = vmatpush.msra.mxu0 %v7346
    %v7348 = vand.u32 %v136, 4294901760
    %7349 = vmatpush.msra.mxu0 %v7348
    %v7350 = vand.u32 %v135, 4294901760
    %7351 = vmatpush.msra.mxu0 %v7350
    %v7352 = vand.u32 %v6776, 4294901760
    %v7353 = vsub.f32 %v6776, %v7352
    %v7354 = vand.u32 %v7353, 4294901760
    %7355 = vmatmul.f32.gmra.mxu0 %v7354
    %v7356 = vpop.f32.mrf.mxu0
    %v7357 = vadd.f32 %v7318, %v7356
    %7358 = vdwg.mxu0
    %v7359 = vand.u32 %v150, 4294901760
    %v7360 = vsub.f32 %v150, %v7359
    %v7361 = vand.u32 %v7360, 4294901760
    %7362 = vmatpush.msra.mxu0 %v7361
    %v7363 = vand.u32 %v149, 4294901760
    %v7364 = vsub.f32 %v149, %v7363
    %v7365 = vand.u32 %v7364, 4294901760
    %7366 = vmatpush.msra.mxu0 %v7365
    %v7367 = vand.u32 %v148, 4294901760
    %v7368 = vsub.f32 %v148, %v7367
    %v7369 = vand.u32 %v7368, 4294901760
    %7370 = vmatpush.msra.mxu0 %v7369
    %v7371 = vand.u32 %v147, 4294901760
    %v7372 = vsub.f32 %v147, %v7371
    %v7373 = vand.u32 %v7372, 4294901760
    %7374 = vmatpush.msra.mxu0 %v7373
    %v7375 = vand.u32 %v146, 4294901760
    %v7376 = vsub.f32 %v146, %v7375
    %v7377 = vand.u32 %v7376, 4294901760
    %7378 = vmatpush.msra.mxu0 %v7377
    %v7379 = vand.u32 %v145, 4294901760
    %v7380 = vsub.f32 %v145, %v7379
    %v7381 = vand.u32 %v7380, 4294901760
    %7382 = vmatpush.msra.mxu0 %v7381
    %v7383 = vand.u32 %v144, 4294901760
    %v7384 = vsub.f32 %v144, %v7383
    %v7385 = vand.u32 %v7384, 4294901760
    %7386 = vmatpush.msra.mxu0 %v7385
    %v7387 = vand.u32 %v143, 4294901760
    %v7388 = vsub.f32 %v143, %v7387
    %v7389 = vand.u32 %v7388, 4294901760
    %7390 = vmatpush.msra.mxu0 %v7389
    %v7391 = vand.u32 %v142, 4294901760
    %v7392 = vsub.f32 %v142, %v7391
    %v7393 = vand.u32 %v7392, 4294901760
    %7394 = vmatpush.msra.mxu0 %v7393
    %v7395 = vand.u32 %v141, 4294901760
    %v7396 = vsub.f32 %v141, %v7395
    %v7397 = vand.u32 %v7396, 4294901760
    %7398 = vmatpush.msra.mxu0 %v7397
    %v7399 = vand.u32 %v140, 4294901760
    %v7400 = vsub.f32 %v140, %v7399
    %v7401 = vand.u32 %v7400, 4294901760
    %7402 = vmatpush.msra.mxu0 %v7401
    %v7403 = vand.u32 %v139, 4294901760
    %v7404 = vsub.f32 %v139, %v7403
    %v7405 = vand.u32 %v7404, 4294901760
    %7406 = vmatpush.msra.mxu0 %v7405
    %v7407 = vand.u32 %v138, 4294901760
    %v7408 = vsub.f32 %v138, %v7407
    %v7409 = vand.u32 %v7408, 4294901760
    %7410 = vmatpush.msra.mxu0 %v7409
    %v7411 = vand.u32 %v137, 4294901760
    %v7412 = vsub.f32 %v137, %v7411
    %v7413 = vand.u32 %v7412, 4294901760
    %7414 = vmatpush.msra.mxu0 %v7413
    %v7415 = vand.u32 %v136, 4294901760
    %v7416 = vsub.f32 %v136, %v7415
    %v7417 = vand.u32 %v7416, 4294901760
    %7418 = vmatpush.msra.mxu0 %v7417
    %v7419 = vand.u32 %v135, 4294901760
    %v7420 = vsub.f32 %v135, %v7419
    %v7421 = vand.u32 %v7420, 4294901760
    %7422 = vmatpush.msra.mxu0 %v7421
    %v7423 = vand.u32 %v6776, 4294901760
    %7424 = vmatmul.f32.gmra.mxu0 %v7423
    %v7425 = vpop.f32.mrf.mxu0
    %v7426 = vadd.f32 %v7357, %v7425
    %7427 = vdwg.mxu0
    %v7428 = vand.u32 %v150, 4294901760
    %7429 = vmatpush.msra.mxu0 %v7428
    %v7430 = vand.u32 %v149, 4294901760
    %7431 = vmatpush.msra.mxu0 %v7430
    %v7432 = vand.u32 %v148, 4294901760
    %7433 = vmatpush.msra.mxu0 %v7432
    %v7434 = vand.u32 %v147, 4294901760
    %7435 = vmatpush.msra.mxu0 %v7434
    %v7436 = vand.u32 %v146, 4294901760
    %7437 = vmatpush.msra.mxu0 %v7436
    %v7438 = vand.u32 %v145, 4294901760
    %7439 = vmatpush.msra.mxu0 %v7438
    %v7440 = vand.u32 %v144, 4294901760
    %7441 = vmatpush.msra.mxu0 %v7440
    %v7442 = vand.u32 %v143, 4294901760
    %7443 = vmatpush.msra.mxu0 %v7442
    %v7444 = vand.u32 %v142, 4294901760
    %7445 = vmatpush.msra.mxu0 %v7444
    %v7446 = vand.u32 %v141, 4294901760
    %7447 = vmatpush.msra.mxu0 %v7446
    %v7448 = vand.u32 %v140, 4294901760
    %7449 = vmatpush.msra.mxu0 %v7448
    %v7450 = vand.u32 %v139, 4294901760
    %7451 = vmatpush.msra.mxu0 %v7450
    %v7452 = vand.u32 %v138, 4294901760
    %7453 = vmatpush.msra.mxu0 %v7452
    %v7454 = vand.u32 %v137, 4294901760
    %7455 = vmatpush.msra.mxu0 %v7454
    %v7456 = vand.u32 %v136, 4294901760
    %7457 = vmatpush.msra.mxu0 %v7456
    %v7458 = vand.u32 %v135, 4294901760
    %7459 = vmatpush.msra.mxu0 %v7458
    %v7460 = vand.u32 %v6776, 4294901760
    %7461 = vmatmul.f32.gmra.mxu0 %v7460
    %v7462 = vpop.f32.mrf.mxu0
    %v7463 = vadd.f32 %v7426, %v7462
    %7464 = vdwg.mxu0
    %v7465 = vand.u32 %v166, 4294901760
    %7466 = vmatpush.msra.mxu0 %v7465
    %v7467 = vand.u32 %v165, 4294901760
    %7468 = vmatpush.msra.mxu0 %v7467
    %v7469 = vand.u32 %v164, 4294901760
    %7470 = vmatpush.msra.mxu0 %v7469
    %v7471 = vand.u32 %v163, 4294901760
    %7472 = vmatpush.msra.mxu0 %v7471
    %v7473 = vand.u32 %v162, 4294901760
    %7474 = vmatpush.msra.mxu0 %v7473
    %v7475 = vand.u32 %v161, 4294901760
    %7476 = vmatpush.msra.mxu0 %v7475
    %v7477 = vand.u32 %v160, 4294901760
    %7478 = vmatpush.msra.mxu0 %v7477
    %v7479 = vand.u32 %v159, 4294901760
    %7480 = vmatpush.msra.mxu0 %v7479
    %v7481 = vand.u32 %v158, 4294901760
    %7482 = vmatpush.msra.mxu0 %v7481
    %v7483 = vand.u32 %v157, 4294901760
    %7484 = vmatpush.msra.mxu0 %v7483
    %v7485 = vand.u32 %v156, 4294901760
    %7486 = vmatpush.msra.mxu0 %v7485
    %v7487 = vand.u32 %v155, 4294901760
    %7488 = vmatpush.msra.mxu0 %v7487
    %v7489 = vand.u32 %v154, 4294901760
    %7490 = vmatpush.msra.mxu0 %v7489
    %v7491 = vand.u32 %v153, 4294901760
    %7492 = vmatpush.msra.mxu0 %v7491
    %v7493 = vand.u32 %v152, 4294901760
    %7494 = vmatpush.msra.mxu0 %v7493
    %v7495 = vand.u32 %v151, 4294901760
    %7496 = vmatpush.msra.mxu0 %v7495
    %v7497 = vand.u32 %v6777, 4294901760
    %v7498 = vsub.f32 %v6777, %v7497
    %v7499 = vand.u32 %v7498, 4294901760
    %v7500 = vsub.f32 %v7498, %v7499
    %v7501 = vand.u32 %v7500, 4294901760
    %7502 = vmatmul.f32.gmra.mxu0 %v7501
    %v7503 = vpop.f32.mrf.mxu0
    %v7504 = vadd.f32 %v7463, %v7503
    %7505 = vdwg.mxu0
    %v7506 = vand.u32 %v166, 4294901760
    %v7507 = vsub.f32 %v166, %v7506
    %v7508 = vand.u32 %v7507, 4294901760
    %v7509 = vsub.f32 %v7507, %v7508
    %v7510 = vand.u32 %v7509, 4294901760
    %7511 = vmatpush.msra.mxu0 %v7510
    %v7512 = vand.u32 %v165, 4294901760
    %v7513 = vsub.f32 %v165, %v7512
    %v7514 = vand.u32 %v7513, 4294901760
    %v7515 = vsub.f32 %v7513, %v7514
    %v7516 = vand.u32 %v7515, 4294901760
    %7517 = vmatpush.msra.mxu0 %v7516
    %v7518 = vand.u32 %v164, 4294901760
    %v7519 = vsub.f32 %v164, %v7518
    %v7520 = vand.u32 %v7519, 4294901760
    %v7521 = vsub.f32 %v7519, %v7520
    %v7522 = vand.u32 %v7521, 4294901760
    %7523 = vmatpush.msra.mxu0 %v7522
    %v7524 = vand.u32 %v163, 4294901760
    %v7525 = vsub.f32 %v163, %v7524
    %v7526 = vand.u32 %v7525, 4294901760
    %v7527 = vsub.f32 %v7525, %v7526
    %v7528 = vand.u32 %v7527, 4294901760
    %7529 = vmatpush.msra.mxu0 %v7528
    %v7530 = vand.u32 %v162, 4294901760
    %v7531 = vsub.f32 %v162, %v7530
    %v7532 = vand.u32 %v7531, 4294901760
    %v7533 = vsub.f32 %v7531, %v7532
    %v7534 = vand.u32 %v7533, 4294901760
    %7535 = vmatpush.msra.mxu0 %v7534
    %v7536 = vand.u32 %v161, 4294901760
    %v7537 = vsub.f32 %v161, %v7536
    %v7538 = vand.u32 %v7537, 4294901760
    %v7539 = vsub.f32 %v7537, %v7538
    %v7540 = vand.u32 %v7539, 4294901760
    %7541 = vmatpush.msra.mxu0 %v7540
    %v7542 = vand.u32 %v160, 4294901760
    %v7543 = vsub.f32 %v160, %v7542
    %v7544 = vand.u32 %v7543, 4294901760
    %v7545 = vsub.f32 %v7543, %v7544
    %v7546 = vand.u32 %v7545, 4294901760
    %7547 = vmatpush.msra.mxu0 %v7546
    %v7548 = vand.u32 %v159, 4294901760
    %v7549 = vsub.f32 %v159, %v7548
    %v7550 = vand.u32 %v7549, 4294901760
    %v7551 = vsub.f32 %v7549, %v7550
    %v7552 = vand.u32 %v7551, 4294901760
    %7553 = vmatpush.msra.mxu0 %v7552
    %v7554 = vand.u32 %v158, 4294901760
    %v7555 = vsub.f32 %v158, %v7554
    %v7556 = vand.u32 %v7555, 4294901760
    %v7557 = vsub.f32 %v7555, %v7556
    %v7558 = vand.u32 %v7557, 4294901760
    %7559 = vmatpush.msra.mxu0 %v7558
    %v7560 = vand.u32 %v157, 4294901760
    %v7561 = vsub.f32 %v157, %v7560
    %v7562 = vand.u32 %v7561, 4294901760
    %v7563 = vsub.f32 %v7561, %v7562
    %v7564 = vand.u32 %v7563, 4294901760
    %7565 = vmatpush.msra.mxu0 %v7564
    %v7566 = vand.u32 %v156, 4294901760
    %v7567 = vsub.f32 %v156, %v7566
    %v7568 = vand.u32 %v7567, 4294901760
    %v7569 = vsub.f32 %v7567, %v7568
    %v7570 = vand.u32 %v7569, 4294901760
    %7571 = vmatpush.msra.mxu0 %v7570
    %v7572 = vand.u32 %v155, 4294901760
    %v7573 = vsub.f32 %v155, %v7572
    %v7574 = vand.u32 %v7573, 4294901760
    %v7575 = vsub.f32 %v7573, %v7574
    %v7576 = vand.u32 %v7575, 4294901760
    %7577 = vmatpush.msra.mxu0 %v7576
    %v7578 = vand.u32 %v154, 4294901760
    %v7579 = vsub.f32 %v154, %v7578
    %v7580 = vand.u32 %v7579, 4294901760
    %v7581 = vsub.f32 %v7579, %v7580
    %v7582 = vand.u32 %v7581, 4294901760
    %7583 = vmatpush.msra.mxu0 %v7582
    %v7584 = vand.u32 %v153, 4294901760
    %v7585 = vsub.f32 %v153, %v7584
    %v7586 = vand.u32 %v7585, 4294901760
    %v7587 = vsub.f32 %v7585, %v7586
    %v7588 = vand.u32 %v7587, 4294901760
    %7589 = vmatpush.msra.mxu0 %v7588
    %v7590 = vand.u32 %v152, 4294901760
    %v7591 = vsub.f32 %v152, %v7590
    %v7592 = vand.u32 %v7591, 4294901760
    %v7593 = vsub.f32 %v7591, %v7592
    %v7594 = vand.u32 %v7593, 4294901760
    %7595 = vmatpush.msra.mxu0 %v7594
    %v7596 = vand.u32 %v151, 4294901760
    %v7597 = vsub.f32 %v151, %v7596
    %v7598 = vand.u32 %v7597, 4294901760
    %v7599 = vsub.f32 %v7597, %v7598
    %v7600 = vand.u32 %v7599, 4294901760
    %7601 = vmatpush.msra.mxu0 %v7600
    %v7602 = vand.u32 %v6777, 4294901760
    %7603 = vmatmul.f32.gmra.mxu0 %v7602
    %v7604 = vpop.f32.mrf.mxu0
    %v7605 = vadd.f32 %v7504, %v7604
    %7606 = vdwg.mxu0
    %v7607 = vand.u32 %v166, 4294901760
    %v7608 = vsub.f32 %v166, %v7607
    %7609 = vmatpush.msra.mxu0 %v7608
    %v7610 = vand.u32 %v165, 4294901760
    %v7611 = vsub.f32 %v165, %v7610
    %7612 = vmatpush.msra.mxu0 %v7611
    %v7613 = vand.u32 %v164, 4294901760
    %v7614 = vsub.f32 %v164, %v7613
    %7615 = vmatpush.msra.mxu0 %v7614
    %v7616 = vand.u32 %v163, 4294901760
    %v7617 = vsub.f32 %v163, %v7616
    %7618 = vmatpush.msra.mxu0 %v7617
    %v7619 = vand.u32 %v162, 4294901760
    %v7620 = vsub.f32 %v162, %v7619
    %7621 = vmatpush.msra.mxu0 %v7620
    %v7622 = vand.u32 %v161, 4294901760
    %v7623 = vsub.f32 %v161, %v7622
    %7624 = vmatpush.msra.mxu0 %v7623
    %v7625 = vand.u32 %v160, 4294901760
    %v7626 = vsub.f32 %v160, %v7625
    %7627 = vmatpush.msra.mxu0 %v7626
    %v7628 = vand.u32 %v159, 4294901760
    %v7629 = vsub.f32 %v159, %v7628
    %7630 = vmatpush.msra.mxu0 %v7629
    %v7631 = vand.u32 %v158, 4294901760
    %v7632 = vsub.f32 %v158, %v7631
    %7633 = vmatpush.msra.mxu0 %v7632
    %v7634 = vand.u32 %v157, 4294901760
    %v7635 = vsub.f32 %v157, %v7634
    %7636 = vmatpush.msra.mxu0 %v7635
    %v7637 = vand.u32 %v156, 4294901760
    %v7638 = vsub.f32 %v156, %v7637
    %7639 = vmatpush.msra.mxu0 %v7638
    %v7640 = vand.u32 %v155, 4294901760
    %v7641 = vsub.f32 %v155, %v7640
    %7642 = vmatpush.msra.mxu0 %v7641
    %v7643 = vand.u32 %v154, 4294901760
    %v7644 = vsub.f32 %v154, %v7643
    %7645 = vmatpush.msra.mxu0 %v7644
    %v7646 = vand.u32 %v153, 4294901760
    %v7647 = vsub.f32 %v153, %v7646
    %7648 = vmatpush.msra.mxu0 %v7647
    %v7649 = vand.u32 %v152, 4294901760
    %v7650 = vsub.f32 %v152, %v7649
    %7651 = vmatpush.msra.mxu0 %v7650
    %v7652 = vand.u32 %v151, 4294901760
    %v7653 = vsub.f32 %v151, %v7652
    %7654 = vmatpush.msra.mxu0 %v7653
    %v7655 = vand.u32 %v6777, 4294901760
    %v7656 = vsub.f32 %v6777, %v7655
    %7657 = vmatmul.f32.gmra.mxu0 %v7656
    %v7658 = vpop.f32.mrf.mxu0
    %v7659 = vadd.f32 %v7605, %v7658
    %7660 = vdwg.mxu0
    %v7661 = vand.u32 %v166, 4294901760
    %7662 = vmatpush.msra.mxu0 %v7661
    %v7663 = vand.u32 %v165, 4294901760
    %7664 = vmatpush.msra.mxu0 %v7663
    %v7665 = vand.u32 %v164, 4294901760
    %7666 = vmatpush.msra.mxu0 %v7665
    %v7667 = vand.u32 %v163, 4294901760
    %7668 = vmatpush.msra.mxu0 %v7667
    %v7669 = vand.u32 %v162, 4294901760
    %7670 = vmatpush.msra.mxu0 %v7669
    %v7671 = vand.u32 %v161, 4294901760
    %7672 = vmatpush.msra.mxu0 %v7671
    %v7673 = vand.u32 %v160, 4294901760
    %7674 = vmatpush.msra.mxu0 %v7673
    %v7675 = vand.u32 %v159, 4294901760
    %7676 = vmatpush.msra.mxu0 %v7675
    %v7677 = vand.u32 %v158, 4294901760
    %7678 = vmatpush.msra.mxu0 %v7677
    %v7679 = vand.u32 %v157, 4294901760
    %7680 = vmatpush.msra.mxu0 %v7679
    %v7681 = vand.u32 %v156, 4294901760
    %7682 = vmatpush.msra.mxu0 %v7681
    %v7683 = vand.u32 %v155, 4294901760
    %7684 = vmatpush.msra.mxu0 %v7683
    %v7685 = vand.u32 %v154, 4294901760
    %7686 = vmatpush.msra.mxu0 %v7685
    %v7687 = vand.u32 %v153, 4294901760
    %7688 = vmatpush.msra.mxu0 %v7687
    %v7689 = vand.u32 %v152, 4294901760
    %7690 = vmatpush.msra.mxu0 %v7689
    %v7691 = vand.u32 %v151, 4294901760
    %7692 = vmatpush.msra.mxu0 %v7691
    %v7693 = vand.u32 %v6777, 4294901760
    %v7694 = vsub.f32 %v6777, %v7693
    %v7695 = vand.u32 %v7694, 4294901760
    %7696 = vmatmul.f32.gmra.mxu0 %v7695
    %v7697 = vpop.f32.mrf.mxu0
    %v7698 = vadd.f32 %v7659, %v7697
    %7699 = vdwg.mxu0
    %v7700 = vand.u32 %v166, 4294901760
    %v7701 = vsub.f32 %v166, %v7700
    %v7702 = vand.u32 %v7701, 4294901760
    %7703 = vmatpush.msra.mxu0 %v7702
    %v7704 = vand.u32 %v165, 4294901760
    %v7705 = vsub.f32 %v165, %v7704
    %v7706 = vand.u32 %v7705, 4294901760
    %7707 = vmatpush.msra.mxu0 %v7706
    %v7708 = vand.u32 %v164, 4294901760
    %v7709 = vsub.f32 %v164, %v7708
    %v7710 = vand.u32 %v7709, 4294901760
    %7711 = vmatpush.msra.mxu0 %v7710
    %v7712 = vand.u32 %v163, 4294901760
    %v7713 = vsub.f32 %v163, %v7712
    %v7714 = vand.u32 %v7713, 4294901760
    %7715 = vmatpush.msra.mxu0 %v7714
    %v7716 = vand.u32 %v162, 4294901760
    %v7717 = vsub.f32 %v162, %v7716
    %v7718 = vand.u32 %v7717, 4294901760
    %7719 = vmatpush.msra.mxu0 %v7718
    %v7720 = vand.u32 %v161, 4294901760
    %v7721 = vsub.f32 %v161, %v7720
    %v7722 = vand.u32 %v7721, 4294901760
    %7723 = vmatpush.msra.mxu0 %v7722
    %v7724 = vand.u32 %v160, 4294901760
    %v7725 = vsub.f32 %v160, %v7724
    %v7726 = vand.u32 %v7725, 4294901760
    %7727 = vmatpush.msra.mxu0 %v7726
    %v7728 = vand.u32 %v159, 4294901760
    %v7729 = vsub.f32 %v159, %v7728
    %v7730 = vand.u32 %v7729, 4294901760
    %7731 = vmatpush.msra.mxu0 %v7730
    %v7732 = vand.u32 %v158, 4294901760
    %v7733 = vsub.f32 %v158, %v7732
    %v7734 = vand.u32 %v7733, 4294901760
    %7735 = vmatpush.msra.mxu0 %v7734
    %v7736 = vand.u32 %v157, 4294901760
    %v7737 = vsub.f32 %v157, %v7736
    %v7738 = vand.u32 %v7737, 4294901760
    %7739 = vmatpush.msra.mxu0 %v7738
    %v7740 = vand.u32 %v156, 4294901760
    %v7741 = vsub.f32 %v156, %v7740
    %v7742 = vand.u32 %v7741, 4294901760
    %7743 = vmatpush.msra.mxu0 %v7742
    %v7744 = vand.u32 %v155, 4294901760
    %v7745 = vsub.f32 %v155, %v7744
    %v7746 = vand.u32 %v7745, 4294901760
    %7747 = vmatpush.msra.mxu0 %v7746
    %v7748 = vand.u32 %v154, 4294901760
    %v7749 = vsub.f32 %v154, %v7748
    %v7750 = vand.u32 %v7749, 4294901760
    %7751 = vmatpush.msra.mxu0 %v7750
    %v7752 = vand.u32 %v153, 4294901760
    %v7753 = vsub.f32 %v153, %v7752
    %v7754 = vand.u32 %v7753, 4294901760
    %7755 = vmatpush.msra.mxu0 %v7754
    %v7756 = vand.u32 %v152, 4294901760
    %v7757 = vsub.f32 %v152, %v7756
    %v7758 = vand.u32 %v7757, 4294901760
    %7759 = vmatpush.msra.mxu0 %v7758
    %v7760 = vand.u32 %v151, 4294901760
    %v7761 = vsub.f32 %v151, %v7760
    %v7762 = vand.u32 %v7761, 4294901760
    %7763 = vmatpush.msra.mxu0 %v7762
    %v7764 = vand.u32 %v6777, 4294901760
    %7765 = vmatmul.f32.gmra.mxu0 %v7764
    %v7766 = vpop.f32.mrf.mxu0
    %v7767 = vadd.f32 %v7698, %v7766
    %7768 = vdwg.mxu0
    %v7769 = vand.u32 %v166, 4294901760
    %7770 = vmatpush.msra.mxu0 %v7769
    %v7771 = vand.u32 %v165, 4294901760
    %7772 = vmatpush.msra.mxu0 %v7771
    %v7773 = vand.u32 %v164, 4294901760
    %7774 = vmatpush.msra.mxu0 %v7773
    %v7775 = vand.u32 %v163, 4294901760
    %7776 = vmatpush.msra.mxu0 %v7775
    %v7777 = vand.u32 %v162, 4294901760
    %7778 = vmatpush.msra.mxu0 %v7777
    %v7779 = vand.u32 %v161, 4294901760
    %7780 = vmatpush.msra.mxu0 %v7779
    %v7781 = vand.u32 %v160, 4294901760
    %7782 = vmatpush.msra.mxu0 %v7781
    %v7783 = vand.u32 %v159, 4294901760
    %7784 = vmatpush.msra.mxu0 %v7783
    %v7785 = vand.u32 %v158, 4294901760
    %7786 = vmatpush.msra.mxu0 %v7785
    %v7787 = vand.u32 %v157, 4294901760
    %7788 = vmatpush.msra.mxu0 %v7787
    %v7789 = vand.u32 %v156, 4294901760
    %7790 = vmatpush.msra.mxu0 %v7789
    %v7791 = vand.u32 %v155, 4294901760
    %7792 = vmatpush.msra.mxu0 %v7791
    %v7793 = vand.u32 %v154, 4294901760
    %7794 = vmatpush.msra.mxu0 %v7793
    %v7795 = vand.u32 %v153, 4294901760
    %7796 = vmatpush.msra.mxu0 %v7795
    %v7797 = vand.u32 %v152, 4294901760
    %7798 = vmatpush.msra.mxu0 %v7797
    %v7799 = vand.u32 %v151, 4294901760
    %7800 = vmatpush.msra.mxu0 %v7799
    %v7801 = vand.u32 %v6777, 4294901760
    %7802 = vmatmul.f32.gmra.mxu0 %v7801
    %v7803 = vpop.f32.mrf.mxu0
    %v7804 = vadd.f32 %v7767, %v7803
    %7805 = vdwg.mxu0
    %v7806 = vand.u32 %v182, 4294901760
    %7807 = vmatpush.msra.mxu0 %v7806
    %v7808 = vand.u32 %v181, 4294901760
    %7809 = vmatpush.msra.mxu0 %v7808
    %v7810 = vand.u32 %v180, 4294901760
    %7811 = vmatpush.msra.mxu0 %v7810
    %v7812 = vand.u32 %v179, 4294901760
    %7813 = vmatpush.msra.mxu0 %v7812
    %v7814 = vand.u32 %v178, 4294901760
    %7815 = vmatpush.msra.mxu0 %v7814
    %v7816 = vand.u32 %v177, 4294901760
    %7817 = vmatpush.msra.mxu0 %v7816
    %v7818 = vand.u32 %v176, 4294901760
    %7819 = vmatpush.msra.mxu0 %v7818
    %v7820 = vand.u32 %v175, 4294901760
    %7821 = vmatpush.msra.mxu0 %v7820
    %v7822 = vand.u32 %v174, 4294901760
    %7823 = vmatpush.msra.mxu0 %v7822
    %v7824 = vand.u32 %v173, 4294901760
    %7825 = vmatpush.msra.mxu0 %v7824
    %v7826 = vand.u32 %v172, 4294901760
    %7827 = vmatpush.msra.mxu0 %v7826
    %v7828 = vand.u32 %v171, 4294901760
    %7829 = vmatpush.msra.mxu0 %v7828
    %v7830 = vand.u32 %v170, 4294901760
    %7831 = vmatpush.msra.mxu0 %v7830
    %v7832 = vand.u32 %v169, 4294901760
    %7833 = vmatpush.msra.mxu0 %v7832
    %v7834 = vand.u32 %v168, 4294901760
    %7835 = vmatpush.msra.mxu0 %v7834
    %v7836 = vand.u32 %v167, 4294901760
    %7837 = vmatpush.msra.mxu0 %v7836
    %v7838 = vand.u32 %v6778, 4294901760
    %v7839 = vsub.f32 %v6778, %v7838
    %v7840 = vand.u32 %v7839, 4294901760
    %v7841 = vsub.f32 %v7839, %v7840
    %v7842 = vand.u32 %v7841, 4294901760
    %7843 = vmatmul.f32.gmra.mxu0 %v7842
    %v7844 = vpop.f32.mrf.mxu0
    %v7845 = vadd.f32 %v7804, %v7844
    %7846 = vdwg.mxu0
    %v7847 = vand.u32 %v182, 4294901760
    %v7848 = vsub.f32 %v182, %v7847
    %v7849 = vand.u32 %v7848, 4294901760
    %v7850 = vsub.f32 %v7848, %v7849
    %v7851 = vand.u32 %v7850, 4294901760
    %7852 = vmatpush.msra.mxu0 %v7851
    %v7853 = vand.u32 %v181, 4294901760
    %v7854 = vsub.f32 %v181, %v7853
    %v7855 = vand.u32 %v7854, 4294901760
    %v7856 = vsub.f32 %v7854, %v7855
    %v7857 = vand.u32 %v7856, 4294901760
    %7858 = vmatpush.msra.mxu0 %v7857
    %v7859 = vand.u32 %v180, 4294901760
    %v7860 = vsub.f32 %v180, %v7859
    %v7861 = vand.u32 %v7860, 4294901760
    %v7862 = vsub.f32 %v7860, %v7861
    %v7863 = vand.u32 %v7862, 4294901760
    %7864 = vmatpush.msra.mxu0 %v7863
    %v7865 = vand.u32 %v179, 4294901760
    %v7866 = vsub.f32 %v179, %v7865
    %v7867 = vand.u32 %v7866, 4294901760
    %v7868 = vsub.f32 %v7866, %v7867
    %v7869 = vand.u32 %v7868, 4294901760
    %7870 = vmatpush.msra.mxu0 %v7869
    %v7871 = vand.u32 %v178, 4294901760
    %v7872 = vsub.f32 %v178, %v7871
    %v7873 = vand.u32 %v7872, 4294901760
    %v7874 = vsub.f32 %v7872, %v7873
    %v7875 = vand.u32 %v7874, 4294901760
    %7876 = vmatpush.msra.mxu0 %v7875
    %v7877 = vand.u32 %v177, 4294901760
    %v7878 = vsub.f32 %v177, %v7877
    %v7879 = vand.u32 %v7878, 4294901760
    %v7880 = vsub.f32 %v7878, %v7879
    %v7881 = vand.u32 %v7880, 4294901760
    %7882 = vmatpush.msra.mxu0 %v7881
    %v7883 = vand.u32 %v176, 4294901760
    %v7884 = vsub.f32 %v176, %v7883
    %v7885 = vand.u32 %v7884, 4294901760
    %v7886 = vsub.f32 %v7884, %v7885
    %v7887 = vand.u32 %v7886, 4294901760
    %7888 = vmatpush.msra.mxu0 %v7887
    %v7889 = vand.u32 %v175, 4294901760
    %v7890 = vsub.f32 %v175, %v7889
    %v7891 = vand.u32 %v7890, 4294901760
    %v7892 = vsub.f32 %v7890, %v7891
    %v7893 = vand.u32 %v7892, 4294901760
    %7894 = vmatpush.msra.mxu0 %v7893
    %v7895 = vand.u32 %v174, 4294901760
    %v7896 = vsub.f32 %v174, %v7895
    %v7897 = vand.u32 %v7896, 4294901760
    %v7898 = vsub.f32 %v7896, %v7897
    %v7899 = vand.u32 %v7898, 4294901760
    %7900 = vmatpush.msra.mxu0 %v7899
    %v7901 = vand.u32 %v173, 4294901760
    %v7902 = vsub.f32 %v173, %v7901
    %v7903 = vand.u32 %v7902, 4294901760
    %v7904 = vsub.f32 %v7902, %v7903
    %v7905 = vand.u32 %v7904, 4294901760
    %7906 = vmatpush.msra.mxu0 %v7905
    %v7907 = vand.u32 %v172, 4294901760
    %v7908 = vsub.f32 %v172, %v7907
    %v7909 = vand.u32 %v7908, 4294901760
    %v7910 = vsub.f32 %v7908, %v7909
    %v7911 = vand.u32 %v7910, 4294901760
    %7912 = vmatpush.msra.mxu0 %v7911
    %v7913 = vand.u32 %v171, 4294901760
    %v7914 = vsub.f32 %v171, %v7913
    %v7915 = vand.u32 %v7914, 4294901760
    %v7916 = vsub.f32 %v7914, %v7915
    %v7917 = vand.u32 %v7916, 4294901760
    %7918 = vmatpush.msra.mxu0 %v7917
    %v7919 = vand.u32 %v170, 4294901760
    %v7920 = vsub.f32 %v170, %v7919
    %v7921 = vand.u32 %v7920, 4294901760
    %v7922 = vsub.f32 %v7920, %v7921
    %v7923 = vand.u32 %v7922, 4294901760
    %7924 = vmatpush.msra.mxu0 %v7923
    %v7925 = vand.u32 %v169, 4294901760
    %v7926 = vsub.f32 %v169, %v7925
    %v7927 = vand.u32 %v7926, 4294901760
    %v7928 = vsub.f32 %v7926, %v7927
    %v7929 = vand.u32 %v7928, 4294901760
    %7930 = vmatpush.msra.mxu0 %v7929
    %v7931 = vand.u32 %v168, 4294901760
    %v7932 = vsub.f32 %v168, %v7931
    %v7933 = vand.u32 %v7932, 4294901760
    %v7934 = vsub.f32 %v7932, %v7933
    %v7935 = vand.u32 %v7934, 4294901760
    %7936 = vmatpush.msra.mxu0 %v7935
    %v7937 = vand.u32 %v167, 4294901760
    %v7938 = vsub.f32 %v167, %v7937
    %v7939 = vand.u32 %v7938, 4294901760
    %v7940 = vsub.f32 %v7938, %v7939
    %v7941 = vand.u32 %v7940, 4294901760
    %7942 = vmatpush.msra.mxu0 %v7941
    %v7943 = vand.u32 %v6778, 4294901760
    %7944 = vmatmul.f32.gmra.mxu0 %v7943
    %v7945 = vpop.f32.mrf.mxu0
    %v7946 = vadd.f32 %v7845, %v7945
    %7947 = vdwg.mxu0
    %v7948 = vand.u32 %v182, 4294901760
    %v7949 = vsub.f32 %v182, %v7948
    %7950 = vmatpush.msra.mxu0 %v7949
    %v7951 = vand.u32 %v181, 4294901760
    %v7952 = vsub.f32 %v181, %v7951
    %7953 = vmatpush.msra.mxu0 %v7952
    %v7954 = vand.u32 %v180, 4294901760
    %v7955 = vsub.f32 %v180, %v7954
    %7956 = vmatpush.msra.mxu0 %v7955
    %v7957 = vand.u32 %v179, 4294901760
    %v7958 = vsub.f32 %v179, %v7957
    %7959 = vmatpush.msra.mxu0 %v7958
    %v7960 = vand.u32 %v178, 4294901760
    %v7961 = vsub.f32 %v178, %v7960
    %7962 = vmatpush.msra.mxu0 %v7961
    %v7963 = vand.u32 %v177, 4294901760
    %v7964 = vsub.f32 %v177, %v7963
    %7965 = vmatpush.msra.mxu0 %v7964
    %v7966 = vand.u32 %v176, 4294901760
    %v7967 = vsub.f32 %v176, %v7966
    %7968 = vmatpush.msra.mxu0 %v7967
    %v7969 = vand.u32 %v175, 4294901760
    %v7970 = vsub.f32 %v175, %v7969
    %7971 = vmatpush.msra.mxu0 %v7970
    %v7972 = vand.u32 %v174, 4294901760
    %v7973 = vsub.f32 %v174, %v7972
    %7974 = vmatpush.msra.mxu0 %v7973
    %v7975 = vand.u32 %v173, 4294901760
    %v7976 = vsub.f32 %v173, %v7975
    %7977 = vmatpush.msra.mxu0 %v7976
    %v7978 = vand.u32 %v172, 4294901760
    %v7979 = vsub.f32 %v172, %v7978
    %7980 = vmatpush.msra.mxu0 %v7979
    %v7981 = vand.u32 %v171, 4294901760
    %v7982 = vsub.f32 %v171, %v7981
    %7983 = vmatpush.msra.mxu0 %v7982
    %v7984 = vand.u32 %v170, 4294901760
    %v7985 = vsub.f32 %v170, %v7984
    %7986 = vmatpush.msra.mxu0 %v7985
    %v7987 = vand.u32 %v169, 4294901760
    %v7988 = vsub.f32 %v169, %v7987
    %7989 = vmatpush.msra.mxu0 %v7988
    %v7990 = vand.u32 %v168, 4294901760
    %v7991 = vsub.f32 %v168, %v7990
    %7992 = vmatpush.msra.mxu0 %v7991
    %v7993 = vand.u32 %v167, 4294901760
    %v7994 = vsub.f32 %v167, %v7993
    %7995 = vmatpush.msra.mxu0 %v7994
    %v7996 = vand.u32 %v6778, 4294901760
    %v7997 = vsub.f32 %v6778, %v7996
    %7998 = vmatmul.f32.gmra.mxu0 %v7997
    %v7999 = vpop.f32.mrf.mxu0
    %v8000 = vadd.f32 %v7946, %v7999
    %8001 = vdwg.mxu0
    %v8002 = vand.u32 %v182, 4294901760
    %8003 = vmatpush.msra.mxu0 %v8002
    %v8004 = vand.u32 %v181, 4294901760
    %8005 = vmatpush.msra.mxu0 %v8004
    %v8006 = vand.u32 %v180, 4294901760
    %8007 = vmatpush.msra.mxu0 %v8006
    %v8008 = vand.u32 %v179, 4294901760
    %8009 = vmatpush.msra.mxu0 %v8008
    %v8010 = vand.u32 %v178, 4294901760
    %8011 = vmatpush.msra.mxu0 %v8010
    %v8012 = vand.u32 %v177, 4294901760
    %8013 = vmatpush.msra.mxu0 %v8012
    %v8014 = vand.u32 %v176, 4294901760
    %8015 = vmatpush.msra.mxu0 %v8014
    %v8016 = vand.u32 %v175, 4294901760
    %8017 = vmatpush.msra.mxu0 %v8016
    %v8018 = vand.u32 %v174, 4294901760
    %8019 = vmatpush.msra.mxu0 %v8018
    %v8020 = vand.u32 %v173, 4294901760
    %8021 = vmatpush.msra.mxu0 %v8020
    %v8022 = vand.u32 %v172, 4294901760
    %8023 = vmatpush.msra.mxu0 %v8022
    %v8024 = vand.u32 %v171, 4294901760
    %8025 = vmatpush.msra.mxu0 %v8024
    %v8026 = vand.u32 %v170, 4294901760
    %8027 = vmatpush.msra.mxu0 %v8026
    %v8028 = vand.u32 %v169, 4294901760
    %8029 = vmatpush.msra.mxu0 %v8028
    %v8030 = vand.u32 %v168, 4294901760
    %8031 = vmatpush.msra.mxu0 %v8030
    %v8032 = vand.u32 %v167, 4294901760
    %8033 = vmatpush.msra.mxu0 %v8032
    %v8034 = vand.u32 %v6778, 4294901760
    %v8035 = vsub.f32 %v6778, %v8034
    %v8036 = vand.u32 %v8035, 4294901760
    %8037 = vmatmul.f32.gmra.mxu0 %v8036
    %v8038 = vpop.f32.mrf.mxu0
    %v8039 = vadd.f32 %v8000, %v8038
    %8040 = vdwg.mxu0
    %v8041 = vand.u32 %v182, 4294901760
    %v8042 = vsub.f32 %v182, %v8041
    %v8043 = vand.u32 %v8042, 4294901760
    %8044 = vmatpush.msra.mxu0 %v8043
    %v8045 = vand.u32 %v181, 4294901760
    %v8046 = vsub.f32 %v181, %v8045
    %v8047 = vand.u32 %v8046, 4294901760
    %8048 = vmatpush.msra.mxu0 %v8047
    %v8049 = vand.u32 %v180, 4294901760
    %v8050 = vsub.f32 %v180, %v8049
    %v8051 = vand.u32 %v8050, 4294901760
    %8052 = vmatpush.msra.mxu0 %v8051
    %v8053 = vand.u32 %v179, 4294901760
    %v8054 = vsub.f32 %v179, %v8053
    %v8055 = vand.u32 %v8054, 4294901760
    %8056 = vmatpush.msra.mxu0 %v8055
    %v8057 = vand.u32 %v178, 4294901760
    %v8058 = vsub.f32 %v178, %v8057
    %v8059 = vand.u32 %v8058, 4294901760
    %8060 = vmatpush.msra.mxu0 %v8059
    %v8061 = vand.u32 %v177, 4294901760
    %v8062 = vsub.f32 %v177, %v8061
    %v8063 = vand.u32 %v8062, 4294901760
    %8064 = vmatpush.msra.mxu0 %v8063
    %v8065 = vand.u32 %v176, 4294901760
    %v8066 = vsub.f32 %v176, %v8065
    %v8067 = vand.u32 %v8066, 4294901760
    %8068 = vmatpush.msra.mxu0 %v8067
    %v8069 = vand.u32 %v175, 4294901760
    %v8070 = vsub.f32 %v175, %v8069
    %v8071 = vand.u32 %v8070, 4294901760
    %8072 = vmatpush.msra.mxu0 %v8071
    %v8073 = vand.u32 %v174, 4294901760
    %v8074 = vsub.f32 %v174, %v8073
    %v8075 = vand.u32 %v8074, 4294901760
    %8076 = vmatpush.msra.mxu0 %v8075
    %v8077 = vand.u32 %v173, 4294901760
    %v8078 = vsub.f32 %v173, %v8077
    %v8079 = vand.u32 %v8078, 4294901760
    %8080 = vmatpush.msra.mxu0 %v8079
    %v8081 = vand.u32 %v172, 4294901760
    %v8082 = vsub.f32 %v172, %v8081
    %v8083 = vand.u32 %v8082, 4294901760
    %8084 = vmatpush.msra.mxu0 %v8083
    %v8085 = vand.u32 %v171, 4294901760
    %v8086 = vsub.f32 %v171, %v8085
    %v8087 = vand.u32 %v8086, 4294901760
    %8088 = vmatpush.msra.mxu0 %v8087
    %v8089 = vand.u32 %v170, 4294901760
    %v8090 = vsub.f32 %v170, %v8089
    %v8091 = vand.u32 %v8090, 4294901760
    %8092 = vmatpush.msra.mxu0 %v8091
    %v8093 = vand.u32 %v169, 4294901760
    %v8094 = vsub.f32 %v169, %v8093
    %v8095 = vand.u32 %v8094, 4294901760
    %8096 = vmatpush.msra.mxu0 %v8095
    %v8097 = vand.u32 %v168, 4294901760
    %v8098 = vsub.f32 %v168, %v8097
    %v8099 = vand.u32 %v8098, 4294901760
    %8100 = vmatpush.msra.mxu0 %v8099
    %v8101 = vand.u32 %v167, 4294901760
    %v8102 = vsub.f32 %v167, %v8101
    %v8103 = vand.u32 %v8102, 4294901760
    %8104 = vmatpush.msra.mxu0 %v8103
    %v8105 = vand.u32 %v6778, 4294901760
    %8106 = vmatmul.f32.gmra.mxu0 %v8105
    %v8107 = vpop.f32.mrf.mxu0
    %v8108 = vadd.f32 %v8039, %v8107
    %8109 = vdwg.mxu0
    %v8110 = vand.u32 %v182, 4294901760
    %8111 = vmatpush.msra.mxu0 %v8110
    %v8112 = vand.u32 %v181, 4294901760
    %8113 = vmatpush.msra.mxu0 %v8112
    %v8114 = vand.u32 %v180, 4294901760
    %8115 = vmatpush.msra.mxu0 %v8114
    %v8116 = vand.u32 %v179, 4294901760
    %8117 = vmatpush.msra.mxu0 %v8116
    %v8118 = vand.u32 %v178, 4294901760
    %8119 = vmatpush.msra.mxu0 %v8118
    %v8120 = vand.u32 %v177, 4294901760
    %8121 = vmatpush.msra.mxu0 %v8120
    %v8122 = vand.u32 %v176, 4294901760
    %8123 = vmatpush.msra.mxu0 %v8122
    %v8124 = vand.u32 %v175, 4294901760
    %8125 = vmatpush.msra.mxu0 %v8124
    %v8126 = vand.u32 %v174, 4294901760
    %8127 = vmatpush.msra.mxu0 %v8126
    %v8128 = vand.u32 %v173, 4294901760
    %8129 = vmatpush.msra.mxu0 %v8128
    %v8130 = vand.u32 %v172, 4294901760
    %8131 = vmatpush.msra.mxu0 %v8130
    %v8132 = vand.u32 %v171, 4294901760
    %8133 = vmatpush.msra.mxu0 %v8132
    %v8134 = vand.u32 %v170, 4294901760
    %8135 = vmatpush.msra.mxu0 %v8134
    %v8136 = vand.u32 %v169, 4294901760
    %8137 = vmatpush.msra.mxu0 %v8136
    %v8138 = vand.u32 %v168, 4294901760
    %8139 = vmatpush.msra.mxu0 %v8138
    %v8140 = vand.u32 %v167, 4294901760
    %8141 = vmatpush.msra.mxu0 %v8140
    %v8142 = vand.u32 %v6778, 4294901760
    %8143 = vmatmul.f32.gmra.mxu0 %v8142
    %v8144 = vpop.f32.mrf.mxu0
    %v8145 = vadd.f32 %v8108, %v8144
    %8146 = vdwg.mxu0
    %8147 = vmatpush.msra.mxu0 0.0
    %8148 = vmatpush.msra.mxu0 0.0
    %8149 = vmatpush.msra.mxu0 0.0
    %8150 = vmatpush.msra.mxu0 0.0
    %8151 = vmatpush.msra.mxu0 0.0
    %8152 = vmatpush.msra.mxu0 0.0
    %8153 = vmatpush.msra.mxu0 0.0
    %8154 = vmatpush.msra.mxu0 0.0
    %v8155 = vand.u32 %v190, 4294901760
    %8156 = vmatpush.msra.mxu0 %v8155
    %v8157 = vand.u32 %v189, 4294901760
    %8158 = vmatpush.msra.mxu0 %v8157
    %v8159 = vand.u32 %v188, 4294901760
    %8160 = vmatpush.msra.mxu0 %v8159
    %v8161 = vand.u32 %v187, 4294901760
    %8162 = vmatpush.msra.mxu0 %v8161
    %v8163 = vand.u32 %v186, 4294901760
    %8164 = vmatpush.msra.mxu0 %v8163
    %v8165 = vand.u32 %v185, 4294901760
    %8166 = vmatpush.msra.mxu0 %v8165
    %v8167 = vand.u32 %v184, 4294901760
    %8168 = vmatpush.msra.mxu0 %v8167
    %v8169 = vand.u32 %v183, 4294901760
    %8170 = vmatpush.msra.mxu0 %v8169
    %v8171 = vand.u32 %v6781, 4294901760
    %v8172 = vsub.f32 %v6781, %v8171
    %v8173 = vand.u32 %v8172, 4294901760
    %v8174 = vsub.f32 %v8172, %v8173
    %v8175 = vand.u32 %v8174, 4294901760
    %8176 = vmatmul.f32.gmra.mxu0 %v8175
    %v8177 = vpop.f32.mrf.mxu0
    %v8178 = vadd.f32 %v8145, %v8177
    %8179 = vdwg.mxu0
    %8180 = vmatpush.msra.mxu0 0.0
    %8181 = vmatpush.msra.mxu0 0.0
    %8182 = vmatpush.msra.mxu0 0.0
    %8183 = vmatpush.msra.mxu0 0.0
    %8184 = vmatpush.msra.mxu0 0.0
    %8185 = vmatpush.msra.mxu0 0.0
    %8186 = vmatpush.msra.mxu0 0.0
    %8187 = vmatpush.msra.mxu0 0.0
    %v8188 = vand.u32 %v190, 4294901760
    %v8189 = vsub.f32 %v190, %v8188
    %v8190 = vand.u32 %v8189, 4294901760
    %v8191 = vsub.f32 %v8189, %v8190
    %v8192 = vand.u32 %v8191, 4294901760
    %8193 = vmatpush.msra.mxu0 %v8192
    %v8194 = vand.u32 %v189, 4294901760
    %v8195 = vsub.f32 %v189, %v8194
    %v8196 = vand.u32 %v8195, 4294901760
    %v8197 = vsub.f32 %v8195, %v8196
    %v8198 = vand.u32 %v8197, 4294901760
    %8199 = vmatpush.msra.mxu0 %v8198
    %v8200 = vand.u32 %v188, 4294901760
    %v8201 = vsub.f32 %v188, %v8200
    %v8202 = vand.u32 %v8201, 4294901760
    %v8203 = vsub.f32 %v8201, %v8202
    %v8204 = vand.u32 %v8203, 4294901760
    %8205 = vmatpush.msra.mxu0 %v8204
    %v8206 = vand.u32 %v187, 4294901760
    %v8207 = vsub.f32 %v187, %v8206
    %v8208 = vand.u32 %v8207, 4294901760
    %v8209 = vsub.f32 %v8207, %v8208
    %v8210 = vand.u32 %v8209, 4294901760
    %8211 = vmatpush.msra.mxu0 %v8210
    %v8212 = vand.u32 %v186, 4294901760
    %v8213 = vsub.f32 %v186, %v8212
    %v8214 = vand.u32 %v8213, 4294901760
    %v8215 = vsub.f32 %v8213, %v8214
    %v8216 = vand.u32 %v8215, 4294901760
    %8217 = vmatpush.msra.mxu0 %v8216
    %v8218 = vand.u32 %v185, 4294901760
    %v8219 = vsub.f32 %v185, %v8218
    %v8220 = vand.u32 %v8219, 4294901760
    %v8221 = vsub.f32 %v8219, %v8220
    %v8222 = vand.u32 %v8221, 4294901760
    %8223 = vmatpush.msra.mxu0 %v8222
    %v8224 = vand.u32 %v184, 4294901760
    %v8225 = vsub.f32 %v184, %v8224
    %v8226 = vand.u32 %v8225, 4294901760
    %v8227 = vsub.f32 %v8225, %v8226
    %v8228 = vand.u32 %v8227, 4294901760
    %8229 = vmatpush.msra.mxu0 %v8228
    %v8230 = vand.u32 %v183, 4294901760
    %v8231 = vsub.f32 %v183, %v8230
    %v8232 = vand.u32 %v8231, 4294901760
    %v8233 = vsub.f32 %v8231, %v8232
    %v8234 = vand.u32 %v8233, 4294901760
    %8235 = vmatpush.msra.mxu0 %v8234
    %v8236 = vand.u32 %v6781, 4294901760
    %8237 = vmatmul.f32.gmra.mxu0 %v8236
    %v8238 = vpop.f32.mrf.mxu0
    %v8239 = vadd.f32 %v8178, %v8238
    %8240 = vdwg.mxu0
    %8241 = vmatpush.msra.mxu0 0.0
    %8242 = vmatpush.msra.mxu0 0.0
    %8243 = vmatpush.msra.mxu0 0.0
    %8244 = vmatpush.msra.mxu0 0.0
    %8245 = vmatpush.msra.mxu0 0.0
    %8246 = vmatpush.msra.mxu0 0.0
    %8247 = vmatpush.msra.mxu0 0.0
    %8248 = vmatpush.msra.mxu0 0.0
    %v8249 = vand.u32 %v190, 4294901760
    %v8250 = vsub.f32 %v190, %v8249
    %8251 = vmatpush.msra.mxu0 %v8250
    %v8252 = vand.u32 %v189, 4294901760
    %v8253 = vsub.f32 %v189, %v8252
    %8254 = vmatpush.msra.mxu0 %v8253
    %v8255 = vand.u32 %v188, 4294901760
    %v8256 = vsub.f32 %v188, %v8255
    %8257 = vmatpush.msra.mxu0 %v8256
    %v8258 = vand.u32 %v187, 4294901760
    %v8259 = vsub.f32 %v187, %v8258
    %8260 = vmatpush.msra.mxu0 %v8259
    %v8261 = vand.u32 %v186, 4294901760
    %v8262 = vsub.f32 %v186, %v8261
    %8263 = vmatpush.msra.mxu0 %v8262
    %v8264 = vand.u32 %v185, 4294901760
    %v8265 = vsub.f32 %v185, %v8264
    %8266 = vmatpush.msra.mxu0 %v8265
    %v8267 = vand.u32 %v184, 4294901760
    %v8268 = vsub.f32 %v184, %v8267
    %8269 = vmatpush.msra.mxu0 %v8268
    %v8270 = vand.u32 %v183, 4294901760
    %v8271 = vsub.f32 %v183, %v8270
    %8272 = vmatpush.msra.mxu0 %v8271
    %v8273 = vand.u32 %v6781, 4294901760
    %v8274 = vsub.f32 %v6781, %v8273
    %8275 = vmatmul.f32.gmra.mxu0 %v8274
    %v8276 = vpop.f32.mrf.mxu0
    %v8277 = vadd.f32 %v8239, %v8276
    %8278 = vdwg.mxu0
    %8279 = vmatpush.msra.mxu0 0.0
    %8280 = vmatpush.msra.mxu0 0.0
    %8281 = vmatpush.msra.mxu0 0.0
    %8282 = vmatpush.msra.mxu0 0.0
    %8283 = vmatpush.msra.mxu0 0.0
    %8284 = vmatpush.msra.mxu0 0.0
    %8285 = vmatpush.msra.mxu0 0.0
    %8286 = vmatpush.msra.mxu0 0.0
    %v8287 = vand.u32 %v190, 4294901760
    %8288 = vmatpush.msra.mxu0 %v8287
    %v8289 = vand.u32 %v189, 4294901760
    %8290 = vmatpush.msra.mxu0 %v8289
    %v8291 = vand.u32 %v188, 4294901760
    %8292 = vmatpush.msra.mxu0 %v8291
    %v8293 = vand.u32 %v187, 4294901760
    %8294 = vmatpush.msra.mxu0 %v8293
    %v8295 = vand.u32 %v186, 4294901760
    %8296 = vmatpush.msra.mxu0 %v8295
    %v8297 = vand.u32 %v185, 4294901760
    %8298 = vmatpush.msra.mxu0 %v8297
    %v8299 = vand.u32 %v184, 4294901760
    %8300 = vmatpush.msra.mxu0 %v8299
    %v8301 = vand.u32 %v183, 4294901760
    %8302 = vmatpush.msra.mxu0 %v8301
    %v8303 = vand.u32 %v6781, 4294901760
    %v8304 = vsub.f32 %v6781, %v8303
    %v8305 = vand.u32 %v8304, 4294901760
    %8306 = vmatmul.f32.gmra.mxu0 %v8305
    %v8307 = vpop.f32.mrf.mxu0
    %v8308 = vadd.f32 %v8277, %v8307
    %8309 = vdwg.mxu0
    %8310 = vmatpush.msra.mxu0 0.0
    %8311 = vmatpush.msra.mxu0 0.0
    %8312 = vmatpush.msra.mxu0 0.0
    %8313 = vmatpush.msra.mxu0 0.0
    %8314 = vmatpush.msra.mxu0 0.0
    %8315 = vmatpush.msra.mxu0 0.0
    %8316 = vmatpush.msra.mxu0 0.0
    %8317 = vmatpush.msra.mxu0 0.0
    %v8318 = vand.u32 %v190, 4294901760
    %v8319 = vsub.f32 %v190, %v8318
    %v8320 = vand.u32 %v8319, 4294901760
    %8321 = vmatpush.msra.mxu0 %v8320
    %v8322 = vand.u32 %v189, 4294901760
    %v8323 = vsub.f32 %v189, %v8322
    %v8324 = vand.u32 %v8323, 4294901760
    %8325 = vmatpush.msra.mxu0 %v8324
    %v8326 = vand.u32 %v188, 4294901760
    %v8327 = vsub.f32 %v188, %v8326
    %v8328 = vand.u32 %v8327, 4294901760
    %8329 = vmatpush.msra.mxu0 %v8328
    %v8330 = vand.u32 %v187, 4294901760
    %v8331 = vsub.f32 %v187, %v8330
    %v8332 = vand.u32 %v8331, 4294901760
    %8333 = vmatpush.msra.mxu0 %v8332
    %v8334 = vand.u32 %v186, 4294901760
    %v8335 = vsub.f32 %v186, %v8334
    %v8336 = vand.u32 %v8335, 4294901760
    %8337 = vmatpush.msra.mxu0 %v8336
    %v8338 = vand.u32 %v185, 4294901760
    %v8339 = vsub.f32 %v185, %v8338
    %v8340 = vand.u32 %v8339, 4294901760
    %8341 = vmatpush.msra.mxu0 %v8340
    %v8342 = vand.u32 %v184, 4294901760
    %v8343 = vsub.f32 %v184, %v8342
    %v8344 = vand.u32 %v8343, 4294901760
    %8345 = vmatpush.msra.mxu0 %v8344
    %v8346 = vand.u32 %v183, 4294901760
    %v8347 = vsub.f32 %v183, %v8346
    %v8348 = vand.u32 %v8347, 4294901760
    %8349 = vmatpush.msra.mxu0 %v8348
    %v8350 = vand.u32 %v6781, 4294901760
    %8351 = vmatmul.f32.gmra.mxu0 %v8350
    %v8352 = vpop.f32.mrf.mxu0
    %v8353 = vadd.f32 %v8308, %v8352
    %8354 = vdwg.mxu0
    %8355 = vmatpush.msra.mxu0 0.0
    %8356 = vmatpush.msra.mxu0 0.0
    %8357 = vmatpush.msra.mxu0 0.0
    %8358 = vmatpush.msra.mxu0 0.0
    %8359 = vmatpush.msra.mxu0 0.0
    %8360 = vmatpush.msra.mxu0 0.0
    %8361 = vmatpush.msra.mxu0 0.0
    %8362 = vmatpush.msra.mxu0 0.0
    %v8363 = vand.u32 %v190, 4294901760
    %8364 = vmatpush.msra.mxu0 %v8363
    %v8365 = vand.u32 %v189, 4294901760
    %8366 = vmatpush.msra.mxu0 %v8365
    %v8367 = vand.u32 %v188, 4294901760
    %8368 = vmatpush.msra.mxu0 %v8367
    %v8369 = vand.u32 %v187, 4294901760
    %8370 = vmatpush.msra.mxu0 %v8369
    %v8371 = vand.u32 %v186, 4294901760
    %8372 = vmatpush.msra.mxu0 %v8371
    %v8373 = vand.u32 %v185, 4294901760
    %8374 = vmatpush.msra.mxu0 %v8373
    %v8375 = vand.u32 %v184, 4294901760
    %8376 = vmatpush.msra.mxu0 %v8375
    %v8377 = vand.u32 %v183, 4294901760
    %8378 = vmatpush.msra.mxu0 %v8377
    %v8379 = vand.u32 %v6781, 4294901760
    %8380 = vmatmul.f32.gmra.mxu0 %v8379
    %v8381 = vpop.f32.mrf.mxu0
    %v8382 = vadd.f32 %v8353, %v8381
    %8383 = vdwg.mxu0
    %v8384 = vmax.f32 %v8382, 0.0
    %vm8385 = vcmask 982016
    %v8387 = vsel %vm8385, %v8384, 0
    %8389 = vmatpush.msra.mxu0 0.0
    %v8390 = vand.u32 %v205, 4294901760
    %8391 = vmatpush.msra.mxu0 %v8390
    %v8392 = vand.u32 %v204, 4294901760
    %8393 = vmatpush.msra.mxu0 %v8392
    %v8394 = vand.u32 %v203, 4294901760
    %8395 = vmatpush.msra.mxu0 %v8394
    %v8396 = vand.u32 %v202, 4294901760
    %8397 = vmatpush.msra.mxu0 %v8396
    %v8398 = vand.u32 %v201, 4294901760
    %8399 = vmatpush.msra.mxu0 %v8398
    %v8400 = vand.u32 %v200, 4294901760
    %8401 = vmatpush.msra.mxu0 %v8400
    %v8402 = vand.u32 %v199, 4294901760
    %8403 = vmatpush.msra.mxu0 %v8402
    %v8404 = vand.u32 %v198, 4294901760
    %8405 = vmatpush.msra.mxu0 %v8404
    %v8406 = vand.u32 %v197, 4294901760
    %8407 = vmatpush.msra.mxu0 %v8406
    %v8408 = vand.u32 %v196, 4294901760
    %8409 = vmatpush.msra.mxu0 %v8408
    %v8410 = vand.u32 %v195, 4294901760
    %8411 = vmatpush.msra.mxu0 %v8410
    %v8412 = vand.u32 %v194, 4294901760
    %8413 = vmatpush.msra.mxu0 %v8412
    %v8414 = vand.u32 %v193, 4294901760
    %8415 = vmatpush.msra.mxu0 %v8414
    %v8416 = vand.u32 %v192, 4294901760
    %8417 = vmatpush.msra.mxu0 %v8416
    %v8418 = vand.u32 %v191, 4294901760
    %8419 = vmatpush.msra.mxu0 %v8418
    %v8420 = vand.u32 %v8387, 4294901760
    %v8421 = vsub.f32 %v8387, %v8420
    %v8422 = vand.u32 %v8421, 4294901760
    %v8423 = vsub.f32 %v8421, %v8422
    %v8424 = vand.u32 %v8423, 4294901760
    %8425 = vmatmul.f32.gmra.mxu0 %v8424
    %v8426 = vpop.f32.mrf.mxu0
    %v8427 = vadd.f32 %v221, %v8426
    %8428 = vdwg.mxu0
    %8429 = vmatpush.msra.mxu0 0.0
    %v8430 = vand.u32 %v205, 4294901760
    %v8431 = vsub.f32 %v205, %v8430
    %v8432 = vand.u32 %v8431, 4294901760
    %v8433 = vsub.f32 %v8431, %v8432
    %v8434 = vand.u32 %v8433, 4294901760
    %8435 = vmatpush.msra.mxu0 %v8434
    %v8436 = vand.u32 %v204, 4294901760
    %v8437 = vsub.f32 %v204, %v8436
    %v8438 = vand.u32 %v8437, 4294901760
    %v8439 = vsub.f32 %v8437, %v8438
    %v8440 = vand.u32 %v8439, 4294901760
    %8441 = vmatpush.msra.mxu0 %v8440
    %v8442 = vand.u32 %v203, 4294901760
    %v8443 = vsub.f32 %v203, %v8442
    %v8444 = vand.u32 %v8443, 4294901760
    %v8445 = vsub.f32 %v8443, %v8444
    %v8446 = vand.u32 %v8445, 4294901760
    %8447 = vmatpush.msra.mxu0 %v8446
    %v8448 = vand.u32 %v202, 4294901760
    %v8449 = vsub.f32 %v202, %v8448
    %v8450 = vand.u32 %v8449, 4294901760
    %v8451 = vsub.f32 %v8449, %v8450
    %v8452 = vand.u32 %v8451, 4294901760
    %8453 = vmatpush.msra.mxu0 %v8452
    %v8454 = vand.u32 %v201, 4294901760
    %v8455 = vsub.f32 %v201, %v8454
    %v8456 = vand.u32 %v8455, 4294901760
    %v8457 = vsub.f32 %v8455, %v8456
    %v8458 = vand.u32 %v8457, 4294901760
    %8459 = vmatpush.msra.mxu0 %v8458
    %v8460 = vand.u32 %v200, 4294901760
    %v8461 = vsub.f32 %v200, %v8460
    %v8462 = vand.u32 %v8461, 4294901760
    %v8463 = vsub.f32 %v8461, %v8462
    %v8464 = vand.u32 %v8463, 4294901760
    %8465 = vmatpush.msra.mxu0 %v8464
    %v8466 = vand.u32 %v199, 4294901760
    %v8467 = vsub.f32 %v199, %v8466
    %v8468 = vand.u32 %v8467, 4294901760
    %v8469 = vsub.f32 %v8467, %v8468
    %v8470 = vand.u32 %v8469, 4294901760
    %8471 = vmatpush.msra.mxu0 %v8470
    %v8472 = vand.u32 %v198, 4294901760
    %v8473 = vsub.f32 %v198, %v8472
    %v8474 = vand.u32 %v8473, 4294901760
    %v8475 = vsub.f32 %v8473, %v8474
    %v8476 = vand.u32 %v8475, 4294901760
    %8477 = vmatpush.msra.mxu0 %v8476
    %v8478 = vand.u32 %v197, 4294901760
    %v8479 = vsub.f32 %v197, %v8478
    %v8480 = vand.u32 %v8479, 4294901760
    %v8481 = vsub.f32 %v8479, %v8480
    %v8482 = vand.u32 %v8481, 4294901760
    %8483 = vmatpush.msra.mxu0 %v8482
    %v8484 = vand.u32 %v196, 4294901760
    %v8485 = vsub.f32 %v196, %v8484
    %v8486 = vand.u32 %v8485, 4294901760
    %v8487 = vsub.f32 %v8485, %v8486
    %v8488 = vand.u32 %v8487, 4294901760
    %8489 = vmatpush.msra.mxu0 %v8488
    %v8490 = vand.u32 %v195, 4294901760
    %v8491 = vsub.f32 %v195, %v8490
    %v8492 = vand.u32 %v8491, 4294901760
    %v8493 = vsub.f32 %v8491, %v8492
    %v8494 = vand.u32 %v8493, 4294901760
    %8495 = vmatpush.msra.mxu0 %v8494
    %v8496 = vand.u32 %v194, 4294901760
    %v8497 = vsub.f32 %v194, %v8496
    %v8498 = vand.u32 %v8497, 4294901760
    %v8499 = vsub.f32 %v8497, %v8498
    %v8500 = vand.u32 %v8499, 4294901760
    %8501 = vmatpush.msra.mxu0 %v8500
    %v8502 = vand.u32 %v193, 4294901760
    %v8503 = vsub.f32 %v193, %v8502
    %v8504 = vand.u32 %v8503, 4294901760
    %v8505 = vsub.f32 %v8503, %v8504
    %v8506 = vand.u32 %v8505, 4294901760
    %8507 = vmatpush.msra.mxu0 %v8506
    %v8508 = vand.u32 %v192, 4294901760
    %v8509 = vsub.f32 %v192, %v8508
    %v8510 = vand.u32 %v8509, 4294901760
    %v8511 = vsub.f32 %v8509, %v8510
    %v8512 = vand.u32 %v8511, 4294901760
    %8513 = vmatpush.msra.mxu0 %v8512
    %v8514 = vand.u32 %v191, 4294901760
    %v8515 = vsub.f32 %v191, %v8514
    %v8516 = vand.u32 %v8515, 4294901760
    %v8517 = vsub.f32 %v8515, %v8516
    %v8518 = vand.u32 %v8517, 4294901760
    %8519 = vmatpush.msra.mxu0 %v8518
    %v8520 = vand.u32 %v8387, 4294901760
    %8521 = vmatmul.f32.gmra.mxu0 %v8520
    %v8522 = vpop.f32.mrf.mxu0
    %v8523 = vadd.f32 %v8427, %v8522
    %8524 = vdwg.mxu0
    %8525 = vmatpush.msra.mxu0 0.0
    %v8526 = vand.u32 %v205, 4294901760
    %v8527 = vsub.f32 %v205, %v8526
    %8528 = vmatpush.msra.mxu0 %v8527
    %v8529 = vand.u32 %v204, 4294901760
    %v8530 = vsub.f32 %v204, %v8529
    %8531 = vmatpush.msra.mxu0 %v8530
    %v8532 = vand.u32 %v203, 4294901760
    %v8533 = vsub.f32 %v203, %v8532
    %8534 = vmatpush.msra.mxu0 %v8533
    %v8535 = vand.u32 %v202, 4294901760
    %v8536 = vsub.f32 %v202, %v8535
    %8537 = vmatpush.msra.mxu0 %v8536
    %v8538 = vand.u32 %v201, 4294901760
    %v8539 = vsub.f32 %v201, %v8538
    %8540 = vmatpush.msra.mxu0 %v8539
    %v8541 = vand.u32 %v200, 4294901760
    %v8542 = vsub.f32 %v200, %v8541
    %8543 = vmatpush.msra.mxu0 %v8542
    %v8544 = vand.u32 %v199, 4294901760
    %v8545 = vsub.f32 %v199, %v8544
    %8546 = vmatpush.msra.mxu0 %v8545
    %v8547 = vand.u32 %v198, 4294901760
    %v8548 = vsub.f32 %v198, %v8547
    %8549 = vmatpush.msra.mxu0 %v8548
    %v8550 = vand.u32 %v197, 4294901760
    %v8551 = vsub.f32 %v197, %v8550
    %8552 = vmatpush.msra.mxu0 %v8551
    %v8553 = vand.u32 %v196, 4294901760
    %v8554 = vsub.f32 %v196, %v8553
    %8555 = vmatpush.msra.mxu0 %v8554
    %v8556 = vand.u32 %v195, 4294901760
    %v8557 = vsub.f32 %v195, %v8556
    %8558 = vmatpush.msra.mxu0 %v8557
    %v8559 = vand.u32 %v194, 4294901760
    %v8560 = vsub.f32 %v194, %v8559
    %8561 = vmatpush.msra.mxu0 %v8560
    %v8562 = vand.u32 %v193, 4294901760
    %v8563 = vsub.f32 %v193, %v8562
    %8564 = vmatpush.msra.mxu0 %v8563
    %v8565 = vand.u32 %v192, 4294901760
    %v8566 = vsub.f32 %v192, %v8565
    %8567 = vmatpush.msra.mxu0 %v8566
    %v8568 = vand.u32 %v191, 4294901760
    %v8569 = vsub.f32 %v191, %v8568
    %8570 = vmatpush.msra.mxu0 %v8569
    %v8571 = vand.u32 %v8387, 4294901760
    %v8572 = vsub.f32 %v8387, %v8571
    %8573 = vmatmul.f32.gmra.mxu0 %v8572
    %v8574 = vpop.f32.mrf.mxu0
    %v8575 = vadd.f32 %v8523, %v8574
    %8576 = vdwg.mxu0
    %8577 = vmatpush.msra.mxu0 0.0
    %v8578 = vand.u32 %v205, 4294901760
    %8579 = vmatpush.msra.mxu0 %v8578
    %v8580 = vand.u32 %v204, 4294901760
    %8581 = vmatpush.msra.mxu0 %v8580
    %v8582 = vand.u32 %v203, 4294901760
    %8583 = vmatpush.msra.mxu0 %v8582
    %v8584 = vand.u32 %v202, 4294901760
    %8585 = vmatpush.msra.mxu0 %v8584
    %v8586 = vand.u32 %v201, 4294901760
    %8587 = vmatpush.msra.mxu0 %v8586
    %v8588 = vand.u32 %v200, 4294901760
    %8589 = vmatpush.msra.mxu0 %v8588
    %v8590 = vand.u32 %v199, 4294901760
    %8591 = vmatpush.msra.mxu0 %v8590
    %v8592 = vand.u32 %v198, 4294901760
    %8593 = vmatpush.msra.mxu0 %v8592
    %v8594 = vand.u32 %v197, 4294901760
    %8595 = vmatpush.msra.mxu0 %v8594
    %v8596 = vand.u32 %v196, 4294901760
    %8597 = vmatpush.msra.mxu0 %v8596
    %v8598 = vand.u32 %v195, 4294901760
    %8599 = vmatpush.msra.mxu0 %v8598
    %v8600 = vand.u32 %v194, 4294901760
    %8601 = vmatpush.msra.mxu0 %v8600
    %v8602 = vand.u32 %v193, 4294901760
    %8603 = vmatpush.msra.mxu0 %v8602
    %v8604 = vand.u32 %v192, 4294901760
    %8605 = vmatpush.msra.mxu0 %v8604
    %v8606 = vand.u32 %v191, 4294901760
    %8607 = vmatpush.msra.mxu0 %v8606
    %v8608 = vand.u32 %v8387, 4294901760
    %v8609 = vsub.f32 %v8387, %v8608
    %v8610 = vand.u32 %v8609, 4294901760
    %8611 = vmatmul.f32.gmra.mxu0 %v8610
    %v8612 = vpop.f32.mrf.mxu0
    %v8613 = vadd.f32 %v8575, %v8612
    %8614 = vdwg.mxu0
    %8615 = vmatpush.msra.mxu0 0.0
    %v8616 = vand.u32 %v205, 4294901760
    %v8617 = vsub.f32 %v205, %v8616
    %v8618 = vand.u32 %v8617, 4294901760
    %8619 = vmatpush.msra.mxu0 %v8618
    %v8620 = vand.u32 %v204, 4294901760
    %v8621 = vsub.f32 %v204, %v8620
    %v8622 = vand.u32 %v8621, 4294901760
    %8623 = vmatpush.msra.mxu0 %v8622
    %v8624 = vand.u32 %v203, 4294901760
    %v8625 = vsub.f32 %v203, %v8624
    %v8626 = vand.u32 %v8625, 4294901760
    %8627 = vmatpush.msra.mxu0 %v8626
    %v8628 = vand.u32 %v202, 4294901760
    %v8629 = vsub.f32 %v202, %v8628
    %v8630 = vand.u32 %v8629, 4294901760
    %8631 = vmatpush.msra.mxu0 %v8630
    %v8632 = vand.u32 %v201, 4294901760
    %v8633 = vsub.f32 %v201, %v8632
    %v8634 = vand.u32 %v8633, 4294901760
    %8635 = vmatpush.msra.mxu0 %v8634
    %v8636 = vand.u32 %v200, 4294901760
    %v8637 = vsub.f32 %v200, %v8636
    %v8638 = vand.u32 %v8637, 4294901760
    %8639 = vmatpush.msra.mxu0 %v8638
    %v8640 = vand.u32 %v199, 4294901760
    %v8641 = vsub.f32 %v199, %v8640
    %v8642 = vand.u32 %v8641, 4294901760
    %8643 = vmatpush.msra.mxu0 %v8642
    %v8644 = vand.u32 %v198, 4294901760
    %v8645 = vsub.f32 %v198, %v8644
    %v8646 = vand.u32 %v8645, 4294901760
    %8647 = vmatpush.msra.mxu0 %v8646
    %v8648 = vand.u32 %v197, 4294901760
    %v8649 = vsub.f32 %v197, %v8648
    %v8650 = vand.u32 %v8649, 4294901760
    %8651 = vmatpush.msra.mxu0 %v8650
    %v8652 = vand.u32 %v196, 4294901760
    %v8653 = vsub.f32 %v196, %v8652
    %v8654 = vand.u32 %v8653, 4294901760
    %8655 = vmatpush.msra.mxu0 %v8654
    %v8656 = vand.u32 %v195, 4294901760
    %v8657 = vsub.f32 %v195, %v8656
    %v8658 = vand.u32 %v8657, 4294901760
    %8659 = vmatpush.msra.mxu0 %v8658
    %v8660 = vand.u32 %v194, 4294901760
    %v8661 = vsub.f32 %v194, %v8660
    %v8662 = vand.u32 %v8661, 4294901760
    %8663 = vmatpush.msra.mxu0 %v8662
    %v8664 = vand.u32 %v193, 4294901760
    %v8665 = vsub.f32 %v193, %v8664
    %v8666 = vand.u32 %v8665, 4294901760
    %8667 = vmatpush.msra.mxu0 %v8666
    %v8668 = vand.u32 %v192, 4294901760
    %v8669 = vsub.f32 %v192, %v8668
    %v8670 = vand.u32 %v8669, 4294901760
    %8671 = vmatpush.msra.mxu0 %v8670
    %v8672 = vand.u32 %v191, 4294901760
    %v8673 = vsub.f32 %v191, %v8672
    %v8674 = vand.u32 %v8673, 4294901760
    %8675 = vmatpush.msra.mxu0 %v8674
    %v8676 = vand.u32 %v8387, 4294901760
    %8677 = vmatmul.f32.gmra.mxu0 %v8676
    %v8678 = vpop.f32.mrf.mxu0
    %v8679 = vadd.f32 %v8613, %v8678
    %8680 = vdwg.mxu0
    %8681 = vmatpush.msra.mxu0 0.0
    %v8682 = vand.u32 %v205, 4294901760
    %8683 = vmatpush.msra.mxu0 %v8682
    %v8684 = vand.u32 %v204, 4294901760
    %8685 = vmatpush.msra.mxu0 %v8684
    %v8686 = vand.u32 %v203, 4294901760
    %8687 = vmatpush.msra.mxu0 %v8686
    %v8688 = vand.u32 %v202, 4294901760
    %8689 = vmatpush.msra.mxu0 %v8688
    %v8690 = vand.u32 %v201, 4294901760
    %8691 = vmatpush.msra.mxu0 %v8690
    %v8692 = vand.u32 %v200, 4294901760
    %8693 = vmatpush.msra.mxu0 %v8692
    %v8694 = vand.u32 %v199, 4294901760
    %8695 = vmatpush.msra.mxu0 %v8694
    %v8696 = vand.u32 %v198, 4294901760
    %8697 = vmatpush.msra.mxu0 %v8696
    %v8698 = vand.u32 %v197, 4294901760
    %8699 = vmatpush.msra.mxu0 %v8698
    %v8700 = vand.u32 %v196, 4294901760
    %8701 = vmatpush.msra.mxu0 %v8700
    %v8702 = vand.u32 %v195, 4294901760
    %8703 = vmatpush.msra.mxu0 %v8702
    %v8704 = vand.u32 %v194, 4294901760
    %8705 = vmatpush.msra.mxu0 %v8704
    %v8706 = vand.u32 %v193, 4294901760
    %8707 = vmatpush.msra.mxu0 %v8706
    %v8708 = vand.u32 %v192, 4294901760
    %8709 = vmatpush.msra.mxu0 %v8708
    %v8710 = vand.u32 %v191, 4294901760
    %8711 = vmatpush.msra.mxu0 %v8710
    %v8712 = vand.u32 %v8387, 4294901760
    %8713 = vmatmul.f32.gmra.mxu0 %v8712
    %v8714 = vpop.f32.mrf.mxu0
    %v8715 = vadd.f32 %v8679, %v8714
    %8716 = vdwg.mxu0
    %v8717 = vmax.f32 %v8715, 0.0
    %v8719 = vsel %vm3933, %v8717, 0
    %v8722 = vsel %vm235, %v216, 0
    %8724 = vmatpush.msra.mxu0 0.0
    %8725 = vmatpush.msra.mxu0 0.0
    %8726 = vmatpush.msra.mxu0 0.0
    %8727 = vmatpush.msra.mxu0 0.0
    %8728 = vmatpush.msra.mxu0 0.0
    %v8729 = vand.u32 %v8722, 4294901760
    %8730 = vmatpush.msra.mxu0 %v8729
    %v8731 = vand.u32 %v215, 4294901760
    %8732 = vmatpush.msra.mxu0 %v8731
    %v8733 = vand.u32 %v214, 4294901760
    %8734 = vmatpush.msra.mxu0 %v8733
    %v8735 = vand.u32 %v213, 4294901760
    %8736 = vmatpush.msra.mxu0 %v8735
    %v8737 = vand.u32 %v212, 4294901760
    %8738 = vmatpush.msra.mxu0 %v8737
    %v8739 = vand.u32 %v211, 4294901760
    %8740 = vmatpush.msra.mxu0 %v8739
    %v8741 = vand.u32 %v210, 4294901760
    %8742 = vmatpush.msra.mxu0 %v8741
    %v8743 = vand.u32 %v209, 4294901760
    %8744 = vmatpush.msra.mxu0 %v8743
    %v8745 = vand.u32 %v208, 4294901760
    %8746 = vmatpush.msra.mxu0 %v8745
    %v8747 = vand.u32 %v207, 4294901760
    %8748 = vmatpush.msra.mxu0 %v8747
    %v8749 = vand.u32 %v206, 4294901760
    %8750 = vmatpush.msra.mxu0 %v8749
    %v8751 = vand.u32 %v8719, 4294901760
    %v8752 = vsub.f32 %v8719, %v8751
    %v8753 = vand.u32 %v8752, 4294901760
    %v8754 = vsub.f32 %v8752, %v8753
    %v8755 = vand.u32 %v8754, 4294901760
    %8756 = vmatmul.f32.gmra.mxu0 %v8755
    %v8757 = vpop.f32.mrf.mxu0
    %v8758 = vadd.f32 %v222, %v8757
    %8759 = vdwg.mxu0
    %8760 = vmatpush.msra.mxu0 0.0
    %8761 = vmatpush.msra.mxu0 0.0
    %8762 = vmatpush.msra.mxu0 0.0
    %8763 = vmatpush.msra.mxu0 0.0
    %8764 = vmatpush.msra.mxu0 0.0
    %v8765 = vand.u32 %v8722, 4294901760
    %v8766 = vsub.f32 %v8722, %v8765
    %v8767 = vand.u32 %v8766, 4294901760
    %v8768 = vsub.f32 %v8766, %v8767
    %v8769 = vand.u32 %v8768, 4294901760
    %8770 = vmatpush.msra.mxu0 %v8769
    %v8771 = vand.u32 %v215, 4294901760
    %v8772 = vsub.f32 %v215, %v8771
    %v8773 = vand.u32 %v8772, 4294901760
    %v8774 = vsub.f32 %v8772, %v8773
    %v8775 = vand.u32 %v8774, 4294901760
    %8776 = vmatpush.msra.mxu0 %v8775
    %v8777 = vand.u32 %v214, 4294901760
    %v8778 = vsub.f32 %v214, %v8777
    %v8779 = vand.u32 %v8778, 4294901760
    %v8780 = vsub.f32 %v8778, %v8779
    %v8781 = vand.u32 %v8780, 4294901760
    %8782 = vmatpush.msra.mxu0 %v8781
    %v8783 = vand.u32 %v213, 4294901760
    %v8784 = vsub.f32 %v213, %v8783
    %v8785 = vand.u32 %v8784, 4294901760
    %v8786 = vsub.f32 %v8784, %v8785
    %v8787 = vand.u32 %v8786, 4294901760
    %8788 = vmatpush.msra.mxu0 %v8787
    %v8789 = vand.u32 %v212, 4294901760
    %v8790 = vsub.f32 %v212, %v8789
    %v8791 = vand.u32 %v8790, 4294901760
    %v8792 = vsub.f32 %v8790, %v8791
    %v8793 = vand.u32 %v8792, 4294901760
    %8794 = vmatpush.msra.mxu0 %v8793
    %v8795 = vand.u32 %v211, 4294901760
    %v8796 = vsub.f32 %v211, %v8795
    %v8797 = vand.u32 %v8796, 4294901760
    %v8798 = vsub.f32 %v8796, %v8797
    %v8799 = vand.u32 %v8798, 4294901760
    %8800 = vmatpush.msra.mxu0 %v8799
    %v8801 = vand.u32 %v210, 4294901760
    %v8802 = vsub.f32 %v210, %v8801
    %v8803 = vand.u32 %v8802, 4294901760
    %v8804 = vsub.f32 %v8802, %v8803
    %v8805 = vand.u32 %v8804, 4294901760
    %8806 = vmatpush.msra.mxu0 %v8805
    %v8807 = vand.u32 %v209, 4294901760
    %v8808 = vsub.f32 %v209, %v8807
    %v8809 = vand.u32 %v8808, 4294901760
    %v8810 = vsub.f32 %v8808, %v8809
    %v8811 = vand.u32 %v8810, 4294901760
    %8812 = vmatpush.msra.mxu0 %v8811
    %v8813 = vand.u32 %v208, 4294901760
    %v8814 = vsub.f32 %v208, %v8813
    %v8815 = vand.u32 %v8814, 4294901760
    %v8816 = vsub.f32 %v8814, %v8815
    %v8817 = vand.u32 %v8816, 4294901760
    %8818 = vmatpush.msra.mxu0 %v8817
    %v8819 = vand.u32 %v207, 4294901760
    %v8820 = vsub.f32 %v207, %v8819
    %v8821 = vand.u32 %v8820, 4294901760
    %v8822 = vsub.f32 %v8820, %v8821
    %v8823 = vand.u32 %v8822, 4294901760
    %8824 = vmatpush.msra.mxu0 %v8823
    %v8825 = vand.u32 %v206, 4294901760
    %v8826 = vsub.f32 %v206, %v8825
    %v8827 = vand.u32 %v8826, 4294901760
    %v8828 = vsub.f32 %v8826, %v8827
    %v8829 = vand.u32 %v8828, 4294901760
    %8830 = vmatpush.msra.mxu0 %v8829
    %v8831 = vand.u32 %v8719, 4294901760
    %8832 = vmatmul.f32.gmra.mxu0 %v8831
    %v8833 = vpop.f32.mrf.mxu0
    %v8834 = vadd.f32 %v8758, %v8833
    %8835 = vdwg.mxu0
    %8836 = vmatpush.msra.mxu0 0.0
    %8837 = vmatpush.msra.mxu0 0.0
    %8838 = vmatpush.msra.mxu0 0.0
    %8839 = vmatpush.msra.mxu0 0.0
    %8840 = vmatpush.msra.mxu0 0.0
    %v8841 = vand.u32 %v8722, 4294901760
    %v8842 = vsub.f32 %v8722, %v8841
    %8843 = vmatpush.msra.mxu0 %v8842
    %v8844 = vand.u32 %v215, 4294901760
    %v8845 = vsub.f32 %v215, %v8844
    %8846 = vmatpush.msra.mxu0 %v8845
    %v8847 = vand.u32 %v214, 4294901760
    %v8848 = vsub.f32 %v214, %v8847
    %8849 = vmatpush.msra.mxu0 %v8848
    %v8850 = vand.u32 %v213, 4294901760
    %v8851 = vsub.f32 %v213, %v8850
    %8852 = vmatpush.msra.mxu0 %v8851
    %v8853 = vand.u32 %v212, 4294901760
    %v8854 = vsub.f32 %v212, %v8853
    %8855 = vmatpush.msra.mxu0 %v8854
    %v8856 = vand.u32 %v211, 4294901760
    %v8857 = vsub.f32 %v211, %v8856
    %8858 = vmatpush.msra.mxu0 %v8857
    %v8859 = vand.u32 %v210, 4294901760
    %v8860 = vsub.f32 %v210, %v8859
    %8861 = vmatpush.msra.mxu0 %v8860
    %v8862 = vand.u32 %v209, 4294901760
    %v8863 = vsub.f32 %v209, %v8862
    %8864 = vmatpush.msra.mxu0 %v8863
    %v8865 = vand.u32 %v208, 4294901760
    %v8866 = vsub.f32 %v208, %v8865
    %8867 = vmatpush.msra.mxu0 %v8866
    %v8868 = vand.u32 %v207, 4294901760
    %v8869 = vsub.f32 %v207, %v8868
    %8870 = vmatpush.msra.mxu0 %v8869
    %v8871 = vand.u32 %v206, 4294901760
    %v8872 = vsub.f32 %v206, %v8871
    %8873 = vmatpush.msra.mxu0 %v8872
    %v8874 = vand.u32 %v8719, 4294901760
    %v8875 = vsub.f32 %v8719, %v8874
    %8876 = vmatmul.f32.gmra.mxu0 %v8875
    %v8877 = vpop.f32.mrf.mxu0
    %v8878 = vadd.f32 %v8834, %v8877
    %8879 = vdwg.mxu0
    %8880 = vmatpush.msra.mxu0 0.0
    %8881 = vmatpush.msra.mxu0 0.0
    %8882 = vmatpush.msra.mxu0 0.0
    %8883 = vmatpush.msra.mxu0 0.0
    %8884 = vmatpush.msra.mxu0 0.0
    %v8885 = vand.u32 %v8722, 4294901760
    %8886 = vmatpush.msra.mxu0 %v8885
    %v8887 = vand.u32 %v215, 4294901760
    %8888 = vmatpush.msra.mxu0 %v8887
    %v8889 = vand.u32 %v214, 4294901760
    %8890 = vmatpush.msra.mxu0 %v8889
    %v8891 = vand.u32 %v213, 4294901760
    %8892 = vmatpush.msra.mxu0 %v8891
    %v8893 = vand.u32 %v212, 4294901760
    %8894 = vmatpush.msra.mxu0 %v8893
    %v8895 = vand.u32 %v211, 4294901760
    %8896 = vmatpush.msra.mxu0 %v8895
    %v8897 = vand.u32 %v210, 4294901760
    %8898 = vmatpush.msra.mxu0 %v8897
    %v8899 = vand.u32 %v209, 4294901760
    %8900 = vmatpush.msra.mxu0 %v8899
    %v8901 = vand.u32 %v208, 4294901760
    %8902 = vmatpush.msra.mxu0 %v8901
    %v8903 = vand.u32 %v207, 4294901760
    %8904 = vmatpush.msra.mxu0 %v8903
    %v8905 = vand.u32 %v206, 4294901760
    %8906 = vmatpush.msra.mxu0 %v8905
    %v8907 = vand.u32 %v8719, 4294901760
    %v8908 = vsub.f32 %v8719, %v8907
    %v8909 = vand.u32 %v8908, 4294901760
    %8910 = vmatmul.f32.gmra.mxu0 %v8909
    %v8911 = vpop.f32.mrf.mxu0
    %v8912 = vadd.f32 %v8878, %v8911
    %8913 = vdwg.mxu0
    %8914 = vmatpush.msra.mxu0 0.0
    %8915 = vmatpush.msra.mxu0 0.0
    %8916 = vmatpush.msra.mxu0 0.0
    %8917 = vmatpush.msra.mxu0 0.0
    %8918 = vmatpush.msra.mxu0 0.0
    %v8919 = vand.u32 %v8722, 4294901760
    %v8920 = vsub.f32 %v8722, %v8919
    %v8921 = vand.u32 %v8920, 4294901760
    %8922 = vmatpush.msra.mxu0 %v8921
    %v8923 = vand.u32 %v215, 4294901760
    %v8924 = vsub.f32 %v215, %v8923
    %v8925 = vand.u32 %v8924, 4294901760
    %8926 = vmatpush.msra.mxu0 %v8925
    %v8927 = vand.u32 %v214, 4294901760
    %v8928 = vsub.f32 %v214, %v8927
    %v8929 = vand.u32 %v8928, 4294901760
    %8930 = vmatpush.msra.mxu0 %v8929
    %v8931 = vand.u32 %v213, 4294901760
    %v8932 = vsub.f32 %v213, %v8931
    %v8933 = vand.u32 %v8932, 4294901760
    %8934 = vmatpush.msra.mxu0 %v8933
    %v8935 = vand.u32 %v212, 4294901760
    %v8936 = vsub.f32 %v212, %v8935
    %v8937 = vand.u32 %v8936, 4294901760
    %8938 = vmatpush.msra.mxu0 %v8937
    %v8939 = vand.u32 %v211, 4294901760
    %v8940 = vsub.f32 %v211, %v8939
    %v8941 = vand.u32 %v8940, 4294901760
    %8942 = vmatpush.msra.mxu0 %v8941
    %v8943 = vand.u32 %v210, 4294901760
    %v8944 = vsub.f32 %v210, %v8943
    %v8945 = vand.u32 %v8944, 4294901760
    %8946 = vmatpush.msra.mxu0 %v8945
    %v8947 = vand.u32 %v209, 4294901760
    %v8948 = vsub.f32 %v209, %v8947
    %v8949 = vand.u32 %v8948, 4294901760
    %8950 = vmatpush.msra.mxu0 %v8949
    %v8951 = vand.u32 %v208, 4294901760
    %v8952 = vsub.f32 %v208, %v8951
    %v8953 = vand.u32 %v8952, 4294901760
    %8954 = vmatpush.msra.mxu0 %v8953
    %v8955 = vand.u32 %v207, 4294901760
    %v8956 = vsub.f32 %v207, %v8955
    %v8957 = vand.u32 %v8956, 4294901760
    %8958 = vmatpush.msra.mxu0 %v8957
    %v8959 = vand.u32 %v206, 4294901760
    %v8960 = vsub.f32 %v206, %v8959
    %v8961 = vand.u32 %v8960, 4294901760
    %8962 = vmatpush.msra.mxu0 %v8961
    %v8963 = vand.u32 %v8719, 4294901760
    %8964 = vmatmul.f32.gmra.mxu0 %v8963
    %v8965 = vpop.f32.mrf.mxu0
    %v8966 = vadd.f32 %v8912, %v8965
    %8967 = vdwg.mxu0
    %8968 = vmatpush.msra.mxu0 0.0
    %8969 = vmatpush.msra.mxu0 0.0
    %8970 = vmatpush.msra.mxu0 0.0
    %8971 = vmatpush.msra.mxu0 0.0
    %8972 = vmatpush.msra.mxu0 0.0
    %v8973 = vand.u32 %v8722, 4294901760
    %8974 = vmatpush.msra.mxu0 %v8973
    %v8975 = vand.u32 %v215, 4294901760
    %8976 = vmatpush.msra.mxu0 %v8975
    %v8977 = vand.u32 %v214, 4294901760
    %8978 = vmatpush.msra.mxu0 %v8977
    %v8979 = vand.u32 %v213, 4294901760
    %8980 = vmatpush.msra.mxu0 %v8979
    %v8981 = vand.u32 %v212, 4294901760
    %8982 = vmatpush.msra.mxu0 %v8981
    %v8983 = vand.u32 %v211, 4294901760
    %8984 = vmatpush.msra.mxu0 %v8983
    %v8985 = vand.u32 %v210, 4294901760
    %8986 = vmatpush.msra.mxu0 %v8985
    %v8987 = vand.u32 %v209, 4294901760
    %8988 = vmatpush.msra.mxu0 %v8987
    %v8989 = vand.u32 %v208, 4294901760
    %8990 = vmatpush.msra.mxu0 %v8989
    %v8991 = vand.u32 %v207, 4294901760
    %8992 = vmatpush.msra.mxu0 %v8991
    %v8993 = vand.u32 %v206, 4294901760
    %8994 = vmatpush.msra.mxu0 %v8993
    %v8995 = vand.u32 %v8719, 4294901760
    %8996 = vmatmul.f32.gmra.mxu0 %v8995
    %v8997 = vpop.f32.mrf.mxu0
    %v8998 = vadd.f32 %v8966, %v8997
    %8999 = vdwg.mxu0
    %vm9000 = vcmask 74752
    %9001 = vst.msk [vmem:[#allocation2] sm:$0x3] %vm9000, %v8998
    // Predicated region
    $region14: #{lenet_forward.1} parent=1 // pred_check
      _
    $region15: #{lenet_forward.1} parent=1 // pred_check_branch
      %9003 = sbr.rel (0) target = $region17
    $region16: #{lenet_forward.1} parent=1 // pred_region
      %9005 = vsyncadd [#allocation3], 0
      %s9007 = sshll.u32 [#allocation2], 4
      %s9008 = int_to_ptr.vmem [resolvable:$true] %s9007
      %s9009 = sshll.u32 %s3, 4
      %s9010 = int_to_ptr.hbm [resolvable:$true] %s9009
      %9012 = dma.vmem_to_hbm [thread:$0]  %s9008, 32, %s9010, [#allocation3]
    $region17: #{lenet_forward.1} parent=1 // pred_fallthru
      _
    // Predicated region
    $region18: #{lenet_forward.1} parent=1 // pred_check
      _
    $region19: #{lenet_forward.1} parent=1 // pred_check_branch
      %9014 = sbr.rel (0) target = $region21
    $region20: #{lenet_forward.1} parent=1 // pred_region
      %9016 = dma.done [#allocation3], 32
    $region21: #{lenet_forward.1} parent=1 // pred_fallthru
      _
    %9017 = vsyncpa [#allocation3], 1

</llo_original>
